<compile_context>
chip_gen: v7x
topology: tpu7x:2x2x1
jax: 0.10.0
libtpu: 0.0.40
codegen_flags: <defaults>
</compile_context>

<pallas_src>
import jax
import jax.numpy as jnp
from jax.experimental import pallas as pl
from jax.experimental.pallas import tpu as pltpu

IMG_DIM = 32 * 32 * 3   # 3072  (lane aligned: 24 * 128)
HID = 200               # logical hidden width of the PyTorch module
HID_PAD = 256           # padded hidden width (lane / MXU aligned)
FF2_PAD = 128           # ff2 logical out-dim 1, padded to one lane tile


def _sigmoid(v):
    # sigmoid(v) = (1 + tanh(v/2)) / 2 : EUP transcendental, no inf transient.
    return 0.5 * (jnp.tanh(0.5 * v) + 1.0)


def net_kernel(scales_ref, img_ref, w1_ref, b1_ref, wff1_ref, bff1_ref,
               wff2_ref, bff2_ref, w2_ref, b2_ref,
               out_ref, sig_ref, tanh_ref, gz_ref):
    f32 = jnp.float32
    bf16 = jnp.bfloat16

    img = img_ref[...]                        # (1, 3072) bf16 (cast host-side)
    s_fc1 = scales_ref[0]                     # per-tensor int8 dequant scales
    s_fc2 = scales_ref[1]                     # (SMEM scalars)

    # x = fc1(img): int8 weight fetch (half the HBM bytes of bf16); the
    # int8 -> bf16 convert is exact and sits on the otherwise-idle VPU.
    w1 = w1_ref[...].astype(bf16)
    x = jnp.dot(img, w1, preferred_element_type=f32) * s_fc1 + b1_ref[...]
    xb = x.astype(bf16)

    # g = ff1(x) ; z = ff2(g)   (only lane 0 of z is the real (1,) output)
    g = jnp.dot(xb, wff1_ref[...], preferred_element_type=f32) + bff1_ref[...]
    z = jnp.dot(g.astype(bf16), wff2_ref[...],
                preferred_element_type=f32) + bff2_ref[...]

    # Small lane-dense outputs consumed by the `while i < 1` loop.
    sig_ref[...] = _sigmoid(x)                # (1, 256)  "fg" used by the loop
    tanh_ref[...] = jnp.tanh(x)               # (1, 256)  "ag" used by the loop
    gz_ref[...] = _sigmoid(z)                 # (1, 128)  lane 0 = increment i0

    # out = sigmoid(fc2(x)) at M=1 (single lane-dense (1, 3072) store).
    w2 = w2_ref[...].astype(bf16)
    out = jnp.dot(xb, w2, preferred_element_type=f32) * s_fc2 + b2_ref[...]
    out_ref[...] = _sigmoid(out)


def _run_kernel(img_bf16, params):
    vmem = pl.BlockSpec(memory_space=pltpu.MemorySpace.VMEM)
    smem = pl.BlockSpec(memory_space=pltpu.MemorySpace.SMEM)
    return pl.pallas_call(
        net_kernel,
        out_shape=(
            jax.ShapeDtypeStruct((1, IMG_DIM), jnp.float32),  # sigmoid(fc2(x))
            jax.ShapeDtypeStruct((1, HID_PAD), jnp.float32),  # sigmoid(x)
            jax.ShapeDtypeStruct((1, HID_PAD), jnp.float32),  # tanh(x)
            jax.ShapeDtypeStruct((1, FF2_PAD), jnp.float32),  # sigmoid(ff2(ff1(x)))
        ),
        in_specs=[smem] + [vmem] * 9,
        out_specs=(vmem, vmem, vmem, vmem),
    )(
        params["scales"],
        img_bf16,
        params["fc1_w"], params["fc1_b"],
        params["ff1_w"], params["ff1_b"],
        params["ff2_w"], params["ff2_b"],
        params["fc2_w"], params["fc2_b"],
    )


@jax.jit
def net_forward(img, params):
    """Returns (out, p_new, counter, i_final) mirroring Net.forward.

    `out` is the tensor the PyTorch module returns; `p_new` is the in-place
    updated nn.Parameter `self.p`; `counter` / `i_final` are the values the
    reference only prints.
    """
    img_b = img.reshape(1, IMG_DIM).astype(jnp.bfloat16)

    out2d, s_pad, t_pad, gz = _run_kernel(img_b, params)

    s1 = s_pad[0, :HID]     # sigmoid(x)  ("fg" actually used by the loop)
    t1 = t_pad[0, :HID]     # tanh(x)     ("ag" actually used by the loop)
    g0 = gz[0, 0]           # sigmoid(ff2(ff1(x)))  -- per-iteration increment
    out = out2d[0]          # (3072,)

    # `while i < 1:` loop.  x never changes inside it, so only `p`, the counter
    # and `i` evolve, and none of them feed the returned tensor.  Kept as a
    # JAX-level while on the ~2.5 KiB of kernel outputs it needs (repeated f32
    # addition, faithful to torch).
    def cond(carry):
        _, i, _ = carry
        return i < 1.0

    def body(carry):
        c, i, p = carry
        p = p * s1          # self.p.data = self.p * fg
        p = p + t1          # self.p.data = self.p + ag
        return c + 1, i + g0, p
        # TODO(synk): torch `print(i)` / `print(f'Counter...')` are host I/O
        # with no Pallas equivalent -- counter/i_final are returned instead.

    counter, i_final, p_new = jax.lax.while_loop(
        cond, body, (jnp.int32(0), g0, params["p"])
    )

    return out.reshape(32, 32, 3), p_new, counter, i_final


def init_params(key):
    """Deterministic torch-nn.Linear-like init; fc1/fc2 int8 + scale, rest bf16/f32."""
    ks = jax.random.split(key, 16)

    def torch_linear(kw, kb, fan_in, fan_out):
        bound = 1.0 / (float(fan_in) ** 0.5)
        w = jax.random.uniform(kw, (fan_in, fan_out), jnp.float32, -bound, bound)
        b = jax.random.uniform(kb, (1, fan_out), jnp.float32, -bound, bound)
        return w, b

    def pad2(a, rows, cols):
        # Zero-fill padding so padded lanes never contaminate downstream dots.
        return jnp.zeros((rows, cols), a.dtype).at[:a.shape[0], :a.shape[1]].set(a)

    def quant_int8(w):
        amax = jnp.max(jnp.abs(w))
        scale = amax / 127.0
        wq = jnp.round(w / scale).astype(jnp.int8)
        return wq, scale

    fc1_w, fc1_b = torch_linear(ks[0], ks[1], IMG_DIM, HID)
    fc2_w, fc2_b = torch_linear(ks[2], ks[3], HID, IMG_DIM)
    ff1_w, ff1_b = torch_linear(ks[4], ks[5], HID, HID)
    ff2_w, ff2_b = torch_linear(ks[6], ks[7], HID, 1)
    # forget_gate / add_gate: defined by the module but their outputs are
    # overwritten by sigmoid(x)/tanh(x) in the reference (dead compute) --
    # initialized for shape fidelity only, never run in the kernel.
    fg_w, fg_b = torch_linear(ks[8], ks[9], HID, HID)
    ag_w, ag_b = torch_linear(ks[10], ks[11], HID, HID)

    fc1_q, fc1_s = quant_int8(fc1_w)
    fc2_q, fc2_s = quant_int8(fc2_w)

    return {
        "p": jax.random.normal(ks[12], (HID,), jnp.float32),
        "p2": jax.random.normal(ks[13], (IMG_DIM,), jnp.float32),  # unused in fwd
        "scales": jnp.stack([fc1_s, fc2_s]).astype(jnp.float32),   # SMEM scalars
        "fc1_w": pad2(fc1_q, IMG_DIM, HID_PAD),                    # int8
        "fc1_b": pad2(fc1_b, 1, HID_PAD),                          # f32
        "fc2_w": pad2(fc2_q, HID_PAD, IMG_DIM),                    # int8
        "fc2_b": fc2_b,                                            # (1, 3072) f32
        "ff1_w": pad2(ff1_w, HID_PAD, HID_PAD).astype(jnp.bfloat16),
        "ff1_b": pad2(ff1_b, 1, HID_PAD),
        "ff2_w": pad2(ff2_w, HID_PAD, FF2_PAD).astype(jnp.bfloat16),
        "ff2_b": pad2(ff2_b, 1, FF2_PAD),
        "forget_w": fg_w.astype(jnp.bfloat16), "forget_b": fg_b,   # dead compute
        "add_w": ag_w.astype(jnp.bfloat16), "add_b": ag_b,         # dead compute
    }


def ref_forward(img, params):
    """Pure-JAX f32 reference using the same dequantized int8 weights."""
    img_f = img.reshape(1, IMG_DIM).astype(jnp.float32)
    w1 = params["fc1_w"].astype(jnp.float32) * params["scales"][0]
    x = img_f @ w1 + params["fc1_b"]
    w2 = params["fc2_w"].astype(jnp.float32) * params["scales"][1]
    out = jax.nn.sigmoid(x @ w2 + params["fc2_b"])
    return out[0].reshape(32, 32, 3)


if __name__ == "__main__":
    key = jax.random.PRNGKey(0)
    pkey, xkey = jax.random.split(key)
    params = init_params(pkey)

    img = jax.random.normal(xkey, (IMG_DIM,), jnp.float32)  # flat 32*32*3 image

    out, p_new, counter, i_final = net_forward(img, params)
    jax.block_until_ready((out, p_new, counter, i_final))

    # Correctness: compare against a pure-JAX f32 reference that uses the same
    # dequantized weights (tolerance covers bf16 activation rounding only).
    ref = ref_forward(img, params)
    err = float(jnp.max(jnp.abs(out - ref)))

    assert out.shape == (32, 32, 3) and out.dtype == jnp.float32
    assert bool(jnp.all(jnp.isfinite(out)))
    assert p_new.shape == (HID,) and bool(jnp.all(jnp.isfinite(p_new)))
    assert err < 2e-2, f"max |out - ref| = {err}"
    print("KERNEL_OK")
</pallas_src>

<mosaic_0001>
module attributes {stable_mosaic.version = 11 : i64} {
  func.func @net_kernel(%arg0: memref<2xf32, #tpu.memory_space<smem>>, %arg1: memref<1x3072xbf16, #tpu.memory_space<vmem>>, %arg2: memref<3072x256xi8, #tpu.memory_space<vmem>>, %arg3: memref<1x256xf32, #tpu.memory_space<vmem>>, %arg4: memref<256x256xbf16, #tpu.memory_space<vmem>>, %arg5: memref<1x256xf32, #tpu.memory_space<vmem>>, %arg6: memref<256x128xbf16, #tpu.memory_space<vmem>>, %arg7: memref<1x128xf32, #tpu.memory_space<vmem>>, %arg8: memref<256x3072xi8, #tpu.memory_space<vmem>>, %arg9: memref<1x3072xf32, #tpu.memory_space<vmem>>, %arg10: memref<1x3072xf32, #tpu.memory_space<vmem>>, %arg11: memref<1x256xf32, #tpu.memory_space<vmem>>, %arg12: memref<1x256xf32, #tpu.memory_space<vmem>>, %arg13: memref<1x128xf32, #tpu.memory_space<vmem>>) attributes {dimension_semantics = [], scalar_prefetch = 0 : i64, scratch_operands = 0 : i64, tpu.core_type = #tpu.core_type<tc>} {
    %c0 = arith.constant 0 : index
    %c0_0 = arith.constant 0 : index
    %0 = vector.load %arg1[%c0, %c0_0] : memref<1x3072xbf16, #tpu.memory_space<vmem>>, vector<1x3072xbf16>
    %c0_1 = arith.constant 0 : index
    %1 = memref.load %arg0[%c0_1] : memref<2xf32, #tpu.memory_space<smem>>
    %c1 = arith.constant 1 : index
    %2 = memref.load %arg0[%c1] : memref<2xf32, #tpu.memory_space<smem>>
    %c0_2 = arith.constant 0 : index
    %c0_3 = arith.constant 0 : index
    %3 = vector.load %arg2[%c0_2, %c0_3] : memref<3072x256xi8, #tpu.memory_space<vmem>>, vector<3072x256xi8>
    %4 = arith.sitofp %3 : vector<3072x256xi8> to vector<3072x256xbf16>
    %cst = arith.constant dense<0.000000e+00> : vector<1x256xf32>
    %5 = tpu.matmul %0, %4, %cst {dimension_numbers = #tpu.dot_dimension_numbers<[1], [0], [0], [1], [0, 0, 1, 1], [], []>} : vector<1x3072xbf16>, vector<3072x256xbf16>, vector<1x256xf32> -> vector<1x256xf32>
    %6 = vector.broadcast %1 : f32 to vector<1x256xf32>
    %7 = arith.mulf %5, %6 : vector<1x256xf32>
    %c0_4 = arith.constant 0 : index
    %c0_5 = arith.constant 0 : index
    %8 = vector.load %arg3[%c0_4, %c0_5] : memref<1x256xf32, #tpu.memory_space<vmem>>, vector<1x256xf32>
    %9 = arith.addf %7, %8 : vector<1x256xf32>
    %10 = arith.truncf %9 : vector<1x256xf32> to vector<1x256xbf16>
    %c0_6 = arith.constant 0 : index
    %c0_7 = arith.constant 0 : index
    %11 = vector.load %arg4[%c0_6, %c0_7] : memref<256x256xbf16, #tpu.memory_space<vmem>>, vector<256x256xbf16>
    %cst_8 = arith.constant dense<0.000000e+00> : vector<1x256xf32>
    %12 = tpu.matmul %10, %11, %cst_8 {dimension_numbers = #tpu.dot_dimension_numbers<[1], [0], [0], [1], [0, 0, 1, 1], [], []>} : vector<1x256xbf16>, vector<256x256xbf16>, vector<1x256xf32> -> vector<1x256xf32>
    %c0_9 = arith.constant 0 : index
    %c0_10 = arith.constant 0 : index
    %13 = vector.load %arg5[%c0_9, %c0_10] : memref<1x256xf32, #tpu.memory_space<vmem>>, vector<1x256xf32>
    %14 = arith.addf %12, %13 : vector<1x256xf32>
    %15 = arith.truncf %14 : vector<1x256xf32> to vector<1x256xbf16>
    %c0_11 = arith.constant 0 : index
    %c0_12 = arith.constant 0 : index
    %16 = vector.load %arg6[%c0_11, %c0_12] : memref<256x128xbf16, #tpu.memory_space<vmem>>, vector<256x128xbf16>
    %cst_13 = arith.constant dense<0.000000e+00> : vector<1x128xf32>
    %17 = tpu.matmul %15, %16, %cst_13 {dimension_numbers = #tpu.dot_dimension_numbers<[1], [0], [0], [1], [0, 0, 1, 1], [], []>} : vector<1x256xbf16>, vector<256x128xbf16>, vector<1x128xf32> -> vector<1x128xf32>
    %c0_14 = arith.constant 0 : index
    %c0_15 = arith.constant 0 : index
    %18 = vector.load %arg7[%c0_14, %c0_15] : memref<1x128xf32, #tpu.memory_space<vmem>>, vector<1x128xf32>
    %19 = arith.addf %17, %18 : vector<1x128xf32>
    %cst_16 = arith.constant 5.000000e-01 : f32
    %20 = vector.broadcast %cst_16 : f32 to vector<1x256xf32>
    %21 = arith.mulf %20, %9 : vector<1x256xf32>
    %22 = math.tanh %21 : vector<1x256xf32>
    %cst_17 = arith.constant 1.000000e+00 : f32
    %23 = vector.broadcast %cst_17 : f32 to vector<1x256xf32>
    %24 = arith.addf %22, %23 : vector<1x256xf32>
    %cst_18 = arith.constant 5.000000e-01 : f32
    %25 = vector.broadcast %cst_18 : f32 to vector<1x256xf32>
    %26 = arith.mulf %25, %24 : vector<1x256xf32>
    %c0_19 = arith.constant 0 : index
    %c0_20 = arith.constant 0 : index
    %27 = vector.load %arg11[%c0_19, %c0_20] : memref<1x256xf32, #tpu.memory_space<vmem>>, vector<1x256xf32>
    tpu.vector_store %arg11[%c0_19, %c0_20], %26 {strides = array<i32>} : memref<1x256xf32, #tpu.memory_space<vmem>>, vector<1x256xf32>,
    %28 = math.tanh %9 : vector<1x256xf32>
    %c0_21 = arith.constant 0 : index
    %c0_22 = arith.constant 0 : index
    %29 = vector.load %arg12[%c0_21, %c0_22] : memref<1x256xf32, #tpu.memory_space<vmem>>, vector<1x256xf32>
    tpu.vector_store %arg12[%c0_21, %c0_22], %28 {strides = array<i32>} : memref<1x256xf32, #tpu.memory_space<vmem>>, vector<1x256xf32>,
    %cst_23 = arith.constant 5.000000e-01 : f32
    %30 = vector.broadcast %cst_23 : f32 to vector<1x128xf32>
    %31 = arith.mulf %30, %19 : vector<1x128xf32>
    %32 = math.tanh %31 : vector<1x128xf32>
    %cst_24 = arith.constant 1.000000e+00 : f32
    %33 = vector.broadcast %cst_24 : f32 to vector<1x128xf32>
    %34 = arith.addf %32, %33 : vector<1x128xf32>
    %cst_25 = arith.constant 5.000000e-01 : f32
    %35 = vector.broadcast %cst_25 : f32 to vector<1x128xf32>
    %36 = arith.mulf %35, %34 : vector<1x128xf32>
    %c0_26 = arith.constant 0 : index
    %c0_27 = arith.constant 0 : index
    %37 = vector.load %arg13[%c0_26, %c0_27] : memref<1x128xf32, #tpu.memory_space<vmem>>, vector<1x128xf32>
    tpu.vector_store %arg13[%c0_26, %c0_27], %36 {strides = array<i32>} : memref<1x128xf32, #tpu.memory_space<vmem>>, vector<1x128xf32>,
    %c0_28 = arith.constant 0 : index
    %c0_29 = arith.constant 0 : index
    %38 = vector.load %arg8[%c0_28, %c0_29] : memref<256x3072xi8, #tpu.memory_space<vmem>>, vector<256x3072xi8>
    %39 = arith.sitofp %38 : vector<256x3072xi8> to vector<256x3072xbf16>
    %cst_30 = arith.constant dense<0.000000e+00> : vector<1x3072xf32>
    %40 = tpu.matmul %10, %39, %cst_30 {dimension_numbers = #tpu.dot_dimension_numbers<[1], [0], [0], [1], [0, 0, 1, 1], [], []>} : vector<1x256xbf16>, vector<256x3072xbf16>, vector<1x3072xf32> -> vector<1x3072xf32>
    %41 = vector.broadcast %2 : f32 to vector<1x3072xf32>
    %42 = arith.mulf %40, %41 : vector<1x3072xf32>
    %c0_31 = arith.constant 0 : index
    %c0_32 = arith.constant 0 : index
    %43 = vector.load %arg9[%c0_31, %c0_32] : memref<1x3072xf32, #tpu.memory_space<vmem>>, vector<1x3072xf32>
    %44 = arith.addf %42, %43 : vector<1x3072xf32>
    %cst_33 = arith.constant 5.000000e-01 : f32
    %45 = vector.broadcast %cst_33 : f32 to vector<1x3072xf32>
    %46 = arith.mulf %45, %44 : vector<1x3072xf32>
    %47 = math.tanh %46 : vector<1x3072xf32>
    %cst_34 = arith.constant 1.000000e+00 : f32
    %48 = vector.broadcast %cst_34 : f32 to vector<1x3072xf32>
    %49 = arith.addf %47, %48 : vector<1x3072xf32>
    %cst_35 = arith.constant 5.000000e-01 : f32
    %50 = vector.broadcast %cst_35 : f32 to vector<1x3072xf32>
    %51 = arith.mulf %50, %49 : vector<1x3072xf32>
    %c0_36 = arith.constant 0 : index
    %c0_37 = arith.constant 0 : index
    %52 = vector.load %arg10[%c0_36, %c0_37] : memref<1x3072xf32, #tpu.memory_space<vmem>>, vector<1x3072xf32>
    tpu.vector_store %arg10[%c0_36, %c0_37], %51 {strides = array<i32>} : memref<1x3072xf32, #tpu.memory_space<vmem>>, vector<1x3072xf32>,
    return
  }
}

</mosaic_0001>

<llo_original>
// kernel: squeeze.7
$region0: #{squeeze.7}
  %s0 = inlined_call_operand.vmem [shape: f32[3072], index: 0, kind: input, shape index: {}]
  %s1 = inlined_call_operand.vmem [shape: f32[32,32,3], index: 1, kind: output, shape index: {}]
  %v2 = vld [vmem:[%s0] ss:$3 sm:$0xff]
  %vm3 = vcmask 23552
  %4 = vst.msk [vmem:[%s1] sm:$0x1] %vm3, %v2
  %s5 = scalar_lea.vmem %s1, 127
  %6 = vst.msk [vmem:[%s5] sm:$0x2] %vm3, %v2
  %s7 = scalar_lea.vmem %s1, 254
  %8 = vst.msk [vmem:[%s7] sm:$0x4] %vm3, %v2
  %s9 = scalar_lea.vmem %s1, 381
  %10 = vst.msk [vmem:[%s9] sm:$0x8] %vm3, %v2
  %s11 = scalar_lea.vmem %s1, 508
  %12 = vst.msk [vmem:[%s11] sm:$0x10] %vm3, %v2
  %s13 = scalar_lea.vmem %s1, 635
  %14 = vst.msk [vmem:[%s13] sm:$0x20] %vm3, %v2
  %s15 = scalar_lea.vmem %s1, 762
  %16 = vst.msk [vmem:[%s15] sm:$0x40] %vm3, %v2
  %s17 = scalar_lea.vmem %s1, 889
  %18 = vst.msk [vmem:[%s17] sm:$0x80] %vm3, %v2
  %s19 = scalar_lea.vmem %s0, 1
  %v20 = vld [vmem:[%s19] ss:$3 sm:$0xff]
  %21 = vrot.lane.b32.xlu0 %v20, 127
  %v22 = vpop.permute.xlu0 %21
  %vm23 = vcmask 23552
  %s24 = scalar_lea.vmem %s1, 43
  %25 = vst.msk [vmem:[%s24] sm:$0x1] %vm23, %v22
  %s26 = scalar_lea.vmem %s1, 170
  %27 = vst.msk [vmem:[%s26] sm:$0x2] %vm23, %v22
  %s28 = scalar_lea.vmem %s1, 297
  %29 = vst.msk [vmem:[%s28] sm:$0x4] %vm23, %v22
  %s30 = scalar_lea.vmem %s1, 424
  %31 = vst.msk [vmem:[%s30] sm:$0x8] %vm23, %v22
  %s32 = scalar_lea.vmem %s1, 551
  %33 = vst.msk [vmem:[%s32] sm:$0x10] %vm23, %v22
  %s34 = scalar_lea.vmem %s1, 678
  %35 = vst.msk [vmem:[%s34] sm:$0x20] %vm23, %v22
  %s36 = scalar_lea.vmem %s1, 805
  %37 = vst.msk [vmem:[%s36] sm:$0x40] %vm23, %v22
  %s38 = scalar_lea.vmem %s1, 932
  %39 = vst.msk [vmem:[%s38] sm:$0x80] %vm23, %v22
  %s40 = scalar_lea.vmem %s0, 2
  %v41 = vld [vmem:[%s40] ss:$3 sm:$0xff]
  %42 = vrot.lane.b32.xlu0 %v41, 126
  %v43 = vpop.permute.xlu0 %42
  %vm44 = vcmask 23552
  %s45 = scalar_lea.vmem %s1, 86
  %46 = vst.msk [vmem:[%s45] sm:$0x1] %vm44, %v43
  %s47 = scalar_lea.vmem %s1, 213
  %48 = vst.msk [vmem:[%s47] sm:$0x2] %vm44, %v43
  %s49 = scalar_lea.vmem %s1, 340
  %50 = vst.msk [vmem:[%s49] sm:$0x4] %vm44, %v43
  %s51 = scalar_lea.vmem %s1, 467
  %52 = vst.msk [vmem:[%s51] sm:$0x8] %vm44, %v43
  %s53 = scalar_lea.vmem %s1, 594
  %54 = vst.msk [vmem:[%s53] sm:$0x10] %vm44, %v43
  %s55 = scalar_lea.vmem %s1, 721
  %56 = vst.msk [vmem:[%s55] sm:$0x20] %vm44, %v43
  %s57 = scalar_lea.vmem %s1, 848
  %58 = vst.msk [vmem:[%s57] sm:$0x40] %vm44, %v43
  %s59 = scalar_lea.vmem %s1, 975
  %60 = vst.msk [vmem:[%s59] sm:$0x80] %vm44, %v43
  %v61 = vld [vmem:[%s0] ss:$3 sm:$0xff]
  %62 = vrot.lane.b32.xlu0 %v61, 125
  %v63 = vpop.permute.xlu0 %62
  %vm64 = vcmask 23552
  %s65 = scalar_lea.vmem %s1, 1
  %66 = vst.msk [vmem:[%s65] sm:$0x1] %vm64, %v63
  %s67 = scalar_lea.vmem %s1, 128
  %68 = vst.msk [vmem:[%s67] sm:$0x2] %vm64, %v63
  %s69 = scalar_lea.vmem %s1, 255
  %70 = vst.msk [vmem:[%s69] sm:$0x4] %vm64, %v63
  %s71 = scalar_lea.vmem %s1, 382
  %72 = vst.msk [vmem:[%s71] sm:$0x8] %vm64, %v63
  %s73 = scalar_lea.vmem %s1, 509
  %74 = vst.msk [vmem:[%s73] sm:$0x10] %vm64, %v63
  %s75 = scalar_lea.vmem %s1, 636
  %76 = vst.msk [vmem:[%s75] sm:$0x20] %vm64, %v63
  %s77 = scalar_lea.vmem %s1, 763
  %78 = vst.msk [vmem:[%s77] sm:$0x40] %vm64, %v63
  %s79 = scalar_lea.vmem %s1, 890
  %80 = vst.msk [vmem:[%s79] sm:$0x80] %vm64, %v63
  %s81 = scalar_lea.vmem %s0, 1
  %v82 = vld [vmem:[%s81] ss:$3 sm:$0xff]
  %83 = vrot.lane.b32.xlu0 %v82, 124
  %v84 = vpop.permute.xlu0 %83
  %vm85 = vcmask 23552
  %s86 = scalar_lea.vmem %s1, 44
  %87 = vst.msk [vmem:[%s86] sm:$0x1] %vm85, %v84
  %s88 = scalar_lea.vmem %s1, 171
  %89 = vst.msk [vmem:[%s88] sm:$0x2] %vm85, %v84
  %s90 = scalar_lea.vmem %s1, 298
  %91 = vst.msk [vmem:[%s90] sm:$0x4] %vm85, %v84
  %s92 = scalar_lea.vmem %s1, 425
  %93 = vst.msk [vmem:[%s92] sm:$0x8] %vm85, %v84
  %s94 = scalar_lea.vmem %s1, 552
  %95 = vst.msk [vmem:[%s94] sm:$0x10] %vm85, %v84
  %s96 = scalar_lea.vmem %s1, 679
  %97 = vst.msk [vmem:[%s96] sm:$0x20] %vm85, %v84
  %s98 = scalar_lea.vmem %s1, 806
  %99 = vst.msk [vmem:[%s98] sm:$0x40] %vm85, %v84
  %s100 = scalar_lea.vmem %s1, 933
  %101 = vst.msk [vmem:[%s100] sm:$0x80] %vm85, %v84
  %s102 = scalar_lea.vmem %s0, 2
  %v103 = vld [vmem:[%s102] ss:$3 sm:$0xff]
  %104 = vrot.lane.b32.xlu0 %v103, 123
  %v105 = vpop.permute.xlu0 %104
  %vm106 = vcmask 23552
  %s107 = scalar_lea.vmem %s1, 87
  %108 = vst.msk [vmem:[%s107] sm:$0x1] %vm106, %v105
  %s109 = scalar_lea.vmem %s1, 214
  %110 = vst.msk [vmem:[%s109] sm:$0x2] %vm106, %v105
  %s111 = scalar_lea.vmem %s1, 341
  %112 = vst.msk [vmem:[%s111] sm:$0x4] %vm106, %v105
  %s113 = scalar_lea.vmem %s1, 468
  %114 = vst.msk [vmem:[%s113] sm:$0x8] %vm106, %v105
  %s115 = scalar_lea.vmem %s1, 595
  %116 = vst.msk [vmem:[%s115] sm:$0x10] %vm106, %v105
  %s117 = scalar_lea.vmem %s1, 722
  %118 = vst.msk [vmem:[%s117] sm:$0x20] %vm106, %v105
  %s119 = scalar_lea.vmem %s1, 849
  %120 = vst.msk [vmem:[%s119] sm:$0x40] %vm106, %v105
  %s121 = scalar_lea.vmem %s1, 976
  %122 = vst.msk [vmem:[%s121] sm:$0x80] %vm106, %v105
  %v123 = vld [vmem:[%s0] ss:$3 sm:$0xff]
  %124 = vrot.lane.b32.xlu0 %v123, 122
  %v125 = vpop.permute.xlu0 %124
  %vm126 = vcmask 23552
  %s127 = scalar_lea.vmem %s1, 2
  %128 = vst.msk [vmem:[%s127] sm:$0x1] %vm126, %v125
  %s129 = scalar_lea.vmem %s1, 129
  %130 = vst.msk [vmem:[%s129] sm:$0x2] %vm126, %v125
  %s131 = scalar_lea.vmem %s1, 256
  %132 = vst.msk [vmem:[%s131] sm:$0x4] %vm126, %v125
  %s133 = scalar_lea.vmem %s1, 383
  %134 = vst.msk [vmem:[%s133] sm:$0x8] %vm126, %v125
  %s135 = scalar_lea.vmem %s1, 510
  %136 = vst.msk [vmem:[%s135] sm:$0x10] %vm126, %v125
  %s137 = scalar_lea.vmem %s1, 637
  %138 = vst.msk [vmem:[%s137] sm:$0x20] %vm126, %v125
  %s139 = scalar_lea.vmem %s1, 764
  %140 = vst.msk [vmem:[%s139] sm:$0x40] %vm126, %v125
  %s141 = scalar_lea.vmem %s1, 891
  %142 = vst.msk [vmem:[%s141] sm:$0x80] %vm126, %v125
  %s143 = scalar_lea.vmem %s0, 1
  %v144 = vld [vmem:[%s143] ss:$3 sm:$0xff]
  %145 = vrot.lane.b32.xlu0 %v144, 121
  %v146 = vpop.permute.xlu0 %145
  %vm147 = vcmask 23552
  %s148 = scalar_lea.vmem %s1, 45
  %149 = vst.msk [vmem:[%s148] sm:$0x1] %vm147, %v146
  %s150 = scalar_lea.vmem %s1, 172
  %151 = vst.msk [vmem:[%s150] sm:$0x2] %vm147, %v146
  %s152 = scalar_lea.vmem %s1, 299
  %153 = vst.msk [vmem:[%s152] sm:$0x4] %vm147, %v146
  %s154 = scalar_lea.vmem %s1, 426
  %155 = vst.msk [vmem:[%s154] sm:$0x8] %vm147, %v146
  %s156 = scalar_lea.vmem %s1, 553
  %157 = vst.msk [vmem:[%s156] sm:$0x10] %vm147, %v146
  %s158 = scalar_lea.vmem %s1, 680
  %159 = vst.msk [vmem:[%s158] sm:$0x20] %vm147, %v146
  %s160 = scalar_lea.vmem %s1, 807
  %161 = vst.msk [vmem:[%s160] sm:$0x40] %vm147, %v146
  %s162 = scalar_lea.vmem %s1, 934
  %163 = vst.msk [vmem:[%s162] sm:$0x80] %vm147, %v146
  %s164 = scalar_lea.vmem %s0, 2
  %v165 = vld [vmem:[%s164] ss:$3 sm:$0xff]
  %166 = vrot.lane.b32.xlu0 %v165, 120
  %v167 = vpop.permute.xlu0 %166
  %vm168 = vcmask 23552
  %s169 = scalar_lea.vmem %s1, 88
  %170 = vst.msk [vmem:[%s169] sm:$0x1] %vm168, %v167
  %s171 = scalar_lea.vmem %s1, 215
  %172 = vst.msk [vmem:[%s171] sm:$0x2] %vm168, %v167
  %s173 = scalar_lea.vmem %s1, 342
  %174 = vst.msk [vmem:[%s173] sm:$0x4] %vm168, %v167
  %s175 = scalar_lea.vmem %s1, 469
  %176 = vst.msk [vmem:[%s175] sm:$0x8] %vm168, %v167
  %s177 = scalar_lea.vmem %s1, 596
  %178 = vst.msk [vmem:[%s177] sm:$0x10] %vm168, %v167
  %s179 = scalar_lea.vmem %s1, 723
  %180 = vst.msk [vmem:[%s179] sm:$0x20] %vm168, %v167
  %s181 = scalar_lea.vmem %s1, 850
  %182 = vst.msk [vmem:[%s181] sm:$0x40] %vm168, %v167
  %s183 = scalar_lea.vmem %s1, 977
  %184 = vst.msk [vmem:[%s183] sm:$0x80] %vm168, %v167
  %v185 = vld [vmem:[%s0] ss:$3 sm:$0xff]
  %186 = vrot.lane.b32.xlu0 %v185, 119
  %v187 = vpop.permute.xlu0 %186
  %vm188 = vcmask 23552
  %s189 = scalar_lea.vmem %s1, 3
  %190 = vst.msk [vmem:[%s189] sm:$0x1] %vm188, %v187
  %s191 = scalar_lea.vmem %s1, 130
  %192 = vst.msk [vmem:[%s191] sm:$0x2] %vm188, %v187
  %s193 = scalar_lea.vmem %s1, 257
  %194 = vst.msk [vmem:[%s193] sm:$0x4] %vm188, %v187
  %s195 = scalar_lea.vmem %s1, 384
  %196 = vst.msk [vmem:[%s195] sm:$0x8] %vm188, %v187
  %s197 = scalar_lea.vmem %s1, 511
  %198 = vst.msk [vmem:[%s197] sm:$0x10] %vm188, %v187
  %s199 = scalar_lea.vmem %s1, 638
  %200 = vst.msk [vmem:[%s199] sm:$0x20] %vm188, %v187
  %s201 = scalar_lea.vmem %s1, 765
  %202 = vst.msk [vmem:[%s201] sm:$0x40] %vm188, %v187
  %s203 = scalar_lea.vmem %s1, 892
  %204 = vst.msk [vmem:[%s203] sm:$0x80] %vm188, %v187
  %s205 = scalar_lea.vmem %s0, 1
  %v206 = vld [vmem:[%s205] ss:$3 sm:$0xff]
  %207 = vrot.lane.b32.xlu0 %v206, 118
  %v208 = vpop.permute.xlu0 %207
  %vm209 = vcmask 23552
  %s210 = scalar_lea.vmem %s1, 46
  %211 = vst.msk [vmem:[%s210] sm:$0x1] %vm209, %v208
  %s212 = scalar_lea.vmem %s1, 173
  %213 = vst.msk [vmem:[%s212] sm:$0x2] %vm209, %v208
  %s214 = scalar_lea.vmem %s1, 300
  %215 = vst.msk [vmem:[%s214] sm:$0x4] %vm209, %v208
  %s216 = scalar_lea.vmem %s1, 427
  %217 = vst.msk [vmem:[%s216] sm:$0x8] %vm209, %v208
  %s218 = scalar_lea.vmem %s1, 554
  %219 = vst.msk [vmem:[%s218] sm:$0x10] %vm209, %v208
  %s220 = scalar_lea.vmem %s1, 681
  %221 = vst.msk [vmem:[%s220] sm:$0x20] %vm209, %v208
  %s222 = scalar_lea.vmem %s1, 808
  %223 = vst.msk [vmem:[%s222] sm:$0x40] %vm209, %v208
  %s224 = scalar_lea.vmem %s1, 935
  %225 = vst.msk [vmem:[%s224] sm:$0x80] %vm209, %v208
  %s226 = scalar_lea.vmem %s0, 2
  %v227 = vld [vmem:[%s226] ss:$3 sm:$0xff]
  %228 = vrot.lane.b32.xlu0 %v227, 117
  %v229 = vpop.permute.xlu0 %228
  %vm230 = vcmask 23552
  %s231 = scalar_lea.vmem %s1, 89
  %232 = vst.msk [vmem:[%s231] sm:$0x1] %vm230, %v229
  %s233 = scalar_lea.vmem %s1, 216
  %234 = vst.msk [vmem:[%s233] sm:$0x2] %vm230, %v229
  %s235 = scalar_lea.vmem %s1, 343
  %236 = vst.msk [vmem:[%s235] sm:$0x4] %vm230, %v229
  %s237 = scalar_lea.vmem %s1, 470
  %238 = vst.msk [vmem:[%s237] sm:$0x8] %vm230, %v229
  %s239 = scalar_lea.vmem %s1, 597
  %240 = vst.msk [vmem:[%s239] sm:$0x10] %vm230, %v229
  %s241 = scalar_lea.vmem %s1, 724
  %242 = vst.msk [vmem:[%s241] sm:$0x20] %vm230, %v229
  %s243 = scalar_lea.vmem %s1, 851
  %244 = vst.msk [vmem:[%s243] sm:$0x40] %vm230, %v229
  %s245 = scalar_lea.vmem %s1, 978
  %246 = vst.msk [vmem:[%s245] sm:$0x80] %vm230, %v229
  %v247 = vld [vmem:[%s0] ss:$3 sm:$0xff]
  %248 = vrot.lane.b32.xlu0 %v247, 116
  %v249 = vpop.permute.xlu0 %248
  %vm250 = vcmask 23552
  %s251 = scalar_lea.vmem %s1, 4
  %252 = vst.msk [vmem:[%s251] sm:$0x1] %vm250, %v249
  %s253 = scalar_lea.vmem %s1, 131
  %254 = vst.msk [vmem:[%s253] sm:$0x2] %vm250, %v249
  %s255 = scalar_lea.vmem %s1, 258
  %256 = vst.msk [vmem:[%s255] sm:$0x4] %vm250, %v249
  %s257 = scalar_lea.vmem %s1, 385
  %258 = vst.msk [vmem:[%s257] sm:$0x8] %vm250, %v249
  %s259 = scalar_lea.vmem %s1, 512
  %260 = vst.msk [vmem:[%s259] sm:$0x10] %vm250, %v249
  %s261 = scalar_lea.vmem %s1, 639
  %262 = vst.msk [vmem:[%s261] sm:$0x20] %vm250, %v249
  %s263 = scalar_lea.vmem %s1, 766
  %264 = vst.msk [vmem:[%s263] sm:$0x40] %vm250, %v249
  %s265 = scalar_lea.vmem %s1, 893
  %266 = vst.msk [vmem:[%s265] sm:$0x80] %vm250, %v249
  %s267 = scalar_lea.vmem %s0, 1
  %v268 = vld [vmem:[%s267] ss:$3 sm:$0xff]
  %269 = vrot.lane.b32.xlu0 %v268, 115
  %v270 = vpop.permute.xlu0 %269
  %vm271 = vcmask 23552
  %s272 = scalar_lea.vmem %s1, 47
  %273 = vst.msk [vmem:[%s272] sm:$0x1] %vm271, %v270
  %s274 = scalar_lea.vmem %s1, 174
  %275 = vst.msk [vmem:[%s274] sm:$0x2] %vm271, %v270
  %s276 = scalar_lea.vmem %s1, 301
  %277 = vst.msk [vmem:[%s276] sm:$0x4] %vm271, %v270
  %s278 = scalar_lea.vmem %s1, 428
  %279 = vst.msk [vmem:[%s278] sm:$0x8] %vm271, %v270
  %s280 = scalar_lea.vmem %s1, 555
  %281 = vst.msk [vmem:[%s280] sm:$0x10] %vm271, %v270
  %s282 = scalar_lea.vmem %s1, 682
  %283 = vst.msk [vmem:[%s282] sm:$0x20] %vm271, %v270
  %s284 = scalar_lea.vmem %s1, 809
  %285 = vst.msk [vmem:[%s284] sm:$0x40] %vm271, %v270
  %s286 = scalar_lea.vmem %s1, 936
  %287 = vst.msk [vmem:[%s286] sm:$0x80] %vm271, %v270
  %s288 = scalar_lea.vmem %s0, 2
  %v289 = vld [vmem:[%s288] ss:$3 sm:$0xff]
  %290 = vrot.lane.b32.xlu0 %v289, 114
  %v291 = vpop.permute.xlu0 %290
  %vm292 = vcmask 23552
  %s293 = scalar_lea.vmem %s1, 90
  %294 = vst.msk [vmem:[%s293] sm:$0x1] %vm292, %v291
  %s295 = scalar_lea.vmem %s1, 217
  %296 = vst.msk [vmem:[%s295] sm:$0x2] %vm292, %v291
  %s297 = scalar_lea.vmem %s1, 344
  %298 = vst.msk [vmem:[%s297] sm:$0x4] %vm292, %v291
  %s299 = scalar_lea.vmem %s1, 471
  %300 = vst.msk [vmem:[%s299] sm:$0x8] %vm292, %v291
  %s301 = scalar_lea.vmem %s1, 598
  %302 = vst.msk [vmem:[%s301] sm:$0x10] %vm292, %v291
  %s303 = scalar_lea.vmem %s1, 725
  %304 = vst.msk [vmem:[%s303] sm:$0x20] %vm292, %v291
  %s305 = scalar_lea.vmem %s1, 852
  %306 = vst.msk [vmem:[%s305] sm:$0x40] %vm292, %v291
  %s307 = scalar_lea.vmem %s1, 979
  %308 = vst.msk [vmem:[%s307] sm:$0x80] %vm292, %v291
  %v309 = vld [vmem:[%s0] ss:$3 sm:$0xff]
  %310 = vrot.lane.b32.xlu0 %v309, 113
  %v311 = vpop.permute.xlu0 %310
  %vm312 = vcmask 23552
  %s313 = scalar_lea.vmem %s1, 5
  %314 = vst.msk [vmem:[%s313] sm:$0x1] %vm312, %v311
  %s315 = scalar_lea.vmem %s1, 132
  %316 = vst.msk [vmem:[%s315] sm:$0x2] %vm312, %v311
  %s317 = scalar_lea.vmem %s1, 259
  %318 = vst.msk [vmem:[%s317] sm:$0x4] %vm312, %v311
  %s319 = scalar_lea.vmem %s1, 386
  %320 = vst.msk [vmem:[%s319] sm:$0x8] %vm312, %v311
  %s321 = scalar_lea.vmem %s1, 513
  %322 = vst.msk [vmem:[%s321] sm:$0x10] %vm312, %v311
  %s323 = scalar_lea.vmem %s1, 640
  %324 = vst.msk [vmem:[%s323] sm:$0x20] %vm312, %v311
  %s325 = scalar_lea.vmem %s1, 767
  %326 = vst.msk [vmem:[%s325] sm:$0x40] %vm312, %v311
  %s327 = scalar_lea.vmem %s1, 894
  %328 = vst.msk [vmem:[%s327] sm:$0x80] %vm312, %v311
  %s329 = scalar_lea.vmem %s0, 1
  %v330 = vld [vmem:[%s329] ss:$3 sm:$0xff]
  %331 = vrot.lane.b32.xlu0 %v330, 112
  %v332 = vpop.permute.xlu0 %331
  %vm333 = vcmask 23552
  %s334 = scalar_lea.vmem %s1, 48
  %335 = vst.msk [vmem:[%s334] sm:$0x1] %vm333, %v332
  %s336 = scalar_lea.vmem %s1, 175
  %337 = vst.msk [vmem:[%s336] sm:$0x2] %vm333, %v332
  %s338 = scalar_lea.vmem %s1, 302
  %339 = vst.msk [vmem:[%s338] sm:$0x4] %vm333, %v332
  %s340 = scalar_lea.vmem %s1, 429
  %341 = vst.msk [vmem:[%s340] sm:$0x8] %vm333, %v332
  %s342 = scalar_lea.vmem %s1, 556
  %343 = vst.msk [vmem:[%s342] sm:$0x10] %vm333, %v332
  %s344 = scalar_lea.vmem %s1, 683
  %345 = vst.msk [vmem:[%s344] sm:$0x20] %vm333, %v332
  %s346 = scalar_lea.vmem %s1, 810
  %347 = vst.msk [vmem:[%s346] sm:$0x40] %vm333, %v332
  %s348 = scalar_lea.vmem %s1, 937
  %349 = vst.msk [vmem:[%s348] sm:$0x80] %vm333, %v332
  %s350 = scalar_lea.vmem %s0, 2
  %v351 = vld [vmem:[%s350] ss:$3 sm:$0xff]
  %352 = vrot.lane.b32.xlu0 %v351, 111
  %v353 = vpop.permute.xlu0 %352
  %vm354 = vcmask 23552
  %s355 = scalar_lea.vmem %s1, 91
  %356 = vst.msk [vmem:[%s355] sm:$0x1] %vm354, %v353
  %s357 = scalar_lea.vmem %s1, 218
  %358 = vst.msk [vmem:[%s357] sm:$0x2] %vm354, %v353
  %s359 = scalar_lea.vmem %s1, 345
  %360 = vst.msk [vmem:[%s359] sm:$0x4] %vm354, %v353
  %s361 = scalar_lea.vmem %s1, 472
  %362 = vst.msk [vmem:[%s361] sm:$0x8] %vm354, %v353
  %s363 = scalar_lea.vmem %s1, 599
  %364 = vst.msk [vmem:[%s363] sm:$0x10] %vm354, %v353
  %s365 = scalar_lea.vmem %s1, 726
  %366 = vst.msk [vmem:[%s365] sm:$0x20] %vm354, %v353
  %s367 = scalar_lea.vmem %s1, 853
  %368 = vst.msk [vmem:[%s367] sm:$0x40] %vm354, %v353
  %s369 = scalar_lea.vmem %s1, 980
  %370 = vst.msk [vmem:[%s369] sm:$0x80] %vm354, %v353
  %v371 = vld [vmem:[%s0] ss:$3 sm:$0xff]
  %372 = vrot.lane.b32.xlu0 %v371, 110
  %v373 = vpop.permute.xlu0 %372
  %vm374 = vcmask 23552
  %s375 = scalar_lea.vmem %s1, 6
  %376 = vst.msk [vmem:[%s375] sm:$0x1] %vm374, %v373
  %s377 = scalar_lea.vmem %s1, 133
  %378 = vst.msk [vmem:[%s377] sm:$0x2] %vm374, %v373
  %s379 = scalar_lea.vmem %s1, 260
  %380 = vst.msk [vmem:[%s379] sm:$0x4] %vm374, %v373
  %s381 = scalar_lea.vmem %s1, 387
  %382 = vst.msk [vmem:[%s381] sm:$0x8] %vm374, %v373
  %s383 = scalar_lea.vmem %s1, 514
  %384 = vst.msk [vmem:[%s383] sm:$0x10] %vm374, %v373
  %s385 = scalar_lea.vmem %s1, 641
  %386 = vst.msk [vmem:[%s385] sm:$0x20] %vm374, %v373
  %s387 = scalar_lea.vmem %s1, 768
  %388 = vst.msk [vmem:[%s387] sm:$0x40] %vm374, %v373
  %s389 = scalar_lea.vmem %s1, 895
  %390 = vst.msk [vmem:[%s389] sm:$0x80] %vm374, %v373
  %s391 = scalar_lea.vmem %s0, 1
  %v392 = vld [vmem:[%s391] ss:$3 sm:$0xff]
  %393 = vrot.lane.b32.xlu0 %v392, 109
  %v394 = vpop.permute.xlu0 %393
  %vm395 = vcmask 23552
  %s396 = scalar_lea.vmem %s1, 49
  %397 = vst.msk [vmem:[%s396] sm:$0x1] %vm395, %v394
  %s398 = scalar_lea.vmem %s1, 176
  %399 = vst.msk [vmem:[%s398] sm:$0x2] %vm395, %v394
  %s400 = scalar_lea.vmem %s1, 303
  %401 = vst.msk [vmem:[%s400] sm:$0x4] %vm395, %v394
  %s402 = scalar_lea.vmem %s1, 430
  %403 = vst.msk [vmem:[%s402] sm:$0x8] %vm395, %v394
  %s404 = scalar_lea.vmem %s1, 557
  %405 = vst.msk [vmem:[%s404] sm:$0x10] %vm395, %v394
  %s406 = scalar_lea.vmem %s1, 684
  %407 = vst.msk [vmem:[%s406] sm:$0x20] %vm395, %v394
  %s408 = scalar_lea.vmem %s1, 811
  %409 = vst.msk [vmem:[%s408] sm:$0x40] %vm395, %v394
  %s410 = scalar_lea.vmem %s1, 938
  %411 = vst.msk [vmem:[%s410] sm:$0x80] %vm395, %v394
  %s412 = scalar_lea.vmem %s0, 2
  %v413 = vld [vmem:[%s412] ss:$3 sm:$0xff]
  %414 = vrot.lane.b32.xlu0 %v413, 108
  %v415 = vpop.permute.xlu0 %414
  %vm416 = vcmask 23552
  %s417 = scalar_lea.vmem %s1, 92
  %418 = vst.msk [vmem:[%s417] sm:$0x1] %vm416, %v415
  %s419 = scalar_lea.vmem %s1, 219
  %420 = vst.msk [vmem:[%s419] sm:$0x2] %vm416, %v415
  %s421 = scalar_lea.vmem %s1, 346
  %422 = vst.msk [vmem:[%s421] sm:$0x4] %vm416, %v415
  %s423 = scalar_lea.vmem %s1, 473
  %424 = vst.msk [vmem:[%s423] sm:$0x8] %vm416, %v415
  %s425 = scalar_lea.vmem %s1, 600
  %426 = vst.msk [vmem:[%s425] sm:$0x10] %vm416, %v415
  %s427 = scalar_lea.vmem %s1, 727
  %428 = vst.msk [vmem:[%s427] sm:$0x20] %vm416, %v415
  %s429 = scalar_lea.vmem %s1, 854
  %430 = vst.msk [vmem:[%s429] sm:$0x40] %vm416, %v415
  %s431 = scalar_lea.vmem %s1, 981
  %432 = vst.msk [vmem:[%s431] sm:$0x80] %vm416, %v415
  %v433 = vld [vmem:[%s0] ss:$3 sm:$0xff]
  %434 = vrot.lane.b32.xlu0 %v433, 107
  %v435 = vpop.permute.xlu0 %434
  %vm436 = vcmask 23552
  %s437 = scalar_lea.vmem %s1, 7
  %438 = vst.msk [vmem:[%s437] sm:$0x1] %vm436, %v435
  %s439 = scalar_lea.vmem %s1, 134
  %440 = vst.msk [vmem:[%s439] sm:$0x2] %vm436, %v435
  %s441 = scalar_lea.vmem %s1, 261
  %442 = vst.msk [vmem:[%s441] sm:$0x4] %vm436, %v435
  %s443 = scalar_lea.vmem %s1, 388
  %444 = vst.msk [vmem:[%s443] sm:$0x8] %vm436, %v435
  %s445 = scalar_lea.vmem %s1, 515
  %446 = vst.msk [vmem:[%s445] sm:$0x10] %vm436, %v435
  %s447 = scalar_lea.vmem %s1, 642
  %448 = vst.msk [vmem:[%s447] sm:$0x20] %vm436, %v435
  %s449 = scalar_lea.vmem %s1, 769
  %450 = vst.msk [vmem:[%s449] sm:$0x40] %vm436, %v435
  %s451 = scalar_lea.vmem %s1, 896
  %452 = vst.msk [vmem:[%s451] sm:$0x80] %vm436, %v435
  %s453 = scalar_lea.vmem %s0, 1
  %v454 = vld [vmem:[%s453] ss:$3 sm:$0xff]
  %455 = vrot.lane.b32.xlu0 %v454, 106
  %v456 = vpop.permute.xlu0 %455
  %vm457 = vcmask 23552
  %s458 = scalar_lea.vmem %s1, 50
  %459 = vst.msk [vmem:[%s458] sm:$0x1] %vm457, %v456
  %s460 = scalar_lea.vmem %s1, 177
  %461 = vst.msk [vmem:[%s460] sm:$0x2] %vm457, %v456
  %s462 = scalar_lea.vmem %s1, 304
  %463 = vst.msk [vmem:[%s462] sm:$0x4] %vm457, %v456
  %s464 = scalar_lea.vmem %s1, 431
  %465 = vst.msk [vmem:[%s464] sm:$0x8] %vm457, %v456
  %s466 = scalar_lea.vmem %s1, 558
  %467 = vst.msk [vmem:[%s466] sm:$0x10] %vm457, %v456
  %s468 = scalar_lea.vmem %s1, 685
  %469 = vst.msk [vmem:[%s468] sm:$0x20] %vm457, %v456
  %s470 = scalar_lea.vmem %s1, 812
  %471 = vst.msk [vmem:[%s470] sm:$0x40] %vm457, %v456
  %s472 = scalar_lea.vmem %s1, 939
  %473 = vst.msk [vmem:[%s472] sm:$0x80] %vm457, %v456
  %s474 = scalar_lea.vmem %s0, 2
  %v475 = vld [vmem:[%s474] ss:$3 sm:$0xff]
  %476 = vrot.lane.b32.xlu0 %v475, 105
  %v477 = vpop.permute.xlu0 %476
  %vm478 = vcmask 23552
  %s479 = scalar_lea.vmem %s1, 93
  %480 = vst.msk [vmem:[%s479] sm:$0x1] %vm478, %v477
  %s481 = scalar_lea.vmem %s1, 220
  %482 = vst.msk [vmem:[%s481] sm:$0x2] %vm478, %v477
  %s483 = scalar_lea.vmem %s1, 347
  %484 = vst.msk [vmem:[%s483] sm:$0x4] %vm478, %v477
  %s485 = scalar_lea.vmem %s1, 474
  %486 = vst.msk [vmem:[%s485] sm:$0x8] %vm478, %v477
  %s487 = scalar_lea.vmem %s1, 601
  %488 = vst.msk [vmem:[%s487] sm:$0x10] %vm478, %v477
  %s489 = scalar_lea.vmem %s1, 728
  %490 = vst.msk [vmem:[%s489] sm:$0x20] %vm478, %v477
  %s491 = scalar_lea.vmem %s1, 855
  %492 = vst.msk [vmem:[%s491] sm:$0x40] %vm478, %v477
  %s493 = scalar_lea.vmem %s1, 982
  %494 = vst.msk [vmem:[%s493] sm:$0x80] %vm478, %v477
  %v495 = vld [vmem:[%s0] ss:$3 sm:$0xff]
  %496 = vrot.lane.b32.xlu0 %v495, 104
  %v497 = vpop.permute.xlu0 %496
  %vm498 = vcmask 23552
  %s499 = scalar_lea.vmem %s1, 8
  %500 = vst.msk [vmem:[%s499] sm:$0x1] %vm498, %v497
  %s501 = scalar_lea.vmem %s1, 135
  %502 = vst.msk [vmem:[%s501] sm:$0x2] %vm498, %v497
  %s503 = scalar_lea.vmem %s1, 262
  %504 = vst.msk [vmem:[%s503] sm:$0x4] %vm498, %v497
  %s505 = scalar_lea.vmem %s1, 389
  %506 = vst.msk [vmem:[%s505] sm:$0x8] %vm498, %v497
  %s507 = scalar_lea.vmem %s1, 516
  %508 = vst.msk [vmem:[%s507] sm:$0x10] %vm498, %v497
  %s509 = scalar_lea.vmem %s1, 643
  %510 = vst.msk [vmem:[%s509] sm:$0x20] %vm498, %v497
  %s511 = scalar_lea.vmem %s1, 770
  %512 = vst.msk [vmem:[%s511] sm:$0x40] %vm498, %v497
  %s513 = scalar_lea.vmem %s1, 897
  %514 = vst.msk [vmem:[%s513] sm:$0x80] %vm498, %v497
  %s515 = scalar_lea.vmem %s0, 1
  %v516 = vld [vmem:[%s515] ss:$3 sm:$0xff]
  %517 = vrot.lane.b32.xlu0 %v516, 103
  %v518 = vpop.permute.xlu0 %517
  %vm519 = vcmask 23552
  %s520 = scalar_lea.vmem %s1, 51
  %521 = vst.msk [vmem:[%s520] sm:$0x1] %vm519, %v518
  %s522 = scalar_lea.vmem %s1, 178
  %523 = vst.msk [vmem:[%s522] sm:$0x2] %vm519, %v518
  %s524 = scalar_lea.vmem %s1, 305
  %525 = vst.msk [vmem:[%s524] sm:$0x4] %vm519, %v518
  %s526 = scalar_lea.vmem %s1, 432
  %527 = vst.msk [vmem:[%s526] sm:$0x8] %vm519, %v518
  %s528 = scalar_lea.vmem %s1, 559
  %529 = vst.msk [vmem:[%s528] sm:$0x10] %vm519, %v518
  %s530 = scalar_lea.vmem %s1, 686
  %531 = vst.msk [vmem:[%s530] sm:$0x20] %vm519, %v518
  %s532 = scalar_lea.vmem %s1, 813
  %533 = vst.msk [vmem:[%s532] sm:$0x40] %vm519, %v518
  %s534 = scalar_lea.vmem %s1, 940
  %535 = vst.msk [vmem:[%s534] sm:$0x80] %vm519, %v518
  %s536 = scalar_lea.vmem %s0, 2
  %v537 = vld [vmem:[%s536] ss:$3 sm:$0xff]
  %538 = vrot.lane.b32.xlu0 %v537, 102
  %v539 = vpop.permute.xlu0 %538
  %vm540 = vcmask 23552
  %s541 = scalar_lea.vmem %s1, 94
  %542 = vst.msk [vmem:[%s541] sm:$0x1] %vm540, %v539
  %s543 = scalar_lea.vmem %s1, 221
  %544 = vst.msk [vmem:[%s543] sm:$0x2] %vm540, %v539
  %s545 = scalar_lea.vmem %s1, 348
  %546 = vst.msk [vmem:[%s545] sm:$0x4] %vm540, %v539
  %s547 = scalar_lea.vmem %s1, 475
  %548 = vst.msk [vmem:[%s547] sm:$0x8] %vm540, %v539
  %s549 = scalar_lea.vmem %s1, 602
  %550 = vst.msk [vmem:[%s549] sm:$0x10] %vm540, %v539
  %s551 = scalar_lea.vmem %s1, 729
  %552 = vst.msk [vmem:[%s551] sm:$0x20] %vm540, %v539
  %s553 = scalar_lea.vmem %s1, 856
  %554 = vst.msk [vmem:[%s553] sm:$0x40] %vm540, %v539
  %s555 = scalar_lea.vmem %s1, 983
  %556 = vst.msk [vmem:[%s555] sm:$0x80] %vm540, %v539
  %v557 = vld [vmem:[%s0] ss:$3 sm:$0xff]
  %558 = vrot.lane.b32.xlu0 %v557, 101
  %v559 = vpop.permute.xlu0 %558
  %vm560 = vcmask 23552
  %s561 = scalar_lea.vmem %s1, 9
  %562 = vst.msk [vmem:[%s561] sm:$0x1] %vm560, %v559
  %s563 = scalar_lea.vmem %s1, 136
  %564 = vst.msk [vmem:[%s563] sm:$0x2] %vm560, %v559
  %s565 = scalar_lea.vmem %s1, 263
  %566 = vst.msk [vmem:[%s565] sm:$0x4] %vm560, %v559
  %s567 = scalar_lea.vmem %s1, 390
  %568 = vst.msk [vmem:[%s567] sm:$0x8] %vm560, %v559
  %s569 = scalar_lea.vmem %s1, 517
  %570 = vst.msk [vmem:[%s569] sm:$0x10] %vm560, %v559
  %s571 = scalar_lea.vmem %s1, 644
  %572 = vst.msk [vmem:[%s571] sm:$0x20] %vm560, %v559
  %s573 = scalar_lea.vmem %s1, 771
  %574 = vst.msk [vmem:[%s573] sm:$0x40] %vm560, %v559
  %s575 = scalar_lea.vmem %s1, 898
  %576 = vst.msk [vmem:[%s575] sm:$0x80] %vm560, %v559
  %s577 = scalar_lea.vmem %s0, 1
  %v578 = vld [vmem:[%s577] ss:$3 sm:$0xff]
  %579 = vrot.lane.b32.xlu0 %v578, 100
  %v580 = vpop.permute.xlu0 %579
  %vm581 = vcmask 23552
  %s582 = scalar_lea.vmem %s1, 52
  %583 = vst.msk [vmem:[%s582] sm:$0x1] %vm581, %v580
  %s584 = scalar_lea.vmem %s1, 179
  %585 = vst.msk [vmem:[%s584] sm:$0x2] %vm581, %v580
  %s586 = scalar_lea.vmem %s1, 306
  %587 = vst.msk [vmem:[%s586] sm:$0x4] %vm581, %v580
  %s588 = scalar_lea.vmem %s1, 433
  %589 = vst.msk [vmem:[%s588] sm:$0x8] %vm581, %v580
  %s590 = scalar_lea.vmem %s1, 560
  %591 = vst.msk [vmem:[%s590] sm:$0x10] %vm581, %v580
  %s592 = scalar_lea.vmem %s1, 687
  %593 = vst.msk [vmem:[%s592] sm:$0x20] %vm581, %v580
  %s594 = scalar_lea.vmem %s1, 814
  %595 = vst.msk [vmem:[%s594] sm:$0x40] %vm581, %v580
  %s596 = scalar_lea.vmem %s1, 941
  %597 = vst.msk [vmem:[%s596] sm:$0x80] %vm581, %v580
  %s598 = scalar_lea.vmem %s0, 2
  %v599 = vld [vmem:[%s598] ss:$3 sm:$0xff]
  %600 = vrot.lane.b32.xlu0 %v599, 99
  %v601 = vpop.permute.xlu0 %600
  %vm602 = vcmask 23552
  %s603 = scalar_lea.vmem %s1, 95
  %604 = vst.msk [vmem:[%s603] sm:$0x1] %vm602, %v601
  %s605 = scalar_lea.vmem %s1, 222
  %606 = vst.msk [vmem:[%s605] sm:$0x2] %vm602, %v601
  %s607 = scalar_lea.vmem %s1, 349
  %608 = vst.msk [vmem:[%s607] sm:$0x4] %vm602, %v601
  %s609 = scalar_lea.vmem %s1, 476
  %610 = vst.msk [vmem:[%s609] sm:$0x8] %vm602, %v601
  %s611 = scalar_lea.vmem %s1, 603
  %612 = vst.msk [vmem:[%s611] sm:$0x10] %vm602, %v601
  %s613 = scalar_lea.vmem %s1, 730
  %614 = vst.msk [vmem:[%s613] sm:$0x20] %vm602, %v601
  %s615 = scalar_lea.vmem %s1, 857
  %616 = vst.msk [vmem:[%s615] sm:$0x40] %vm602, %v601
  %s617 = scalar_lea.vmem %s1, 984
  %618 = vst.msk [vmem:[%s617] sm:$0x80] %vm602, %v601
  %v619 = vld [vmem:[%s0] ss:$3 sm:$0xff]
  %620 = vrot.lane.b32.xlu0 %v619, 98
  %v621 = vpop.permute.xlu0 %620
  %vm622 = vcmask 23552
  %s623 = scalar_lea.vmem %s1, 10
  %624 = vst.msk [vmem:[%s623] sm:$0x1] %vm622, %v621
  %s625 = scalar_lea.vmem %s1, 137
  %626 = vst.msk [vmem:[%s625] sm:$0x2] %vm622, %v621
  %s627 = scalar_lea.vmem %s1, 264
  %628 = vst.msk [vmem:[%s627] sm:$0x4] %vm622, %v621
  %s629 = scalar_lea.vmem %s1, 391
  %630 = vst.msk [vmem:[%s629] sm:$0x8] %vm622, %v621
  %s631 = scalar_lea.vmem %s1, 518
  %632 = vst.msk [vmem:[%s631] sm:$0x10] %vm622, %v621
  %s633 = scalar_lea.vmem %s1, 645
  %634 = vst.msk [vmem:[%s633] sm:$0x20] %vm622, %v621
  %s635 = scalar_lea.vmem %s1, 772
  %636 = vst.msk [vmem:[%s635] sm:$0x40] %vm622, %v621
  %s637 = scalar_lea.vmem %s1, 899
  %638 = vst.msk [vmem:[%s637] sm:$0x80] %vm622, %v621
  %s639 = scalar_lea.vmem %s0, 1
  %v640 = vld [vmem:[%s639] ss:$3 sm:$0xff]
  %641 = vrot.lane.b32.xlu0 %v640, 97
  %v642 = vpop.permute.xlu0 %641
  %vm643 = vcmask 23552
  %s644 = scalar_lea.vmem %s1, 53
  %645 = vst.msk [vmem:[%s644] sm:$0x1] %vm643, %v642
  %s646 = scalar_lea.vmem %s1, 180
  %647 = vst.msk [vmem:[%s646] sm:$0x2] %vm643, %v642
  %s648 = scalar_lea.vmem %s1, 307
  %649 = vst.msk [vmem:[%s648] sm:$0x4] %vm643, %v642
  %s650 = scalar_lea.vmem %s1, 434
  %651 = vst.msk [vmem:[%s650] sm:$0x8] %vm643, %v642
  %s652 = scalar_lea.vmem %s1, 561
  %653 = vst.msk [vmem:[%s652] sm:$0x10] %vm643, %v642
  %s654 = scalar_lea.vmem %s1, 688
  %655 = vst.msk [vmem:[%s654] sm:$0x20] %vm643, %v642
  %s656 = scalar_lea.vmem %s1, 815
  %657 = vst.msk [vmem:[%s656] sm:$0x40] %vm643, %v642
  %s658 = scalar_lea.vmem %s1, 942
  %659 = vst.msk [vmem:[%s658] sm:$0x80] %vm643, %v642
  %s660 = scalar_lea.vmem %s0, 2
  %v661 = vld [vmem:[%s660] ss:$3 sm:$0xff]
  %662 = vrot.lane.b32.xlu0 %v661, 96
  %v663 = vpop.permute.xlu0 %662
  %vm664 = vcmask 23552
  %s665 = scalar_lea.vmem %s1, 96
  %666 = vst.msk [vmem:[%s665] sm:$0x1] %vm664, %v663
  %s667 = scalar_lea.vmem %s1, 223
  %668 = vst.msk [vmem:[%s667] sm:$0x2] %vm664, %v663
  %s669 = scalar_lea.vmem %s1, 350
  %670 = vst.msk [vmem:[%s669] sm:$0x4] %vm664, %v663
  %s671 = scalar_lea.vmem %s1, 477
  %672 = vst.msk [vmem:[%s671] sm:$0x8] %vm664, %v663
  %s673 = scalar_lea.vmem %s1, 604
  %674 = vst.msk [vmem:[%s673] sm:$0x10] %vm664, %v663
  %s675 = scalar_lea.vmem %s1, 731
  %676 = vst.msk [vmem:[%s675] sm:$0x20] %vm664, %v663
  %s677 = scalar_lea.vmem %s1, 858
  %678 = vst.msk [vmem:[%s677] sm:$0x40] %vm664, %v663
  %s679 = scalar_lea.vmem %s1, 985
  %680 = vst.msk [vmem:[%s679] sm:$0x80] %vm664, %v663
  %v681 = vld [vmem:[%s0] ss:$3 sm:$0xff]
  %682 = vrot.lane.b32.xlu0 %v681, 95
  %v683 = vpop.permute.xlu0 %682
  %vm684 = vcmask 23552
  %s685 = scalar_lea.vmem %s1, 11
  %686 = vst.msk [vmem:[%s685] sm:$0x1] %vm684, %v683
  %s687 = scalar_lea.vmem %s1, 138
  %688 = vst.msk [vmem:[%s687] sm:$0x2] %vm684, %v683
  %s689 = scalar_lea.vmem %s1, 265
  %690 = vst.msk [vmem:[%s689] sm:$0x4] %vm684, %v683
  %s691 = scalar_lea.vmem %s1, 392
  %692 = vst.msk [vmem:[%s691] sm:$0x8] %vm684, %v683
  %s693 = scalar_lea.vmem %s1, 519
  %694 = vst.msk [vmem:[%s693] sm:$0x10] %vm684, %v683
  %s695 = scalar_lea.vmem %s1, 646
  %696 = vst.msk [vmem:[%s695] sm:$0x20] %vm684, %v683
  %s697 = scalar_lea.vmem %s1, 773
  %698 = vst.msk [vmem:[%s697] sm:$0x40] %vm684, %v683
  %s699 = scalar_lea.vmem %s1, 900
  %700 = vst.msk [vmem:[%s699] sm:$0x80] %vm684, %v683
  %s701 = scalar_lea.vmem %s0, 1
  %v702 = vld [vmem:[%s701] ss:$3 sm:$0xff]
  %703 = vrot.lane.b32.xlu0 %v702, 94
  %v704 = vpop.permute.xlu0 %703
  %vm705 = vcmask 23552
  %s706 = scalar_lea.vmem %s1, 54
  %707 = vst.msk [vmem:[%s706] sm:$0x1] %vm705, %v704
  %s708 = scalar_lea.vmem %s1, 181
  %709 = vst.msk [vmem:[%s708] sm:$0x2] %vm705, %v704
  %s710 = scalar_lea.vmem %s1, 308
  %711 = vst.msk [vmem:[%s710] sm:$0x4] %vm705, %v704
  %s712 = scalar_lea.vmem %s1, 435
  %713 = vst.msk [vmem:[%s712] sm:$0x8] %vm705, %v704
  %s714 = scalar_lea.vmem %s1, 562
  %715 = vst.msk [vmem:[%s714] sm:$0x10] %vm705, %v704
  %s716 = scalar_lea.vmem %s1, 689
  %717 = vst.msk [vmem:[%s716] sm:$0x20] %vm705, %v704
  %s718 = scalar_lea.vmem %s1, 816
  %719 = vst.msk [vmem:[%s718] sm:$0x40] %vm705, %v704
  %s720 = scalar_lea.vmem %s1, 943
  %721 = vst.msk [vmem:[%s720] sm:$0x80] %vm705, %v704
  %s722 = scalar_lea.vmem %s0, 2
  %v723 = vld [vmem:[%s722] ss:$3 sm:$0xff]
  %724 = vrot.lane.b32.xlu0 %v723, 93
  %v725 = vpop.permute.xlu0 %724
  %vm726 = vcmask 23552
  %s727 = scalar_lea.vmem %s1, 97
  %728 = vst.msk [vmem:[%s727] sm:$0x1] %vm726, %v725
  %s729 = scalar_lea.vmem %s1, 224
  %730 = vst.msk [vmem:[%s729] sm:$0x2] %vm726, %v725
  %s731 = scalar_lea.vmem %s1, 351
  %732 = vst.msk [vmem:[%s731] sm:$0x4] %vm726, %v725
  %s733 = scalar_lea.vmem %s1, 478
  %734 = vst.msk [vmem:[%s733] sm:$0x8] %vm726, %v725
  %s735 = scalar_lea.vmem %s1, 605
  %736 = vst.msk [vmem:[%s735] sm:$0x10] %vm726, %v725
  %s737 = scalar_lea.vmem %s1, 732
  %738 = vst.msk [vmem:[%s737] sm:$0x20] %vm726, %v725
  %s739 = scalar_lea.vmem %s1, 859
  %740 = vst.msk [vmem:[%s739] sm:$0x40] %vm726, %v725
  %s741 = scalar_lea.vmem %s1, 986
  %742 = vst.msk [vmem:[%s741] sm:$0x80] %vm726, %v725
  %v743 = vld [vmem:[%s0] ss:$3 sm:$0xff]
  %744 = vrot.lane.b32.xlu0 %v743, 92
  %v745 = vpop.permute.xlu0 %744
  %vm746 = vcmask 23552
  %s747 = scalar_lea.vmem %s1, 12
  %748 = vst.msk [vmem:[%s747] sm:$0x1] %vm746, %v745
  %s749 = scalar_lea.vmem %s1, 139
  %750 = vst.msk [vmem:[%s749] sm:$0x2] %vm746, %v745
  %s751 = scalar_lea.vmem %s1, 266
  %752 = vst.msk [vmem:[%s751] sm:$0x4] %vm746, %v745
  %s753 = scalar_lea.vmem %s1, 393
  %754 = vst.msk [vmem:[%s753] sm:$0x8] %vm746, %v745
  %s755 = scalar_lea.vmem %s1, 520
  %756 = vst.msk [vmem:[%s755] sm:$0x10] %vm746, %v745
  %s757 = scalar_lea.vmem %s1, 647
  %758 = vst.msk [vmem:[%s757] sm:$0x20] %vm746, %v745
  %s759 = scalar_lea.vmem %s1, 774
  %760 = vst.msk [vmem:[%s759] sm:$0x40] %vm746, %v745
  %s761 = scalar_lea.vmem %s1, 901
  %762 = vst.msk [vmem:[%s761] sm:$0x80] %vm746, %v745
  %s763 = scalar_lea.vmem %s0, 1
  %v764 = vld [vmem:[%s763] ss:$3 sm:$0xff]
  %765 = vrot.lane.b32.xlu0 %v764, 91
  %v766 = vpop.permute.xlu0 %765
  %vm767 = vcmask 23552
  %s768 = scalar_lea.vmem %s1, 55
  %769 = vst.msk [vmem:[%s768] sm:$0x1] %vm767, %v766
  %s770 = scalar_lea.vmem %s1, 182
  %771 = vst.msk [vmem:[%s770] sm:$0x2] %vm767, %v766
  %s772 = scalar_lea.vmem %s1, 309
  %773 = vst.msk [vmem:[%s772] sm:$0x4] %vm767, %v766
  %s774 = scalar_lea.vmem %s1, 436
  %775 = vst.msk [vmem:[%s774] sm:$0x8] %vm767, %v766
  %s776 = scalar_lea.vmem %s1, 563
  %777 = vst.msk [vmem:[%s776] sm:$0x10] %vm767, %v766
  %s778 = scalar_lea.vmem %s1, 690
  %779 = vst.msk [vmem:[%s778] sm:$0x20] %vm767, %v766
  %s780 = scalar_lea.vmem %s1, 817
  %781 = vst.msk [vmem:[%s780] sm:$0x40] %vm767, %v766
  %s782 = scalar_lea.vmem %s1, 944
  %783 = vst.msk [vmem:[%s782] sm:$0x80] %vm767, %v766
  %s784 = scalar_lea.vmem %s0, 2
  %v785 = vld [vmem:[%s784] ss:$3 sm:$0xff]
  %786 = vrot.lane.b32.xlu0 %v785, 90
  %v787 = vpop.permute.xlu0 %786
  %vm788 = vcmask 23552
  %s789 = scalar_lea.vmem %s1, 98
  %790 = vst.msk [vmem:[%s789] sm:$0x1] %vm788, %v787
  %s791 = scalar_lea.vmem %s1, 225
  %792 = vst.msk [vmem:[%s791] sm:$0x2] %vm788, %v787
  %s793 = scalar_lea.vmem %s1, 352
  %794 = vst.msk [vmem:[%s793] sm:$0x4] %vm788, %v787
  %s795 = scalar_lea.vmem %s1, 479
  %796 = vst.msk [vmem:[%s795] sm:$0x8] %vm788, %v787
  %s797 = scalar_lea.vmem %s1, 606
  %798 = vst.msk [vmem:[%s797] sm:$0x10] %vm788, %v787
  %s799 = scalar_lea.vmem %s1, 733
  %800 = vst.msk [vmem:[%s799] sm:$0x20] %vm788, %v787
  %s801 = scalar_lea.vmem %s1, 860
  %802 = vst.msk [vmem:[%s801] sm:$0x40] %vm788, %v787
  %s803 = scalar_lea.vmem %s1, 987
  %804 = vst.msk [vmem:[%s803] sm:$0x80] %vm788, %v787
  %v805 = vld [vmem:[%s0] ss:$3 sm:$0xff]
  %806 = vrot.lane.b32.xlu0 %v805, 89
  %v807 = vpop.permute.xlu0 %806
  %vm808 = vcmask 23552
  %s809 = scalar_lea.vmem %s1, 13
  %810 = vst.msk [vmem:[%s809] sm:$0x1] %vm808, %v807
  %s811 = scalar_lea.vmem %s1, 140
  %812 = vst.msk [vmem:[%s811] sm:$0x2] %vm808, %v807
  %s813 = scalar_lea.vmem %s1, 267
  %814 = vst.msk [vmem:[%s813] sm:$0x4] %vm808, %v807
  %s815 = scalar_lea.vmem %s1, 394
  %816 = vst.msk [vmem:[%s815] sm:$0x8] %vm808, %v807
  %s817 = scalar_lea.vmem %s1, 521
  %818 = vst.msk [vmem:[%s817] sm:$0x10] %vm808, %v807
  %s819 = scalar_lea.vmem %s1, 648
  %820 = vst.msk [vmem:[%s819] sm:$0x20] %vm808, %v807
  %s821 = scalar_lea.vmem %s1, 775
  %822 = vst.msk [vmem:[%s821] sm:$0x40] %vm808, %v807
  %s823 = scalar_lea.vmem %s1, 902
  %824 = vst.msk [vmem:[%s823] sm:$0x80] %vm808, %v807
  %s825 = scalar_lea.vmem %s0, 1
  %v826 = vld [vmem:[%s825] ss:$3 sm:$0xff]
  %827 = vrot.lane.b32.xlu0 %v826, 88
  %v828 = vpop.permute.xlu0 %827
  %vm829 = vcmask 23552
  %s830 = scalar_lea.vmem %s1, 56
  %831 = vst.msk [vmem:[%s830] sm:$0x1] %vm829, %v828
  %s832 = scalar_lea.vmem %s1, 183
  %833 = vst.msk [vmem:[%s832] sm:$0x2] %vm829, %v828
  %s834 = scalar_lea.vmem %s1, 310
  %835 = vst.msk [vmem:[%s834] sm:$0x4] %vm829, %v828
  %s836 = scalar_lea.vmem %s1, 437
  %837 = vst.msk [vmem:[%s836] sm:$0x8] %vm829, %v828
  %s838 = scalar_lea.vmem %s1, 564
  %839 = vst.msk [vmem:[%s838] sm:$0x10] %vm829, %v828
  %s840 = scalar_lea.vmem %s1, 691
  %841 = vst.msk [vmem:[%s840] sm:$0x20] %vm829, %v828
  %s842 = scalar_lea.vmem %s1, 818
  %843 = vst.msk [vmem:[%s842] sm:$0x40] %vm829, %v828
  %s844 = scalar_lea.vmem %s1, 945
  %845 = vst.msk [vmem:[%s844] sm:$0x80] %vm829, %v828
  %s846 = scalar_lea.vmem %s0, 2
  %v847 = vld [vmem:[%s846] ss:$3 sm:$0xff]
  %848 = vrot.lane.b32.xlu0 %v847, 87
  %v849 = vpop.permute.xlu0 %848
  %vm850 = vcmask 23552
  %s851 = scalar_lea.vmem %s1, 99
  %852 = vst.msk [vmem:[%s851] sm:$0x1] %vm850, %v849
  %s853 = scalar_lea.vmem %s1, 226
  %854 = vst.msk [vmem:[%s853] sm:$0x2] %vm850, %v849
  %s855 = scalar_lea.vmem %s1, 353
  %856 = vst.msk [vmem:[%s855] sm:$0x4] %vm850, %v849
  %s857 = scalar_lea.vmem %s1, 480
  %858 = vst.msk [vmem:[%s857] sm:$0x8] %vm850, %v849
  %s859 = scalar_lea.vmem %s1, 607
  %860 = vst.msk [vmem:[%s859] sm:$0x10] %vm850, %v849
  %s861 = scalar_lea.vmem %s1, 734
  %862 = vst.msk [vmem:[%s861] sm:$0x20] %vm850, %v849
  %s863 = scalar_lea.vmem %s1, 861
  %864 = vst.msk [vmem:[%s863] sm:$0x40] %vm850, %v849
  %s865 = scalar_lea.vmem %s1, 988
  %866 = vst.msk [vmem:[%s865] sm:$0x80] %vm850, %v849
  %v867 = vld [vmem:[%s0] ss:$3 sm:$0xff]
  %868 = vrot.lane.b32.xlu0 %v867, 86
  %v869 = vpop.permute.xlu0 %868
  %vm870 = vcmask 23552
  %s871 = scalar_lea.vmem %s1, 14
  %872 = vst.msk [vmem:[%s871] sm:$0x1] %vm870, %v869
  %s873 = scalar_lea.vmem %s1, 141
  %874 = vst.msk [vmem:[%s873] sm:$0x2] %vm870, %v869
  %s875 = scalar_lea.vmem %s1, 268
  %876 = vst.msk [vmem:[%s875] sm:$0x4] %vm870, %v869
  %s877 = scalar_lea.vmem %s1, 395
  %878 = vst.msk [vmem:[%s877] sm:$0x8] %vm870, %v869
  %s879 = scalar_lea.vmem %s1, 522
  %880 = vst.msk [vmem:[%s879] sm:$0x10] %vm870, %v869
  %s881 = scalar_lea.vmem %s1, 649
  %882 = vst.msk [vmem:[%s881] sm:$0x20] %vm870, %v869
  %s883 = scalar_lea.vmem %s1, 776
  %884 = vst.msk [vmem:[%s883] sm:$0x40] %vm870, %v869
  %s885 = scalar_lea.vmem %s1, 903
  %886 = vst.msk [vmem:[%s885] sm:$0x80] %vm870, %v869
  %s887 = scalar_lea.vmem %s0, 1
  %v888 = vld [vmem:[%s887] ss:$3 sm:$0xff]
  %889 = vrot.lane.b32.xlu0 %v888, 85
  %v890 = vpop.permute.xlu0 %889
  %vm891 = vcmask 23552
  %s892 = scalar_lea.vmem %s1, 57
  %893 = vst.msk [vmem:[%s892] sm:$0x1] %vm891, %v890
  %s894 = scalar_lea.vmem %s1, 184
  %895 = vst.msk [vmem:[%s894] sm:$0x2] %vm891, %v890
  %s896 = scalar_lea.vmem %s1, 311
  %897 = vst.msk [vmem:[%s896] sm:$0x4] %vm891, %v890
  %s898 = scalar_lea.vmem %s1, 438
  %899 = vst.msk [vmem:[%s898] sm:$0x8] %vm891, %v890
  %s900 = scalar_lea.vmem %s1, 565
  %901 = vst.msk [vmem:[%s900] sm:$0x10] %vm891, %v890
  %s902 = scalar_lea.vmem %s1, 692
  %903 = vst.msk [vmem:[%s902] sm:$0x20] %vm891, %v890
  %s904 = scalar_lea.vmem %s1, 819
  %905 = vst.msk [vmem:[%s904] sm:$0x40] %vm891, %v890
  %s906 = scalar_lea.vmem %s1, 946
  %907 = vst.msk [vmem:[%s906] sm:$0x80] %vm891, %v890
  %s908 = scalar_lea.vmem %s0, 2
  %v909 = vld [vmem:[%s908] ss:$3 sm:$0xff]
  %910 = vrot.lane.b32.xlu0 %v909, 84
  %v911 = vpop.permute.xlu0 %910
  %vm912 = vcmask 23552
  %s913 = scalar_lea.vmem %s1, 100
  %914 = vst.msk [vmem:[%s913] sm:$0x1] %vm912, %v911
  %s915 = scalar_lea.vmem %s1, 227
  %916 = vst.msk [vmem:[%s915] sm:$0x2] %vm912, %v911
  %s917 = scalar_lea.vmem %s1, 354
  %918 = vst.msk [vmem:[%s917] sm:$0x4] %vm912, %v911
  %s919 = scalar_lea.vmem %s1, 481
  %920 = vst.msk [vmem:[%s919] sm:$0x8] %vm912, %v911
  %s921 = scalar_lea.vmem %s1, 608
  %922 = vst.msk [vmem:[%s921] sm:$0x10] %vm912, %v911
  %s923 = scalar_lea.vmem %s1, 735
  %924 = vst.msk [vmem:[%s923] sm:$0x20] %vm912, %v911
  %s925 = scalar_lea.vmem %s1, 862
  %926 = vst.msk [vmem:[%s925] sm:$0x40] %vm912, %v911
  %s927 = scalar_lea.vmem %s1, 989
  %928 = vst.msk [vmem:[%s927] sm:$0x80] %vm912, %v911
  %v929 = vld [vmem:[%s0] ss:$3 sm:$0xff]
  %930 = vrot.lane.b32.xlu0 %v929, 83
  %v931 = vpop.permute.xlu0 %930
  %vm932 = vcmask 23552
  %s933 = scalar_lea.vmem %s1, 15
  %934 = vst.msk [vmem:[%s933] sm:$0x1] %vm932, %v931
  %s935 = scalar_lea.vmem %s1, 142
  %936 = vst.msk [vmem:[%s935] sm:$0x2] %vm932, %v931
  %s937 = scalar_lea.vmem %s1, 269
  %938 = vst.msk [vmem:[%s937] sm:$0x4] %vm932, %v931
  %s939 = scalar_lea.vmem %s1, 396
  %940 = vst.msk [vmem:[%s939] sm:$0x8] %vm932, %v931
  %s941 = scalar_lea.vmem %s1, 523
  %942 = vst.msk [vmem:[%s941] sm:$0x10] %vm932, %v931
  %s943 = scalar_lea.vmem %s1, 650
  %944 = vst.msk [vmem:[%s943] sm:$0x20] %vm932, %v931
  %s945 = scalar_lea.vmem %s1, 777
  %946 = vst.msk [vmem:[%s945] sm:$0x40] %vm932, %v931
  %s947 = scalar_lea.vmem %s1, 904
  %948 = vst.msk [vmem:[%s947] sm:$0x80] %vm932, %v931
  %s949 = scalar_lea.vmem %s0, 1
  %v950 = vld [vmem:[%s949] ss:$3 sm:$0xff]
  %951 = vrot.lane.b32.xlu0 %v950, 82
  %v952 = vpop.permute.xlu0 %951
  %vm953 = vcmask 23552
  %s954 = scalar_lea.vmem %s1, 58
  %955 = vst.msk [vmem:[%s954] sm:$0x1] %vm953, %v952
  %s956 = scalar_lea.vmem %s1, 185
  %957 = vst.msk [vmem:[%s956] sm:$0x2] %vm953, %v952
  %s958 = scalar_lea.vmem %s1, 312
  %959 = vst.msk [vmem:[%s958] sm:$0x4] %vm953, %v952
  %s960 = scalar_lea.vmem %s1, 439
  %961 = vst.msk [vmem:[%s960] sm:$0x8] %vm953, %v952
  %s962 = scalar_lea.vmem %s1, 566
  %963 = vst.msk [vmem:[%s962] sm:$0x10] %vm953, %v952
  %s964 = scalar_lea.vmem %s1, 693
  %965 = vst.msk [vmem:[%s964] sm:$0x20] %vm953, %v952
  %s966 = scalar_lea.vmem %s1, 820
  %967 = vst.msk [vmem:[%s966] sm:$0x40] %vm953, %v952
  %s968 = scalar_lea.vmem %s1, 947
  %969 = vst.msk [vmem:[%s968] sm:$0x80] %vm953, %v952
  %s970 = scalar_lea.vmem %s0, 2
  %v971 = vld [vmem:[%s970] ss:$3 sm:$0xff]
  %972 = vrot.lane.b32.xlu0 %v971, 81
  %v973 = vpop.permute.xlu0 %972
  %vm974 = vcmask 23552
  %s975 = scalar_lea.vmem %s1, 101
  %976 = vst.msk [vmem:[%s975] sm:$0x1] %vm974, %v973
  %s977 = scalar_lea.vmem %s1, 228
  %978 = vst.msk [vmem:[%s977] sm:$0x2] %vm974, %v973
  %s979 = scalar_lea.vmem %s1, 355
  %980 = vst.msk [vmem:[%s979] sm:$0x4] %vm974, %v973
  %s981 = scalar_lea.vmem %s1, 482
  %982 = vst.msk [vmem:[%s981] sm:$0x8] %vm974, %v973
  %s983 = scalar_lea.vmem %s1, 609
  %984 = vst.msk [vmem:[%s983] sm:$0x10] %vm974, %v973
  %s985 = scalar_lea.vmem %s1, 736
  %986 = vst.msk [vmem:[%s985] sm:$0x20] %vm974, %v973
  %s987 = scalar_lea.vmem %s1, 863
  %988 = vst.msk [vmem:[%s987] sm:$0x40] %vm974, %v973
  %s989 = scalar_lea.vmem %s1, 990
  %990 = vst.msk [vmem:[%s989] sm:$0x80] %vm974, %v973
  %v991 = vld [vmem:[%s0] ss:$3 sm:$0xff]
  %992 = vrot.lane.b32.xlu0 %v991, 80
  %v993 = vpop.permute.xlu0 %992
  %vm994 = vcmask 23552
  %s995 = scalar_lea.vmem %s1, 16
  %996 = vst.msk [vmem:[%s995] sm:$0x1] %vm994, %v993
  %s997 = scalar_lea.vmem %s1, 143
  %998 = vst.msk [vmem:[%s997] sm:$0x2] %vm994, %v993
  %s999 = scalar_lea.vmem %s1, 270
  %1000 = vst.msk [vmem:[%s999] sm:$0x4] %vm994, %v993
  %s1001 = scalar_lea.vmem %s1, 397
  %1002 = vst.msk [vmem:[%s1001] sm:$0x8] %vm994, %v993
  %s1003 = scalar_lea.vmem %s1, 524
  %1004 = vst.msk [vmem:[%s1003] sm:$0x10] %vm994, %v993
  %s1005 = scalar_lea.vmem %s1, 651
  %1006 = vst.msk [vmem:[%s1005] sm:$0x20] %vm994, %v993
  %s1007 = scalar_lea.vmem %s1, 778
  %1008 = vst.msk [vmem:[%s1007] sm:$0x40] %vm994, %v993
  %s1009 = scalar_lea.vmem %s1, 905
  %1010 = vst.msk [vmem:[%s1009] sm:$0x80] %vm994, %v993
  %s1011 = scalar_lea.vmem %s0, 1
  %v1012 = vld [vmem:[%s1011] ss:$3 sm:$0xff]
  %1013 = vrot.lane.b32.xlu0 %v1012, 79
  %v1014 = vpop.permute.xlu0 %1013
  %vm1015 = vcmask 23552
  %s1016 = scalar_lea.vmem %s1, 59
  %1017 = vst.msk [vmem:[%s1016] sm:$0x1] %vm1015, %v1014
  %s1018 = scalar_lea.vmem %s1, 186
  %1019 = vst.msk [vmem:[%s1018] sm:$0x2] %vm1015, %v1014
  %s1020 = scalar_lea.vmem %s1, 313
  %1021 = vst.msk [vmem:[%s1020] sm:$0x4] %vm1015, %v1014
  %s1022 = scalar_lea.vmem %s1, 440
  %1023 = vst.msk [vmem:[%s1022] sm:$0x8] %vm1015, %v1014
  %s1024 = scalar_lea.vmem %s1, 567
  %1025 = vst.msk [vmem:[%s1024] sm:$0x10] %vm1015, %v1014
  %s1026 = scalar_lea.vmem %s1, 694
  %1027 = vst.msk [vmem:[%s1026] sm:$0x20] %vm1015, %v1014
  %s1028 = scalar_lea.vmem %s1, 821
  %1029 = vst.msk [vmem:[%s1028] sm:$0x40] %vm1015, %v1014
  %s1030 = scalar_lea.vmem %s1, 948
  %1031 = vst.msk [vmem:[%s1030] sm:$0x80] %vm1015, %v1014
  %s1032 = scalar_lea.vmem %s0, 2
  %v1033 = vld [vmem:[%s1032] ss:$3 sm:$0xff]
  %1034 = vrot.lane.b32.xlu0 %v1033, 78
  %v1035 = vpop.permute.xlu0 %1034
  %vm1036 = vcmask 23552
  %s1037 = scalar_lea.vmem %s1, 102
  %1038 = vst.msk [vmem:[%s1037] sm:$0x1] %vm1036, %v1035
  %s1039 = scalar_lea.vmem %s1, 229
  %1040 = vst.msk [vmem:[%s1039] sm:$0x2] %vm1036, %v1035
  %s1041 = scalar_lea.vmem %s1, 356
  %1042 = vst.msk [vmem:[%s1041] sm:$0x4] %vm1036, %v1035
  %s1043 = scalar_lea.vmem %s1, 483
  %1044 = vst.msk [vmem:[%s1043] sm:$0x8] %vm1036, %v1035
  %s1045 = scalar_lea.vmem %s1, 610
  %1046 = vst.msk [vmem:[%s1045] sm:$0x10] %vm1036, %v1035
  %s1047 = scalar_lea.vmem %s1, 737
  %1048 = vst.msk [vmem:[%s1047] sm:$0x20] %vm1036, %v1035
  %s1049 = scalar_lea.vmem %s1, 864
  %1050 = vst.msk [vmem:[%s1049] sm:$0x40] %vm1036, %v1035
  %s1051 = scalar_lea.vmem %s1, 991
  %1052 = vst.msk [vmem:[%s1051] sm:$0x80] %vm1036, %v1035
  %v1053 = vld [vmem:[%s0] ss:$3 sm:$0xff]
  %1054 = vrot.lane.b32.xlu0 %v1053, 77
  %v1055 = vpop.permute.xlu0 %1054
  %vm1056 = vcmask 23552
  %s1057 = scalar_lea.vmem %s1, 17
  %1058 = vst.msk [vmem:[%s1057] sm:$0x1] %vm1056, %v1055
  %s1059 = scalar_lea.vmem %s1, 144
  %1060 = vst.msk [vmem:[%s1059] sm:$0x2] %vm1056, %v1055
  %s1061 = scalar_lea.vmem %s1, 271
  %1062 = vst.msk [vmem:[%s1061] sm:$0x4] %vm1056, %v1055
  %s1063 = scalar_lea.vmem %s1, 398
  %1064 = vst.msk [vmem:[%s1063] sm:$0x8] %vm1056, %v1055
  %s1065 = scalar_lea.vmem %s1, 525
  %1066 = vst.msk [vmem:[%s1065] sm:$0x10] %vm1056, %v1055
  %s1067 = scalar_lea.vmem %s1, 652
  %1068 = vst.msk [vmem:[%s1067] sm:$0x20] %vm1056, %v1055
  %s1069 = scalar_lea.vmem %s1, 779
  %1070 = vst.msk [vmem:[%s1069] sm:$0x40] %vm1056, %v1055
  %s1071 = scalar_lea.vmem %s1, 906
  %1072 = vst.msk [vmem:[%s1071] sm:$0x80] %vm1056, %v1055
  %s1073 = scalar_lea.vmem %s0, 1
  %v1074 = vld [vmem:[%s1073] ss:$3 sm:$0xff]
  %1075 = vrot.lane.b32.xlu0 %v1074, 76
  %v1076 = vpop.permute.xlu0 %1075
  %vm1077 = vcmask 23552
  %s1078 = scalar_lea.vmem %s1, 60
  %1079 = vst.msk [vmem:[%s1078] sm:$0x1] %vm1077, %v1076
  %s1080 = scalar_lea.vmem %s1, 187
  %1081 = vst.msk [vmem:[%s1080] sm:$0x2] %vm1077, %v1076
  %s1082 = scalar_lea.vmem %s1, 314
  %1083 = vst.msk [vmem:[%s1082] sm:$0x4] %vm1077, %v1076
  %s1084 = scalar_lea.vmem %s1, 441
  %1085 = vst.msk [vmem:[%s1084] sm:$0x8] %vm1077, %v1076
  %s1086 = scalar_lea.vmem %s1, 568
  %1087 = vst.msk [vmem:[%s1086] sm:$0x10] %vm1077, %v1076
  %s1088 = scalar_lea.vmem %s1, 695
  %1089 = vst.msk [vmem:[%s1088] sm:$0x20] %vm1077, %v1076
  %s1090 = scalar_lea.vmem %s1, 822
  %1091 = vst.msk [vmem:[%s1090] sm:$0x40] %vm1077, %v1076
  %s1092 = scalar_lea.vmem %s1, 949
  %1093 = vst.msk [vmem:[%s1092] sm:$0x80] %vm1077, %v1076
  %s1094 = scalar_lea.vmem %s0, 2
  %v1095 = vld [vmem:[%s1094] ss:$3 sm:$0xff]
  %1096 = vrot.lane.b32.xlu0 %v1095, 75
  %v1097 = vpop.permute.xlu0 %1096
  %vm1098 = vcmask 23552
  %s1099 = scalar_lea.vmem %s1, 103
  %1100 = vst.msk [vmem:[%s1099] sm:$0x1] %vm1098, %v1097
  %s1101 = scalar_lea.vmem %s1, 230
  %1102 = vst.msk [vmem:[%s1101] sm:$0x2] %vm1098, %v1097
  %s1103 = scalar_lea.vmem %s1, 357
  %1104 = vst.msk [vmem:[%s1103] sm:$0x4] %vm1098, %v1097
  %s1105 = scalar_lea.vmem %s1, 484
  %1106 = vst.msk [vmem:[%s1105] sm:$0x8] %vm1098, %v1097
  %s1107 = scalar_lea.vmem %s1, 611
  %1108 = vst.msk [vmem:[%s1107] sm:$0x10] %vm1098, %v1097
  %s1109 = scalar_lea.vmem %s1, 738
  %1110 = vst.msk [vmem:[%s1109] sm:$0x20] %vm1098, %v1097
  %s1111 = scalar_lea.vmem %s1, 865
  %1112 = vst.msk [vmem:[%s1111] sm:$0x40] %vm1098, %v1097
  %s1113 = scalar_lea.vmem %s1, 992
  %1114 = vst.msk [vmem:[%s1113] sm:$0x80] %vm1098, %v1097
  %v1115 = vld [vmem:[%s0] ss:$3 sm:$0xff]
  %1116 = vrot.lane.b32.xlu0 %v1115, 74
  %v1117 = vpop.permute.xlu0 %1116
  %vm1118 = vcmask 23552
  %s1119 = scalar_lea.vmem %s1, 18
  %1120 = vst.msk [vmem:[%s1119] sm:$0x1] %vm1118, %v1117
  %s1121 = scalar_lea.vmem %s1, 145
  %1122 = vst.msk [vmem:[%s1121] sm:$0x2] %vm1118, %v1117
  %s1123 = scalar_lea.vmem %s1, 272
  %1124 = vst.msk [vmem:[%s1123] sm:$0x4] %vm1118, %v1117
  %s1125 = scalar_lea.vmem %s1, 399
  %1126 = vst.msk [vmem:[%s1125] sm:$0x8] %vm1118, %v1117
  %s1127 = scalar_lea.vmem %s1, 526
  %1128 = vst.msk [vmem:[%s1127] sm:$0x10] %vm1118, %v1117
  %s1129 = scalar_lea.vmem %s1, 653
  %1130 = vst.msk [vmem:[%s1129] sm:$0x20] %vm1118, %v1117
  %s1131 = scalar_lea.vmem %s1, 780
  %1132 = vst.msk [vmem:[%s1131] sm:$0x40] %vm1118, %v1117
  %s1133 = scalar_lea.vmem %s1, 907
  %1134 = vst.msk [vmem:[%s1133] sm:$0x80] %vm1118, %v1117
  %s1135 = scalar_lea.vmem %s0, 1
  %v1136 = vld [vmem:[%s1135] ss:$3 sm:$0xff]
  %1137 = vrot.lane.b32.xlu0 %v1136, 73
  %v1138 = vpop.permute.xlu0 %1137
  %vm1139 = vcmask 23552
  %s1140 = scalar_lea.vmem %s1, 61
  %1141 = vst.msk [vmem:[%s1140] sm:$0x1] %vm1139, %v1138
  %s1142 = scalar_lea.vmem %s1, 188
  %1143 = vst.msk [vmem:[%s1142] sm:$0x2] %vm1139, %v1138
  %s1144 = scalar_lea.vmem %s1, 315
  %1145 = vst.msk [vmem:[%s1144] sm:$0x4] %vm1139, %v1138
  %s1146 = scalar_lea.vmem %s1, 442
  %1147 = vst.msk [vmem:[%s1146] sm:$0x8] %vm1139, %v1138
  %s1148 = scalar_lea.vmem %s1, 569
  %1149 = vst.msk [vmem:[%s1148] sm:$0x10] %vm1139, %v1138
  %s1150 = scalar_lea.vmem %s1, 696
  %1151 = vst.msk [vmem:[%s1150] sm:$0x20] %vm1139, %v1138
  %s1152 = scalar_lea.vmem %s1, 823
  %1153 = vst.msk [vmem:[%s1152] sm:$0x40] %vm1139, %v1138
  %s1154 = scalar_lea.vmem %s1, 950
  %1155 = vst.msk [vmem:[%s1154] sm:$0x80] %vm1139, %v1138
  %s1156 = scalar_lea.vmem %s0, 2
  %v1157 = vld [vmem:[%s1156] ss:$3 sm:$0xff]
  %1158 = vrot.lane.b32.xlu0 %v1157, 72
  %v1159 = vpop.permute.xlu0 %1158
  %vm1160 = vcmask 23552
  %s1161 = scalar_lea.vmem %s1, 104
  %1162 = vst.msk [vmem:[%s1161] sm:$0x1] %vm1160, %v1159
  %s1163 = scalar_lea.vmem %s1, 231
  %1164 = vst.msk [vmem:[%s1163] sm:$0x2] %vm1160, %v1159
  %s1165 = scalar_lea.vmem %s1, 358
  %1166 = vst.msk [vmem:[%s1165] sm:$0x4] %vm1160, %v1159
  %s1167 = scalar_lea.vmem %s1, 485
  %1168 = vst.msk [vmem:[%s1167] sm:$0x8] %vm1160, %v1159
  %s1169 = scalar_lea.vmem %s1, 612
  %1170 = vst.msk [vmem:[%s1169] sm:$0x10] %vm1160, %v1159
  %s1171 = scalar_lea.vmem %s1, 739
  %1172 = vst.msk [vmem:[%s1171] sm:$0x20] %vm1160, %v1159
  %s1173 = scalar_lea.vmem %s1, 866
  %1174 = vst.msk [vmem:[%s1173] sm:$0x40] %vm1160, %v1159
  %s1175 = scalar_lea.vmem %s1, 993
  %1176 = vst.msk [vmem:[%s1175] sm:$0x80] %vm1160, %v1159
  %v1177 = vld [vmem:[%s0] ss:$3 sm:$0xff]
  %1178 = vrot.lane.b32.xlu0 %v1177, 71
  %v1179 = vpop.permute.xlu0 %1178
  %vm1180 = vcmask 23552
  %s1181 = scalar_lea.vmem %s1, 19
  %1182 = vst.msk [vmem:[%s1181] sm:$0x1] %vm1180, %v1179
  %s1183 = scalar_lea.vmem %s1, 146
  %1184 = vst.msk [vmem:[%s1183] sm:$0x2] %vm1180, %v1179
  %s1185 = scalar_lea.vmem %s1, 273
  %1186 = vst.msk [vmem:[%s1185] sm:$0x4] %vm1180, %v1179
  %s1187 = scalar_lea.vmem %s1, 400
  %1188 = vst.msk [vmem:[%s1187] sm:$0x8] %vm1180, %v1179
  %s1189 = scalar_lea.vmem %s1, 527
  %1190 = vst.msk [vmem:[%s1189] sm:$0x10] %vm1180, %v1179
  %s1191 = scalar_lea.vmem %s1, 654
  %1192 = vst.msk [vmem:[%s1191] sm:$0x20] %vm1180, %v1179
  %s1193 = scalar_lea.vmem %s1, 781
  %1194 = vst.msk [vmem:[%s1193] sm:$0x40] %vm1180, %v1179
  %s1195 = scalar_lea.vmem %s1, 908
  %1196 = vst.msk [vmem:[%s1195] sm:$0x80] %vm1180, %v1179
  %s1197 = scalar_lea.vmem %s0, 1
  %v1198 = vld [vmem:[%s1197] ss:$3 sm:$0xff]
  %1199 = vrot.lane.b32.xlu0 %v1198, 70
  %v1200 = vpop.permute.xlu0 %1199
  %vm1201 = vcmask 23552
  %s1202 = scalar_lea.vmem %s1, 62
  %1203 = vst.msk [vmem:[%s1202] sm:$0x1] %vm1201, %v1200
  %s1204 = scalar_lea.vmem %s1, 189
  %1205 = vst.msk [vmem:[%s1204] sm:$0x2] %vm1201, %v1200
  %s1206 = scalar_lea.vmem %s1, 316
  %1207 = vst.msk [vmem:[%s1206] sm:$0x4] %vm1201, %v1200
  %s1208 = scalar_lea.vmem %s1, 443
  %1209 = vst.msk [vmem:[%s1208] sm:$0x8] %vm1201, %v1200
  %s1210 = scalar_lea.vmem %s1, 570
  %1211 = vst.msk [vmem:[%s1210] sm:$0x10] %vm1201, %v1200
  %s1212 = scalar_lea.vmem %s1, 697
  %1213 = vst.msk [vmem:[%s1212] sm:$0x20] %vm1201, %v1200
  %s1214 = scalar_lea.vmem %s1, 824
  %1215 = vst.msk [vmem:[%s1214] sm:$0x40] %vm1201, %v1200
  %s1216 = scalar_lea.vmem %s1, 951
  %1217 = vst.msk [vmem:[%s1216] sm:$0x80] %vm1201, %v1200
  %s1218 = scalar_lea.vmem %s0, 2
  %v1219 = vld [vmem:[%s1218] ss:$3 sm:$0xff]
  %1220 = vrot.lane.b32.xlu0 %v1219, 69
  %v1221 = vpop.permute.xlu0 %1220
  %vm1222 = vcmask 23552
  %s1223 = scalar_lea.vmem %s1, 105
  %1224 = vst.msk [vmem:[%s1223] sm:$0x1] %vm1222, %v1221
  %s1225 = scalar_lea.vmem %s1, 232
  %1226 = vst.msk [vmem:[%s1225] sm:$0x2] %vm1222, %v1221
  %s1227 = scalar_lea.vmem %s1, 359
  %1228 = vst.msk [vmem:[%s1227] sm:$0x4] %vm1222, %v1221
  %s1229 = scalar_lea.vmem %s1, 486
  %1230 = vst.msk [vmem:[%s1229] sm:$0x8] %vm1222, %v1221
  %s1231 = scalar_lea.vmem %s1, 613
  %1232 = vst.msk [vmem:[%s1231] sm:$0x10] %vm1222, %v1221
  %s1233 = scalar_lea.vmem %s1, 740
  %1234 = vst.msk [vmem:[%s1233] sm:$0x20] %vm1222, %v1221
  %s1235 = scalar_lea.vmem %s1, 867
  %1236 = vst.msk [vmem:[%s1235] sm:$0x40] %vm1222, %v1221
  %s1237 = scalar_lea.vmem %s1, 994
  %1238 = vst.msk [vmem:[%s1237] sm:$0x80] %vm1222, %v1221
  %v1239 = vld [vmem:[%s0] ss:$3 sm:$0xff]
  %1240 = vrot.lane.b32.xlu0 %v1239, 68
  %v1241 = vpop.permute.xlu0 %1240
  %vm1242 = vcmask 23552
  %s1243 = scalar_lea.vmem %s1, 20
  %1244 = vst.msk [vmem:[%s1243] sm:$0x1] %vm1242, %v1241
  %s1245 = scalar_lea.vmem %s1, 147
  %1246 = vst.msk [vmem:[%s1245] sm:$0x2] %vm1242, %v1241
  %s1247 = scalar_lea.vmem %s1, 274
  %1248 = vst.msk [vmem:[%s1247] sm:$0x4] %vm1242, %v1241
  %s1249 = scalar_lea.vmem %s1, 401
  %1250 = vst.msk [vmem:[%s1249] sm:$0x8] %vm1242, %v1241
  %s1251 = scalar_lea.vmem %s1, 528
  %1252 = vst.msk [vmem:[%s1251] sm:$0x10] %vm1242, %v1241
  %s1253 = scalar_lea.vmem %s1, 655
  %1254 = vst.msk [vmem:[%s1253] sm:$0x20] %vm1242, %v1241
  %s1255 = scalar_lea.vmem %s1, 782
  %1256 = vst.msk [vmem:[%s1255] sm:$0x40] %vm1242, %v1241
  %s1257 = scalar_lea.vmem %s1, 909
  %1258 = vst.msk [vmem:[%s1257] sm:$0x80] %vm1242, %v1241
  %s1259 = scalar_lea.vmem %s0, 1
  %v1260 = vld [vmem:[%s1259] ss:$3 sm:$0xff]
  %1261 = vrot.lane.b32.xlu0 %v1260, 67
  %v1262 = vpop.permute.xlu0 %1261
  %vm1263 = vcmask 23552
  %s1264 = scalar_lea.vmem %s1, 63
  %1265 = vst.msk [vmem:[%s1264] sm:$0x1] %vm1263, %v1262
  %s1266 = scalar_lea.vmem %s1, 190
  %1267 = vst.msk [vmem:[%s1266] sm:$0x2] %vm1263, %v1262
  %s1268 = scalar_lea.vmem %s1, 317
  %1269 = vst.msk [vmem:[%s1268] sm:$0x4] %vm1263, %v1262
  %s1270 = scalar_lea.vmem %s1, 444
  %1271 = vst.msk [vmem:[%s1270] sm:$0x8] %vm1263, %v1262
  %s1272 = scalar_lea.vmem %s1, 571
  %1273 = vst.msk [vmem:[%s1272] sm:$0x10] %vm1263, %v1262
  %s1274 = scalar_lea.vmem %s1, 698
  %1275 = vst.msk [vmem:[%s1274] sm:$0x20] %vm1263, %v1262
  %s1276 = scalar_lea.vmem %s1, 825
  %1277 = vst.msk [vmem:[%s1276] sm:$0x40] %vm1263, %v1262
  %s1278 = scalar_lea.vmem %s1, 952
  %1279 = vst.msk [vmem:[%s1278] sm:$0x80] %vm1263, %v1262
  %s1280 = scalar_lea.vmem %s0, 2
  %v1281 = vld [vmem:[%s1280] ss:$3 sm:$0xff]
  %1282 = vrot.lane.b32.xlu0 %v1281, 66
  %v1283 = vpop.permute.xlu0 %1282
  %vm1284 = vcmask 23552
  %s1285 = scalar_lea.vmem %s1, 106
  %1286 = vst.msk [vmem:[%s1285] sm:$0x1] %vm1284, %v1283
  %s1287 = scalar_lea.vmem %s1, 233
  %1288 = vst.msk [vmem:[%s1287] sm:$0x2] %vm1284, %v1283
  %s1289 = scalar_lea.vmem %s1, 360
  %1290 = vst.msk [vmem:[%s1289] sm:$0x4] %vm1284, %v1283
  %s1291 = scalar_lea.vmem %s1, 487
  %1292 = vst.msk [vmem:[%s1291] sm:$0x8] %vm1284, %v1283
  %s1293 = scalar_lea.vmem %s1, 614
  %1294 = vst.msk [vmem:[%s1293] sm:$0x10] %vm1284, %v1283
  %s1295 = scalar_lea.vmem %s1, 741
  %1296 = vst.msk [vmem:[%s1295] sm:$0x20] %vm1284, %v1283
  %s1297 = scalar_lea.vmem %s1, 868
  %1298 = vst.msk [vmem:[%s1297] sm:$0x40] %vm1284, %v1283
  %s1299 = scalar_lea.vmem %s1, 995
  %1300 = vst.msk [vmem:[%s1299] sm:$0x80] %vm1284, %v1283
  %v1301 = vld [vmem:[%s0] ss:$3 sm:$0xff]
  %1302 = vrot.lane.b32.xlu0 %v1301, 65
  %v1303 = vpop.permute.xlu0 %1302
  %vm1304 = vcmask 23552
  %s1305 = scalar_lea.vmem %s1, 21
  %1306 = vst.msk [vmem:[%s1305] sm:$0x1] %vm1304, %v1303
  %s1307 = scalar_lea.vmem %s1, 148
  %1308 = vst.msk [vmem:[%s1307] sm:$0x2] %vm1304, %v1303
  %s1309 = scalar_lea.vmem %s1, 275
  %1310 = vst.msk [vmem:[%s1309] sm:$0x4] %vm1304, %v1303
  %s1311 = scalar_lea.vmem %s1, 402
  %1312 = vst.msk [vmem:[%s1311] sm:$0x8] %vm1304, %v1303
  %s1313 = scalar_lea.vmem %s1, 529
  %1314 = vst.msk [vmem:[%s1313] sm:$0x10] %vm1304, %v1303
  %s1315 = scalar_lea.vmem %s1, 656
  %1316 = vst.msk [vmem:[%s1315] sm:$0x20] %vm1304, %v1303
  %s1317 = scalar_lea.vmem %s1, 783
  %1318 = vst.msk [vmem:[%s1317] sm:$0x40] %vm1304, %v1303
  %s1319 = scalar_lea.vmem %s1, 910
  %1320 = vst.msk [vmem:[%s1319] sm:$0x80] %vm1304, %v1303
  %s1321 = scalar_lea.vmem %s0, 1
  %v1322 = vld [vmem:[%s1321] ss:$3 sm:$0xff]
  %1323 = vrot.lane.b32.xlu0 %v1322, 64
  %v1324 = vpop.permute.xlu0 %1323
  %vm1325 = vcmask 23552
  %s1326 = scalar_lea.vmem %s1, 64
  %1327 = vst.msk [vmem:[%s1326] sm:$0x1] %vm1325, %v1324
  %s1328 = scalar_lea.vmem %s1, 191
  %1329 = vst.msk [vmem:[%s1328] sm:$0x2] %vm1325, %v1324
  %s1330 = scalar_lea.vmem %s1, 318
  %1331 = vst.msk [vmem:[%s1330] sm:$0x4] %vm1325, %v1324
  %s1332 = scalar_lea.vmem %s1, 445
  %1333 = vst.msk [vmem:[%s1332] sm:$0x8] %vm1325, %v1324
  %s1334 = scalar_lea.vmem %s1, 572
  %1335 = vst.msk [vmem:[%s1334] sm:$0x10] %vm1325, %v1324
  %s1336 = scalar_lea.vmem %s1, 699
  %1337 = vst.msk [vmem:[%s1336] sm:$0x20] %vm1325, %v1324
  %s1338 = scalar_lea.vmem %s1, 826
  %1339 = vst.msk [vmem:[%s1338] sm:$0x40] %vm1325, %v1324
  %s1340 = scalar_lea.vmem %s1, 953
  %1341 = vst.msk [vmem:[%s1340] sm:$0x80] %vm1325, %v1324
  %s1342 = scalar_lea.vmem %s0, 2
  %v1343 = vld [vmem:[%s1342] ss:$3 sm:$0xff]
  %1344 = vrot.lane.b32.xlu0 %v1343, 63
  %v1345 = vpop.permute.xlu0 %1344
  %vm1346 = vcmask 23552
  %s1347 = scalar_lea.vmem %s1, 107
  %1348 = vst.msk [vmem:[%s1347] sm:$0x1] %vm1346, %v1345
  %s1349 = scalar_lea.vmem %s1, 234
  %1350 = vst.msk [vmem:[%s1349] sm:$0x2] %vm1346, %v1345
  %s1351 = scalar_lea.vmem %s1, 361
  %1352 = vst.msk [vmem:[%s1351] sm:$0x4] %vm1346, %v1345
  %s1353 = scalar_lea.vmem %s1, 488
  %1354 = vst.msk [vmem:[%s1353] sm:$0x8] %vm1346, %v1345
  %s1355 = scalar_lea.vmem %s1, 615
  %1356 = vst.msk [vmem:[%s1355] sm:$0x10] %vm1346, %v1345
  %s1357 = scalar_lea.vmem %s1, 742
  %1358 = vst.msk [vmem:[%s1357] sm:$0x20] %vm1346, %v1345
  %s1359 = scalar_lea.vmem %s1, 869
  %1360 = vst.msk [vmem:[%s1359] sm:$0x40] %vm1346, %v1345
  %s1361 = scalar_lea.vmem %s1, 996
  %1362 = vst.msk [vmem:[%s1361] sm:$0x80] %vm1346, %v1345
  %v1363 = vld [vmem:[%s0] ss:$3 sm:$0xff]
  %1364 = vrot.lane.b32.xlu0 %v1363, 62
  %v1365 = vpop.permute.xlu0 %1364
  %vm1366 = vcmask 23552
  %s1367 = scalar_lea.vmem %s1, 22
  %1368 = vst.msk [vmem:[%s1367] sm:$0x1] %vm1366, %v1365
  %s1369 = scalar_lea.vmem %s1, 149
  %1370 = vst.msk [vmem:[%s1369] sm:$0x2] %vm1366, %v1365
  %s1371 = scalar_lea.vmem %s1, 276
  %1372 = vst.msk [vmem:[%s1371] sm:$0x4] %vm1366, %v1365
  %s1373 = scalar_lea.vmem %s1, 403
  %1374 = vst.msk [vmem:[%s1373] sm:$0x8] %vm1366, %v1365
  %s1375 = scalar_lea.vmem %s1, 530
  %1376 = vst.msk [vmem:[%s1375] sm:$0x10] %vm1366, %v1365
  %s1377 = scalar_lea.vmem %s1, 657
  %1378 = vst.msk [vmem:[%s1377] sm:$0x20] %vm1366, %v1365
  %s1379 = scalar_lea.vmem %s1, 784
  %1380 = vst.msk [vmem:[%s1379] sm:$0x40] %vm1366, %v1365
  %s1381 = scalar_lea.vmem %s1, 911
  %1382 = vst.msk [vmem:[%s1381] sm:$0x80] %vm1366, %v1365
  %s1383 = scalar_lea.vmem %s0, 1
  %v1384 = vld [vmem:[%s1383] ss:$3 sm:$0xff]
  %1385 = vrot.lane.b32.xlu0 %v1384, 61
  %v1386 = vpop.permute.xlu0 %1385
  %vm1387 = vcmask 23552
  %s1388 = scalar_lea.vmem %s1, 65
  %1389 = vst.msk [vmem:[%s1388] sm:$0x1] %vm1387, %v1386
  %s1390 = scalar_lea.vmem %s1, 192
  %1391 = vst.msk [vmem:[%s1390] sm:$0x2] %vm1387, %v1386
  %s1392 = scalar_lea.vmem %s1, 319
  %1393 = vst.msk [vmem:[%s1392] sm:$0x4] %vm1387, %v1386
  %s1394 = scalar_lea.vmem %s1, 446
  %1395 = vst.msk [vmem:[%s1394] sm:$0x8] %vm1387, %v1386
  %s1396 = scalar_lea.vmem %s1, 573
  %1397 = vst.msk [vmem:[%s1396] sm:$0x10] %vm1387, %v1386
  %s1398 = scalar_lea.vmem %s1, 700
  %1399 = vst.msk [vmem:[%s1398] sm:$0x20] %vm1387, %v1386
  %s1400 = scalar_lea.vmem %s1, 827
  %1401 = vst.msk [vmem:[%s1400] sm:$0x40] %vm1387, %v1386
  %s1402 = scalar_lea.vmem %s1, 954
  %1403 = vst.msk [vmem:[%s1402] sm:$0x80] %vm1387, %v1386
  %s1404 = scalar_lea.vmem %s0, 2
  %v1405 = vld [vmem:[%s1404] ss:$3 sm:$0xff]
  %1406 = vrot.lane.b32.xlu0 %v1405, 60
  %v1407 = vpop.permute.xlu0 %1406
  %vm1408 = vcmask 23552
  %s1409 = scalar_lea.vmem %s1, 108
  %1410 = vst.msk [vmem:[%s1409] sm:$0x1] %vm1408, %v1407
  %s1411 = scalar_lea.vmem %s1, 235
  %1412 = vst.msk [vmem:[%s1411] sm:$0x2] %vm1408, %v1407
  %s1413 = scalar_lea.vmem %s1, 362
  %1414 = vst.msk [vmem:[%s1413] sm:$0x4] %vm1408, %v1407
  %s1415 = scalar_lea.vmem %s1, 489
  %1416 = vst.msk [vmem:[%s1415] sm:$0x8] %vm1408, %v1407
  %s1417 = scalar_lea.vmem %s1, 616
  %1418 = vst.msk [vmem:[%s1417] sm:$0x10] %vm1408, %v1407
  %s1419 = scalar_lea.vmem %s1, 743
  %1420 = vst.msk [vmem:[%s1419] sm:$0x20] %vm1408, %v1407
  %s1421 = scalar_lea.vmem %s1, 870
  %1422 = vst.msk [vmem:[%s1421] sm:$0x40] %vm1408, %v1407
  %s1423 = scalar_lea.vmem %s1, 997
  %1424 = vst.msk [vmem:[%s1423] sm:$0x80] %vm1408, %v1407
  %v1425 = vld [vmem:[%s0] ss:$3 sm:$0xff]
  %1426 = vrot.lane.b32.xlu0 %v1425, 59
  %v1427 = vpop.permute.xlu0 %1426
  %vm1428 = vcmask 23552
  %s1429 = scalar_lea.vmem %s1, 23
  %1430 = vst.msk [vmem:[%s1429] sm:$0x1] %vm1428, %v1427
  %s1431 = scalar_lea.vmem %s1, 150
  %1432 = vst.msk [vmem:[%s1431] sm:$0x2] %vm1428, %v1427
  %s1433 = scalar_lea.vmem %s1, 277
  %1434 = vst.msk [vmem:[%s1433] sm:$0x4] %vm1428, %v1427
  %s1435 = scalar_lea.vmem %s1, 404
  %1436 = vst.msk [vmem:[%s1435] sm:$0x8] %vm1428, %v1427
  %s1437 = scalar_lea.vmem %s1, 531
  %1438 = vst.msk [vmem:[%s1437] sm:$0x10] %vm1428, %v1427
  %s1439 = scalar_lea.vmem %s1, 658
  %1440 = vst.msk [vmem:[%s1439] sm:$0x20] %vm1428, %v1427
  %s1441 = scalar_lea.vmem %s1, 785
  %1442 = vst.msk [vmem:[%s1441] sm:$0x40] %vm1428, %v1427
  %s1443 = scalar_lea.vmem %s1, 912
  %1444 = vst.msk [vmem:[%s1443] sm:$0x80] %vm1428, %v1427
  %s1445 = scalar_lea.vmem %s0, 1
  %v1446 = vld [vmem:[%s1445] ss:$3 sm:$0xff]
  %1447 = vrot.lane.b32.xlu0 %v1446, 58
  %v1448 = vpop.permute.xlu0 %1447
  %vm1449 = vcmask 23552
  %s1450 = scalar_lea.vmem %s1, 66
  %1451 = vst.msk [vmem:[%s1450] sm:$0x1] %vm1449, %v1448
  %s1452 = scalar_lea.vmem %s1, 193
  %1453 = vst.msk [vmem:[%s1452] sm:$0x2] %vm1449, %v1448
  %s1454 = scalar_lea.vmem %s1, 320
  %1455 = vst.msk [vmem:[%s1454] sm:$0x4] %vm1449, %v1448
  %s1456 = scalar_lea.vmem %s1, 447
  %1457 = vst.msk [vmem:[%s1456] sm:$0x8] %vm1449, %v1448
  %s1458 = scalar_lea.vmem %s1, 574
  %1459 = vst.msk [vmem:[%s1458] sm:$0x10] %vm1449, %v1448
  %s1460 = scalar_lea.vmem %s1, 701
  %1461 = vst.msk [vmem:[%s1460] sm:$0x20] %vm1449, %v1448
  %s1462 = scalar_lea.vmem %s1, 828
  %1463 = vst.msk [vmem:[%s1462] sm:$0x40] %vm1449, %v1448
  %s1464 = scalar_lea.vmem %s1, 955
  %1465 = vst.msk [vmem:[%s1464] sm:$0x80] %vm1449, %v1448
  %s1466 = scalar_lea.vmem %s0, 2
  %v1467 = vld [vmem:[%s1466] ss:$3 sm:$0xff]
  %1468 = vrot.lane.b32.xlu0 %v1467, 57
  %v1469 = vpop.permute.xlu0 %1468
  %vm1470 = vcmask 23552
  %s1471 = scalar_lea.vmem %s1, 109
  %1472 = vst.msk [vmem:[%s1471] sm:$0x1] %vm1470, %v1469
  %s1473 = scalar_lea.vmem %s1, 236
  %1474 = vst.msk [vmem:[%s1473] sm:$0x2] %vm1470, %v1469
  %s1475 = scalar_lea.vmem %s1, 363
  %1476 = vst.msk [vmem:[%s1475] sm:$0x4] %vm1470, %v1469
  %s1477 = scalar_lea.vmem %s1, 490
  %1478 = vst.msk [vmem:[%s1477] sm:$0x8] %vm1470, %v1469
  %s1479 = scalar_lea.vmem %s1, 617
  %1480 = vst.msk [vmem:[%s1479] sm:$0x10] %vm1470, %v1469
  %s1481 = scalar_lea.vmem %s1, 744
  %1482 = vst.msk [vmem:[%s1481] sm:$0x20] %vm1470, %v1469
  %s1483 = scalar_lea.vmem %s1, 871
  %1484 = vst.msk [vmem:[%s1483] sm:$0x40] %vm1470, %v1469
  %s1485 = scalar_lea.vmem %s1, 998
  %1486 = vst.msk [vmem:[%s1485] sm:$0x80] %vm1470, %v1469
  %v1487 = vld [vmem:[%s0] ss:$3 sm:$0xff]
  %1488 = vrot.lane.b32.xlu0 %v1487, 56
  %v1489 = vpop.permute.xlu0 %1488
  %vm1490 = vcmask 23552
  %s1491 = scalar_lea.vmem %s1, 24
  %1492 = vst.msk [vmem:[%s1491] sm:$0x1] %vm1490, %v1489
  %s1493 = scalar_lea.vmem %s1, 151
  %1494 = vst.msk [vmem:[%s1493] sm:$0x2] %vm1490, %v1489
  %s1495 = scalar_lea.vmem %s1, 278
  %1496 = vst.msk [vmem:[%s1495] sm:$0x4] %vm1490, %v1489
  %s1497 = scalar_lea.vmem %s1, 405
  %1498 = vst.msk [vmem:[%s1497] sm:$0x8] %vm1490, %v1489
  %s1499 = scalar_lea.vmem %s1, 532
  %1500 = vst.msk [vmem:[%s1499] sm:$0x10] %vm1490, %v1489
  %s1501 = scalar_lea.vmem %s1, 659
  %1502 = vst.msk [vmem:[%s1501] sm:$0x20] %vm1490, %v1489
  %s1503 = scalar_lea.vmem %s1, 786
  %1504 = vst.msk [vmem:[%s1503] sm:$0x40] %vm1490, %v1489
  %s1505 = scalar_lea.vmem %s1, 913
  %1506 = vst.msk [vmem:[%s1505] sm:$0x80] %vm1490, %v1489
  %s1507 = scalar_lea.vmem %s0, 1
  %v1508 = vld [vmem:[%s1507] ss:$3 sm:$0xff]
  %1509 = vrot.lane.b32.xlu0 %v1508, 55
  %v1510 = vpop.permute.xlu0 %1509
  %vm1511 = vcmask 23552
  %s1512 = scalar_lea.vmem %s1, 67
  %1513 = vst.msk [vmem:[%s1512] sm:$0x1] %vm1511, %v1510
  %s1514 = scalar_lea.vmem %s1, 194
  %1515 = vst.msk [vmem:[%s1514] sm:$0x2] %vm1511, %v1510
  %s1516 = scalar_lea.vmem %s1, 321
  %1517 = vst.msk [vmem:[%s1516] sm:$0x4] %vm1511, %v1510
  %s1518 = scalar_lea.vmem %s1, 448
  %1519 = vst.msk [vmem:[%s1518] sm:$0x8] %vm1511, %v1510
  %s1520 = scalar_lea.vmem %s1, 575
  %1521 = vst.msk [vmem:[%s1520] sm:$0x10] %vm1511, %v1510
  %s1522 = scalar_lea.vmem %s1, 702
  %1523 = vst.msk [vmem:[%s1522] sm:$0x20] %vm1511, %v1510
  %s1524 = scalar_lea.vmem %s1, 829
  %1525 = vst.msk [vmem:[%s1524] sm:$0x40] %vm1511, %v1510
  %s1526 = scalar_lea.vmem %s1, 956
  %1527 = vst.msk [vmem:[%s1526] sm:$0x80] %vm1511, %v1510
  %s1528 = scalar_lea.vmem %s0, 2
  %v1529 = vld [vmem:[%s1528] ss:$3 sm:$0xff]
  %1530 = vrot.lane.b32.xlu0 %v1529, 54
  %v1531 = vpop.permute.xlu0 %1530
  %vm1532 = vcmask 23552
  %s1533 = scalar_lea.vmem %s1, 110
  %1534 = vst.msk [vmem:[%s1533] sm:$0x1] %vm1532, %v1531
  %s1535 = scalar_lea.vmem %s1, 237
  %1536 = vst.msk [vmem:[%s1535] sm:$0x2] %vm1532, %v1531
  %s1537 = scalar_lea.vmem %s1, 364
  %1538 = vst.msk [vmem:[%s1537] sm:$0x4] %vm1532, %v1531
  %s1539 = scalar_lea.vmem %s1, 491
  %1540 = vst.msk [vmem:[%s1539] sm:$0x8] %vm1532, %v1531
  %s1541 = scalar_lea.vmem %s1, 618
  %1542 = vst.msk [vmem:[%s1541] sm:$0x10] %vm1532, %v1531
  %s1543 = scalar_lea.vmem %s1, 745
  %1544 = vst.msk [vmem:[%s1543] sm:$0x20] %vm1532, %v1531
  %s1545 = scalar_lea.vmem %s1, 872
  %1546 = vst.msk [vmem:[%s1545] sm:$0x40] %vm1532, %v1531
  %s1547 = scalar_lea.vmem %s1, 999
  %1548 = vst.msk [vmem:[%s1547] sm:$0x80] %vm1532, %v1531
  %v1549 = vld [vmem:[%s0] ss:$3 sm:$0xff]
  %1550 = vrot.lane.b32.xlu0 %v1549, 53
  %v1551 = vpop.permute.xlu0 %1550
  %vm1552 = vcmask 23552
  %s1553 = scalar_lea.vmem %s1, 25
  %1554 = vst.msk [vmem:[%s1553] sm:$0x1] %vm1552, %v1551
  %s1555 = scalar_lea.vmem %s1, 152
  %1556 = vst.msk [vmem:[%s1555] sm:$0x2] %vm1552, %v1551
  %s1557 = scalar_lea.vmem %s1, 279
  %1558 = vst.msk [vmem:[%s1557] sm:$0x4] %vm1552, %v1551
  %s1559 = scalar_lea.vmem %s1, 406
  %1560 = vst.msk [vmem:[%s1559] sm:$0x8] %vm1552, %v1551
  %s1561 = scalar_lea.vmem %s1, 533
  %1562 = vst.msk [vmem:[%s1561] sm:$0x10] %vm1552, %v1551
  %s1563 = scalar_lea.vmem %s1, 660
  %1564 = vst.msk [vmem:[%s1563] sm:$0x20] %vm1552, %v1551
  %s1565 = scalar_lea.vmem %s1, 787
  %1566 = vst.msk [vmem:[%s1565] sm:$0x40] %vm1552, %v1551
  %s1567 = scalar_lea.vmem %s1, 914
  %1568 = vst.msk [vmem:[%s1567] sm:$0x80] %vm1552, %v1551
  %s1569 = scalar_lea.vmem %s0, 1
  %v1570 = vld [vmem:[%s1569] ss:$3 sm:$0xff]
  %1571 = vrot.lane.b32.xlu0 %v1570, 52
  %v1572 = vpop.permute.xlu0 %1571
  %vm1573 = vcmask 23552
  %s1574 = scalar_lea.vmem %s1, 68
  %1575 = vst.msk [vmem:[%s1574] sm:$0x1] %vm1573, %v1572
  %s1576 = scalar_lea.vmem %s1, 195
  %1577 = vst.msk [vmem:[%s1576] sm:$0x2] %vm1573, %v1572
  %s1578 = scalar_lea.vmem %s1, 322
  %1579 = vst.msk [vmem:[%s1578] sm:$0x4] %vm1573, %v1572
  %s1580 = scalar_lea.vmem %s1, 449
  %1581 = vst.msk [vmem:[%s1580] sm:$0x8] %vm1573, %v1572
  %s1582 = scalar_lea.vmem %s1, 576
  %1583 = vst.msk [vmem:[%s1582] sm:$0x10] %vm1573, %v1572
  %s1584 = scalar_lea.vmem %s1, 703
  %1585 = vst.msk [vmem:[%s1584] sm:$0x20] %vm1573, %v1572
  %s1586 = scalar_lea.vmem %s1, 830
  %1587 = vst.msk [vmem:[%s1586] sm:$0x40] %vm1573, %v1572
  %s1588 = scalar_lea.vmem %s1, 957
  %1589 = vst.msk [vmem:[%s1588] sm:$0x80] %vm1573, %v1572
  %s1590 = scalar_lea.vmem %s0, 2
  %v1591 = vld [vmem:[%s1590] ss:$3 sm:$0xff]
  %1592 = vrot.lane.b32.xlu0 %v1591, 51
  %v1593 = vpop.permute.xlu0 %1592
  %vm1594 = vcmask 23552
  %s1595 = scalar_lea.vmem %s1, 111
  %1596 = vst.msk [vmem:[%s1595] sm:$0x1] %vm1594, %v1593
  %s1597 = scalar_lea.vmem %s1, 238
  %1598 = vst.msk [vmem:[%s1597] sm:$0x2] %vm1594, %v1593
  %s1599 = scalar_lea.vmem %s1, 365
  %1600 = vst.msk [vmem:[%s1599] sm:$0x4] %vm1594, %v1593
  %s1601 = scalar_lea.vmem %s1, 492
  %1602 = vst.msk [vmem:[%s1601] sm:$0x8] %vm1594, %v1593
  %s1603 = scalar_lea.vmem %s1, 619
  %1604 = vst.msk [vmem:[%s1603] sm:$0x10] %vm1594, %v1593
  %s1605 = scalar_lea.vmem %s1, 746
  %1606 = vst.msk [vmem:[%s1605] sm:$0x20] %vm1594, %v1593
  %s1607 = scalar_lea.vmem %s1, 873
  %1608 = vst.msk [vmem:[%s1607] sm:$0x40] %vm1594, %v1593
  %s1609 = scalar_lea.vmem %s1, 1000
  %1610 = vst.msk [vmem:[%s1609] sm:$0x80] %vm1594, %v1593
  %v1611 = vld [vmem:[%s0] ss:$3 sm:$0xff]
  %1612 = vrot.lane.b32.xlu0 %v1611, 50
  %v1613 = vpop.permute.xlu0 %1612
  %vm1614 = vcmask 23552
  %s1615 = scalar_lea.vmem %s1, 26
  %1616 = vst.msk [vmem:[%s1615] sm:$0x1] %vm1614, %v1613
  %s1617 = scalar_lea.vmem %s1, 153
  %1618 = vst.msk [vmem:[%s1617] sm:$0x2] %vm1614, %v1613
  %s1619 = scalar_lea.vmem %s1, 280
  %1620 = vst.msk [vmem:[%s1619] sm:$0x4] %vm1614, %v1613
  %s1621 = scalar_lea.vmem %s1, 407
  %1622 = vst.msk [vmem:[%s1621] sm:$0x8] %vm1614, %v1613
  %s1623 = scalar_lea.vmem %s1, 534
  %1624 = vst.msk [vmem:[%s1623] sm:$0x10] %vm1614, %v1613
  %s1625 = scalar_lea.vmem %s1, 661
  %1626 = vst.msk [vmem:[%s1625] sm:$0x20] %vm1614, %v1613
  %s1627 = scalar_lea.vmem %s1, 788
  %1628 = vst.msk [vmem:[%s1627] sm:$0x40] %vm1614, %v1613
  %s1629 = scalar_lea.vmem %s1, 915
  %1630 = vst.msk [vmem:[%s1629] sm:$0x80] %vm1614, %v1613
  %s1631 = scalar_lea.vmem %s0, 1
  %v1632 = vld [vmem:[%s1631] ss:$3 sm:$0xff]
  %1633 = vrot.lane.b32.xlu0 %v1632, 49
  %v1634 = vpop.permute.xlu0 %1633
  %vm1635 = vcmask 23552
  %s1636 = scalar_lea.vmem %s1, 69
  %1637 = vst.msk [vmem:[%s1636] sm:$0x1] %vm1635, %v1634
  %s1638 = scalar_lea.vmem %s1, 196
  %1639 = vst.msk [vmem:[%s1638] sm:$0x2] %vm1635, %v1634
  %s1640 = scalar_lea.vmem %s1, 323
  %1641 = vst.msk [vmem:[%s1640] sm:$0x4] %vm1635, %v1634
  %s1642 = scalar_lea.vmem %s1, 450
  %1643 = vst.msk [vmem:[%s1642] sm:$0x8] %vm1635, %v1634
  %s1644 = scalar_lea.vmem %s1, 577
  %1645 = vst.msk [vmem:[%s1644] sm:$0x10] %vm1635, %v1634
  %s1646 = scalar_lea.vmem %s1, 704
  %1647 = vst.msk [vmem:[%s1646] sm:$0x20] %vm1635, %v1634
  %s1648 = scalar_lea.vmem %s1, 831
  %1649 = vst.msk [vmem:[%s1648] sm:$0x40] %vm1635, %v1634
  %s1650 = scalar_lea.vmem %s1, 958
  %1651 = vst.msk [vmem:[%s1650] sm:$0x80] %vm1635, %v1634
  %s1652 = scalar_lea.vmem %s0, 2
  %v1653 = vld [vmem:[%s1652] ss:$3 sm:$0xff]
  %1654 = vrot.lane.b32.xlu0 %v1653, 48
  %v1655 = vpop.permute.xlu0 %1654
  %vm1656 = vcmask 23552
  %s1657 = scalar_lea.vmem %s1, 112
  %1658 = vst.msk [vmem:[%s1657] sm:$0x1] %vm1656, %v1655
  %s1659 = scalar_lea.vmem %s1, 239
  %1660 = vst.msk [vmem:[%s1659] sm:$0x2] %vm1656, %v1655
  %s1661 = scalar_lea.vmem %s1, 366
  %1662 = vst.msk [vmem:[%s1661] sm:$0x4] %vm1656, %v1655
  %s1663 = scalar_lea.vmem %s1, 493
  %1664 = vst.msk [vmem:[%s1663] sm:$0x8] %vm1656, %v1655
  %s1665 = scalar_lea.vmem %s1, 620
  %1666 = vst.msk [vmem:[%s1665] sm:$0x10] %vm1656, %v1655
  %s1667 = scalar_lea.vmem %s1, 747
  %1668 = vst.msk [vmem:[%s1667] sm:$0x20] %vm1656, %v1655
  %s1669 = scalar_lea.vmem %s1, 874
  %1670 = vst.msk [vmem:[%s1669] sm:$0x40] %vm1656, %v1655
  %s1671 = scalar_lea.vmem %s1, 1001
  %1672 = vst.msk [vmem:[%s1671] sm:$0x80] %vm1656, %v1655
  %v1673 = vld [vmem:[%s0] ss:$3 sm:$0xff]
  %1674 = vrot.lane.b32.xlu0 %v1673, 47
  %v1675 = vpop.permute.xlu0 %1674
  %vm1676 = vcmask 23552
  %s1677 = scalar_lea.vmem %s1, 27
  %1678 = vst.msk [vmem:[%s1677] sm:$0x1] %vm1676, %v1675
  %s1679 = scalar_lea.vmem %s1, 154
  %1680 = vst.msk [vmem:[%s1679] sm:$0x2] %vm1676, %v1675
  %s1681 = scalar_lea.vmem %s1, 281
  %1682 = vst.msk [vmem:[%s1681] sm:$0x4] %vm1676, %v1675
  %s1683 = scalar_lea.vmem %s1, 408
  %1684 = vst.msk [vmem:[%s1683] sm:$0x8] %vm1676, %v1675
  %s1685 = scalar_lea.vmem %s1, 535
  %1686 = vst.msk [vmem:[%s1685] sm:$0x10] %vm1676, %v1675
  %s1687 = scalar_lea.vmem %s1, 662
  %1688 = vst.msk [vmem:[%s1687] sm:$0x20] %vm1676, %v1675
  %s1689 = scalar_lea.vmem %s1, 789
  %1690 = vst.msk [vmem:[%s1689] sm:$0x40] %vm1676, %v1675
  %s1691 = scalar_lea.vmem %s1, 916
  %1692 = vst.msk [vmem:[%s1691] sm:$0x80] %vm1676, %v1675
  %s1693 = scalar_lea.vmem %s0, 1
  %v1694 = vld [vmem:[%s1693] ss:$3 sm:$0xff]
  %1695 = vrot.lane.b32.xlu0 %v1694, 46
  %v1696 = vpop.permute.xlu0 %1695
  %vm1697 = vcmask 23552
  %s1698 = scalar_lea.vmem %s1, 70
  %1699 = vst.msk [vmem:[%s1698] sm:$0x1] %vm1697, %v1696
  %s1700 = scalar_lea.vmem %s1, 197
  %1701 = vst.msk [vmem:[%s1700] sm:$0x2] %vm1697, %v1696
  %s1702 = scalar_lea.vmem %s1, 324
  %1703 = vst.msk [vmem:[%s1702] sm:$0x4] %vm1697, %v1696
  %s1704 = scalar_lea.vmem %s1, 451
  %1705 = vst.msk [vmem:[%s1704] sm:$0x8] %vm1697, %v1696
  %s1706 = scalar_lea.vmem %s1, 578
  %1707 = vst.msk [vmem:[%s1706] sm:$0x10] %vm1697, %v1696
  %s1708 = scalar_lea.vmem %s1, 705
  %1709 = vst.msk [vmem:[%s1708] sm:$0x20] %vm1697, %v1696
  %s1710 = scalar_lea.vmem %s1, 832
  %1711 = vst.msk [vmem:[%s1710] sm:$0x40] %vm1697, %v1696
  %s1712 = scalar_lea.vmem %s1, 959
  %1713 = vst.msk [vmem:[%s1712] sm:$0x80] %vm1697, %v1696
  %s1714 = scalar_lea.vmem %s0, 2
  %v1715 = vld [vmem:[%s1714] ss:$3 sm:$0xff]
  %1716 = vrot.lane.b32.xlu0 %v1715, 45
  %v1717 = vpop.permute.xlu0 %1716
  %vm1718 = vcmask 23552
  %s1719 = scalar_lea.vmem %s1, 113
  %1720 = vst.msk [vmem:[%s1719] sm:$0x1] %vm1718, %v1717
  %s1721 = scalar_lea.vmem %s1, 240
  %1722 = vst.msk [vmem:[%s1721] sm:$0x2] %vm1718, %v1717
  %s1723 = scalar_lea.vmem %s1, 367
  %1724 = vst.msk [vmem:[%s1723] sm:$0x4] %vm1718, %v1717
  %s1725 = scalar_lea.vmem %s1, 494
  %1726 = vst.msk [vmem:[%s1725] sm:$0x8] %vm1718, %v1717
  %s1727 = scalar_lea.vmem %s1, 621
  %1728 = vst.msk [vmem:[%s1727] sm:$0x10] %vm1718, %v1717
  %s1729 = scalar_lea.vmem %s1, 748
  %1730 = vst.msk [vmem:[%s1729] sm:$0x20] %vm1718, %v1717
  %s1731 = scalar_lea.vmem %s1, 875
  %1732 = vst.msk [vmem:[%s1731] sm:$0x40] %vm1718, %v1717
  %s1733 = scalar_lea.vmem %s1, 1002
  %1734 = vst.msk [vmem:[%s1733] sm:$0x80] %vm1718, %v1717
  %v1735 = vld [vmem:[%s0] ss:$3 sm:$0xff]
  %1736 = vrot.lane.b32.xlu0 %v1735, 44
  %v1737 = vpop.permute.xlu0 %1736
  %vm1738 = vcmask 23552
  %s1739 = scalar_lea.vmem %s1, 28
  %1740 = vst.msk [vmem:[%s1739] sm:$0x1] %vm1738, %v1737
  %s1741 = scalar_lea.vmem %s1, 155
  %1742 = vst.msk [vmem:[%s1741] sm:$0x2] %vm1738, %v1737
  %s1743 = scalar_lea.vmem %s1, 282
  %1744 = vst.msk [vmem:[%s1743] sm:$0x4] %vm1738, %v1737
  %s1745 = scalar_lea.vmem %s1, 409
  %1746 = vst.msk [vmem:[%s1745] sm:$0x8] %vm1738, %v1737
  %s1747 = scalar_lea.vmem %s1, 536
  %1748 = vst.msk [vmem:[%s1747] sm:$0x10] %vm1738, %v1737
  %s1749 = scalar_lea.vmem %s1, 663
  %1750 = vst.msk [vmem:[%s1749] sm:$0x20] %vm1738, %v1737
  %s1751 = scalar_lea.vmem %s1, 790
  %1752 = vst.msk [vmem:[%s1751] sm:$0x40] %vm1738, %v1737
  %s1753 = scalar_lea.vmem %s1, 917
  %1754 = vst.msk [vmem:[%s1753] sm:$0x80] %vm1738, %v1737
  %s1755 = scalar_lea.vmem %s0, 1
  %v1756 = vld [vmem:[%s1755] ss:$3 sm:$0xff]
  %1757 = vrot.lane.b32.xlu0 %v1756, 43
  %v1758 = vpop.permute.xlu0 %1757
  %vm1759 = vcmask 23552
  %s1760 = scalar_lea.vmem %s1, 71
  %1761 = vst.msk [vmem:[%s1760] sm:$0x1] %vm1759, %v1758
  %s1762 = scalar_lea.vmem %s1, 198
  %1763 = vst.msk [vmem:[%s1762] sm:$0x2] %vm1759, %v1758
  %s1764 = scalar_lea.vmem %s1, 325
  %1765 = vst.msk [vmem:[%s1764] sm:$0x4] %vm1759, %v1758
  %s1766 = scalar_lea.vmem %s1, 452
  %1767 = vst.msk [vmem:[%s1766] sm:$0x8] %vm1759, %v1758
  %s1768 = scalar_lea.vmem %s1, 579
  %1769 = vst.msk [vmem:[%s1768] sm:$0x10] %vm1759, %v1758
  %s1770 = scalar_lea.vmem %s1, 706
  %1771 = vst.msk [vmem:[%s1770] sm:$0x20] %vm1759, %v1758
  %s1772 = scalar_lea.vmem %s1, 833
  %1773 = vst.msk [vmem:[%s1772] sm:$0x40] %vm1759, %v1758
  %s1774 = scalar_lea.vmem %s1, 960
  %1775 = vst.msk [vmem:[%s1774] sm:$0x80] %vm1759, %v1758
  %s1776 = scalar_lea.vmem %s0, 2
  %v1777 = vld [vmem:[%s1776] ss:$3 sm:$0xff]
  %1778 = vrot.lane.b32.xlu0 %v1777, 42
  %v1779 = vpop.permute.xlu0 %1778
  %vm1780 = vcmask 23552
  %s1781 = scalar_lea.vmem %s1, 114
  %1782 = vst.msk [vmem:[%s1781] sm:$0x1] %vm1780, %v1779
  %s1783 = scalar_lea.vmem %s1, 241
  %1784 = vst.msk [vmem:[%s1783] sm:$0x2] %vm1780, %v1779
  %s1785 = scalar_lea.vmem %s1, 368
  %1786 = vst.msk [vmem:[%s1785] sm:$0x4] %vm1780, %v1779
  %s1787 = scalar_lea.vmem %s1, 495
  %1788 = vst.msk [vmem:[%s1787] sm:$0x8] %vm1780, %v1779
  %s1789 = scalar_lea.vmem %s1, 622
  %1790 = vst.msk [vmem:[%s1789] sm:$0x10] %vm1780, %v1779
  %s1791 = scalar_lea.vmem %s1, 749
  %1792 = vst.msk [vmem:[%s1791] sm:$0x20] %vm1780, %v1779
  %s1793 = scalar_lea.vmem %s1, 876
  %1794 = vst.msk [vmem:[%s1793] sm:$0x40] %vm1780, %v1779
  %s1795 = scalar_lea.vmem %s1, 1003
  %1796 = vst.msk [vmem:[%s1795] sm:$0x80] %vm1780, %v1779
  %v1797 = vld [vmem:[%s0] ss:$3 sm:$0xff]
  %1798 = vrot.lane.b32.xlu0 %v1797, 41
  %v1799 = vpop.permute.xlu0 %1798
  %vm1800 = vcmask 23552
  %s1801 = scalar_lea.vmem %s1, 29
  %1802 = vst.msk [vmem:[%s1801] sm:$0x1] %vm1800, %v1799
  %s1803 = scalar_lea.vmem %s1, 156
  %1804 = vst.msk [vmem:[%s1803] sm:$0x2] %vm1800, %v1799
  %s1805 = scalar_lea.vmem %s1, 283
  %1806 = vst.msk [vmem:[%s1805] sm:$0x4] %vm1800, %v1799
  %s1807 = scalar_lea.vmem %s1, 410
  %1808 = vst.msk [vmem:[%s1807] sm:$0x8] %vm1800, %v1799
  %s1809 = scalar_lea.vmem %s1, 537
  %1810 = vst.msk [vmem:[%s1809] sm:$0x10] %vm1800, %v1799
  %s1811 = scalar_lea.vmem %s1, 664
  %1812 = vst.msk [vmem:[%s1811] sm:$0x20] %vm1800, %v1799
  %s1813 = scalar_lea.vmem %s1, 791
  %1814 = vst.msk [vmem:[%s1813] sm:$0x40] %vm1800, %v1799
  %s1815 = scalar_lea.vmem %s1, 918
  %1816 = vst.msk [vmem:[%s1815] sm:$0x80] %vm1800, %v1799
  %s1817 = scalar_lea.vmem %s0, 1
  %v1818 = vld [vmem:[%s1817] ss:$3 sm:$0xff]
  %1819 = vrot.lane.b32.xlu0 %v1818, 40
  %v1820 = vpop.permute.xlu0 %1819
  %vm1821 = vcmask 23552
  %s1822 = scalar_lea.vmem %s1, 72
  %1823 = vst.msk [vmem:[%s1822] sm:$0x1] %vm1821, %v1820
  %s1824 = scalar_lea.vmem %s1, 199
  %1825 = vst.msk [vmem:[%s1824] sm:$0x2] %vm1821, %v1820
  %s1826 = scalar_lea.vmem %s1, 326
  %1827 = vst.msk [vmem:[%s1826] sm:$0x4] %vm1821, %v1820
  %s1828 = scalar_lea.vmem %s1, 453
  %1829 = vst.msk [vmem:[%s1828] sm:$0x8] %vm1821, %v1820
  %s1830 = scalar_lea.vmem %s1, 580
  %1831 = vst.msk [vmem:[%s1830] sm:$0x10] %vm1821, %v1820
  %s1832 = scalar_lea.vmem %s1, 707
  %1833 = vst.msk [vmem:[%s1832] sm:$0x20] %vm1821, %v1820
  %s1834 = scalar_lea.vmem %s1, 834
  %1835 = vst.msk [vmem:[%s1834] sm:$0x40] %vm1821, %v1820
  %s1836 = scalar_lea.vmem %s1, 961
  %1837 = vst.msk [vmem:[%s1836] sm:$0x80] %vm1821, %v1820
  %s1838 = scalar_lea.vmem %s0, 2
  %v1839 = vld [vmem:[%s1838] ss:$3 sm:$0xff]
  %1840 = vrot.lane.b32.xlu0 %v1839, 39
  %v1841 = vpop.permute.xlu0 %1840
  %vm1842 = vcmask 23552
  %s1843 = scalar_lea.vmem %s1, 115
  %1844 = vst.msk [vmem:[%s1843] sm:$0x1] %vm1842, %v1841
  %s1845 = scalar_lea.vmem %s1, 242
  %1846 = vst.msk [vmem:[%s1845] sm:$0x2] %vm1842, %v1841
  %s1847 = scalar_lea.vmem %s1, 369
  %1848 = vst.msk [vmem:[%s1847] sm:$0x4] %vm1842, %v1841
  %s1849 = scalar_lea.vmem %s1, 496
  %1850 = vst.msk [vmem:[%s1849] sm:$0x8] %vm1842, %v1841
  %s1851 = scalar_lea.vmem %s1, 623
  %1852 = vst.msk [vmem:[%s1851] sm:$0x10] %vm1842, %v1841
  %s1853 = scalar_lea.vmem %s1, 750
  %1854 = vst.msk [vmem:[%s1853] sm:$0x20] %vm1842, %v1841
  %s1855 = scalar_lea.vmem %s1, 877
  %1856 = vst.msk [vmem:[%s1855] sm:$0x40] %vm1842, %v1841
  %s1857 = scalar_lea.vmem %s1, 1004
  %1858 = vst.msk [vmem:[%s1857] sm:$0x80] %vm1842, %v1841
  %v1859 = vld [vmem:[%s0] ss:$3 sm:$0xff]
  %1860 = vrot.lane.b32.xlu0 %v1859, 38
  %v1861 = vpop.permute.xlu0 %1860
  %vm1862 = vcmask 23552
  %s1863 = scalar_lea.vmem %s1, 30
  %1864 = vst.msk [vmem:[%s1863] sm:$0x1] %vm1862, %v1861
  %s1865 = scalar_lea.vmem %s1, 157
  %1866 = vst.msk [vmem:[%s1865] sm:$0x2] %vm1862, %v1861
  %s1867 = scalar_lea.vmem %s1, 284
  %1868 = vst.msk [vmem:[%s1867] sm:$0x4] %vm1862, %v1861
  %s1869 = scalar_lea.vmem %s1, 411
  %1870 = vst.msk [vmem:[%s1869] sm:$0x8] %vm1862, %v1861
  %s1871 = scalar_lea.vmem %s1, 538
  %1872 = vst.msk [vmem:[%s1871] sm:$0x10] %vm1862, %v1861
  %s1873 = scalar_lea.vmem %s1, 665
  %1874 = vst.msk [vmem:[%s1873] sm:$0x20] %vm1862, %v1861
  %s1875 = scalar_lea.vmem %s1, 792
  %1876 = vst.msk [vmem:[%s1875] sm:$0x40] %vm1862, %v1861
  %s1877 = scalar_lea.vmem %s1, 919
  %1878 = vst.msk [vmem:[%s1877] sm:$0x80] %vm1862, %v1861
  %s1879 = scalar_lea.vmem %s0, 1
  %v1880 = vld [vmem:[%s1879] ss:$3 sm:$0xff]
  %1881 = vrot.lane.b32.xlu0 %v1880, 37
  %v1882 = vpop.permute.xlu0 %1881
  %vm1883 = vcmask 23552
  %s1884 = scalar_lea.vmem %s1, 73
  %1885 = vst.msk [vmem:[%s1884] sm:$0x1] %vm1883, %v1882
  %s1886 = scalar_lea.vmem %s1, 200
  %1887 = vst.msk [vmem:[%s1886] sm:$0x2] %vm1883, %v1882
  %s1888 = scalar_lea.vmem %s1, 327
  %1889 = vst.msk [vmem:[%s1888] sm:$0x4] %vm1883, %v1882
  %s1890 = scalar_lea.vmem %s1, 454
  %1891 = vst.msk [vmem:[%s1890] sm:$0x8] %vm1883, %v1882
  %s1892 = scalar_lea.vmem %s1, 581
  %1893 = vst.msk [vmem:[%s1892] sm:$0x10] %vm1883, %v1882
  %s1894 = scalar_lea.vmem %s1, 708
  %1895 = vst.msk [vmem:[%s1894] sm:$0x20] %vm1883, %v1882
  %s1896 = scalar_lea.vmem %s1, 835
  %1897 = vst.msk [vmem:[%s1896] sm:$0x40] %vm1883, %v1882
  %s1898 = scalar_lea.vmem %s1, 962
  %1899 = vst.msk [vmem:[%s1898] sm:$0x80] %vm1883, %v1882
  %s1900 = scalar_lea.vmem %s0, 2
  %v1901 = vld [vmem:[%s1900] ss:$3 sm:$0xff]
  %1902 = vrot.lane.b32.xlu0 %v1901, 36
  %v1903 = vpop.permute.xlu0 %1902
  %vm1904 = vcmask 23552
  %s1905 = scalar_lea.vmem %s1, 116
  %1906 = vst.msk [vmem:[%s1905] sm:$0x1] %vm1904, %v1903
  %s1907 = scalar_lea.vmem %s1, 243
  %1908 = vst.msk [vmem:[%s1907] sm:$0x2] %vm1904, %v1903
  %s1909 = scalar_lea.vmem %s1, 370
  %1910 = vst.msk [vmem:[%s1909] sm:$0x4] %vm1904, %v1903
  %s1911 = scalar_lea.vmem %s1, 497
  %1912 = vst.msk [vmem:[%s1911] sm:$0x8] %vm1904, %v1903
  %s1913 = scalar_lea.vmem %s1, 624
  %1914 = vst.msk [vmem:[%s1913] sm:$0x10] %vm1904, %v1903
  %s1915 = scalar_lea.vmem %s1, 751
  %1916 = vst.msk [vmem:[%s1915] sm:$0x20] %vm1904, %v1903
  %s1917 = scalar_lea.vmem %s1, 878
  %1918 = vst.msk [vmem:[%s1917] sm:$0x40] %vm1904, %v1903
  %s1919 = scalar_lea.vmem %s1, 1005
  %1920 = vst.msk [vmem:[%s1919] sm:$0x80] %vm1904, %v1903
  %v1921 = vld [vmem:[%s0] ss:$3 sm:$0xff]
  %1922 = vrot.lane.b32.xlu0 %v1921, 35
  %v1923 = vpop.permute.xlu0 %1922
  %vm1924 = vcmask 23552
  %s1925 = scalar_lea.vmem %s1, 31
  %1926 = vst.msk [vmem:[%s1925] sm:$0x1] %vm1924, %v1923
  %s1927 = scalar_lea.vmem %s1, 158
  %1928 = vst.msk [vmem:[%s1927] sm:$0x2] %vm1924, %v1923
  %s1929 = scalar_lea.vmem %s1, 285
  %1930 = vst.msk [vmem:[%s1929] sm:$0x4] %vm1924, %v1923
  %s1931 = scalar_lea.vmem %s1, 412
  %1932 = vst.msk [vmem:[%s1931] sm:$0x8] %vm1924, %v1923
  %s1933 = scalar_lea.vmem %s1, 539
  %1934 = vst.msk [vmem:[%s1933] sm:$0x10] %vm1924, %v1923
  %s1935 = scalar_lea.vmem %s1, 666
  %1936 = vst.msk [vmem:[%s1935] sm:$0x20] %vm1924, %v1923
  %s1937 = scalar_lea.vmem %s1, 793
  %1938 = vst.msk [vmem:[%s1937] sm:$0x40] %vm1924, %v1923
  %s1939 = scalar_lea.vmem %s1, 920
  %1940 = vst.msk [vmem:[%s1939] sm:$0x80] %vm1924, %v1923
  %s1941 = scalar_lea.vmem %s0, 1
  %v1942 = vld [vmem:[%s1941] ss:$3 sm:$0xff]
  %1943 = vrot.lane.b32.xlu0 %v1942, 34
  %v1944 = vpop.permute.xlu0 %1943
  %vm1945 = vcmask 23552
  %s1946 = scalar_lea.vmem %s1, 74
  %1947 = vst.msk [vmem:[%s1946] sm:$0x1] %vm1945, %v1944
  %s1948 = scalar_lea.vmem %s1, 201
  %1949 = vst.msk [vmem:[%s1948] sm:$0x2] %vm1945, %v1944
  %s1950 = scalar_lea.vmem %s1, 328
  %1951 = vst.msk [vmem:[%s1950] sm:$0x4] %vm1945, %v1944
  %s1952 = scalar_lea.vmem %s1, 455
  %1953 = vst.msk [vmem:[%s1952] sm:$0x8] %vm1945, %v1944
  %s1954 = scalar_lea.vmem %s1, 582
  %1955 = vst.msk [vmem:[%s1954] sm:$0x10] %vm1945, %v1944
  %s1956 = scalar_lea.vmem %s1, 709
  %1957 = vst.msk [vmem:[%s1956] sm:$0x20] %vm1945, %v1944
  %s1958 = scalar_lea.vmem %s1, 836
  %1959 = vst.msk [vmem:[%s1958] sm:$0x40] %vm1945, %v1944
  %s1960 = scalar_lea.vmem %s1, 963
  %1961 = vst.msk [vmem:[%s1960] sm:$0x80] %vm1945, %v1944
  %s1962 = scalar_lea.vmem %s0, 2
  %v1963 = vld [vmem:[%s1962] ss:$3 sm:$0xff]
  %1964 = vrot.lane.b32.xlu0 %v1963, 33
  %v1965 = vpop.permute.xlu0 %1964
  %vm1966 = vcmask 23552
  %s1967 = scalar_lea.vmem %s1, 117
  %1968 = vst.msk [vmem:[%s1967] sm:$0x1] %vm1966, %v1965
  %s1969 = scalar_lea.vmem %s1, 244
  %1970 = vst.msk [vmem:[%s1969] sm:$0x2] %vm1966, %v1965
  %s1971 = scalar_lea.vmem %s1, 371
  %1972 = vst.msk [vmem:[%s1971] sm:$0x4] %vm1966, %v1965
  %s1973 = scalar_lea.vmem %s1, 498
  %1974 = vst.msk [vmem:[%s1973] sm:$0x8] %vm1966, %v1965
  %s1975 = scalar_lea.vmem %s1, 625
  %1976 = vst.msk [vmem:[%s1975] sm:$0x10] %vm1966, %v1965
  %s1977 = scalar_lea.vmem %s1, 752
  %1978 = vst.msk [vmem:[%s1977] sm:$0x20] %vm1966, %v1965
  %s1979 = scalar_lea.vmem %s1, 879
  %1980 = vst.msk [vmem:[%s1979] sm:$0x40] %vm1966, %v1965
  %s1981 = scalar_lea.vmem %s1, 1006
  %1982 = vst.msk [vmem:[%s1981] sm:$0x80] %vm1966, %v1965
  %v1983 = vld [vmem:[%s0] ss:$3 sm:$0xff]
  %1984 = vrot.lane.b32.xlu0 %v1983, 32
  %v1985 = vpop.permute.xlu0 %1984
  %vm1986 = vcmask 23552
  %s1987 = scalar_lea.vmem %s1, 32
  %1988 = vst.msk [vmem:[%s1987] sm:$0x1] %vm1986, %v1985
  %s1989 = scalar_lea.vmem %s1, 159
  %1990 = vst.msk [vmem:[%s1989] sm:$0x2] %vm1986, %v1985
  %s1991 = scalar_lea.vmem %s1, 286
  %1992 = vst.msk [vmem:[%s1991] sm:$0x4] %vm1986, %v1985
  %s1993 = scalar_lea.vmem %s1, 413
  %1994 = vst.msk [vmem:[%s1993] sm:$0x8] %vm1986, %v1985
  %s1995 = scalar_lea.vmem %s1, 540
  %1996 = vst.msk [vmem:[%s1995] sm:$0x10] %vm1986, %v1985
  %s1997 = scalar_lea.vmem %s1, 667
  %1998 = vst.msk [vmem:[%s1997] sm:$0x20] %vm1986, %v1985
  %s1999 = scalar_lea.vmem %s1, 794
  %2000 = vst.msk [vmem:[%s1999] sm:$0x40] %vm1986, %v1985
  %s2001 = scalar_lea.vmem %s1, 921
  %2002 = vst.msk [vmem:[%s2001] sm:$0x80] %vm1986, %v1985
  %s2003 = scalar_lea.vmem %s0, 1
  %v2004 = vld [vmem:[%s2003] ss:$3 sm:$0xff]
  %2005 = vrot.lane.b32.xlu0 %v2004, 31
  %v2006 = vpop.permute.xlu0 %2005
  %vm2007 = vcmask 23552
  %s2008 = scalar_lea.vmem %s1, 75
  %2009 = vst.msk [vmem:[%s2008] sm:$0x1] %vm2007, %v2006
  %s2010 = scalar_lea.vmem %s1, 202
  %2011 = vst.msk [vmem:[%s2010] sm:$0x2] %vm2007, %v2006
  %s2012 = scalar_lea.vmem %s1, 329
  %2013 = vst.msk [vmem:[%s2012] sm:$0x4] %vm2007, %v2006
  %s2014 = scalar_lea.vmem %s1, 456
  %2015 = vst.msk [vmem:[%s2014] sm:$0x8] %vm2007, %v2006
  %s2016 = scalar_lea.vmem %s1, 583
  %2017 = vst.msk [vmem:[%s2016] sm:$0x10] %vm2007, %v2006
  %s2018 = scalar_lea.vmem %s1, 710
  %2019 = vst.msk [vmem:[%s2018] sm:$0x20] %vm2007, %v2006
  %s2020 = scalar_lea.vmem %s1, 837
  %2021 = vst.msk [vmem:[%s2020] sm:$0x40] %vm2007, %v2006
  %s2022 = scalar_lea.vmem %s1, 964
  %2023 = vst.msk [vmem:[%s2022] sm:$0x80] %vm2007, %v2006
  %s2024 = scalar_lea.vmem %s0, 2
  %v2025 = vld [vmem:[%s2024] ss:$3 sm:$0xff]
  %2026 = vrot.lane.b32.xlu0 %v2025, 30
  %v2027 = vpop.permute.xlu0 %2026
  %vm2028 = vcmask 23552
  %s2029 = scalar_lea.vmem %s1, 118
  %2030 = vst.msk [vmem:[%s2029] sm:$0x1] %vm2028, %v2027
  %s2031 = scalar_lea.vmem %s1, 245
  %2032 = vst.msk [vmem:[%s2031] sm:$0x2] %vm2028, %v2027
  %s2033 = scalar_lea.vmem %s1, 372
  %2034 = vst.msk [vmem:[%s2033] sm:$0x4] %vm2028, %v2027
  %s2035 = scalar_lea.vmem %s1, 499
  %2036 = vst.msk [vmem:[%s2035] sm:$0x8] %vm2028, %v2027
  %s2037 = scalar_lea.vmem %s1, 626
  %2038 = vst.msk [vmem:[%s2037] sm:$0x10] %vm2028, %v2027
  %s2039 = scalar_lea.vmem %s1, 753
  %2040 = vst.msk [vmem:[%s2039] sm:$0x20] %vm2028, %v2027
  %s2041 = scalar_lea.vmem %s1, 880
  %2042 = vst.msk [vmem:[%s2041] sm:$0x40] %vm2028, %v2027
  %s2043 = scalar_lea.vmem %s1, 1007
  %2044 = vst.msk [vmem:[%s2043] sm:$0x80] %vm2028, %v2027
  %v2045 = vld [vmem:[%s0] ss:$3 sm:$0xff]
  %2046 = vrot.lane.b32.xlu0 %v2045, 29
  %v2047 = vpop.permute.xlu0 %2046
  %vm2048 = vcmask 23552
  %s2049 = scalar_lea.vmem %s1, 33
  %2050 = vst.msk [vmem:[%s2049] sm:$0x1] %vm2048, %v2047
  %s2051 = scalar_lea.vmem %s1, 160
  %2052 = vst.msk [vmem:[%s2051] sm:$0x2] %vm2048, %v2047
  %s2053 = scalar_lea.vmem %s1, 287
  %2054 = vst.msk [vmem:[%s2053] sm:$0x4] %vm2048, %v2047
  %s2055 = scalar_lea.vmem %s1, 414
  %2056 = vst.msk [vmem:[%s2055] sm:$0x8] %vm2048, %v2047
  %s2057 = scalar_lea.vmem %s1, 541
  %2058 = vst.msk [vmem:[%s2057] sm:$0x10] %vm2048, %v2047
  %s2059 = scalar_lea.vmem %s1, 668
  %2060 = vst.msk [vmem:[%s2059] sm:$0x20] %vm2048, %v2047
  %s2061 = scalar_lea.vmem %s1, 795
  %2062 = vst.msk [vmem:[%s2061] sm:$0x40] %vm2048, %v2047
  %s2063 = scalar_lea.vmem %s1, 922
  %2064 = vst.msk [vmem:[%s2063] sm:$0x80] %vm2048, %v2047
  %s2065 = scalar_lea.vmem %s0, 1
  %v2066 = vld [vmem:[%s2065] ss:$3 sm:$0xff]
  %2067 = vrot.lane.b32.xlu0 %v2066, 28
  %v2068 = vpop.permute.xlu0 %2067
  %vm2069 = vcmask 23552
  %s2070 = scalar_lea.vmem %s1, 76
  %2071 = vst.msk [vmem:[%s2070] sm:$0x1] %vm2069, %v2068
  %s2072 = scalar_lea.vmem %s1, 203
  %2073 = vst.msk [vmem:[%s2072] sm:$0x2] %vm2069, %v2068
  %s2074 = scalar_lea.vmem %s1, 330
  %2075 = vst.msk [vmem:[%s2074] sm:$0x4] %vm2069, %v2068
  %s2076 = scalar_lea.vmem %s1, 457
  %2077 = vst.msk [vmem:[%s2076] sm:$0x8] %vm2069, %v2068
  %s2078 = scalar_lea.vmem %s1, 584
  %2079 = vst.msk [vmem:[%s2078] sm:$0x10] %vm2069, %v2068
  %s2080 = scalar_lea.vmem %s1, 711
  %2081 = vst.msk [vmem:[%s2080] sm:$0x20] %vm2069, %v2068
  %s2082 = scalar_lea.vmem %s1, 838
  %2083 = vst.msk [vmem:[%s2082] sm:$0x40] %vm2069, %v2068
  %s2084 = scalar_lea.vmem %s1, 965
  %2085 = vst.msk [vmem:[%s2084] sm:$0x80] %vm2069, %v2068
  %s2086 = scalar_lea.vmem %s0, 2
  %v2087 = vld [vmem:[%s2086] ss:$3 sm:$0xff]
  %2088 = vrot.lane.b32.xlu0 %v2087, 27
  %v2089 = vpop.permute.xlu0 %2088
  %vm2090 = vcmask 23552
  %s2091 = scalar_lea.vmem %s1, 119
  %2092 = vst.msk [vmem:[%s2091] sm:$0x1] %vm2090, %v2089
  %s2093 = scalar_lea.vmem %s1, 246
  %2094 = vst.msk [vmem:[%s2093] sm:$0x2] %vm2090, %v2089
  %s2095 = scalar_lea.vmem %s1, 373
  %2096 = vst.msk [vmem:[%s2095] sm:$0x4] %vm2090, %v2089
  %s2097 = scalar_lea.vmem %s1, 500
  %2098 = vst.msk [vmem:[%s2097] sm:$0x8] %vm2090, %v2089
  %s2099 = scalar_lea.vmem %s1, 627
  %2100 = vst.msk [vmem:[%s2099] sm:$0x10] %vm2090, %v2089
  %s2101 = scalar_lea.vmem %s1, 754
  %2102 = vst.msk [vmem:[%s2101] sm:$0x20] %vm2090, %v2089
  %s2103 = scalar_lea.vmem %s1, 881
  %2104 = vst.msk [vmem:[%s2103] sm:$0x40] %vm2090, %v2089
  %s2105 = scalar_lea.vmem %s1, 1008
  %2106 = vst.msk [vmem:[%s2105] sm:$0x80] %vm2090, %v2089
  %v2107 = vld [vmem:[%s0] ss:$3 sm:$0xff]
  %2108 = vrot.lane.b32.xlu0 %v2107, 26
  %v2109 = vpop.permute.xlu0 %2108
  %vm2110 = vcmask 23552
  %s2111 = scalar_lea.vmem %s1, 34
  %2112 = vst.msk [vmem:[%s2111] sm:$0x1] %vm2110, %v2109
  %s2113 = scalar_lea.vmem %s1, 161
  %2114 = vst.msk [vmem:[%s2113] sm:$0x2] %vm2110, %v2109
  %s2115 = scalar_lea.vmem %s1, 288
  %2116 = vst.msk [vmem:[%s2115] sm:$0x4] %vm2110, %v2109
  %s2117 = scalar_lea.vmem %s1, 415
  %2118 = vst.msk [vmem:[%s2117] sm:$0x8] %vm2110, %v2109
  %s2119 = scalar_lea.vmem %s1, 542
  %2120 = vst.msk [vmem:[%s2119] sm:$0x10] %vm2110, %v2109
  %s2121 = scalar_lea.vmem %s1, 669
  %2122 = vst.msk [vmem:[%s2121] sm:$0x20] %vm2110, %v2109
  %s2123 = scalar_lea.vmem %s1, 796
  %2124 = vst.msk [vmem:[%s2123] sm:$0x40] %vm2110, %v2109
  %s2125 = scalar_lea.vmem %s1, 923
  %2126 = vst.msk [vmem:[%s2125] sm:$0x80] %vm2110, %v2109
  %s2127 = scalar_lea.vmem %s0, 1
  %v2128 = vld [vmem:[%s2127] ss:$3 sm:$0xff]
  %2129 = vrot.lane.b32.xlu0 %v2128, 25
  %v2130 = vpop.permute.xlu0 %2129
  %vm2131 = vcmask 23552
  %s2132 = scalar_lea.vmem %s1, 77
  %2133 = vst.msk [vmem:[%s2132] sm:$0x1] %vm2131, %v2130
  %s2134 = scalar_lea.vmem %s1, 204
  %2135 = vst.msk [vmem:[%s2134] sm:$0x2] %vm2131, %v2130
  %s2136 = scalar_lea.vmem %s1, 331
  %2137 = vst.msk [vmem:[%s2136] sm:$0x4] %vm2131, %v2130
  %s2138 = scalar_lea.vmem %s1, 458
  %2139 = vst.msk [vmem:[%s2138] sm:$0x8] %vm2131, %v2130
  %s2140 = scalar_lea.vmem %s1, 585
  %2141 = vst.msk [vmem:[%s2140] sm:$0x10] %vm2131, %v2130
  %s2142 = scalar_lea.vmem %s1, 712
  %2143 = vst.msk [vmem:[%s2142] sm:$0x20] %vm2131, %v2130
  %s2144 = scalar_lea.vmem %s1, 839
  %2145 = vst.msk [vmem:[%s2144] sm:$0x40] %vm2131, %v2130
  %s2146 = scalar_lea.vmem %s1, 966
  %2147 = vst.msk [vmem:[%s2146] sm:$0x80] %vm2131, %v2130
  %s2148 = scalar_lea.vmem %s0, 2
  %v2149 = vld [vmem:[%s2148] ss:$3 sm:$0xff]
  %2150 = vrot.lane.b32.xlu0 %v2149, 24
  %v2151 = vpop.permute.xlu0 %2150
  %vm2152 = vcmask 23552
  %s2153 = scalar_lea.vmem %s1, 120
  %2154 = vst.msk [vmem:[%s2153] sm:$0x1] %vm2152, %v2151
  %s2155 = scalar_lea.vmem %s1, 247
  %2156 = vst.msk [vmem:[%s2155] sm:$0x2] %vm2152, %v2151
  %s2157 = scalar_lea.vmem %s1, 374
  %2158 = vst.msk [vmem:[%s2157] sm:$0x4] %vm2152, %v2151
  %s2159 = scalar_lea.vmem %s1, 501
  %2160 = vst.msk [vmem:[%s2159] sm:$0x8] %vm2152, %v2151
  %s2161 = scalar_lea.vmem %s1, 628
  %2162 = vst.msk [vmem:[%s2161] sm:$0x10] %vm2152, %v2151
  %s2163 = scalar_lea.vmem %s1, 755
  %2164 = vst.msk [vmem:[%s2163] sm:$0x20] %vm2152, %v2151
  %s2165 = scalar_lea.vmem %s1, 882
  %2166 = vst.msk [vmem:[%s2165] sm:$0x40] %vm2152, %v2151
  %s2167 = scalar_lea.vmem %s1, 1009
  %2168 = vst.msk [vmem:[%s2167] sm:$0x80] %vm2152, %v2151
  %v2169 = vld [vmem:[%s0] ss:$3 sm:$0xff]
  %2170 = vrot.lane.b32.xlu0 %v2169, 23
  %v2171 = vpop.permute.xlu0 %2170
  %vm2172 = vcmask 23552
  %s2173 = scalar_lea.vmem %s1, 35
  %2174 = vst.msk [vmem:[%s2173] sm:$0x1] %vm2172, %v2171
  %s2175 = scalar_lea.vmem %s1, 162
  %2176 = vst.msk [vmem:[%s2175] sm:$0x2] %vm2172, %v2171
  %s2177 = scalar_lea.vmem %s1, 289
  %2178 = vst.msk [vmem:[%s2177] sm:$0x4] %vm2172, %v2171
  %s2179 = scalar_lea.vmem %s1, 416
  %2180 = vst.msk [vmem:[%s2179] sm:$0x8] %vm2172, %v2171
  %s2181 = scalar_lea.vmem %s1, 543
  %2182 = vst.msk [vmem:[%s2181] sm:$0x10] %vm2172, %v2171
  %s2183 = scalar_lea.vmem %s1, 670
  %2184 = vst.msk [vmem:[%s2183] sm:$0x20] %vm2172, %v2171
  %s2185 = scalar_lea.vmem %s1, 797
  %2186 = vst.msk [vmem:[%s2185] sm:$0x40] %vm2172, %v2171
  %s2187 = scalar_lea.vmem %s1, 924
  %2188 = vst.msk [vmem:[%s2187] sm:$0x80] %vm2172, %v2171
  %s2189 = scalar_lea.vmem %s0, 1
  %v2190 = vld [vmem:[%s2189] ss:$3 sm:$0xff]
  %2191 = vrot.lane.b32.xlu0 %v2190, 22
  %v2192 = vpop.permute.xlu0 %2191
  %vm2193 = vcmask 23552
  %s2194 = scalar_lea.vmem %s1, 78
  %2195 = vst.msk [vmem:[%s2194] sm:$0x1] %vm2193, %v2192
  %s2196 = scalar_lea.vmem %s1, 205
  %2197 = vst.msk [vmem:[%s2196] sm:$0x2] %vm2193, %v2192
  %s2198 = scalar_lea.vmem %s1, 332
  %2199 = vst.msk [vmem:[%s2198] sm:$0x4] %vm2193, %v2192
  %s2200 = scalar_lea.vmem %s1, 459
  %2201 = vst.msk [vmem:[%s2200] sm:$0x8] %vm2193, %v2192
  %s2202 = scalar_lea.vmem %s1, 586
  %2203 = vst.msk [vmem:[%s2202] sm:$0x10] %vm2193, %v2192
  %s2204 = scalar_lea.vmem %s1, 713
  %2205 = vst.msk [vmem:[%s2204] sm:$0x20] %vm2193, %v2192
  %s2206 = scalar_lea.vmem %s1, 840
  %2207 = vst.msk [vmem:[%s2206] sm:$0x40] %vm2193, %v2192
  %s2208 = scalar_lea.vmem %s1, 967
  %2209 = vst.msk [vmem:[%s2208] sm:$0x80] %vm2193, %v2192
  %s2210 = scalar_lea.vmem %s0, 2
  %v2211 = vld [vmem:[%s2210] ss:$3 sm:$0xff]
  %2212 = vrot.lane.b32.xlu0 %v2211, 21
  %v2213 = vpop.permute.xlu0 %2212
  %vm2214 = vcmask 23552
  %s2215 = scalar_lea.vmem %s1, 121
  %2216 = vst.msk [vmem:[%s2215] sm:$0x1] %vm2214, %v2213
  %s2217 = scalar_lea.vmem %s1, 248
  %2218 = vst.msk [vmem:[%s2217] sm:$0x2] %vm2214, %v2213
  %s2219 = scalar_lea.vmem %s1, 375
  %2220 = vst.msk [vmem:[%s2219] sm:$0x4] %vm2214, %v2213
  %s2221 = scalar_lea.vmem %s1, 502
  %2222 = vst.msk [vmem:[%s2221] sm:$0x8] %vm2214, %v2213
  %s2223 = scalar_lea.vmem %s1, 629
  %2224 = vst.msk [vmem:[%s2223] sm:$0x10] %vm2214, %v2213
  %s2225 = scalar_lea.vmem %s1, 756
  %2226 = vst.msk [vmem:[%s2225] sm:$0x20] %vm2214, %v2213
  %s2227 = scalar_lea.vmem %s1, 883
  %2228 = vst.msk [vmem:[%s2227] sm:$0x40] %vm2214, %v2213
  %s2229 = scalar_lea.vmem %s1, 1010
  %2230 = vst.msk [vmem:[%s2229] sm:$0x80] %vm2214, %v2213
  %v2231 = vld [vmem:[%s0] ss:$3 sm:$0xff]
  %2232 = vrot.lane.b32.xlu0 %v2231, 20
  %v2233 = vpop.permute.xlu0 %2232
  %vm2234 = vcmask 23552
  %s2235 = scalar_lea.vmem %s1, 36
  %2236 = vst.msk [vmem:[%s2235] sm:$0x1] %vm2234, %v2233
  %s2237 = scalar_lea.vmem %s1, 163
  %2238 = vst.msk [vmem:[%s2237] sm:$0x2] %vm2234, %v2233
  %s2239 = scalar_lea.vmem %s1, 290
  %2240 = vst.msk [vmem:[%s2239] sm:$0x4] %vm2234, %v2233
  %s2241 = scalar_lea.vmem %s1, 417
  %2242 = vst.msk [vmem:[%s2241] sm:$0x8] %vm2234, %v2233
  %s2243 = scalar_lea.vmem %s1, 544
  %2244 = vst.msk [vmem:[%s2243] sm:$0x10] %vm2234, %v2233
  %s2245 = scalar_lea.vmem %s1, 671
  %2246 = vst.msk [vmem:[%s2245] sm:$0x20] %vm2234, %v2233
  %s2247 = scalar_lea.vmem %s1, 798
  %2248 = vst.msk [vmem:[%s2247] sm:$0x40] %vm2234, %v2233
  %s2249 = scalar_lea.vmem %s1, 925
  %2250 = vst.msk [vmem:[%s2249] sm:$0x80] %vm2234, %v2233
  %s2251 = scalar_lea.vmem %s0, 1
  %v2252 = vld [vmem:[%s2251] ss:$3 sm:$0xff]
  %2253 = vrot.lane.b32.xlu0 %v2252, 19
  %v2254 = vpop.permute.xlu0 %2253
  %vm2255 = vcmask 23552
  %s2256 = scalar_lea.vmem %s1, 79
  %2257 = vst.msk [vmem:[%s2256] sm:$0x1] %vm2255, %v2254
  %s2258 = scalar_lea.vmem %s1, 206
  %2259 = vst.msk [vmem:[%s2258] sm:$0x2] %vm2255, %v2254
  %s2260 = scalar_lea.vmem %s1, 333
  %2261 = vst.msk [vmem:[%s2260] sm:$0x4] %vm2255, %v2254
  %s2262 = scalar_lea.vmem %s1, 460
  %2263 = vst.msk [vmem:[%s2262] sm:$0x8] %vm2255, %v2254
  %s2264 = scalar_lea.vmem %s1, 587
  %2265 = vst.msk [vmem:[%s2264] sm:$0x10] %vm2255, %v2254
  %s2266 = scalar_lea.vmem %s1, 714
  %2267 = vst.msk [vmem:[%s2266] sm:$0x20] %vm2255, %v2254
  %s2268 = scalar_lea.vmem %s1, 841
  %2269 = vst.msk [vmem:[%s2268] sm:$0x40] %vm2255, %v2254
  %s2270 = scalar_lea.vmem %s1, 968
  %2271 = vst.msk [vmem:[%s2270] sm:$0x80] %vm2255, %v2254
  %s2272 = scalar_lea.vmem %s0, 2
  %v2273 = vld [vmem:[%s2272] ss:$3 sm:$0xff]
  %2274 = vrot.lane.b32.xlu0 %v2273, 18
  %v2275 = vpop.permute.xlu0 %2274
  %vm2276 = vcmask 23552
  %s2277 = scalar_lea.vmem %s1, 122
  %2278 = vst.msk [vmem:[%s2277] sm:$0x1] %vm2276, %v2275
  %s2279 = scalar_lea.vmem %s1, 249
  %2280 = vst.msk [vmem:[%s2279] sm:$0x2] %vm2276, %v2275
  %s2281 = scalar_lea.vmem %s1, 376
  %2282 = vst.msk [vmem:[%s2281] sm:$0x4] %vm2276, %v2275
  %s2283 = scalar_lea.vmem %s1, 503
  %2284 = vst.msk [vmem:[%s2283] sm:$0x8] %vm2276, %v2275
  %s2285 = scalar_lea.vmem %s1, 630
  %2286 = vst.msk [vmem:[%s2285] sm:$0x10] %vm2276, %v2275
  %s2287 = scalar_lea.vmem %s1, 757
  %2288 = vst.msk [vmem:[%s2287] sm:$0x20] %vm2276, %v2275
  %s2289 = scalar_lea.vmem %s1, 884
  %2290 = vst.msk [vmem:[%s2289] sm:$0x40] %vm2276, %v2275
  %s2291 = scalar_lea.vmem %s1, 1011
  %2292 = vst.msk [vmem:[%s2291] sm:$0x80] %vm2276, %v2275
  %v2293 = vld [vmem:[%s0] ss:$3 sm:$0xff]
  %2294 = vrot.lane.b32.xlu0 %v2293, 17
  %v2295 = vpop.permute.xlu0 %2294
  %vm2296 = vcmask 23552
  %s2297 = scalar_lea.vmem %s1, 37
  %2298 = vst.msk [vmem:[%s2297] sm:$0x1] %vm2296, %v2295
  %s2299 = scalar_lea.vmem %s1, 164
  %2300 = vst.msk [vmem:[%s2299] sm:$0x2] %vm2296, %v2295
  %s2301 = scalar_lea.vmem %s1, 291
  %2302 = vst.msk [vmem:[%s2301] sm:$0x4] %vm2296, %v2295
  %s2303 = scalar_lea.vmem %s1, 418
  %2304 = vst.msk [vmem:[%s2303] sm:$0x8] %vm2296, %v2295
  %s2305 = scalar_lea.vmem %s1, 545
  %2306 = vst.msk [vmem:[%s2305] sm:$0x10] %vm2296, %v2295
  %s2307 = scalar_lea.vmem %s1, 672
  %2308 = vst.msk [vmem:[%s2307] sm:$0x20] %vm2296, %v2295
  %s2309 = scalar_lea.vmem %s1, 799
  %2310 = vst.msk [vmem:[%s2309] sm:$0x40] %vm2296, %v2295
  %s2311 = scalar_lea.vmem %s1, 926
  %2312 = vst.msk [vmem:[%s2311] sm:$0x80] %vm2296, %v2295
  %s2313 = scalar_lea.vmem %s0, 1
  %v2314 = vld [vmem:[%s2313] ss:$3 sm:$0xff]
  %2315 = vrot.lane.b32.xlu0 %v2314, 16
  %v2316 = vpop.permute.xlu0 %2315
  %vm2317 = vcmask 23552
  %s2318 = scalar_lea.vmem %s1, 80
  %2319 = vst.msk [vmem:[%s2318] sm:$0x1] %vm2317, %v2316
  %s2320 = scalar_lea.vmem %s1, 207
  %2321 = vst.msk [vmem:[%s2320] sm:$0x2] %vm2317, %v2316
  %s2322 = scalar_lea.vmem %s1, 334
  %2323 = vst.msk [vmem:[%s2322] sm:$0x4] %vm2317, %v2316
  %s2324 = scalar_lea.vmem %s1, 461
  %2325 = vst.msk [vmem:[%s2324] sm:$0x8] %vm2317, %v2316
  %s2326 = scalar_lea.vmem %s1, 588
  %2327 = vst.msk [vmem:[%s2326] sm:$0x10] %vm2317, %v2316
  %s2328 = scalar_lea.vmem %s1, 715
  %2329 = vst.msk [vmem:[%s2328] sm:$0x20] %vm2317, %v2316
  %s2330 = scalar_lea.vmem %s1, 842
  %2331 = vst.msk [vmem:[%s2330] sm:$0x40] %vm2317, %v2316
  %s2332 = scalar_lea.vmem %s1, 969
  %2333 = vst.msk [vmem:[%s2332] sm:$0x80] %vm2317, %v2316
  %s2334 = scalar_lea.vmem %s0, 2
  %v2335 = vld [vmem:[%s2334] ss:$3 sm:$0xff]
  %2336 = vrot.lane.b32.xlu0 %v2335, 15
  %v2337 = vpop.permute.xlu0 %2336
  %vm2338 = vcmask 23552
  %s2339 = scalar_lea.vmem %s1, 123
  %2340 = vst.msk [vmem:[%s2339] sm:$0x1] %vm2338, %v2337
  %s2341 = scalar_lea.vmem %s1, 250
  %2342 = vst.msk [vmem:[%s2341] sm:$0x2] %vm2338, %v2337
  %s2343 = scalar_lea.vmem %s1, 377
  %2344 = vst.msk [vmem:[%s2343] sm:$0x4] %vm2338, %v2337
  %s2345 = scalar_lea.vmem %s1, 504
  %2346 = vst.msk [vmem:[%s2345] sm:$0x8] %vm2338, %v2337
  %s2347 = scalar_lea.vmem %s1, 631
  %2348 = vst.msk [vmem:[%s2347] sm:$0x10] %vm2338, %v2337
  %s2349 = scalar_lea.vmem %s1, 758
  %2350 = vst.msk [vmem:[%s2349] sm:$0x20] %vm2338, %v2337
  %s2351 = scalar_lea.vmem %s1, 885
  %2352 = vst.msk [vmem:[%s2351] sm:$0x40] %vm2338, %v2337
  %s2353 = scalar_lea.vmem %s1, 1012
  %2354 = vst.msk [vmem:[%s2353] sm:$0x80] %vm2338, %v2337
  %v2355 = vld [vmem:[%s0] ss:$3 sm:$0xff]
  %2356 = vrot.lane.b32.xlu0 %v2355, 14
  %v2357 = vpop.permute.xlu0 %2356
  %vm2358 = vcmask 23552
  %s2359 = scalar_lea.vmem %s1, 38
  %2360 = vst.msk [vmem:[%s2359] sm:$0x1] %vm2358, %v2357
  %s2361 = scalar_lea.vmem %s1, 165
  %2362 = vst.msk [vmem:[%s2361] sm:$0x2] %vm2358, %v2357
  %s2363 = scalar_lea.vmem %s1, 292
  %2364 = vst.msk [vmem:[%s2363] sm:$0x4] %vm2358, %v2357
  %s2365 = scalar_lea.vmem %s1, 419
  %2366 = vst.msk [vmem:[%s2365] sm:$0x8] %vm2358, %v2357
  %s2367 = scalar_lea.vmem %s1, 546
  %2368 = vst.msk [vmem:[%s2367] sm:$0x10] %vm2358, %v2357
  %s2369 = scalar_lea.vmem %s1, 673
  %2370 = vst.msk [vmem:[%s2369] sm:$0x20] %vm2358, %v2357
  %s2371 = scalar_lea.vmem %s1, 800
  %2372 = vst.msk [vmem:[%s2371] sm:$0x40] %vm2358, %v2357
  %s2373 = scalar_lea.vmem %s1, 927
  %2374 = vst.msk [vmem:[%s2373] sm:$0x80] %vm2358, %v2357
  %s2375 = scalar_lea.vmem %s0, 1
  %v2376 = vld [vmem:[%s2375] ss:$3 sm:$0xff]
  %2377 = vrot.lane.b32.xlu0 %v2376, 13
  %v2378 = vpop.permute.xlu0 %2377
  %vm2379 = vcmask 23552
  %s2380 = scalar_lea.vmem %s1, 81
  %2381 = vst.msk [vmem:[%s2380] sm:$0x1] %vm2379, %v2378
  %s2382 = scalar_lea.vmem %s1, 208
  %2383 = vst.msk [vmem:[%s2382] sm:$0x2] %vm2379, %v2378
  %s2384 = scalar_lea.vmem %s1, 335
  %2385 = vst.msk [vmem:[%s2384] sm:$0x4] %vm2379, %v2378
  %s2386 = scalar_lea.vmem %s1, 462
  %2387 = vst.msk [vmem:[%s2386] sm:$0x8] %vm2379, %v2378
  %s2388 = scalar_lea.vmem %s1, 589
  %2389 = vst.msk [vmem:[%s2388] sm:$0x10] %vm2379, %v2378
  %s2390 = scalar_lea.vmem %s1, 716
  %2391 = vst.msk [vmem:[%s2390] sm:$0x20] %vm2379, %v2378
  %s2392 = scalar_lea.vmem %s1, 843
  %2393 = vst.msk [vmem:[%s2392] sm:$0x40] %vm2379, %v2378
  %s2394 = scalar_lea.vmem %s1, 970
  %2395 = vst.msk [vmem:[%s2394] sm:$0x80] %vm2379, %v2378
  %s2396 = scalar_lea.vmem %s0, 2
  %v2397 = vld [vmem:[%s2396] ss:$3 sm:$0xff]
  %2398 = vrot.lane.b32.xlu0 %v2397, 12
  %v2399 = vpop.permute.xlu0 %2398
  %vm2400 = vcmask 23552
  %s2401 = scalar_lea.vmem %s1, 124
  %2402 = vst.msk [vmem:[%s2401] sm:$0x1] %vm2400, %v2399
  %s2403 = scalar_lea.vmem %s1, 251
  %2404 = vst.msk [vmem:[%s2403] sm:$0x2] %vm2400, %v2399
  %s2405 = scalar_lea.vmem %s1, 378
  %2406 = vst.msk [vmem:[%s2405] sm:$0x4] %vm2400, %v2399
  %s2407 = scalar_lea.vmem %s1, 505
  %2408 = vst.msk [vmem:[%s2407] sm:$0x8] %vm2400, %v2399
  %s2409 = scalar_lea.vmem %s1, 632
  %2410 = vst.msk [vmem:[%s2409] sm:$0x10] %vm2400, %v2399
  %s2411 = scalar_lea.vmem %s1, 759
  %2412 = vst.msk [vmem:[%s2411] sm:$0x20] %vm2400, %v2399
  %s2413 = scalar_lea.vmem %s1, 886
  %2414 = vst.msk [vmem:[%s2413] sm:$0x40] %vm2400, %v2399
  %s2415 = scalar_lea.vmem %s1, 1013
  %2416 = vst.msk [vmem:[%s2415] sm:$0x80] %vm2400, %v2399
  %v2417 = vld [vmem:[%s0] ss:$3 sm:$0xff]
  %2418 = vrot.lane.b32.xlu0 %v2417, 11
  %v2419 = vpop.permute.xlu0 %2418
  %vm2420 = vcmask 23552
  %s2421 = scalar_lea.vmem %s1, 39
  %2422 = vst.msk [vmem:[%s2421] sm:$0x1] %vm2420, %v2419
  %s2423 = scalar_lea.vmem %s1, 166
  %2424 = vst.msk [vmem:[%s2423] sm:$0x2] %vm2420, %v2419
  %s2425 = scalar_lea.vmem %s1, 293
  %2426 = vst.msk [vmem:[%s2425] sm:$0x4] %vm2420, %v2419
  %s2427 = scalar_lea.vmem %s1, 420
  %2428 = vst.msk [vmem:[%s2427] sm:$0x8] %vm2420, %v2419
  %s2429 = scalar_lea.vmem %s1, 547
  %2430 = vst.msk [vmem:[%s2429] sm:$0x10] %vm2420, %v2419
  %s2431 = scalar_lea.vmem %s1, 674
  %2432 = vst.msk [vmem:[%s2431] sm:$0x20] %vm2420, %v2419
  %s2433 = scalar_lea.vmem %s1, 801
  %2434 = vst.msk [vmem:[%s2433] sm:$0x40] %vm2420, %v2419
  %s2435 = scalar_lea.vmem %s1, 928
  %2436 = vst.msk [vmem:[%s2435] sm:$0x80] %vm2420, %v2419
  %s2437 = scalar_lea.vmem %s0, 1
  %v2438 = vld [vmem:[%s2437] ss:$3 sm:$0xff]
  %2439 = vrot.lane.b32.xlu0 %v2438, 10
  %v2440 = vpop.permute.xlu0 %2439
  %vm2441 = vcmask 23552
  %s2442 = scalar_lea.vmem %s1, 82
  %2443 = vst.msk [vmem:[%s2442] sm:$0x1] %vm2441, %v2440
  %s2444 = scalar_lea.vmem %s1, 209
  %2445 = vst.msk [vmem:[%s2444] sm:$0x2] %vm2441, %v2440
  %s2446 = scalar_lea.vmem %s1, 336
  %2447 = vst.msk [vmem:[%s2446] sm:$0x4] %vm2441, %v2440
  %s2448 = scalar_lea.vmem %s1, 463
  %2449 = vst.msk [vmem:[%s2448] sm:$0x8] %vm2441, %v2440
  %s2450 = scalar_lea.vmem %s1, 590
  %2451 = vst.msk [vmem:[%s2450] sm:$0x10] %vm2441, %v2440
  %s2452 = scalar_lea.vmem %s1, 717
  %2453 = vst.msk [vmem:[%s2452] sm:$0x20] %vm2441, %v2440
  %s2454 = scalar_lea.vmem %s1, 844
  %2455 = vst.msk [vmem:[%s2454] sm:$0x40] %vm2441, %v2440
  %s2456 = scalar_lea.vmem %s1, 971
  %2457 = vst.msk [vmem:[%s2456] sm:$0x80] %vm2441, %v2440
  %s2458 = scalar_lea.vmem %s0, 2
  %v2459 = vld [vmem:[%s2458] ss:$3 sm:$0xff]
  %2460 = vrot.lane.b32.xlu0 %v2459, 9
  %v2461 = vpop.permute.xlu0 %2460
  %vm2462 = vcmask 23552
  %s2463 = scalar_lea.vmem %s1, 125
  %2464 = vst.msk [vmem:[%s2463] sm:$0x1] %vm2462, %v2461
  %s2465 = scalar_lea.vmem %s1, 252
  %2466 = vst.msk [vmem:[%s2465] sm:$0x2] %vm2462, %v2461
  %s2467 = scalar_lea.vmem %s1, 379
  %2468 = vst.msk [vmem:[%s2467] sm:$0x4] %vm2462, %v2461
  %s2469 = scalar_lea.vmem %s1, 506
  %2470 = vst.msk [vmem:[%s2469] sm:$0x8] %vm2462, %v2461
  %s2471 = scalar_lea.vmem %s1, 633
  %2472 = vst.msk [vmem:[%s2471] sm:$0x10] %vm2462, %v2461
  %s2473 = scalar_lea.vmem %s1, 760
  %2474 = vst.msk [vmem:[%s2473] sm:$0x20] %vm2462, %v2461
  %s2475 = scalar_lea.vmem %s1, 887
  %2476 = vst.msk [vmem:[%s2475] sm:$0x40] %vm2462, %v2461
  %s2477 = scalar_lea.vmem %s1, 1014
  %2478 = vst.msk [vmem:[%s2477] sm:$0x80] %vm2462, %v2461
  %v2479 = vld [vmem:[%s0] ss:$3 sm:$0xff]
  %2480 = vrot.lane.b32.xlu0 %v2479, 8
  %v2481 = vpop.permute.xlu0 %2480
  %vm2482 = vcmask 23552
  %s2483 = scalar_lea.vmem %s1, 40
  %2484 = vst.msk [vmem:[%s2483] sm:$0x1] %vm2482, %v2481
  %s2485 = scalar_lea.vmem %s1, 167
  %2486 = vst.msk [vmem:[%s2485] sm:$0x2] %vm2482, %v2481
  %s2487 = scalar_lea.vmem %s1, 294
  %2488 = vst.msk [vmem:[%s2487] sm:$0x4] %vm2482, %v2481
  %s2489 = scalar_lea.vmem %s1, 421
  %2490 = vst.msk [vmem:[%s2489] sm:$0x8] %vm2482, %v2481
  %s2491 = scalar_lea.vmem %s1, 548
  %2492 = vst.msk [vmem:[%s2491] sm:$0x10] %vm2482, %v2481
  %s2493 = scalar_lea.vmem %s1, 675
  %2494 = vst.msk [vmem:[%s2493] sm:$0x20] %vm2482, %v2481
  %s2495 = scalar_lea.vmem %s1, 802
  %2496 = vst.msk [vmem:[%s2495] sm:$0x40] %vm2482, %v2481
  %s2497 = scalar_lea.vmem %s1, 929
  %2498 = vst.msk [vmem:[%s2497] sm:$0x80] %vm2482, %v2481
  %s2499 = scalar_lea.vmem %s0, 1
  %v2500 = vld [vmem:[%s2499] ss:$3 sm:$0xff]
  %2501 = vrot.lane.b32.xlu0 %v2500, 7
  %v2502 = vpop.permute.xlu0 %2501
  %vm2503 = vcmask 23552
  %s2504 = scalar_lea.vmem %s1, 83
  %2505 = vst.msk [vmem:[%s2504] sm:$0x1] %vm2503, %v2502
  %s2506 = scalar_lea.vmem %s1, 210
  %2507 = vst.msk [vmem:[%s2506] sm:$0x2] %vm2503, %v2502
  %s2508 = scalar_lea.vmem %s1, 337
  %2509 = vst.msk [vmem:[%s2508] sm:$0x4] %vm2503, %v2502
  %s2510 = scalar_lea.vmem %s1, 464
  %2511 = vst.msk [vmem:[%s2510] sm:$0x8] %vm2503, %v2502
  %s2512 = scalar_lea.vmem %s1, 591
  %2513 = vst.msk [vmem:[%s2512] sm:$0x10] %vm2503, %v2502
  %s2514 = scalar_lea.vmem %s1, 718
  %2515 = vst.msk [vmem:[%s2514] sm:$0x20] %vm2503, %v2502
  %s2516 = scalar_lea.vmem %s1, 845
  %2517 = vst.msk [vmem:[%s2516] sm:$0x40] %vm2503, %v2502
  %s2518 = scalar_lea.vmem %s1, 972
  %2519 = vst.msk [vmem:[%s2518] sm:$0x80] %vm2503, %v2502
  %s2520 = scalar_lea.vmem %s0, 2
  %v2521 = vld [vmem:[%s2520] ss:$3 sm:$0xff]
  %2522 = vrot.lane.b32.xlu0 %v2521, 6
  %v2523 = vpop.permute.xlu0 %2522
  %vm2524 = vcmask 23552
  %s2525 = scalar_lea.vmem %s1, 126
  %2526 = vst.msk [vmem:[%s2525] sm:$0x1] %vm2524, %v2523
  %s2527 = scalar_lea.vmem %s1, 253
  %2528 = vst.msk [vmem:[%s2527] sm:$0x2] %vm2524, %v2523
  %s2529 = scalar_lea.vmem %s1, 380
  %2530 = vst.msk [vmem:[%s2529] sm:$0x4] %vm2524, %v2523
  %s2531 = scalar_lea.vmem %s1, 507
  %2532 = vst.msk [vmem:[%s2531] sm:$0x8] %vm2524, %v2523
  %s2533 = scalar_lea.vmem %s1, 634
  %2534 = vst.msk [vmem:[%s2533] sm:$0x10] %vm2524, %v2523
  %s2535 = scalar_lea.vmem %s1, 761
  %2536 = vst.msk [vmem:[%s2535] sm:$0x20] %vm2524, %v2523
  %s2537 = scalar_lea.vmem %s1, 888
  %2538 = vst.msk [vmem:[%s2537] sm:$0x40] %vm2524, %v2523
  %s2539 = scalar_lea.vmem %s1, 1015
  %2540 = vst.msk [vmem:[%s2539] sm:$0x80] %vm2524, %v2523
  %v2541 = vld [vmem:[%s0] ss:$3 sm:$0xff]
  %2542 = vrot.lane.b32.xlu0 %v2541, 5
  %v2543 = vpop.permute.xlu0 %2542
  %vm2544 = vcmask 23552
  %s2545 = scalar_lea.vmem %s1, 41
  %2546 = vst.msk [vmem:[%s2545] sm:$0x1] %vm2544, %v2543
  %s2547 = scalar_lea.vmem %s1, 168
  %2548 = vst.msk [vmem:[%s2547] sm:$0x2] %vm2544, %v2543
  %s2549 = scalar_lea.vmem %s1, 295
  %2550 = vst.msk [vmem:[%s2549] sm:$0x4] %vm2544, %v2543
  %s2551 = scalar_lea.vmem %s1, 422
  %2552 = vst.msk [vmem:[%s2551] sm:$0x8] %vm2544, %v2543
  %s2553 = scalar_lea.vmem %s1, 549
  %2554 = vst.msk [vmem:[%s2553] sm:$0x10] %vm2544, %v2543
  %s2555 = scalar_lea.vmem %s1, 676
  %2556 = vst.msk [vmem:[%s2555] sm:$0x20] %vm2544, %v2543
  %s2557 = scalar_lea.vmem %s1, 803
  %2558 = vst.msk [vmem:[%s2557] sm:$0x40] %vm2544, %v2543
  %s2559 = scalar_lea.vmem %s1, 930
  %2560 = vst.msk [vmem:[%s2559] sm:$0x80] %vm2544, %v2543
  %s2561 = scalar_lea.vmem %s0, 1
  %v2562 = vld [vmem:[%s2561] ss:$3 sm:$0xff]
  %2563 = vrot.lane.b32.xlu0 %v2562, 4
  %v2564 = vpop.permute.xlu0 %2563
  %vm2565 = vcmask 23552
  %s2566 = scalar_lea.vmem %s1, 84
  %2567 = vst.msk [vmem:[%s2566] sm:$0x1] %vm2565, %v2564
  %s2568 = scalar_lea.vmem %s1, 211
  %2569 = vst.msk [vmem:[%s2568] sm:$0x2] %vm2565, %v2564
  %s2570 = scalar_lea.vmem %s1, 338
  %2571 = vst.msk [vmem:[%s2570] sm:$0x4] %vm2565, %v2564
  %s2572 = scalar_lea.vmem %s1, 465
  %2573 = vst.msk [vmem:[%s2572] sm:$0x8] %vm2565, %v2564
  %s2574 = scalar_lea.vmem %s1, 592
  %2575 = vst.msk [vmem:[%s2574] sm:$0x10] %vm2565, %v2564
  %s2576 = scalar_lea.vmem %s1, 719
  %2577 = vst.msk [vmem:[%s2576] sm:$0x20] %vm2565, %v2564
  %s2578 = scalar_lea.vmem %s1, 846
  %2579 = vst.msk [vmem:[%s2578] sm:$0x40] %vm2565, %v2564
  %s2580 = scalar_lea.vmem %s1, 973
  %2581 = vst.msk [vmem:[%s2580] sm:$0x80] %vm2565, %v2564
  %s2582 = scalar_lea.vmem %s0, 2
  %v2583 = vld [vmem:[%s2582] ss:$3 sm:$0xff]
  %2584 = vrot.lane.b32.xlu0 %v2583, 3
  %v2585 = vpop.permute.xlu0 %2584
  %vm2586 = vcmask 23552
  %s2587 = scalar_lea.vmem %s1, 127
  %2588 = vst.msk [vmem:[%s2587] sm:$0x1] %vm2586, %v2585
  %s2589 = scalar_lea.vmem %s1, 254
  %2590 = vst.msk [vmem:[%s2589] sm:$0x2] %vm2586, %v2585
  %s2591 = scalar_lea.vmem %s1, 381
  %2592 = vst.msk [vmem:[%s2591] sm:$0x4] %vm2586, %v2585
  %s2593 = scalar_lea.vmem %s1, 508
  %2594 = vst.msk [vmem:[%s2593] sm:$0x8] %vm2586, %v2585
  %s2595 = scalar_lea.vmem %s1, 635
  %2596 = vst.msk [vmem:[%s2595] sm:$0x10] %vm2586, %v2585
  %s2597 = scalar_lea.vmem %s1, 762
  %2598 = vst.msk [vmem:[%s2597] sm:$0x20] %vm2586, %v2585
  %s2599 = scalar_lea.vmem %s1, 889
  %2600 = vst.msk [vmem:[%s2599] sm:$0x40] %vm2586, %v2585
  %s2601 = scalar_lea.vmem %s1, 1016
  %2602 = vst.msk [vmem:[%s2601] sm:$0x80] %vm2586, %v2585
  %v2603 = vld [vmem:[%s0] ss:$3 sm:$0xff]
  %s2604 = scalar_lea.vmem %s0, 1
  %v2605 = vld [vmem:[%s2604] ss:$3 sm:$0xff]
  %vm2606 = vcmask 1031168
  %v2607 = vsel %vm2606, %v2605, %v2603
  %2608 = vrot.lane.b32.xlu0 %v2607, 2
  %v2609 = vpop.permute.xlu0 %2608
  %vm2610 = vcmask 15360
  %s2611 = scalar_lea.vmem %s1, 42
  %2612 = vst.msk [vmem:[%s2611] sm:$0x1] %vm2610, %v2609
  %s2613 = scalar_lea.vmem %s1, 169
  %2614 = vst.msk [vmem:[%s2613] sm:$0x2] %vm2610, %v2609
  %s2615 = scalar_lea.vmem %s1, 296
  %2616 = vst.msk [vmem:[%s2615] sm:$0x4] %vm2610, %v2609
  %s2617 = scalar_lea.vmem %s1, 423
  %2618 = vst.msk [vmem:[%s2617] sm:$0x8] %vm2610, %v2609
  %s2619 = scalar_lea.vmem %s1, 550
  %2620 = vst.msk [vmem:[%s2619] sm:$0x10] %vm2610, %v2609
  %s2621 = scalar_lea.vmem %s1, 677
  %2622 = vst.msk [vmem:[%s2621] sm:$0x20] %vm2610, %v2609
  %s2623 = scalar_lea.vmem %s1, 804
  %2624 = vst.msk [vmem:[%s2623] sm:$0x40] %vm2610, %v2609
  %s2625 = scalar_lea.vmem %s1, 931
  %2626 = vst.msk [vmem:[%s2625] sm:$0x80] %vm2610, %v2609
  %vm2627 = vcmask 23568
  %s2628 = scalar_lea.vmem %s1, 42
  %2629 = vst.msk [vmem:[%s2628] sm:$0x1] %vm2627, %v2609
  %s2630 = scalar_lea.vmem %s1, 169
  %2631 = vst.msk [vmem:[%s2630] sm:$0x2] %vm2627, %v2609
  %s2632 = scalar_lea.vmem %s1, 296
  %2633 = vst.msk [vmem:[%s2632] sm:$0x4] %vm2627, %v2609
  %s2634 = scalar_lea.vmem %s1, 423
  %2635 = vst.msk [vmem:[%s2634] sm:$0x8] %vm2627, %v2609
  %s2636 = scalar_lea.vmem %s1, 550
  %2637 = vst.msk [vmem:[%s2636] sm:$0x10] %vm2627, %v2609
  %s2638 = scalar_lea.vmem %s1, 677
  %2639 = vst.msk [vmem:[%s2638] sm:$0x20] %vm2627, %v2609
  %s2640 = scalar_lea.vmem %s1, 804
  %2641 = vst.msk [vmem:[%s2640] sm:$0x40] %vm2627, %v2609
  %s2642 = scalar_lea.vmem %s1, 931
  %2643 = vst.msk [vmem:[%s2642] sm:$0x80] %vm2627, %v2609
  %s2644 = scalar_lea.vmem %s0, 1
  %v2645 = vld [vmem:[%s2644] ss:$3 sm:$0xff]
  %s2646 = scalar_lea.vmem %s0, 2
  %v2647 = vld [vmem:[%s2646] ss:$3 sm:$0xff]
  %vm2648 = vcmask 1039360
  %v2649 = vsel %vm2648, %v2647, %v2645
  %2650 = vrot.lane.b32.xlu0 %v2649, 1
  %v2651 = vpop.permute.xlu0 %2650
  %vm2652 = vcmask 7168
  %s2653 = scalar_lea.vmem %s1, 85
  %2654 = vst.msk [vmem:[%s2653] sm:$0x1] %vm2652, %v2651
  %s2655 = scalar_lea.vmem %s1, 212
  %2656 = vst.msk [vmem:[%s2655] sm:$0x2] %vm2652, %v2651
  %s2657 = scalar_lea.vmem %s1, 339
  %2658 = vst.msk [vmem:[%s2657] sm:$0x4] %vm2652, %v2651
  %s2659 = scalar_lea.vmem %s1, 466
  %2660 = vst.msk [vmem:[%s2659] sm:$0x8] %vm2652, %v2651
  %s2661 = scalar_lea.vmem %s1, 593
  %2662 = vst.msk [vmem:[%s2661] sm:$0x10] %vm2652, %v2651
  %s2663 = scalar_lea.vmem %s1, 720
  %2664 = vst.msk [vmem:[%s2663] sm:$0x20] %vm2652, %v2651
  %s2665 = scalar_lea.vmem %s1, 847
  %2666 = vst.msk [vmem:[%s2665] sm:$0x40] %vm2652, %v2651
  %s2667 = scalar_lea.vmem %s1, 974
  %2668 = vst.msk [vmem:[%s2667] sm:$0x80] %vm2652, %v2651
  %vm2669 = vcmask 23560
  %s2670 = scalar_lea.vmem %s1, 85
  %2671 = vst.msk [vmem:[%s2670] sm:$0x1] %vm2669, %v2651
  %s2672 = scalar_lea.vmem %s1, 212
  %2673 = vst.msk [vmem:[%s2672] sm:$0x2] %vm2669, %v2651
  %s2674 = scalar_lea.vmem %s1, 339
  %2675 = vst.msk [vmem:[%s2674] sm:$0x4] %vm2669, %v2651
  %s2676 = scalar_lea.vmem %s1, 466
  %2677 = vst.msk [vmem:[%s2676] sm:$0x8] %vm2669, %v2651
  %s2678 = scalar_lea.vmem %s1, 593
  %2679 = vst.msk [vmem:[%s2678] sm:$0x10] %vm2669, %v2651
  %s2680 = scalar_lea.vmem %s1, 720
  %2681 = vst.msk [vmem:[%s2680] sm:$0x20] %vm2669, %v2651
  %s2682 = scalar_lea.vmem %s1, 847
  %2683 = vst.msk [vmem:[%s2682] sm:$0x40] %vm2669, %v2651
  %s2684 = scalar_lea.vmem %s1, 974
  %2685 = vst.msk [vmem:[%s2684] sm:$0x80] %vm2669, %v2651

// kernel: net_forward.1
$region0: #{net_forward.1}
  #allocation0 [shape = 'u32[]', space=smem, size = 0x4, offset = 0x4, fixed_abs, tag = 'smem constant byte address 0x4 - core index']
  #allocation1 [shape = 'u32[144,128]{1,0:T(1,128)}', space=vmem, size = 0x12000, scoped, tag = 'internal scratch']
  %s0 = inlined_call_operand.vmem [shape: f32[2], index: 0, kind: input, shape index: {}]
  %s1 = inlined_call_operand.vmem [shape: bf16[1,3072], index: 1, kind: input, shape index: {}]
  %s2 = inlined_call_operand.hbm [shape: s8[3072,256], index: 2, kind: input, shape index: {}]
  %s3 = inlined_call_operand.vmem [shape: f32[1,256], index: 3, kind: input, shape index: {}]
  %s4 = inlined_call_operand.hbm [shape: bf16[256,256], index: 4, kind: input, shape index: {}]
  %s5 = inlined_call_operand.vmem [shape: f32[1,256], index: 5, kind: input, shape index: {}]
  %s6 = inlined_call_operand.hbm [shape: bf16[256,128], index: 6, kind: input, shape index: {}]
  %s7 = inlined_call_operand.vmem [shape: f32[1,128], index: 7, kind: input, shape index: {}]
  %s8 = inlined_call_operand.hbm [shape: s8[256,3072], index: 8, kind: input, shape index: {}]
  %s9 = inlined_call_operand.vmem [shape: f32[1,3072], index: 9, kind: input, shape index: {}]
  %s10 = inlined_call_operand.vmem [shape: f32[1,3072], index: 10, kind: output, shape index: {0}]
  %s11 = inlined_call_operand.vmem [shape: f32[1,256], index: 11, kind: output, shape index: {1}]
  %s12 = inlined_call_operand.vmem [shape: f32[1,256], index: 12, kind: output, shape index: {2}]
  %s13 = inlined_call_operand.vmem [shape: f32[1,128], index: 13, kind: output, shape index: {3}]
  %14 = xla_tuple %s10, %s11, %s12, %s13
  %s15 = sld [smem:[#allocation0]]
  $region94: #{net_forward.1} parent=0
    _
  %s17 = ssub.s32 1, %s15
  %s18 = scalar_select 0, %s17, %s15
  $region1: #{net_forward.1} parent=0
    #allocation2 [shape = 'u8[512]{0}', space=smem, size = 0x200, scoped, tag = 'input window, operand 0, single buffered']
    #allocation3 [shape = 's32[1]{0}', space=sflag, size = 0x4, scoped, tag = 'scoped memory for net_forward.1']
    #allocation4 [shape = 's32[1]{0}', space=sflag, size = 0x4, scoped, tag = 'scoped memory for net_forward.1']
    #allocation5 [shape = 'u8[786432]{0}', space=vmem, size = 0xc0000, scoped, tag = 'input window, operand 2, single buffered']
    #allocation6 [shape = 'u8[131072]{0}', space=vmem, size = 0x20000, scoped, tag = 'input window, operand 4, single buffered']
    #allocation7 [shape = 's32[1]{0}', space=sflag, size = 0x4, scoped, tag = 'scoped memory for net_forward.1']
    #allocation8 [shape = 'u8[65536]{0}', space=vmem, size = 0x10000, scoped, tag = 'input window, operand 6, single buffered']
    #allocation9 [shape = 'u8[786432]{0}', space=vmem, size = 0xc0000, scoped, tag = 'input window, operand 8, single buffered']
    #allocation10 [shape = 's32[1]{0}', space=sflag, size = 0x4, scoped, tag = 'scoped memory for net_forward.1']
    %19 = vsyncpa [#allocation4], 0
    %20 = vsyncpa [#allocation3], 0
    %21 = vsyncpa [#allocation7], 0
    %22 = vsyncpa [#allocation10], 0
    // Predicated region
    $region2: #{net_forward.1} parent=1 // pred_check
      _
    $region3: #{net_forward.1} parent=1 // pred_check_branch
      %24 = sbr.rel (0) target = $region5
    $region4: #{net_forward.1} parent=1 // pred_region
      %s26 = ssub.s32 16, 16
      %27 = vsyncadd [#allocation4], %s26
      %s29 = sshll.u32 %s0, 4
      %s30 = int_to_ptr.vmem [resolvable:$true] %s29
      %32 = dma.vmem_to_smem %s30, 16, [#allocation2], [#allocation4]
    $region5: #{net_forward.1} parent=1 // pred_fallthru
      _
    // Predicated region
    $region6: #{net_forward.1} parent=1 // pred_check
      _
    $region7: #{net_forward.1} parent=1 // pred_check_branch
      %34 = sbr.rel (0) target = $region9
    $region8: #{net_forward.1} parent=1 // pred_region
      _
    $region9: #{net_forward.1} parent=1 // pred_fallthru
      _
    // Predicated region
    $region10: #{net_forward.1} parent=1 // pred_check
      _
    $region11: #{net_forward.1} parent=1 // pred_check_branch
      %36 = sbr.rel (0) target = $region13
    $region12: #{net_forward.1} parent=1 // pred_region
      %s38 = ssub.s32 24576, 24576
      %39 = vsyncadd [#allocation3], %s38
      %s40 = sshll.u32 [#allocation5], 4
      %s41 = int_to_ptr.vmem [resolvable:$true] %s40
      %46 = dma.hbm_to_vmem [thread:$0]  %s2, 24576, %s41, [#allocation3], 256, 256, 16
    $region13: #{net_forward.1} parent=1 // pred_fallthru
      _
    // Predicated region
    $region14: #{net_forward.1} parent=1 // pred_check
      _
    $region15: #{net_forward.1} parent=1 // pred_check_branch
      %48 = sbr.rel (0) target = $region17
    $region16: #{net_forward.1} parent=1 // pred_region
      _
    $region17: #{net_forward.1} parent=1 // pred_fallthru
      _
    // Predicated region
    $region18: #{net_forward.1} parent=1 // pred_check
      _
    $region19: #{net_forward.1} parent=1 // pred_check_branch
      %50 = sbr.rel (0) target = $region21
    $region20: #{net_forward.1} parent=1 // pred_region
      %s52 = ssub.s32 4096, 4096
      %53 = vsyncadd [#allocation7], %s52
      %s54 = sshll.u32 [#allocation6], 4
      %s55 = int_to_ptr.vmem [resolvable:$true] %s54
      %60 = dma.hbm_to_vmem [thread:$0]  %s4, 4096, %s55, [#allocation7], 128, 128, 8
    $region21: #{net_forward.1} parent=1 // pred_fallthru
      _
    // Predicated region
    $region22: #{net_forward.1} parent=1 // pred_check
      _
    $region23: #{net_forward.1} parent=1 // pred_check_branch
      %62 = sbr.rel (0) target = $region25
    $region24: #{net_forward.1} parent=1 // pred_region
      _
    $region25: #{net_forward.1} parent=1 // pred_fallthru
      _
    // Predicated region
    $region26: #{net_forward.1} parent=1 // pred_check
      _
    $region27: #{net_forward.1} parent=1 // pred_check_branch
      %64 = sbr.rel (0) target = $region29
    $region28: #{net_forward.1} parent=1 // pred_region
      %s66 = ssub.s32 2048, 2048
      %67 = vsyncadd [#allocation7], %s66
      %s68 = sshll.u32 [#allocation8], 4
      %s69 = int_to_ptr.vmem [resolvable:$true] %s68
      %74 = dma.hbm_to_vmem [thread:$0]  %s6, 2048, %s69, [#allocation7], 64, 64, 4
    $region29: #{net_forward.1} parent=1 // pred_fallthru
      _
    // Predicated region
    $region30: #{net_forward.1} parent=1 // pred_check
      _
    $region31: #{net_forward.1} parent=1 // pred_check_branch
      %76 = sbr.rel (0) target = $region33
    $region32: #{net_forward.1} parent=1 // pred_region
      _
    $region33: #{net_forward.1} parent=1 // pred_fallthru
      _
    // Predicated region
    $region34: #{net_forward.1} parent=1 // pred_check
      _
    $region35: #{net_forward.1} parent=1 // pred_check_branch
      %78 = sbr.rel (0) target = $region37
    $region36: #{net_forward.1} parent=1 // pred_region
      %s80 = ssub.s32 24576, 24576
      %81 = vsyncadd [#allocation10], %s80
      %s82 = sshll.u32 [#allocation9], 4
      %s83 = int_to_ptr.vmem [resolvable:$true] %s82
      %88 = dma.hbm_to_vmem [thread:$0]  %s8, 24576, %s83, [#allocation10], 3072, 3072, 192
    $region37: #{net_forward.1} parent=1 // pred_fallthru
      _
    // Predicated region
    $region38: #{net_forward.1} parent=1 // pred_check
      _
    $region39: #{net_forward.1} parent=1 // pred_check_branch
      %90 = sbr.rel (0) target = $region41
    $region40: #{net_forward.1} parent=1 // pred_region
      _
    $region41: #{net_forward.1} parent=1 // pred_fallthru
      _
    // Predicated region
    $region42: #{net_forward.1} parent=1 // pred_check
      _
    $region43: #{net_forward.1} parent=1 // pred_check_branch
      %92 = sbr.rel (0) target = $region45
    $region44: #{net_forward.1} parent=1 // pred_region
      %93 = dma.done [#allocation4], 16
    $region45: #{net_forward.1} parent=1 // pred_fallthru
      _
    // Predicated region
    $region46: #{net_forward.1} parent=1 // pred_check
      _
    $region47: #{net_forward.1} parent=1 // pred_check_branch
      %95 = sbr.rel (0) target = $region49
    $region48: #{net_forward.1} parent=1 // pred_region
      %96 = dma.done [#allocation3], 24576
    $region49: #{net_forward.1} parent=1 // pred_fallthru
      _
    // Predicated region
    $region50: #{net_forward.1} parent=1 // pred_check
      _
    $region51: #{net_forward.1} parent=1 // pred_check_branch
      %98 = sbr.rel (0) target = $region53
    $region52: #{net_forward.1} parent=1 // pred_region
      %99 = dma.done [#allocation7], 4096
    $region53: #{net_forward.1} parent=1 // pred_fallthru
      _
    // Predicated region
    $region54: #{net_forward.1} parent=1 // pred_check
      _
    $region55: #{net_forward.1} parent=1 // pred_check_branch
      %101 = sbr.rel (0) target = $region57
    $region56: #{net_forward.1} parent=1 // pred_region
      %102 = dma.done [#allocation7], 2048
    $region57: #{net_forward.1} parent=1 // pred_fallthru
      _
    // Predicated region
    $region58: #{net_forward.1} parent=1 // pred_check
      _
    $region59: #{net_forward.1} parent=1 // pred_check_branch
      %104 = sbr.rel (0) target = $region61
    $region60: #{net_forward.1} parent=1 // pred_region
      %105 = dma.done [#allocation10], 24576
    $region61: #{net_forward.1} parent=1 // pred_fallthru
      _
    %106 = sfence
    %v108 = vld [vmem:[%s1] sm:$0xff]
    %v109 = vld [vmem:[%s1 + $0x8] sm:$0xff]
    %v110 = vld [vmem:[%s1 + $0x10] sm:$0xff]
    %s111 = sld [smem:[#allocation2]]
    %s112 = sld [smem:[#allocation2 + $0x1]]
    %v113 = vld [vmem:[#allocation5] sm:$0xff]
    %v114 = vld [vmem:[#allocation5 + $0x8] sm:$0xff]
    %v115 = vld [vmem:[#allocation5 + $0x10] sm:$0xff]
    %v116 = vld [vmem:[#allocation5 + $0x18] sm:$0xff]
    %v117 = vld [vmem:[#allocation5 + $0x20] sm:$0xff]
    %v118 = vld [vmem:[#allocation5 + $0x28] sm:$0xff]
    %v119 = vld [vmem:[#allocation5 + $0x30] sm:$0xff]
    %v120 = vld [vmem:[#allocation5 + $0x38] sm:$0xff]
    %v121 = vld [vmem:[#allocation5 + $0x40] sm:$0xff]
    %v122 = vld [vmem:[#allocation5 + $0x48] sm:$0xff]
    %v123 = vld [vmem:[#allocation5 + $0x50] sm:$0xff]
    %v124 = vld [vmem:[#allocation5 + $0x58] sm:$0xff]
    %v125 = vld [vmem:[#allocation5 + $0x60] sm:$0xff]
    %v126 = vld [vmem:[#allocation5 + $0x68] sm:$0xff]
    %v127 = vld [vmem:[#allocation5 + $0x70] sm:$0xff]
    %v128 = vld [vmem:[#allocation5 + $0x78] sm:$0xff]
    %v129 = vld [vmem:[#allocation5 + $0x80] sm:$0xff]
    %v130 = vld [vmem:[#allocation5 + $0x88] sm:$0xff]
    %v131 = vld [vmem:[#allocation5 + $0x90] sm:$0xff]
    %v132 = vld [vmem:[#allocation5 + $0x98] sm:$0xff]
    %v133 = vld [vmem:[#allocation5 + $0xa0] sm:$0xff]
    %v134 = vld [vmem:[#allocation5 + $0xa8] sm:$0xff]
    %v135 = vld [vmem:[#allocation5 + $0xb0] sm:$0xff]
    %v136 = vld [vmem:[#allocation5 + $0xb8] sm:$0xff]
    %v137 = vld [vmem:[#allocation5 + $0xc0] sm:$0xff]
    %v138 = vld [vmem:[#allocation5 + $0xc8] sm:$0xff]
    %v139 = vld [vmem:[#allocation5 + $0xd0] sm:$0xff]
    %v140 = vld [vmem:[#allocation5 + $0xd8] sm:$0xff]
    %v141 = vld [vmem:[#allocation5 + $0xe0] sm:$0xff]
    %v142 = vld [vmem:[#allocation5 + $0xe8] sm:$0xff]
    %v143 = vld [vmem:[#allocation5 + $0xf0] sm:$0xff]
    %v144 = vld [vmem:[#allocation5 + $0xf8] sm:$0xff]
    %v145 = vld [vmem:[#allocation5 + $0x100] sm:$0xff]
    %v146 = vld [vmem:[#allocation5 + $0x108] sm:$0xff]
    %v147 = vld [vmem:[#allocation5 + $0x110] sm:$0xff]
    %v148 = vld [vmem:[#allocation5 + $0x118] sm:$0xff]
    %v149 = vld [vmem:[#allocation5 + $0x120] sm:$0xff]
    %v150 = vld [vmem:[#allocation5 + $0x128] sm:$0xff]
    %v151 = vld [vmem:[#allocation5 + $0x130] sm:$0xff]
    %v152 = vld [vmem:[#allocation5 + $0x138] sm:$0xff]
    %v153 = vld [vmem:[#allocation5 + $0x140] sm:$0xff]
    %v154 = vld [vmem:[#allocation5 + $0x148] sm:$0xff]
    %v155 = vld [vmem:[#allocation5 + $0x150] sm:$0xff]
    %v156 = vld [vmem:[#allocation5 + $0x158] sm:$0xff]
    %v157 = vld [vmem:[#allocation5 + $0x160] sm:$0xff]
    %v158 = vld [vmem:[#allocation5 + $0x168] sm:$0xff]
    %v159 = vld [vmem:[#allocation5 + $0x170] sm:$0xff]
    %v160 = vld [vmem:[#allocation5 + $0x178] sm:$0xff]
    %v161 = vld [vmem:[#allocation5 + $0x180] sm:$0xff]
    %v162 = vld [vmem:[#allocation5 + $0x188] sm:$0xff]
    %v163 = vld [vmem:[#allocation5 + $0x190] sm:$0xff]
    %v164 = vld [vmem:[#allocation5 + $0x198] sm:$0xff]
    %v165 = vld [vmem:[#allocation5 + $0x1a0] sm:$0xff]
    %v166 = vld [vmem:[#allocation5 + $0x1a8] sm:$0xff]
    %v167 = vld [vmem:[#allocation5 + $0x1b0] sm:$0xff]
    %v168 = vld [vmem:[#allocation5 + $0x1b8] sm:$0xff]
    %v169 = vld [vmem:[#allocation5 + $0x1c0] sm:$0xff]
    %v170 = vld [vmem:[#allocation5 + $0x1c8] sm:$0xff]
    %v171 = vld [vmem:[#allocation5 + $0x1d0] sm:$0xff]
    %v172 = vld [vmem:[#allocation5 + $0x1d8] sm:$0xff]
    %v173 = vld [vmem:[#allocation5 + $0x1e0] sm:$0xff]
    %v174 = vld [vmem:[#allocation5 + $0x1e8] sm:$0xff]
    %v175 = vld [vmem:[#allocation5 + $0x1f0] sm:$0xff]
    %v176 = vld [vmem:[#allocation5 + $0x1f8] sm:$0xff]
    %v177 = vld [vmem:[#allocation5 + $0x200] sm:$0xff]
    %v178 = vld [vmem:[#allocation5 + $0x208] sm:$0xff]
    %v179 = vld [vmem:[#allocation5 + $0x210] sm:$0xff]
    %v180 = vld [vmem:[#allocation5 + $0x218] sm:$0xff]
    %v181 = vld [vmem:[#allocation5 + $0x220] sm:$0xff]
    %v182 = vld [vmem:[#allocation5 + $0x228] sm:$0xff]
    %v183 = vld [vmem:[#allocation5 + $0x230] sm:$0xff]
    %v184 = vld [vmem:[#allocation5 + $0x238] sm:$0xff]
    %v185 = vld [vmem:[#allocation5 + $0x240] sm:$0xff]
    %v186 = vld [vmem:[#allocation5 + $0x248] sm:$0xff]
    %v187 = vld [vmem:[#allocation5 + $0x250] sm:$0xff]
    %v188 = vld [vmem:[#allocation5 + $0x258] sm:$0xff]
    %v189 = vld [vmem:[#allocation5 + $0x260] sm:$0xff]
    %v190 = vld [vmem:[#allocation5 + $0x268] sm:$0xff]
    %v191 = vld [vmem:[#allocation5 + $0x270] sm:$0xff]
    %v192 = vld [vmem:[#allocation5 + $0x278] sm:$0xff]
    %v193 = vld [vmem:[#allocation5 + $0x280] sm:$0xff]
    %v194 = vld [vmem:[#allocation5 + $0x288] sm:$0xff]
    %v195 = vld [vmem:[#allocation5 + $0x290] sm:$0xff]
    %v196 = vld [vmem:[#allocation5 + $0x298] sm:$0xff]
    %v197 = vld [vmem:[#allocation5 + $0x2a0] sm:$0xff]
    %v198 = vld [vmem:[#allocation5 + $0x2a8] sm:$0xff]
    %v199 = vld [vmem:[#allocation5 + $0x2b0] sm:$0xff]
    %v200 = vld [vmem:[#allocation5 + $0x2b8] sm:$0xff]
    %v201 = vld [vmem:[#allocation5 + $0x2c0] sm:$0xff]
    %v202 = vld [vmem:[#allocation5 + $0x2c8] sm:$0xff]
    %v203 = vld [vmem:[#allocation5 + $0x2d0] sm:$0xff]
    %v204 = vld [vmem:[#allocation5 + $0x2d8] sm:$0xff]
    %v205 = vld [vmem:[#allocation5 + $0x2e0] sm:$0xff]
    %v206 = vld [vmem:[#allocation5 + $0x2e8] sm:$0xff]
    %v207 = vld [vmem:[#allocation5 + $0x2f0] sm:$0xff]
    %v208 = vld [vmem:[#allocation5 + $0x2f8] sm:$0xff]
    %v209 = vld [vmem:[#allocation5 + $0x300] sm:$0xff]
    %v210 = vld [vmem:[#allocation5 + $0x308] sm:$0xff]
    %v211 = vld [vmem:[#allocation5 + $0x310] sm:$0xff]
    %v212 = vld [vmem:[#allocation5 + $0x318] sm:$0xff]
    %v213 = vld [vmem:[#allocation5 + $0x320] sm:$0xff]
    %v214 = vld [vmem:[#allocation5 + $0x328] sm:$0xff]
    %v215 = vld [vmem:[#allocation5 + $0x330] sm:$0xff]
    %v216 = vld [vmem:[#allocation5 + $0x338] sm:$0xff]
    %v217 = vld [vmem:[#allocation5 + $0x340] sm:$0xff]
    %v218 = vld [vmem:[#allocation5 + $0x348] sm:$0xff]
    %v219 = vld [vmem:[#allocation5 + $0x350] sm:$0xff]
    %v220 = vld [vmem:[#allocation5 + $0x358] sm:$0xff]
    %v221 = vld [vmem:[#allocation5 + $0x360] sm:$0xff]
    %v222 = vld [vmem:[#allocation5 + $0x368] sm:$0xff]
    %v223 = vld [vmem:[#allocation5 + $0x370] sm:$0xff]
    %v224 = vld [vmem:[#allocation5 + $0x378] sm:$0xff]
    %v225 = vld [vmem:[#allocation5 + $0x380] sm:$0xff]
    %v226 = vld [vmem:[#allocation5 + $0x388] sm:$0xff]
    %v227 = vld [vmem:[#allocation5 + $0x390] sm:$0xff]
    %v228 = vld [vmem:[#allocation5 + $0x398] sm:$0xff]
    %v229 = vld [vmem:[#allocation5 + $0x3a0] sm:$0xff]
    %v230 = vld [vmem:[#allocation5 + $0x3a8] sm:$0xff]
    %v231 = vld [vmem:[#allocation5 + $0x3b0] sm:$0xff]
    %v232 = vld [vmem:[#allocation5 + $0x3b8] sm:$0xff]
    %v233 = vld [vmem:[#allocation5 + $0x3c0] sm:$0xff]
    %v234 = vld [vmem:[#allocation5 + $0x3c8] sm:$0xff]
    %v235 = vld [vmem:[#allocation5 + $0x3d0] sm:$0xff]
    %v236 = vld [vmem:[#allocation5 + $0x3d8] sm:$0xff]
    %v237 = vld [vmem:[#allocation5 + $0x3e0] sm:$0xff]
    %v238 = vld [vmem:[#allocation5 + $0x3e8] sm:$0xff]
    %v239 = vld [vmem:[#allocation5 + $0x3f0] sm:$0xff]
    %v240 = vld [vmem:[#allocation5 + $0x3f8] sm:$0xff]
    %v241 = vld [vmem:[#allocation5 + $0x400] sm:$0xff]
    %v242 = vld [vmem:[#allocation5 + $0x408] sm:$0xff]
    %v243 = vld [vmem:[#allocation5 + $0x410] sm:$0xff]
    %v244 = vld [vmem:[#allocation5 + $0x418] sm:$0xff]
    %v245 = vld [vmem:[#allocation5 + $0x420] sm:$0xff]
    %v246 = vld [vmem:[#allocation5 + $0x428] sm:$0xff]
    %v247 = vld [vmem:[#allocation5 + $0x430] sm:$0xff]
    %v248 = vld [vmem:[#allocation5 + $0x438] sm:$0xff]
    %v249 = vld [vmem:[#allocation5 + $0x440] sm:$0xff]
    %v250 = vld [vmem:[#allocation5 + $0x448] sm:$0xff]
    %v251 = vld [vmem:[#allocation5 + $0x450] sm:$0xff]
    %v252 = vld [vmem:[#allocation5 + $0x458] sm:$0xff]
    %v253 = vld [vmem:[#allocation5 + $0x460] sm:$0xff]
    %v254 = vld [vmem:[#allocation5 + $0x468] sm:$0xff]
    %v255 = vld [vmem:[#allocation5 + $0x470] sm:$0xff]
    %v256 = vld [vmem:[#allocation5 + $0x478] sm:$0xff]
    %v257 = vld [vmem:[#allocation5 + $0x480] sm:$0xff]
    %v258 = vld [vmem:[#allocation5 + $0x488] sm:$0xff]
    %v259 = vld [vmem:[#allocation5 + $0x490] sm:$0xff]
    %v260 = vld [vmem:[#allocation5 + $0x498] sm:$0xff]
    %v261 = vld [vmem:[#allocation5 + $0x4a0] sm:$0xff]
    %v262 = vld [vmem:[#allocation5 + $0x4a8] sm:$0xff]
    %v263 = vld [vmem:[#allocation5 + $0x4b0] sm:$0xff]
    %v264 = vld [vmem:[#allocation5 + $0x4b8] sm:$0xff]
    %v265 = vld [vmem:[#allocation5 + $0x4c0] sm:$0xff]
    %v266 = vld [vmem:[#allocation5 + $0x4c8] sm:$0xff]
    %v267 = vld [vmem:[#allocation5 + $0x4d0] sm:$0xff]
    %v268 = vld [vmem:[#allocation5 + $0x4d8] sm:$0xff]
    %v269 = vld [vmem:[#allocation5 + $0x4e0] sm:$0xff]
    %v270 = vld [vmem:[#allocation5 + $0x4e8] sm:$0xff]
    %v271 = vld [vmem:[#allocation5 + $0x4f0] sm:$0xff]
    %v272 = vld [vmem:[#allocation5 + $0x4f8] sm:$0xff]
    %v273 = vld [vmem:[#allocation5 + $0x500] sm:$0xff]
    %v274 = vld [vmem:[#allocation5 + $0x508] sm:$0xff]
    %v275 = vld [vmem:[#allocation5 + $0x510] sm:$0xff]
    %v276 = vld [vmem:[#allocation5 + $0x518] sm:$0xff]
    %v277 = vld [vmem:[#allocation5 + $0x520] sm:$0xff]
    %v278 = vld [vmem:[#allocation5 + $0x528] sm:$0xff]
    %v279 = vld [vmem:[#allocation5 + $0x530] sm:$0xff]
    %v280 = vld [vmem:[#allocation5 + $0x538] sm:$0xff]
    %v281 = vld [vmem:[#allocation5 + $0x540] sm:$0xff]
    %v282 = vld [vmem:[#allocation5 + $0x548] sm:$0xff]
    %v283 = vld [vmem:[#allocation5 + $0x550] sm:$0xff]
    %v284 = vld [vmem:[#allocation5 + $0x558] sm:$0xff]
    %v285 = vld [vmem:[#allocation5 + $0x560] sm:$0xff]
    %v286 = vld [vmem:[#allocation5 + $0x568] sm:$0xff]
    %v287 = vld [vmem:[#allocation5 + $0x570] sm:$0xff]
    %v288 = vld [vmem:[#allocation5 + $0x578] sm:$0xff]
    %v289 = vld [vmem:[#allocation5 + $0x580] sm:$0xff]
    %v290 = vld [vmem:[#allocation5 + $0x588] sm:$0xff]
    %v291 = vld [vmem:[#allocation5 + $0x590] sm:$0xff]
    %v292 = vld [vmem:[#allocation5 + $0x598] sm:$0xff]
    %v293 = vld [vmem:[#allocation5 + $0x5a0] sm:$0xff]
    %v294 = vld [vmem:[#allocation5 + $0x5a8] sm:$0xff]
    %v295 = vld [vmem:[#allocation5 + $0x5b0] sm:$0xff]
    %v296 = vld [vmem:[#allocation5 + $0x5b8] sm:$0xff]
    %v297 = vld [vmem:[#allocation5 + $0x5c0] sm:$0xff]
    %v298 = vld [vmem:[#allocation5 + $0x5c8] sm:$0xff]
    %v299 = vld [vmem:[#allocation5 + $0x5d0] sm:$0xff]
    %v300 = vld [vmem:[#allocation5 + $0x5d8] sm:$0xff]
    %v301 = vld [vmem:[#allocation5 + $0x5e0] sm:$0xff]
    %v302 = vld [vmem:[#allocation5 + $0x5e8] sm:$0xff]
    %v303 = vld [vmem:[#allocation5 + $0x5f0] sm:$0xff]
    %v304 = vld [vmem:[#allocation5 + $0x5f8] sm:$0xff]
    %v305 = vunpack.c.l.s8.bf16 %v113
    %v306 = vunpack.c.l.s8.bf16 %v114
    %v307 = vunpack.c.h.s8.bf16 %v113
    %v308 = vunpack.c.h.s8.bf16 %v114
    %v309 = vunpack.c.l.s8.bf16 %v115
    %v310 = vunpack.c.l.s8.bf16 %v116
    %v311 = vunpack.c.h.s8.bf16 %v115
    %v312 = vunpack.c.h.s8.bf16 %v116
    %v313 = vunpack.c.l.s8.bf16 %v117
    %v314 = vunpack.c.l.s8.bf16 %v118
    %v315 = vunpack.c.h.s8.bf16 %v117
    %v316 = vunpack.c.h.s8.bf16 %v118
    %v317 = vunpack.c.l.s8.bf16 %v119
    %v318 = vunpack.c.l.s8.bf16 %v120
    %v319 = vunpack.c.h.s8.bf16 %v119
    %v320 = vunpack.c.h.s8.bf16 %v120
    %v321 = vunpack.c.l.s8.bf16 %v121
    %v322 = vunpack.c.l.s8.bf16 %v122
    %v323 = vunpack.c.h.s8.bf16 %v121
    %v324 = vunpack.c.h.s8.bf16 %v122
    %v325 = vunpack.c.l.s8.bf16 %v123
    %v326 = vunpack.c.l.s8.bf16 %v124
    %v327 = vunpack.c.h.s8.bf16 %v123
    %v328 = vunpack.c.h.s8.bf16 %v124
    %v329 = vunpack.c.l.s8.bf16 %v125
    %v330 = vunpack.c.l.s8.bf16 %v126
    %v331 = vunpack.c.h.s8.bf16 %v125
    %v332 = vunpack.c.h.s8.bf16 %v126
    %v333 = vunpack.c.l.s8.bf16 %v127
    %v334 = vunpack.c.l.s8.bf16 %v128
    %v335 = vunpack.c.h.s8.bf16 %v127
    %v336 = vunpack.c.h.s8.bf16 %v128
    %v337 = vunpack.c.l.s8.bf16 %v129
    %v338 = vunpack.c.l.s8.bf16 %v130
    %v339 = vunpack.c.h.s8.bf16 %v129
    %v340 = vunpack.c.h.s8.bf16 %v130
    %v341 = vunpack.c.l.s8.bf16 %v131
    %v342 = vunpack.c.l.s8.bf16 %v132
    %v343 = vunpack.c.h.s8.bf16 %v131
    %v344 = vunpack.c.h.s8.bf16 %v132
    %v345 = vunpack.c.l.s8.bf16 %v133
    %v346 = vunpack.c.l.s8.bf16 %v134
    %v347 = vunpack.c.h.s8.bf16 %v133
    %v348 = vunpack.c.h.s8.bf16 %v134
    %v349 = vunpack.c.l.s8.bf16 %v135
    %v350 = vunpack.c.l.s8.bf16 %v136
    %v351 = vunpack.c.h.s8.bf16 %v135
    %v352 = vunpack.c.h.s8.bf16 %v136
    %v353 = vunpack.c.l.s8.bf16 %v137
    %v354 = vunpack.c.l.s8.bf16 %v138
    %v355 = vunpack.c.h.s8.bf16 %v137
    %v356 = vunpack.c.h.s8.bf16 %v138
    %v357 = vunpack.c.l.s8.bf16 %v139
    %v358 = vunpack.c.l.s8.bf16 %v140
    %v359 = vunpack.c.h.s8.bf16 %v139
    %v360 = vunpack.c.h.s8.bf16 %v140
    %v361 = vunpack.c.l.s8.bf16 %v141
    %v362 = vunpack.c.l.s8.bf16 %v142
    %v363 = vunpack.c.h.s8.bf16 %v141
    %v364 = vunpack.c.h.s8.bf16 %v142
    %v365 = vunpack.c.l.s8.bf16 %v143
    %v366 = vunpack.c.l.s8.bf16 %v144
    %v367 = vunpack.c.h.s8.bf16 %v143
    %v368 = vunpack.c.h.s8.bf16 %v144
    %v369 = vunpack.c.l.s8.bf16 %v145
    %v370 = vunpack.c.l.s8.bf16 %v146
    %v371 = vunpack.c.h.s8.bf16 %v145
    %v372 = vunpack.c.h.s8.bf16 %v146
    %v373 = vunpack.c.l.s8.bf16 %v147
    %v374 = vunpack.c.l.s8.bf16 %v148
    %v375 = vunpack.c.h.s8.bf16 %v147
    %v376 = vunpack.c.h.s8.bf16 %v148
    %v377 = vunpack.c.l.s8.bf16 %v149
    %v378 = vunpack.c.l.s8.bf16 %v150
    %v379 = vunpack.c.h.s8.bf16 %v149
    %v380 = vunpack.c.h.s8.bf16 %v150
    %v381 = vunpack.c.l.s8.bf16 %v151
    %v382 = vunpack.c.l.s8.bf16 %v152
    %v383 = vunpack.c.h.s8.bf16 %v151
    %v384 = vunpack.c.h.s8.bf16 %v152
    %v385 = vunpack.c.l.s8.bf16 %v153
    %v386 = vunpack.c.l.s8.bf16 %v154
    %v387 = vunpack.c.h.s8.bf16 %v153
    %v388 = vunpack.c.h.s8.bf16 %v154
    %v389 = vunpack.c.l.s8.bf16 %v155
    %v390 = vunpack.c.l.s8.bf16 %v156
    %v391 = vunpack.c.h.s8.bf16 %v155
    %v392 = vunpack.c.h.s8.bf16 %v156
    %v393 = vunpack.c.l.s8.bf16 %v157
    %v394 = vunpack.c.l.s8.bf16 %v158
    %v395 = vunpack.c.h.s8.bf16 %v157
    %v396 = vunpack.c.h.s8.bf16 %v158
    %v397 = vunpack.c.l.s8.bf16 %v159
    %v398 = vunpack.c.l.s8.bf16 %v160
    %v399 = vunpack.c.h.s8.bf16 %v159
    %v400 = vunpack.c.h.s8.bf16 %v160
    %v401 = vunpack.c.l.s8.bf16 %v161
    %v402 = vunpack.c.l.s8.bf16 %v162
    %v403 = vunpack.c.h.s8.bf16 %v161
    %v404 = vunpack.c.h.s8.bf16 %v162
    %v405 = vunpack.c.l.s8.bf16 %v163
    %v406 = vunpack.c.l.s8.bf16 %v164
    %v407 = vunpack.c.h.s8.bf16 %v163
    %v408 = vunpack.c.h.s8.bf16 %v164
    %v409 = vunpack.c.l.s8.bf16 %v165
    %v410 = vunpack.c.l.s8.bf16 %v166
    %v411 = vunpack.c.h.s8.bf16 %v165
    %v412 = vunpack.c.h.s8.bf16 %v166
    %v413 = vunpack.c.l.s8.bf16 %v167
    %v414 = vunpack.c.l.s8.bf16 %v168
    %v415 = vunpack.c.h.s8.bf16 %v167
    %v416 = vunpack.c.h.s8.bf16 %v168
    %v417 = vunpack.c.l.s8.bf16 %v169
    %v418 = vunpack.c.l.s8.bf16 %v170
    %v419 = vunpack.c.h.s8.bf16 %v169
    %v420 = vunpack.c.h.s8.bf16 %v170
    %v421 = vunpack.c.l.s8.bf16 %v171
    %v422 = vunpack.c.l.s8.bf16 %v172
    %v423 = vunpack.c.h.s8.bf16 %v171
    %v424 = vunpack.c.h.s8.bf16 %v172
    %v425 = vunpack.c.l.s8.bf16 %v173
    %v426 = vunpack.c.l.s8.bf16 %v174
    %v427 = vunpack.c.h.s8.bf16 %v173
    %v428 = vunpack.c.h.s8.bf16 %v174
    %v429 = vunpack.c.l.s8.bf16 %v175
    %v430 = vunpack.c.l.s8.bf16 %v176
    %v431 = vunpack.c.h.s8.bf16 %v175
    %v432 = vunpack.c.h.s8.bf16 %v176
    %v433 = vunpack.c.l.s8.bf16 %v177
    %v434 = vunpack.c.l.s8.bf16 %v178
    %v435 = vunpack.c.h.s8.bf16 %v177
    %v436 = vunpack.c.h.s8.bf16 %v178
    %v437 = vunpack.c.l.s8.bf16 %v179
    %v438 = vunpack.c.l.s8.bf16 %v180
    %v439 = vunpack.c.h.s8.bf16 %v179
    %v440 = vunpack.c.h.s8.bf16 %v180
    %v441 = vunpack.c.l.s8.bf16 %v181
    %v442 = vunpack.c.l.s8.bf16 %v182
    %v443 = vunpack.c.h.s8.bf16 %v181
    %v444 = vunpack.c.h.s8.bf16 %v182
    %v445 = vunpack.c.l.s8.bf16 %v183
    %v446 = vunpack.c.l.s8.bf16 %v184
    %v447 = vunpack.c.h.s8.bf16 %v183
    %v448 = vunpack.c.h.s8.bf16 %v184
    %v449 = vunpack.c.l.s8.bf16 %v185
    %v450 = vunpack.c.l.s8.bf16 %v186
    %v451 = vunpack.c.h.s8.bf16 %v185
    %v452 = vunpack.c.h.s8.bf16 %v186
    %v453 = vunpack.c.l.s8.bf16 %v187
    %v454 = vunpack.c.l.s8.bf16 %v188
    %v455 = vunpack.c.h.s8.bf16 %v187
    %v456 = vunpack.c.h.s8.bf16 %v188
    %v457 = vunpack.c.l.s8.bf16 %v189
    %v458 = vunpack.c.l.s8.bf16 %v190
    %v459 = vunpack.c.h.s8.bf16 %v189
    %v460 = vunpack.c.h.s8.bf16 %v190
    %v461 = vunpack.c.l.s8.bf16 %v191
    %v462 = vunpack.c.l.s8.bf16 %v192
    %v463 = vunpack.c.h.s8.bf16 %v191
    %v464 = vunpack.c.h.s8.bf16 %v192
    %v465 = vunpack.c.l.s8.bf16 %v193
    %v466 = vunpack.c.l.s8.bf16 %v194
    %v467 = vunpack.c.h.s8.bf16 %v193
    %v468 = vunpack.c.h.s8.bf16 %v194
    %v469 = vunpack.c.l.s8.bf16 %v195
    %v470 = vunpack.c.l.s8.bf16 %v196
    %v471 = vunpack.c.h.s8.bf16 %v195
    %v472 = vunpack.c.h.s8.bf16 %v196
    %v473 = vunpack.c.l.s8.bf16 %v197
    %v474 = vunpack.c.l.s8.bf16 %v198
    %v475 = vunpack.c.h.s8.bf16 %v197
    %v476 = vunpack.c.h.s8.bf16 %v198
    %v477 = vunpack.c.l.s8.bf16 %v199
    %v478 = vunpack.c.l.s8.bf16 %v200
    %v479 = vunpack.c.h.s8.bf16 %v199
    %v480 = vunpack.c.h.s8.bf16 %v200
    %v481 = vunpack.c.l.s8.bf16 %v201
    %v482 = vunpack.c.l.s8.bf16 %v202
    %v483 = vunpack.c.h.s8.bf16 %v201
    %v484 = vunpack.c.h.s8.bf16 %v202
    %v485 = vunpack.c.l.s8.bf16 %v203
    %v486 = vunpack.c.l.s8.bf16 %v204
    %v487 = vunpack.c.h.s8.bf16 %v203
    %v488 = vunpack.c.h.s8.bf16 %v204
    %v489 = vunpack.c.l.s8.bf16 %v205
    %v490 = vunpack.c.l.s8.bf16 %v206
    %v491 = vunpack.c.h.s8.bf16 %v205
    %v492 = vunpack.c.h.s8.bf16 %v206
    %v493 = vunpack.c.l.s8.bf16 %v207
    %v494 = vunpack.c.l.s8.bf16 %v208
    %v495 = vunpack.c.h.s8.bf16 %v207
    %v496 = vunpack.c.h.s8.bf16 %v208
    %v497 = vunpack.c.l.s8.bf16 %v209
    %v498 = vunpack.c.l.s8.bf16 %v210
    %v499 = vunpack.c.h.s8.bf16 %v209
    %v500 = vunpack.c.h.s8.bf16 %v210
    %v501 = vunpack.c.l.s8.bf16 %v211
    %v502 = vunpack.c.l.s8.bf16 %v212
    %v503 = vunpack.c.h.s8.bf16 %v211
    %v504 = vunpack.c.h.s8.bf16 %v212
    %v505 = vunpack.c.l.s8.bf16 %v213
    %v506 = vunpack.c.l.s8.bf16 %v214
    %v507 = vunpack.c.h.s8.bf16 %v213
    %v508 = vunpack.c.h.s8.bf16 %v214
    %v509 = vunpack.c.l.s8.bf16 %v215
    %v510 = vunpack.c.l.s8.bf16 %v216
    %v511 = vunpack.c.h.s8.bf16 %v215
    %v512 = vunpack.c.h.s8.bf16 %v216
    %v513 = vunpack.c.l.s8.bf16 %v217
    %v514 = vunpack.c.l.s8.bf16 %v218
    %v515 = vunpack.c.h.s8.bf16 %v217
    %v516 = vunpack.c.h.s8.bf16 %v218
    %v517 = vunpack.c.l.s8.bf16 %v219
    %v518 = vunpack.c.l.s8.bf16 %v220
    %v519 = vunpack.c.h.s8.bf16 %v219
    %v520 = vunpack.c.h.s8.bf16 %v220
    %v521 = vunpack.c.l.s8.bf16 %v221
    %v522 = vunpack.c.l.s8.bf16 %v222
    %v523 = vunpack.c.h.s8.bf16 %v221
    %v524 = vunpack.c.h.s8.bf16 %v222
    %v525 = vunpack.c.l.s8.bf16 %v223
    %v526 = vunpack.c.l.s8.bf16 %v224
    %v527 = vunpack.c.h.s8.bf16 %v223
    %v528 = vunpack.c.h.s8.bf16 %v224
    %v529 = vunpack.c.l.s8.bf16 %v225
    %v530 = vunpack.c.l.s8.bf16 %v226
    %v531 = vunpack.c.h.s8.bf16 %v225
    %v532 = vunpack.c.h.s8.bf16 %v226
    %v533 = vunpack.c.l.s8.bf16 %v227
    %v534 = vunpack.c.l.s8.bf16 %v228
    %v535 = vunpack.c.h.s8.bf16 %v227
    %v536 = vunpack.c.h.s8.bf16 %v228
    %v537 = vunpack.c.l.s8.bf16 %v229
    %v538 = vunpack.c.l.s8.bf16 %v230
    %v539 = vunpack.c.h.s8.bf16 %v229
    %v540 = vunpack.c.h.s8.bf16 %v230
    %v541 = vunpack.c.l.s8.bf16 %v231
    %v542 = vunpack.c.l.s8.bf16 %v232
    %v543 = vunpack.c.h.s8.bf16 %v231
    %v544 = vunpack.c.h.s8.bf16 %v232
    %v545 = vunpack.c.l.s8.bf16 %v233
    %v546 = vunpack.c.l.s8.bf16 %v234
    %v547 = vunpack.c.h.s8.bf16 %v233
    %v548 = vunpack.c.h.s8.bf16 %v234
    %v549 = vunpack.c.l.s8.bf16 %v235
    %v550 = vunpack.c.l.s8.bf16 %v236
    %v551 = vunpack.c.h.s8.bf16 %v235
    %v552 = vunpack.c.h.s8.bf16 %v236
    %v553 = vunpack.c.l.s8.bf16 %v237
    %v554 = vunpack.c.l.s8.bf16 %v238
    %v555 = vunpack.c.h.s8.bf16 %v237
    %v556 = vunpack.c.h.s8.bf16 %v238
    %v557 = vunpack.c.l.s8.bf16 %v239
    %v558 = vunpack.c.l.s8.bf16 %v240
    %v559 = vunpack.c.h.s8.bf16 %v239
    %v560 = vunpack.c.h.s8.bf16 %v240
    %v561 = vunpack.c.l.s8.bf16 %v241
    %v562 = vunpack.c.l.s8.bf16 %v242
    %v563 = vunpack.c.h.s8.bf16 %v241
    %v564 = vunpack.c.h.s8.bf16 %v242
    %v565 = vunpack.c.l.s8.bf16 %v243
    %v566 = vunpack.c.l.s8.bf16 %v244
    %v567 = vunpack.c.h.s8.bf16 %v243
    %v568 = vunpack.c.h.s8.bf16 %v244
    %v569 = vunpack.c.l.s8.bf16 %v245
    %v570 = vunpack.c.l.s8.bf16 %v246
    %v571 = vunpack.c.h.s8.bf16 %v245
    %v572 = vunpack.c.h.s8.bf16 %v246
    %v573 = vunpack.c.l.s8.bf16 %v247
    %v574 = vunpack.c.l.s8.bf16 %v248
    %v575 = vunpack.c.h.s8.bf16 %v247
    %v576 = vunpack.c.h.s8.bf16 %v248
    %v577 = vunpack.c.l.s8.bf16 %v249
    %v578 = vunpack.c.l.s8.bf16 %v250
    %v579 = vunpack.c.h.s8.bf16 %v249
    %v580 = vunpack.c.h.s8.bf16 %v250
    %v581 = vunpack.c.l.s8.bf16 %v251
    %v582 = vunpack.c.l.s8.bf16 %v252
    %v583 = vunpack.c.h.s8.bf16 %v251
    %v584 = vunpack.c.h.s8.bf16 %v252
    %v585 = vunpack.c.l.s8.bf16 %v253
    %v586 = vunpack.c.l.s8.bf16 %v254
    %v587 = vunpack.c.h.s8.bf16 %v253
    %v588 = vunpack.c.h.s8.bf16 %v254
    %v589 = vunpack.c.l.s8.bf16 %v255
    %v590 = vunpack.c.l.s8.bf16 %v256
    %v591 = vunpack.c.h.s8.bf16 %v255
    %v592 = vunpack.c.h.s8.bf16 %v256
    %v593 = vunpack.c.l.s8.bf16 %v257
    %v594 = vunpack.c.l.s8.bf16 %v258
    %v595 = vunpack.c.h.s8.bf16 %v257
    %v596 = vunpack.c.h.s8.bf16 %v258
    %v597 = vunpack.c.l.s8.bf16 %v259
    %v598 = vunpack.c.l.s8.bf16 %v260
    %v599 = vunpack.c.h.s8.bf16 %v259
    %v600 = vunpack.c.h.s8.bf16 %v260
    %v601 = vunpack.c.l.s8.bf16 %v261
    %v602 = vunpack.c.l.s8.bf16 %v262
    %v603 = vunpack.c.h.s8.bf16 %v261
    %v604 = vunpack.c.h.s8.bf16 %v262
    %v605 = vunpack.c.l.s8.bf16 %v263
    %v606 = vunpack.c.l.s8.bf16 %v264
    %v607 = vunpack.c.h.s8.bf16 %v263
    %v608 = vunpack.c.h.s8.bf16 %v264
    %v609 = vunpack.c.l.s8.bf16 %v265
    %v610 = vunpack.c.l.s8.bf16 %v266
    %v611 = vunpack.c.h.s8.bf16 %v265
    %v612 = vunpack.c.h.s8.bf16 %v266
    %v613 = vunpack.c.l.s8.bf16 %v267
    %v614 = vunpack.c.l.s8.bf16 %v268
    %v615 = vunpack.c.h.s8.bf16 %v267
    %v616 = vunpack.c.h.s8.bf16 %v268
    %v617 = vunpack.c.l.s8.bf16 %v269
    %v618 = vunpack.c.l.s8.bf16 %v270
    %v619 = vunpack.c.h.s8.bf16 %v269
    %v620 = vunpack.c.h.s8.bf16 %v270
    %v621 = vunpack.c.l.s8.bf16 %v271
    %v622 = vunpack.c.l.s8.bf16 %v272
    %v623 = vunpack.c.h.s8.bf16 %v271
    %v624 = vunpack.c.h.s8.bf16 %v272
    %v625 = vunpack.c.l.s8.bf16 %v273
    %v626 = vunpack.c.l.s8.bf16 %v274
    %v627 = vunpack.c.h.s8.bf16 %v273
    %v628 = vunpack.c.h.s8.bf16 %v274
    %v629 = vunpack.c.l.s8.bf16 %v275
    %v630 = vunpack.c.l.s8.bf16 %v276
    %v631 = vunpack.c.h.s8.bf16 %v275
    %v632 = vunpack.c.h.s8.bf16 %v276
    %v633 = vunpack.c.l.s8.bf16 %v277
    %v634 = vunpack.c.l.s8.bf16 %v278
    %v635 = vunpack.c.h.s8.bf16 %v277
    %v636 = vunpack.c.h.s8.bf16 %v278
    %v637 = vunpack.c.l.s8.bf16 %v279
    %v638 = vunpack.c.l.s8.bf16 %v280
    %v639 = vunpack.c.h.s8.bf16 %v279
    %v640 = vunpack.c.h.s8.bf16 %v280
    %v641 = vunpack.c.l.s8.bf16 %v281
    %v642 = vunpack.c.l.s8.bf16 %v282
    %v643 = vunpack.c.h.s8.bf16 %v281
    %v644 = vunpack.c.h.s8.bf16 %v282
    %v645 = vunpack.c.l.s8.bf16 %v283
    %v646 = vunpack.c.l.s8.bf16 %v284
    %v647 = vunpack.c.h.s8.bf16 %v283
    %v648 = vunpack.c.h.s8.bf16 %v284
    %v649 = vunpack.c.l.s8.bf16 %v285
    %v650 = vunpack.c.l.s8.bf16 %v286
    %v651 = vunpack.c.h.s8.bf16 %v285
    %v652 = vunpack.c.h.s8.bf16 %v286
    %v653 = vunpack.c.l.s8.bf16 %v287
    %v654 = vunpack.c.l.s8.bf16 %v288
    %v655 = vunpack.c.h.s8.bf16 %v287
    %v656 = vunpack.c.h.s8.bf16 %v288
    %v657 = vunpack.c.l.s8.bf16 %v289
    %v658 = vunpack.c.l.s8.bf16 %v290
    %v659 = vunpack.c.h.s8.bf16 %v289
    %v660 = vunpack.c.h.s8.bf16 %v290
    %v661 = vunpack.c.l.s8.bf16 %v291
    %v662 = vunpack.c.l.s8.bf16 %v292
    %v663 = vunpack.c.h.s8.bf16 %v291
    %v664 = vunpack.c.h.s8.bf16 %v292
    %v665 = vunpack.c.l.s8.bf16 %v293
    %v666 = vunpack.c.l.s8.bf16 %v294
    %v667 = vunpack.c.h.s8.bf16 %v293
    %v668 = vunpack.c.h.s8.bf16 %v294
    %v669 = vunpack.c.l.s8.bf16 %v295
    %v670 = vunpack.c.l.s8.bf16 %v296
    %v671 = vunpack.c.h.s8.bf16 %v295
    %v672 = vunpack.c.h.s8.bf16 %v296
    %v673 = vunpack.c.l.s8.bf16 %v297
    %v674 = vunpack.c.l.s8.bf16 %v298
    %v675 = vunpack.c.h.s8.bf16 %v297
    %v676 = vunpack.c.h.s8.bf16 %v298
    %v677 = vunpack.c.l.s8.bf16 %v299
    %v678 = vunpack.c.l.s8.bf16 %v300
    %v679 = vunpack.c.h.s8.bf16 %v299
    %v680 = vunpack.c.h.s8.bf16 %v300
    %v681 = vunpack.c.l.s8.bf16 %v301
    %v682 = vunpack.c.l.s8.bf16 %v302
    %v683 = vunpack.c.h.s8.bf16 %v301
    %v684 = vunpack.c.h.s8.bf16 %v302
    %v685 = vunpack.c.l.s8.bf16 %v303
    %v686 = vunpack.c.l.s8.bf16 %v304
    %v687 = vunpack.c.h.s8.bf16 %v303
    %v688 = vunpack.c.h.s8.bf16 %v304
    %v692 = vcombine.high %v108, %v108
    %v694 = vunpack.c.l.s4 1966171168
    %v695 = vunpack.c.0.s8 %v694
    %v696 = vlaneseq
    %v697 = vshrl.u32 %v696, 7
    %v698 = vsub.s32 %v695, %v697
    %v699 = vrot.slane %v108, %v698
    %v701 = vunpack.c.l.s4 1966171168
    %v702 = vunpack.c.0.s8 %v701
    %v703 = vlaneseq
    %v704 = vshrl.u32 %v703, 7
    %v705 = vsub.s32 %v702, %v704
    %v706 = vrot.slane %v692, %v705
    %v707 = vcombine.high %v699, %v699
    %v708 = vcombine.high %v706, %v706
    %v710 = vunpack.c.l.s4 1966171168
    %v711 = vunpack.c.0.s8 %v710
    %v712 = vlaneseq
    %v713 = vshrl.u32 %v712, 7
    %v714 = vsub.s32 %v711, %v713
    %v715 = vrot.slane %v699, %v714
    %v717 = vunpack.c.l.s4 1966171168
    %v718 = vunpack.c.0.s8 %v717
    %v719 = vlaneseq
    %v720 = vshrl.u32 %v719, 7
    %v721 = vsub.s32 %v718, %v720
    %v722 = vrot.slane %v706, %v721
    %v724 = vunpack.c.l.s4 1966171168
    %v725 = vunpack.c.0.s8 %v724
    %v726 = vlaneseq
    %v727 = vshrl.u32 %v726, 7
    %v728 = vsub.s32 %v725, %v727
    %v729 = vrot.slane %v707, %v728
    %v731 = vunpack.c.l.s4 1966171168
    %v732 = vunpack.c.0.s8 %v731
    %v733 = vlaneseq
    %v734 = vshrl.u32 %v733, 7
    %v735 = vsub.s32 %v732, %v734
    %v736 = vrot.slane %v708, %v735
    %v737 = vcombine.high %v715, %v715
    %v738 = vcombine.high %v722, %v722
    %v739 = vcombine.high %v729, %v729
    %v740 = vcombine.high %v736, %v736
    %v741 = vcombine.high %v109, %v109
    %v743 = vunpack.c.l.s4 1966171168
    %v744 = vunpack.c.0.s8 %v743
    %v745 = vlaneseq
    %v746 = vshrl.u32 %v745, 7
    %v747 = vsub.s32 %v744, %v746
    %v748 = vrot.slane %v109, %v747
    %v750 = vunpack.c.l.s4 1966171168
    %v751 = vunpack.c.0.s8 %v750
    %v752 = vlaneseq
    %v753 = vshrl.u32 %v752, 7
    %v754 = vsub.s32 %v751, %v753
    %v755 = vrot.slane %v741, %v754
    %v756 = vcombine.high %v748, %v748
    %v757 = vcombine.high %v755, %v755
    %v759 = vunpack.c.l.s4 1966171168
    %v760 = vunpack.c.0.s8 %v759
    %v761 = vlaneseq
    %v762 = vshrl.u32 %v761, 7
    %v763 = vsub.s32 %v760, %v762
    %v764 = vrot.slane %v748, %v763
    %v766 = vunpack.c.l.s4 1966171168
    %v767 = vunpack.c.0.s8 %v766
    %v768 = vlaneseq
    %v769 = vshrl.u32 %v768, 7
    %v770 = vsub.s32 %v767, %v769
    %v771 = vrot.slane %v755, %v770
    %v773 = vunpack.c.l.s4 1966171168
    %v774 = vunpack.c.0.s8 %v773
    %v775 = vlaneseq
    %v776 = vshrl.u32 %v775, 7
    %v777 = vsub.s32 %v774, %v776
    %v778 = vrot.slane %v756, %v777
    %v780 = vunpack.c.l.s4 1966171168
    %v781 = vunpack.c.0.s8 %v780
    %v782 = vlaneseq
    %v783 = vshrl.u32 %v782, 7
    %v784 = vsub.s32 %v781, %v783
    %v785 = vrot.slane %v757, %v784
    %v786 = vcombine.high %v764, %v764
    %v787 = vcombine.high %v771, %v771
    %v788 = vcombine.high %v778, %v778
    %v789 = vcombine.high %v785, %v785
    %v790 = vcombine.high %v110, %v110
    %v792 = vunpack.c.l.s4 1966171168
    %v793 = vunpack.c.0.s8 %v792
    %v794 = vlaneseq
    %v795 = vshrl.u32 %v794, 7
    %v796 = vsub.s32 %v793, %v795
    %v797 = vrot.slane %v110, %v796
    %v799 = vunpack.c.l.s4 1966171168
    %v800 = vunpack.c.0.s8 %v799
    %v801 = vlaneseq
    %v802 = vshrl.u32 %v801, 7
    %v803 = vsub.s32 %v800, %v802
    %v804 = vrot.slane %v790, %v803
    %v805 = vcombine.high %v797, %v797
    %v806 = vcombine.high %v804, %v804
    %v808 = vunpack.c.l.s4 1966171168
    %v809 = vunpack.c.0.s8 %v808
    %v810 = vlaneseq
    %v811 = vshrl.u32 %v810, 7
    %v812 = vsub.s32 %v809, %v811
    %v813 = vrot.slane %v797, %v812
    %v815 = vunpack.c.l.s4 1966171168
    %v816 = vunpack.c.0.s8 %v815
    %v817 = vlaneseq
    %v818 = vshrl.u32 %v817, 7
    %v819 = vsub.s32 %v816, %v818
    %v820 = vrot.slane %v804, %v819
    %v822 = vunpack.c.l.s4 1966171168
    %v823 = vunpack.c.0.s8 %v822
    %v824 = vlaneseq
    %v825 = vshrl.u32 %v824, 7
    %v826 = vsub.s32 %v823, %v825
    %v827 = vrot.slane %v805, %v826
    %v829 = vunpack.c.l.s4 1966171168
    %v830 = vunpack.c.0.s8 %v829
    %v831 = vlaneseq
    %v832 = vshrl.u32 %v831, 7
    %v833 = vsub.s32 %v830, %v832
    %v834 = vrot.slane %v806, %v833
    %v835 = vcombine.high %v813, %v813
    %v836 = vcombine.high %v820, %v820
    %v837 = vcombine.high %v827, %v827
    %v838 = vcombine.high %v834, %v834
    %863 = vmatprep.subr.bf16.mxu0 %v306
    %864 = vmatpush1.bf16.msra.mxu0 %v305
    %865 = vmatprep.subr.bf16.mxu0 %v308
    %866 = vmatpush1.bf16.msra.mxu0 %v307
    %867 = vmatprep.subr.bf16.mxu0 %v310
    %868 = vmatpush1.bf16.msra.mxu0 %v309
    %869 = vmatprep.subr.bf16.mxu0 %v312
    %870 = vmatpush1.bf16.msra.mxu0 %v311
    %871 = vmatprep.subr.bf16.mxu0 %v314
    %872 = vmatpush1.bf16.msra.mxu0 %v313
    %873 = vmatprep.subr.bf16.mxu0 %v316
    %874 = vmatpush1.bf16.msra.mxu0 %v315
    %875 = vmatprep.subr.bf16.mxu0 %v318
    %876 = vmatpush1.bf16.msra.mxu0 %v317
    %877 = vmatprep.subr.bf16.mxu0 %v320
    %878 = vmatpush1.bf16.msra.mxu0 %v319
    %879 = vmatprep.subr.bf16.mxu0 %v322
    %880 = vmatpush1.bf16.msra.mxu0 %v321
    %881 = vmatprep.subr.bf16.mxu0 %v324
    %882 = vmatpush1.bf16.msra.mxu0 %v323
    %883 = vmatprep.subr.bf16.mxu0 %v326
    %884 = vmatpush1.bf16.msra.mxu0 %v325
    %885 = vmatprep.subr.bf16.mxu0 %v328
    %886 = vmatpush1.bf16.msra.mxu0 %v327
    %887 = vmatprep.subr.bf16.mxu0 %v330
    %888 = vmatpush1.bf16.msra.mxu0 %v329
    %889 = vmatprep.subr.bf16.mxu0 %v332
    %890 = vmatpush1.bf16.msra.mxu0 %v331
    %891 = vmatprep.subr.bf16.mxu0 %v334
    %892 = vmatpush1.bf16.msra.mxu0 %v333
    %893 = vmatprep.subr.bf16.mxu0 %v336
    %894 = vmatpush1.bf16.msra.mxu0 %v335
    %895 = vmatprep.mubr.bf16.mxu0 %v729
    %896 = vmatmul.mubr.bf16.gmra.mrb[0].mxu0 %v715
    %v897 = vpop.f32.mrb[0].mxu0
    %v898 = vadd.f32 0.0, %v897
    %v899 = vpop.f32.mrb[0].mxu0
    %v900 = vadd.f32 0.0, %v899
    %v901 = vpop.f32.mrb[0].mxu0
    %v902 = vpop.f32.mrb[0].mxu0
    %903 = vdwg.mxu0
    %904 = vmatprep.subr.bf16.mxu0 %v338
    %905 = vmatpush1.bf16.msra.mxu0 %v337
    %906 = vmatprep.subr.bf16.mxu0 %v340
    %907 = vmatpush1.bf16.msra.mxu0 %v339
    %908 = vmatprep.subr.bf16.mxu0 %v342
    %909 = vmatpush1.bf16.msra.mxu0 %v341
    %910 = vmatprep.subr.bf16.mxu0 %v344
    %911 = vmatpush1.bf16.msra.mxu0 %v343
    %912 = vmatprep.subr.bf16.mxu0 %v346
    %913 = vmatpush1.bf16.msra.mxu0 %v345
    %914 = vmatprep.subr.bf16.mxu0 %v348
    %915 = vmatpush1.bf16.msra.mxu0 %v347
    %916 = vmatprep.subr.bf16.mxu0 %v350
    %917 = vmatpush1.bf16.msra.mxu0 %v349
    %918 = vmatprep.subr.bf16.mxu0 %v352
    %919 = vmatpush1.bf16.msra.mxu0 %v351
    %920 = vmatprep.subr.bf16.mxu0 %v354
    %921 = vmatpush1.bf16.msra.mxu0 %v353
    %922 = vmatprep.subr.bf16.mxu0 %v356
    %923 = vmatpush1.bf16.msra.mxu0 %v355
    %924 = vmatprep.subr.bf16.mxu0 %v358
    %925 = vmatpush1.bf16.msra.mxu0 %v357
    %926 = vmatprep.subr.bf16.mxu0 %v360
    %927 = vmatpush1.bf16.msra.mxu0 %v359
    %928 = vmatprep.subr.bf16.mxu0 %v362
    %929 = vmatpush1.bf16.msra.mxu0 %v361
    %930 = vmatprep.subr.bf16.mxu0 %v364
    %931 = vmatpush1.bf16.msra.mxu0 %v363
    %932 = vmatprep.subr.bf16.mxu0 %v366
    %933 = vmatpush1.bf16.msra.mxu0 %v365
    %934 = vmatprep.subr.bf16.mxu0 %v368
    %935 = vmatpush1.bf16.msra.mxu0 %v367
    %936 = vmatprep.mubr.bf16.mxu0 %v739
    %937 = vmatmul.mubr.bf16.gmra.mrb[0].mxu0 %v737
    %v938 = vpop.f32.mrb[0].mxu0
    %v939 = vadd.f32 %v898, %v938
    %v940 = vpop.f32.mrb[0].mxu0
    %v941 = vadd.f32 %v900, %v940
    %v942 = vpop.f32.mrb[0].mxu0
    %v943 = vpop.f32.mrb[0].mxu0
    %944 = vdwg.mxu0
    %945 = vmatprep.subr.bf16.mxu0 %v370
    %946 = vmatpush1.bf16.msra.mxu0 %v369
    %947 = vmatprep.subr.bf16.mxu0 %v372
    %948 = vmatpush1.bf16.msra.mxu0 %v371
    %949 = vmatprep.subr.bf16.mxu0 %v374
    %950 = vmatpush1.bf16.msra.mxu0 %v373
    %951 = vmatprep.subr.bf16.mxu0 %v376
    %952 = vmatpush1.bf16.msra.mxu0 %v375
    %953 = vmatprep.subr.bf16.mxu0 %v378
    %954 = vmatpush1.bf16.msra.mxu0 %v377
    %955 = vmatprep.subr.bf16.mxu0 %v380
    %956 = vmatpush1.bf16.msra.mxu0 %v379
    %957 = vmatprep.subr.bf16.mxu0 %v382
    %958 = vmatpush1.bf16.msra.mxu0 %v381
    %959 = vmatprep.subr.bf16.mxu0 %v384
    %960 = vmatpush1.bf16.msra.mxu0 %v383
    %961 = vmatprep.subr.bf16.mxu0 %v386
    %962 = vmatpush1.bf16.msra.mxu0 %v385
    %963 = vmatprep.subr.bf16.mxu0 %v388
    %964 = vmatpush1.bf16.msra.mxu0 %v387
    %965 = vmatprep.subr.bf16.mxu0 %v390
    %966 = vmatpush1.bf16.msra.mxu0 %v389
    %967 = vmatprep.subr.bf16.mxu0 %v392
    %968 = vmatpush1.bf16.msra.mxu0 %v391
    %969 = vmatprep.subr.bf16.mxu0 %v394
    %970 = vmatpush1.bf16.msra.mxu0 %v393
    %971 = vmatprep.subr.bf16.mxu0 %v396
    %972 = vmatpush1.bf16.msra.mxu0 %v395
    %973 = vmatprep.subr.bf16.mxu0 %v398
    %974 = vmatpush1.bf16.msra.mxu0 %v397
    %975 = vmatprep.subr.bf16.mxu0 %v400
    %976 = vmatpush1.bf16.msra.mxu0 %v399
    %977 = vmatprep.mubr.bf16.mxu0 %v736
    %978 = vmatmul.mubr.bf16.gmra.mrb[0].mxu0 %v722
    %v979 = vpop.f32.mrb[0].mxu0
    %v980 = vadd.f32 %v939, %v979
    %v981 = vpop.f32.mrb[0].mxu0
    %v982 = vadd.f32 %v941, %v981
    %v983 = vpop.f32.mrb[0].mxu0
    %v984 = vpop.f32.mrb[0].mxu0
    %985 = vdwg.mxu0
    %986 = vmatprep.subr.bf16.mxu0 %v402
    %987 = vmatpush1.bf16.msra.mxu0 %v401
    %988 = vmatprep.subr.bf16.mxu0 %v404
    %989 = vmatpush1.bf16.msra.mxu0 %v403
    %990 = vmatprep.subr.bf16.mxu0 %v406
    %991 = vmatpush1.bf16.msra.mxu0 %v405
    %992 = vmatprep.subr.bf16.mxu0 %v408
    %993 = vmatpush1.bf16.msra.mxu0 %v407
    %994 = vmatprep.subr.bf16.mxu0 %v410
    %995 = vmatpush1.bf16.msra.mxu0 %v409
    %996 = vmatprep.subr.bf16.mxu0 %v412
    %997 = vmatpush1.bf16.msra.mxu0 %v411
    %998 = vmatprep.subr.bf16.mxu0 %v414
    %999 = vmatpush1.bf16.msra.mxu0 %v413
    %1000 = vmatprep.subr.bf16.mxu0 %v416
    %1001 = vmatpush1.bf16.msra.mxu0 %v415
    %1002 = vmatprep.subr.bf16.mxu0 %v418
    %1003 = vmatpush1.bf16.msra.mxu0 %v417
    %1004 = vmatprep.subr.bf16.mxu0 %v420
    %1005 = vmatpush1.bf16.msra.mxu0 %v419
    %1006 = vmatprep.subr.bf16.mxu0 %v422
    %1007 = vmatpush1.bf16.msra.mxu0 %v421
    %1008 = vmatprep.subr.bf16.mxu0 %v424
    %1009 = vmatpush1.bf16.msra.mxu0 %v423
    %1010 = vmatprep.subr.bf16.mxu0 %v426
    %1011 = vmatpush1.bf16.msra.mxu0 %v425
    %1012 = vmatprep.subr.bf16.mxu0 %v428
    %1013 = vmatpush1.bf16.msra.mxu0 %v427
    %1014 = vmatprep.subr.bf16.mxu0 %v430
    %1015 = vmatpush1.bf16.msra.mxu0 %v429
    %1016 = vmatprep.subr.bf16.mxu0 %v432
    %1017 = vmatpush1.bf16.msra.mxu0 %v431
    %1018 = vmatprep.mubr.bf16.mxu0 %v740
    %1019 = vmatmul.mubr.bf16.gmra.mrb[0].mxu0 %v738
    %v1020 = vpop.f32.mrb[0].mxu0
    %v1021 = vadd.f32 %v980, %v1020
    %v1022 = vpop.f32.mrb[0].mxu0
    %v1023 = vadd.f32 %v982, %v1022
    %v1024 = vpop.f32.mrb[0].mxu0
    %v1025 = vpop.f32.mrb[0].mxu0
    %1026 = vdwg.mxu0
    %1027 = vmatprep.subr.bf16.mxu0 %v434
    %1028 = vmatpush1.bf16.msra.mxu0 %v433
    %1029 = vmatprep.subr.bf16.mxu0 %v436
    %1030 = vmatpush1.bf16.msra.mxu0 %v435
    %1031 = vmatprep.subr.bf16.mxu0 %v438
    %1032 = vmatpush1.bf16.msra.mxu0 %v437
    %1033 = vmatprep.subr.bf16.mxu0 %v440
    %1034 = vmatpush1.bf16.msra.mxu0 %v439
    %1035 = vmatprep.subr.bf16.mxu0 %v442
    %1036 = vmatpush1.bf16.msra.mxu0 %v441
    %1037 = vmatprep.subr.bf16.mxu0 %v444
    %1038 = vmatpush1.bf16.msra.mxu0 %v443
    %1039 = vmatprep.subr.bf16.mxu0 %v446
    %1040 = vmatpush1.bf16.msra.mxu0 %v445
    %1041 = vmatprep.subr.bf16.mxu0 %v448
    %1042 = vmatpush1.bf16.msra.mxu0 %v447
    %1043 = vmatprep.subr.bf16.mxu0 %v450
    %1044 = vmatpush1.bf16.msra.mxu0 %v449
    %1045 = vmatprep.subr.bf16.mxu0 %v452
    %1046 = vmatpush1.bf16.msra.mxu0 %v451
    %1047 = vmatprep.subr.bf16.mxu0 %v454
    %1048 = vmatpush1.bf16.msra.mxu0 %v453
    %1049 = vmatprep.subr.bf16.mxu0 %v456
    %1050 = vmatpush1.bf16.msra.mxu0 %v455
    %1051 = vmatprep.subr.bf16.mxu0 %v458
    %1052 = vmatpush1.bf16.msra.mxu0 %v457
    %1053 = vmatprep.subr.bf16.mxu0 %v460
    %1054 = vmatpush1.bf16.msra.mxu0 %v459
    %1055 = vmatprep.subr.bf16.mxu0 %v462
    %1056 = vmatpush1.bf16.msra.mxu0 %v461
    %1057 = vmatprep.subr.bf16.mxu0 %v464
    %1058 = vmatpush1.bf16.msra.mxu0 %v463
    %1059 = vmatprep.mubr.bf16.mxu0 %v778
    %1060 = vmatmul.mubr.bf16.gmra.mrb[0].mxu0 %v764
    %v1061 = vpop.f32.mrb[0].mxu0
    %v1062 = vadd.f32 %v1021, %v1061
    %v1063 = vpop.f32.mrb[0].mxu0
    %v1064 = vadd.f32 %v1023, %v1063
    %v1065 = vpop.f32.mrb[0].mxu0
    %v1066 = vpop.f32.mrb[0].mxu0
    %1067 = vdwg.mxu0
    %1068 = vmatprep.subr.bf16.mxu0 %v466
    %1069 = vmatpush1.bf16.msra.mxu0 %v465
    %1070 = vmatprep.subr.bf16.mxu0 %v468
    %1071 = vmatpush1.bf16.msra.mxu0 %v467
    %1072 = vmatprep.subr.bf16.mxu0 %v470
    %1073 = vmatpush1.bf16.msra.mxu0 %v469
    %1074 = vmatprep.subr.bf16.mxu0 %v472
    %1075 = vmatpush1.bf16.msra.mxu0 %v471
    %1076 = vmatprep.subr.bf16.mxu0 %v474
    %1077 = vmatpush1.bf16.msra.mxu0 %v473
    %1078 = vmatprep.subr.bf16.mxu0 %v476
    %1079 = vmatpush1.bf16.msra.mxu0 %v475
    %1080 = vmatprep.subr.bf16.mxu0 %v478
    %1081 = vmatpush1.bf16.msra.mxu0 %v477
    %1082 = vmatprep.subr.bf16.mxu0 %v480
    %1083 = vmatpush1.bf16.msra.mxu0 %v479
    %1084 = vmatprep.subr.bf16.mxu0 %v482
    %1085 = vmatpush1.bf16.msra.mxu0 %v481
    %1086 = vmatprep.subr.bf16.mxu0 %v484
    %1087 = vmatpush1.bf16.msra.mxu0 %v483
    %1088 = vmatprep.subr.bf16.mxu0 %v486
    %1089 = vmatpush1.bf16.msra.mxu0 %v485
    %1090 = vmatprep.subr.bf16.mxu0 %v488
    %1091 = vmatpush1.bf16.msra.mxu0 %v487
    %1092 = vmatprep.subr.bf16.mxu0 %v490
    %1093 = vmatpush1.bf16.msra.mxu0 %v489
    %1094 = vmatprep.subr.bf16.mxu0 %v492
    %1095 = vmatpush1.bf16.msra.mxu0 %v491
    %1096 = vmatprep.subr.bf16.mxu0 %v494
    %1097 = vmatpush1.bf16.msra.mxu0 %v493
    %1098 = vmatprep.subr.bf16.mxu0 %v496
    %1099 = vmatpush1.bf16.msra.mxu0 %v495
    %1100 = vmatprep.mubr.bf16.mxu0 %v788
    %1101 = vmatmul.mubr.bf16.gmra.mrb[0].mxu0 %v786
    %v1102 = vpop.f32.mrb[0].mxu0
    %v1103 = vadd.f32 %v1062, %v1102
    %v1104 = vpop.f32.mrb[0].mxu0
    %v1105 = vadd.f32 %v1064, %v1104
    %v1106 = vpop.f32.mrb[0].mxu0
    %v1107 = vpop.f32.mrb[0].mxu0
    %1108 = vdwg.mxu0
    %1109 = vmatprep.subr.bf16.mxu0 %v498
    %1110 = vmatpush1.bf16.msra.mxu0 %v497
    %1111 = vmatprep.subr.bf16.mxu0 %v500
    %1112 = vmatpush1.bf16.msra.mxu0 %v499
    %1113 = vmatprep.subr.bf16.mxu0 %v502
    %1114 = vmatpush1.bf16.msra.mxu0 %v501
    %1115 = vmatprep.subr.bf16.mxu0 %v504
    %1116 = vmatpush1.bf16.msra.mxu0 %v503
    %1117 = vmatprep.subr.bf16.mxu0 %v506
    %1118 = vmatpush1.bf16.msra.mxu0 %v505
    %1119 = vmatprep.subr.bf16.mxu0 %v508
    %1120 = vmatpush1.bf16.msra.mxu0 %v507
    %1121 = vmatprep.subr.bf16.mxu0 %v510
    %1122 = vmatpush1.bf16.msra.mxu0 %v509
    %1123 = vmatprep.subr.bf16.mxu0 %v512
    %1124 = vmatpush1.bf16.msra.mxu0 %v511
    %1125 = vmatprep.subr.bf16.mxu0 %v514
    %1126 = vmatpush1.bf16.msra.mxu0 %v513
    %1127 = vmatprep.subr.bf16.mxu0 %v516
    %1128 = vmatpush1.bf16.msra.mxu0 %v515
    %1129 = vmatprep.subr.bf16.mxu0 %v518
    %1130 = vmatpush1.bf16.msra.mxu0 %v517
    %1131 = vmatprep.subr.bf16.mxu0 %v520
    %1132 = vmatpush1.bf16.msra.mxu0 %v519
    %1133 = vmatprep.subr.bf16.mxu0 %v522
    %1134 = vmatpush1.bf16.msra.mxu0 %v521
    %1135 = vmatprep.subr.bf16.mxu0 %v524
    %1136 = vmatpush1.bf16.msra.mxu0 %v523
    %1137 = vmatprep.subr.bf16.mxu0 %v526
    %1138 = vmatpush1.bf16.msra.mxu0 %v525
    %1139 = vmatprep.subr.bf16.mxu0 %v528
    %1140 = vmatpush1.bf16.msra.mxu0 %v527
    %1141 = vmatprep.mubr.bf16.mxu0 %v785
    %1142 = vmatmul.mubr.bf16.gmra.mrb[0].mxu0 %v771
    %v1143 = vpop.f32.mrb[0].mxu0
    %v1144 = vadd.f32 %v1103, %v1143
    %v1145 = vpop.f32.mrb[0].mxu0
    %v1146 = vadd.f32 %v1105, %v1145
    %v1147 = vpop.f32.mrb[0].mxu0
    %v1148 = vpop.f32.mrb[0].mxu0
    %1149 = vdwg.mxu0
    %1150 = vmatprep.subr.bf16.mxu0 %v530
    %1151 = vmatpush1.bf16.msra.mxu0 %v529
    %1152 = vmatprep.subr.bf16.mxu0 %v532
    %1153 = vmatpush1.bf16.msra.mxu0 %v531
    %1154 = vmatprep.subr.bf16.mxu0 %v534
    %1155 = vmatpush1.bf16.msra.mxu0 %v533
    %1156 = vmatprep.subr.bf16.mxu0 %v536
    %1157 = vmatpush1.bf16.msra.mxu0 %v535
    %1158 = vmatprep.subr.bf16.mxu0 %v538
    %1159 = vmatpush1.bf16.msra.mxu0 %v537
    %1160 = vmatprep.subr.bf16.mxu0 %v540
    %1161 = vmatpush1.bf16.msra.mxu0 %v539
    %1162 = vmatprep.subr.bf16.mxu0 %v542
    %1163 = vmatpush1.bf16.msra.mxu0 %v541
    %1164 = vmatprep.subr.bf16.mxu0 %v544
    %1165 = vmatpush1.bf16.msra.mxu0 %v543
    %1166 = vmatprep.subr.bf16.mxu0 %v546
    %1167 = vmatpush1.bf16.msra.mxu0 %v545
    %1168 = vmatprep.subr.bf16.mxu0 %v548
    %1169 = vmatpush1.bf16.msra.mxu0 %v547
    %1170 = vmatprep.subr.bf16.mxu0 %v550
    %1171 = vmatpush1.bf16.msra.mxu0 %v549
    %1172 = vmatprep.subr.bf16.mxu0 %v552
    %1173 = vmatpush1.bf16.msra.mxu0 %v551
    %1174 = vmatprep.subr.bf16.mxu0 %v554
    %1175 = vmatpush1.bf16.msra.mxu0 %v553
    %1176 = vmatprep.subr.bf16.mxu0 %v556
    %1177 = vmatpush1.bf16.msra.mxu0 %v555
    %1178 = vmatprep.subr.bf16.mxu0 %v558
    %1179 = vmatpush1.bf16.msra.mxu0 %v557
    %1180 = vmatprep.subr.bf16.mxu0 %v560
    %1181 = vmatpush1.bf16.msra.mxu0 %v559
    %1182 = vmatprep.mubr.bf16.mxu0 %v789
    %1183 = vmatmul.mubr.bf16.gmra.mrb[0].mxu0 %v787
    %v1184 = vpop.f32.mrb[0].mxu0
    %v1185 = vadd.f32 %v1144, %v1184
    %v1186 = vpop.f32.mrb[0].mxu0
    %v1187 = vadd.f32 %v1146, %v1186
    %v1188 = vpop.f32.mrb[0].mxu0
    %v1189 = vpop.f32.mrb[0].mxu0
    %1190 = vdwg.mxu0
    %1191 = vmatprep.subr.bf16.mxu0 %v562
    %1192 = vmatpush1.bf16.msra.mxu0 %v561
    %1193 = vmatprep.subr.bf16.mxu0 %v564
    %1194 = vmatpush1.bf16.msra.mxu0 %v563
    %1195 = vmatprep.subr.bf16.mxu0 %v566
    %1196 = vmatpush1.bf16.msra.mxu0 %v565
    %1197 = vmatprep.subr.bf16.mxu0 %v568
    %1198 = vmatpush1.bf16.msra.mxu0 %v567
    %1199 = vmatprep.subr.bf16.mxu0 %v570
    %1200 = vmatpush1.bf16.msra.mxu0 %v569
    %1201 = vmatprep.subr.bf16.mxu0 %v572
    %1202 = vmatpush1.bf16.msra.mxu0 %v571
    %1203 = vmatprep.subr.bf16.mxu0 %v574
    %1204 = vmatpush1.bf16.msra.mxu0 %v573
    %1205 = vmatprep.subr.bf16.mxu0 %v576
    %1206 = vmatpush1.bf16.msra.mxu0 %v575
    %1207 = vmatprep.subr.bf16.mxu0 %v578
    %1208 = vmatpush1.bf16.msra.mxu0 %v577
    %1209 = vmatprep.subr.bf16.mxu0 %v580
    %1210 = vmatpush1.bf16.msra.mxu0 %v579
    %1211 = vmatprep.subr.bf16.mxu0 %v582
    %1212 = vmatpush1.bf16.msra.mxu0 %v581
    %1213 = vmatprep.subr.bf16.mxu0 %v584
    %1214 = vmatpush1.bf16.msra.mxu0 %v583
    %1215 = vmatprep.subr.bf16.mxu0 %v586
    %1216 = vmatpush1.bf16.msra.mxu0 %v585
    %1217 = vmatprep.subr.bf16.mxu0 %v588
    %1218 = vmatpush1.bf16.msra.mxu0 %v587
    %1219 = vmatprep.subr.bf16.mxu0 %v590
    %1220 = vmatpush1.bf16.msra.mxu0 %v589
    %1221 = vmatprep.subr.bf16.mxu0 %v592
    %1222 = vmatpush1.bf16.msra.mxu0 %v591
    %1223 = vmatprep.mubr.bf16.mxu0 %v827
    %1224 = vmatmul.mubr.bf16.gmra.mrb[0].mxu0 %v813
    %v1225 = vpop.f32.mrb[0].mxu0
    %v1226 = vadd.f32 %v1185, %v1225
    %v1227 = vpop.f32.mrb[0].mxu0
    %v1228 = vadd.f32 %v1187, %v1227
    %v1229 = vpop.f32.mrb[0].mxu0
    %v1230 = vpop.f32.mrb[0].mxu0
    %1231 = vdwg.mxu0
    %1232 = vmatprep.subr.bf16.mxu0 %v594
    %1233 = vmatpush1.bf16.msra.mxu0 %v593
    %1234 = vmatprep.subr.bf16.mxu0 %v596
    %1235 = vmatpush1.bf16.msra.mxu0 %v595
    %1236 = vmatprep.subr.bf16.mxu0 %v598
    %1237 = vmatpush1.bf16.msra.mxu0 %v597
    %1238 = vmatprep.subr.bf16.mxu0 %v600
    %1239 = vmatpush1.bf16.msra.mxu0 %v599
    %1240 = vmatprep.subr.bf16.mxu0 %v602
    %1241 = vmatpush1.bf16.msra.mxu0 %v601
    %1242 = vmatprep.subr.bf16.mxu0 %v604
    %1243 = vmatpush1.bf16.msra.mxu0 %v603
    %1244 = vmatprep.subr.bf16.mxu0 %v606
    %1245 = vmatpush1.bf16.msra.mxu0 %v605
    %1246 = vmatprep.subr.bf16.mxu0 %v608
    %1247 = vmatpush1.bf16.msra.mxu0 %v607
    %1248 = vmatprep.subr.bf16.mxu0 %v610
    %1249 = vmatpush1.bf16.msra.mxu0 %v609
    %1250 = vmatprep.subr.bf16.mxu0 %v612
    %1251 = vmatpush1.bf16.msra.mxu0 %v611
    %1252 = vmatprep.subr.bf16.mxu0 %v614
    %1253 = vmatpush1.bf16.msra.mxu0 %v613
    %1254 = vmatprep.subr.bf16.mxu0 %v616
    %1255 = vmatpush1.bf16.msra.mxu0 %v615
    %1256 = vmatprep.subr.bf16.mxu0 %v618
    %1257 = vmatpush1.bf16.msra.mxu0 %v617
    %1258 = vmatprep.subr.bf16.mxu0 %v620
    %1259 = vmatpush1.bf16.msra.mxu0 %v619
    %1260 = vmatprep.subr.bf16.mxu0 %v622
    %1261 = vmatpush1.bf16.msra.mxu0 %v621
    %1262 = vmatprep.subr.bf16.mxu0 %v624
    %1263 = vmatpush1.bf16.msra.mxu0 %v623
    %1264 = vmatprep.mubr.bf16.mxu0 %v837
    %1265 = vmatmul.mubr.bf16.gmra.mrb[0].mxu0 %v835
    %v1266 = vpop.f32.mrb[0].mxu0
    %v1267 = vadd.f32 %v1226, %v1266
    %v1268 = vpop.f32.mrb[0].mxu0
    %v1269 = vadd.f32 %v1228, %v1268
    %v1270 = vpop.f32.mrb[0].mxu0
    %v1271 = vpop.f32.mrb[0].mxu0
    %1272 = vdwg.mxu0
    %1273 = vmatprep.subr.bf16.mxu0 %v626
    %1274 = vmatpush1.bf16.msra.mxu0 %v625
    %1275 = vmatprep.subr.bf16.mxu0 %v628
    %1276 = vmatpush1.bf16.msra.mxu0 %v627
    %1277 = vmatprep.subr.bf16.mxu0 %v630
    %1278 = vmatpush1.bf16.msra.mxu0 %v629
    %1279 = vmatprep.subr.bf16.mxu0 %v632
    %1280 = vmatpush1.bf16.msra.mxu0 %v631
    %1281 = vmatprep.subr.bf16.mxu0 %v634
    %1282 = vmatpush1.bf16.msra.mxu0 %v633
    %1283 = vmatprep.subr.bf16.mxu0 %v636
    %1284 = vmatpush1.bf16.msra.mxu0 %v635
    %1285 = vmatprep.subr.bf16.mxu0 %v638
    %1286 = vmatpush1.bf16.msra.mxu0 %v637
    %1287 = vmatprep.subr.bf16.mxu0 %v640
    %1288 = vmatpush1.bf16.msra.mxu0 %v639
    %1289 = vmatprep.subr.bf16.mxu0 %v642
    %1290 = vmatpush1.bf16.msra.mxu0 %v641
    %1291 = vmatprep.subr.bf16.mxu0 %v644
    %1292 = vmatpush1.bf16.msra.mxu0 %v643
    %1293 = vmatprep.subr.bf16.mxu0 %v646
    %1294 = vmatpush1.bf16.msra.mxu0 %v645
    %1295 = vmatprep.subr.bf16.mxu0 %v648
    %1296 = vmatpush1.bf16.msra.mxu0 %v647
    %1297 = vmatprep.subr.bf16.mxu0 %v650
    %1298 = vmatpush1.bf16.msra.mxu0 %v649
    %1299 = vmatprep.subr.bf16.mxu0 %v652
    %1300 = vmatpush1.bf16.msra.mxu0 %v651
    %1301 = vmatprep.subr.bf16.mxu0 %v654
    %1302 = vmatpush1.bf16.msra.mxu0 %v653
    %1303 = vmatprep.subr.bf16.mxu0 %v656
    %1304 = vmatpush1.bf16.msra.mxu0 %v655
    %1305 = vmatprep.mubr.bf16.mxu0 %v834
    %1306 = vmatmul.mubr.bf16.gmra.mrb[0].mxu0 %v820
    %v1307 = vpop.f32.mrb[0].mxu0
    %v1308 = vadd.f32 %v1267, %v1307
    %v1309 = vpop.f32.mrb[0].mxu0
    %v1310 = vadd.f32 %v1269, %v1309
    %v1311 = vpop.f32.mrb[0].mxu0
    %v1312 = vpop.f32.mrb[0].mxu0
    %1313 = vdwg.mxu0
    %1314 = vmatprep.subr.bf16.mxu0 %v658
    %1315 = vmatpush1.bf16.msra.mxu0 %v657
    %1316 = vmatprep.subr.bf16.mxu0 %v660
    %1317 = vmatpush1.bf16.msra.mxu0 %v659
    %1318 = vmatprep.subr.bf16.mxu0 %v662
    %1319 = vmatpush1.bf16.msra.mxu0 %v661
    %1320 = vmatprep.subr.bf16.mxu0 %v664
    %1321 = vmatpush1.bf16.msra.mxu0 %v663
    %1322 = vmatprep.subr.bf16.mxu0 %v666
    %1323 = vmatpush1.bf16.msra.mxu0 %v665
    %1324 = vmatprep.subr.bf16.mxu0 %v668
    %1325 = vmatpush1.bf16.msra.mxu0 %v667
    %1326 = vmatprep.subr.bf16.mxu0 %v670
    %1327 = vmatpush1.bf16.msra.mxu0 %v669
    %1328 = vmatprep.subr.bf16.mxu0 %v672
    %1329 = vmatpush1.bf16.msra.mxu0 %v671
    %1330 = vmatprep.subr.bf16.mxu0 %v674
    %1331 = vmatpush1.bf16.msra.mxu0 %v673
    %1332 = vmatprep.subr.bf16.mxu0 %v676
    %1333 = vmatpush1.bf16.msra.mxu0 %v675
    %1334 = vmatprep.subr.bf16.mxu0 %v678
    %1335 = vmatpush1.bf16.msra.mxu0 %v677
    %1336 = vmatprep.subr.bf16.mxu0 %v680
    %1337 = vmatpush1.bf16.msra.mxu0 %v679
    %1338 = vmatprep.subr.bf16.mxu0 %v682
    %1339 = vmatpush1.bf16.msra.mxu0 %v681
    %1340 = vmatprep.subr.bf16.mxu0 %v684
    %1341 = vmatpush1.bf16.msra.mxu0 %v683
    %1342 = vmatprep.subr.bf16.mxu0 %v686
    %1343 = vmatpush1.bf16.msra.mxu0 %v685
    %1344 = vmatprep.subr.bf16.mxu0 %v688
    %1345 = vmatpush1.bf16.msra.mxu0 %v687
    %1346 = vmatprep.mubr.bf16.mxu0 %v838
    %1347 = vmatmul.mubr.bf16.gmra.mrb[0].mxu0 %v836
    %v1348 = vpop.f32.mrb[0].mxu0
    %v1349 = vadd.f32 %v1308, %v1348
    %v1350 = vpop.f32.mrb[0].mxu0
    %v1351 = vadd.f32 %v1310, %v1350
    %v1352 = vpop.f32.mrb[0].mxu0
    %v1353 = vpop.f32.mrb[0].mxu0
    %1354 = vdwg.mxu0
    %v1355 = vstv %s111
    %v1356 = vmul.f32 %v1349, %v1355
    %v1357 = vmul.f32 %v1351, %v1355
    %v1358 = vld [vmem:[%s3] sm:$0x3]
    %v1360 = vlaneseq
    %v1361 = vshrl.u32 %v1360, 7
    %v1362 = vsub.s32 0, %v1361
    %v1363 = vrot.slane %v1358, %v1362
    %v1364 = vlaneseq
    %v1365 = vshrl.u32 %v1364, 7
    %v1366 = vsub.s32 1, %v1365
    %v1367 = vrot.slane %v1358, %v1366
    %v1370 = vadd.f32 %v1356, %v1363
    %v1371 = vadd.f32 %v1357, %v1367
    %v1372 = vpack.c.bf16 %v1370, %v1370
    %v1373 = vpack.c.bf16 %v1371, %v1371
    %v1374 = vld [vmem:[#allocation6] sm:$0xff]
    %v1375 = vld [vmem:[#allocation6 + $0x8] sm:$0xff]
    %v1376 = vld [vmem:[#allocation6 + $0x10] sm:$0xff]
    %v1377 = vld [vmem:[#allocation6 + $0x18] sm:$0xff]
    %v1378 = vld [vmem:[#allocation6 + $0x20] sm:$0xff]
    %v1379 = vld [vmem:[#allocation6 + $0x28] sm:$0xff]
    %v1380 = vld [vmem:[#allocation6 + $0x30] sm:$0xff]
    %v1381 = vld [vmem:[#allocation6 + $0x38] sm:$0xff]
    %v1382 = vld [vmem:[#allocation6 + $0x40] sm:$0xff]
    %v1383 = vld [vmem:[#allocation6 + $0x48] sm:$0xff]
    %v1384 = vld [vmem:[#allocation6 + $0x50] sm:$0xff]
    %v1385 = vld [vmem:[#allocation6 + $0x58] sm:$0xff]
    %v1386 = vld [vmem:[#allocation6 + $0x60] sm:$0xff]
    %v1387 = vld [vmem:[#allocation6 + $0x68] sm:$0xff]
    %v1388 = vld [vmem:[#allocation6 + $0x70] sm:$0xff]
    %v1389 = vld [vmem:[#allocation6 + $0x78] sm:$0xff]
    %v1390 = vld [vmem:[#allocation6 + $0x80] sm:$0xff]
    %v1391 = vld [vmem:[#allocation6 + $0x88] sm:$0xff]
    %v1392 = vld [vmem:[#allocation6 + $0x90] sm:$0xff]
    %v1393 = vld [vmem:[#allocation6 + $0x98] sm:$0xff]
    %v1394 = vld [vmem:[#allocation6 + $0xa0] sm:$0xff]
    %v1395 = vld [vmem:[#allocation6 + $0xa8] sm:$0xff]
    %v1396 = vld [vmem:[#allocation6 + $0xb0] sm:$0xff]
    %v1397 = vld [vmem:[#allocation6 + $0xb8] sm:$0xff]
    %v1398 = vld [vmem:[#allocation6 + $0xc0] sm:$0xff]
    %v1399 = vld [vmem:[#allocation6 + $0xc8] sm:$0xff]
    %v1400 = vld [vmem:[#allocation6 + $0xd0] sm:$0xff]
    %v1401 = vld [vmem:[#allocation6 + $0xd8] sm:$0xff]
    %v1402 = vld [vmem:[#allocation6 + $0xe0] sm:$0xff]
    %v1403 = vld [vmem:[#allocation6 + $0xe8] sm:$0xff]
    %v1404 = vld [vmem:[#allocation6 + $0xf0] sm:$0xff]
    %v1405 = vld [vmem:[#allocation6 + $0xf8] sm:$0xff]
    %v1406 = vld [vmem:[%s5] sm:$0x3]
    %v1439 = vunpack.c.l.b16 %v1374
    %v1440 = vunpack.c.h.b16 %v1374
    %v1441 = vunpack.c.l.b16 %v1375
    %v1442 = vunpack.c.h.b16 %v1375
    %v1443 = vunpack.c.l.b16 %v1376
    %v1444 = vunpack.c.h.b16 %v1376
    %v1445 = vunpack.c.l.b16 %v1377
    %v1446 = vunpack.c.h.b16 %v1377
    %v1447 = vunpack.c.l.b16 %v1378
    %v1448 = vunpack.c.h.b16 %v1378
    %v1449 = vunpack.c.l.b16 %v1379
    %v1450 = vunpack.c.h.b16 %v1379
    %v1451 = vunpack.c.l.b16 %v1380
    %v1452 = vunpack.c.h.b16 %v1380
    %v1453 = vunpack.c.l.b16 %v1381
    %v1454 = vunpack.c.h.b16 %v1381
    %v1455 = vunpack.c.l.b16 %v1382
    %v1456 = vunpack.c.h.b16 %v1382
    %v1457 = vunpack.c.l.b16 %v1383
    %v1458 = vunpack.c.h.b16 %v1383
    %v1459 = vunpack.c.l.b16 %v1384
    %v1460 = vunpack.c.h.b16 %v1384
    %v1461 = vunpack.c.l.b16 %v1385
    %v1462 = vunpack.c.h.b16 %v1385
    %v1463 = vunpack.c.l.b16 %v1386
    %v1464 = vunpack.c.h.b16 %v1386
    %v1465 = vunpack.c.l.b16 %v1387
    %v1466 = vunpack.c.h.b16 %v1387
    %v1467 = vunpack.c.l.b16 %v1388
    %v1468 = vunpack.c.h.b16 %v1388
    %v1469 = vunpack.c.l.b16 %v1389
    %v1470 = vunpack.c.h.b16 %v1389
    %v1471 = vunpack.c.l.b16 %v1390
    %v1472 = vunpack.c.h.b16 %v1390
    %v1473 = vunpack.c.l.b16 %v1391
    %v1474 = vunpack.c.h.b16 %v1391
    %v1475 = vunpack.c.l.b16 %v1392
    %v1476 = vunpack.c.h.b16 %v1392
    %v1477 = vunpack.c.l.b16 %v1393
    %v1478 = vunpack.c.h.b16 %v1393
    %v1479 = vunpack.c.l.b16 %v1394
    %v1480 = vunpack.c.h.b16 %v1394
    %v1481 = vunpack.c.l.b16 %v1395
    %v1482 = vunpack.c.h.b16 %v1395
    %v1483 = vunpack.c.l.b16 %v1396
    %v1484 = vunpack.c.h.b16 %v1396
    %v1485 = vunpack.c.l.b16 %v1397
    %v1486 = vunpack.c.h.b16 %v1397
    %v1487 = vunpack.c.l.b16 %v1398
    %v1488 = vunpack.c.h.b16 %v1398
    %v1489 = vunpack.c.l.b16 %v1399
    %v1490 = vunpack.c.h.b16 %v1399
    %v1491 = vunpack.c.l.b16 %v1400
    %v1492 = vunpack.c.h.b16 %v1400
    %v1493 = vunpack.c.l.b16 %v1401
    %v1494 = vunpack.c.h.b16 %v1401
    %v1495 = vunpack.c.l.b16 %v1402
    %v1496 = vunpack.c.h.b16 %v1402
    %v1497 = vunpack.c.l.b16 %v1403
    %v1498 = vunpack.c.h.b16 %v1403
    %v1499 = vunpack.c.l.b16 %v1404
    %v1500 = vunpack.c.h.b16 %v1404
    %v1501 = vunpack.c.l.b16 %v1405
    %v1502 = vunpack.c.h.b16 %v1405
    %v1503 = vpack.c.b16 %v1441, %v1439
    %v1504 = vpack.c.b16 %v1442, %v1440
    %v1505 = vpack.c.b16 %v1445, %v1443
    %v1506 = vpack.c.b16 %v1446, %v1444
    %v1507 = vpack.c.b16 %v1449, %v1447
    %v1508 = vpack.c.b16 %v1450, %v1448
    %v1509 = vpack.c.b16 %v1453, %v1451
    %v1510 = vpack.c.b16 %v1454, %v1452
    %v1511 = vpack.c.b16 %v1457, %v1455
    %v1512 = vpack.c.b16 %v1458, %v1456
    %v1513 = vpack.c.b16 %v1461, %v1459
    %v1514 = vpack.c.b16 %v1462, %v1460
    %v1515 = vpack.c.b16 %v1465, %v1463
    %v1516 = vpack.c.b16 %v1466, %v1464
    %v1517 = vpack.c.b16 %v1469, %v1467
    %v1518 = vpack.c.b16 %v1470, %v1468
    %v1519 = vpack.c.b16 %v1473, %v1471
    %v1520 = vpack.c.b16 %v1474, %v1472
    %v1521 = vpack.c.b16 %v1477, %v1475
    %v1522 = vpack.c.b16 %v1478, %v1476
    %v1523 = vpack.c.b16 %v1481, %v1479
    %v1524 = vpack.c.b16 %v1482, %v1480
    %v1525 = vpack.c.b16 %v1485, %v1483
    %v1526 = vpack.c.b16 %v1486, %v1484
    %v1527 = vpack.c.b16 %v1489, %v1487
    %v1528 = vpack.c.b16 %v1490, %v1488
    %v1529 = vpack.c.b16 %v1493, %v1491
    %v1530 = vpack.c.b16 %v1494, %v1492
    %v1531 = vpack.c.b16 %v1497, %v1495
    %v1532 = vpack.c.b16 %v1498, %v1496
    %v1533 = vpack.c.b16 %v1501, %v1499
    %v1534 = vpack.c.b16 %v1502, %v1500
    %v1568 = vlaneseq
    %v1569 = vshrl.u32 %v1568, 7
    %v1570 = vsub.s32 0, %v1569
    %v1571 = vrot.slane %v1406, %v1570
    %v1572 = vlaneseq
    %v1573 = vshrl.u32 %v1572, 7
    %v1574 = vsub.s32 1, %v1573
    %v1575 = vrot.slane %v1406, %v1574
    %1578 = vmatprep.subr.bf16.mxu0 %v1504
    %1579 = vmatpush1.bf16.msra.mxu0 %v1503
    %1580 = vmatprep.subr.bf16.mxu0 %v1506
    %1581 = vmatpush1.bf16.msra.mxu0 %v1505
    %1582 = vmatprep.subr.bf16.mxu0 %v1508
    %1583 = vmatpush1.bf16.msra.mxu0 %v1507
    %1584 = vmatprep.subr.bf16.mxu0 %v1510
    %1585 = vmatpush1.bf16.msra.mxu0 %v1509
    %1586 = vmatprep.subr.bf16.mxu0 %v1512
    %1587 = vmatpush1.bf16.msra.mxu0 %v1511
    %1588 = vmatprep.subr.bf16.mxu0 %v1514
    %1589 = vmatpush1.bf16.msra.mxu0 %v1513
    %1590 = vmatprep.subr.bf16.mxu0 %v1516
    %1591 = vmatpush1.bf16.msra.mxu0 %v1515
    %1592 = vmatprep.subr.bf16.mxu0 %v1518
    %1593 = vmatpush1.bf16.msra.mxu0 %v1517
    %1594 = vmatprep.subr.bf16.mxu0 %v1520
    %1595 = vmatpush1.bf16.msra.mxu0 %v1519
    %1596 = vmatprep.subr.bf16.mxu0 %v1522
    %1597 = vmatpush1.bf16.msra.mxu0 %v1521
    %1598 = vmatprep.subr.bf16.mxu0 %v1524
    %1599 = vmatpush1.bf16.msra.mxu0 %v1523
    %1600 = vmatprep.subr.bf16.mxu0 %v1526
    %1601 = vmatpush1.bf16.msra.mxu0 %v1525
    %1602 = vmatprep.subr.bf16.mxu0 %v1528
    %1603 = vmatpush1.bf16.msra.mxu0 %v1527
    %1604 = vmatprep.subr.bf16.mxu0 %v1530
    %1605 = vmatpush1.bf16.msra.mxu0 %v1529
    %1606 = vmatprep.subr.bf16.mxu0 %v1532
    %1607 = vmatpush1.bf16.msra.mxu0 %v1531
    %1608 = vmatprep.subr.bf16.mxu0 %v1534
    %1609 = vmatpush1.bf16.msra.mxu0 %v1533
    %1610 = vmatprep.mubr.bf16.mxu0 %v1373
    %1611 = vmatmul.mubr.bf16.gmra.mrb[0].mxu0 %v1372
    %v1612 = vpop.f32.mrb[0].mxu0
    %v1613 = vadd.f32 %v1571, %v1612
    %v1614 = vpop.f32.mrb[0].mxu0
    %v1615 = vadd.f32 %v1575, %v1614
    %v1616 = vpop.f32.mrb[0].mxu0
    %v1617 = vpop.f32.mrb[0].mxu0
    %1618 = vdwg.mxu0
    %v1619 = vpack.c.bf16 %v1613, %v1613
    %v1620 = vpack.c.bf16 %v1615, %v1615
    %v1621 = vld [vmem:[#allocation8] sm:$0xf]
    %v1622 = vld [vmem:[#allocation8 + $0x4] sm:$0xf]
    %v1623 = vld [vmem:[#allocation8 + $0x8] sm:$0xf]
    %v1624 = vld [vmem:[#allocation8 + $0xc] sm:$0xf]
    %v1625 = vld [vmem:[#allocation8 + $0x10] sm:$0xf]
    %v1626 = vld [vmem:[#allocation8 + $0x14] sm:$0xf]
    %v1627 = vld [vmem:[#allocation8 + $0x18] sm:$0xf]
    %v1628 = vld [vmem:[#allocation8 + $0x1c] sm:$0xf]
    %v1629 = vld [vmem:[#allocation8 + $0x20] sm:$0xf]
    %v1630 = vld [vmem:[#allocation8 + $0x24] sm:$0xf]
    %v1631 = vld [vmem:[#allocation8 + $0x28] sm:$0xf]
    %v1632 = vld [vmem:[#allocation8 + $0x2c] sm:$0xf]
    %v1633 = vld [vmem:[#allocation8 + $0x30] sm:$0xf]
    %v1634 = vld [vmem:[#allocation8 + $0x34] sm:$0xf]
    %v1635 = vld [vmem:[#allocation8 + $0x38] sm:$0xf]
    %v1636 = vld [vmem:[#allocation8 + $0x3c] sm:$0xf]
    %v1637 = vld [vmem:[#allocation8 + $0x40] sm:$0xf]
    %v1638 = vld [vmem:[#allocation8 + $0x44] sm:$0xf]
    %v1639 = vld [vmem:[#allocation8 + $0x48] sm:$0xf]
    %v1640 = vld [vmem:[#allocation8 + $0x4c] sm:$0xf]
    %v1641 = vld [vmem:[#allocation8 + $0x50] sm:$0xf]
    %v1642 = vld [vmem:[#allocation8 + $0x54] sm:$0xf]
    %v1643 = vld [vmem:[#allocation8 + $0x58] sm:$0xf]
    %v1644 = vld [vmem:[#allocation8 + $0x5c] sm:$0xf]
    %v1645 = vld [vmem:[#allocation8 + $0x60] sm:$0xf]
    %v1646 = vld [vmem:[#allocation8 + $0x64] sm:$0xf]
    %v1647 = vld [vmem:[#allocation8 + $0x68] sm:$0xf]
    %v1648 = vld [vmem:[#allocation8 + $0x6c] sm:$0xf]
    %v1649 = vld [vmem:[#allocation8 + $0x70] sm:$0xf]
    %v1650 = vld [vmem:[#allocation8 + $0x74] sm:$0xf]
    %v1651 = vld [vmem:[#allocation8 + $0x78] sm:$0xf]
    %v1652 = vld [vmem:[#allocation8 + $0x7c] sm:$0xf]
    %v1653 = vld [vmem:[%s7] sm:$0x1]
    %v1686 = vunpack.c.l.b16 %v1621
    %v1687 = vunpack.c.l.b16 %v1622
    %v1688 = vunpack.c.l.b16 %v1623
    %v1689 = vunpack.c.l.b16 %v1624
    %v1690 = vunpack.c.l.b16 %v1625
    %v1691 = vunpack.c.l.b16 %v1626
    %v1692 = vunpack.c.l.b16 %v1627
    %v1693 = vunpack.c.l.b16 %v1628
    %v1694 = vunpack.c.l.b16 %v1629
    %v1695 = vunpack.c.l.b16 %v1630
    %v1696 = vunpack.c.l.b16 %v1631
    %v1697 = vunpack.c.l.b16 %v1632
    %v1698 = vunpack.c.l.b16 %v1633
    %v1699 = vunpack.c.l.b16 %v1634
    %v1700 = vunpack.c.l.b16 %v1635
    %v1701 = vunpack.c.l.b16 %v1636
    %v1702 = vunpack.c.l.b16 %v1637
    %v1703 = vunpack.c.l.b16 %v1638
    %v1704 = vunpack.c.l.b16 %v1639
    %v1705 = vunpack.c.l.b16 %v1640
    %v1706 = vunpack.c.l.b16 %v1641
    %v1707 = vunpack.c.l.b16 %v1642
    %v1708 = vunpack.c.l.b16 %v1643
    %v1709 = vunpack.c.l.b16 %v1644
    %v1710 = vunpack.c.l.b16 %v1645
    %v1711 = vunpack.c.l.b16 %v1646
    %v1712 = vunpack.c.l.b16 %v1647
    %v1713 = vunpack.c.l.b16 %v1648
    %v1714 = vunpack.c.l.b16 %v1649
    %v1715 = vunpack.c.l.b16 %v1650
    %v1716 = vunpack.c.l.b16 %v1651
    %v1717 = vunpack.c.l.b16 %v1652
    %v1718 = vpack.c.b16 %v1687, %v1686
    %v1719 = vpack.c.b16 %v1689, %v1688
    %v1720 = vpack.c.b16 %v1691, %v1690
    %v1721 = vpack.c.b16 %v1693, %v1692
    %v1722 = vpack.c.b16 %v1695, %v1694
    %v1723 = vpack.c.b16 %v1697, %v1696
    %v1724 = vpack.c.b16 %v1699, %v1698
    %v1725 = vpack.c.b16 %v1701, %v1700
    %v1726 = vpack.c.b16 %v1703, %v1702
    %v1727 = vpack.c.b16 %v1705, %v1704
    %v1728 = vpack.c.b16 %v1707, %v1706
    %v1729 = vpack.c.b16 %v1709, %v1708
    %v1730 = vpack.c.b16 %v1711, %v1710
    %v1731 = vpack.c.b16 %v1713, %v1712
    %v1732 = vpack.c.b16 %v1715, %v1714
    %v1733 = vpack.c.b16 %v1717, %v1716
    %1750 = vmatprep.subr.bf16.mxu0 0
    %1751 = vmatpush1.bf16.msra.mxu0 %v1718
    %1752 = vmatprep.subr.bf16.mxu0 0
    %1753 = vmatpush1.bf16.msra.mxu0 %v1719
    %1754 = vmatprep.subr.bf16.mxu0 0
    %1755 = vmatpush1.bf16.msra.mxu0 %v1720
    %1756 = vmatprep.subr.bf16.mxu0 0
    %1757 = vmatpush1.bf16.msra.mxu0 %v1721
    %1758 = vmatprep.subr.bf16.mxu0 0
    %1759 = vmatpush1.bf16.msra.mxu0 %v1722
    %1760 = vmatprep.subr.bf16.mxu0 0
    %1761 = vmatpush1.bf16.msra.mxu0 %v1723
    %1762 = vmatprep.subr.bf16.mxu0 0
    %1763 = vmatpush1.bf16.msra.mxu0 %v1724
    %1764 = vmatprep.subr.bf16.mxu0 0
    %1765 = vmatpush1.bf16.msra.mxu0 %v1725
    %1766 = vmatprep.subr.bf16.mxu0 0
    %1767 = vmatpush1.bf16.msra.mxu0 %v1726
    %1768 = vmatprep.subr.bf16.mxu0 0
    %1769 = vmatpush1.bf16.msra.mxu0 %v1727
    %1770 = vmatprep.subr.bf16.mxu0 0
    %1771 = vmatpush1.bf16.msra.mxu0 %v1728
    %1772 = vmatprep.subr.bf16.mxu0 0
    %1773 = vmatpush1.bf16.msra.mxu0 %v1729
    %1774 = vmatprep.subr.bf16.mxu0 0
    %1775 = vmatpush1.bf16.msra.mxu0 %v1730
    %1776 = vmatprep.subr.bf16.mxu0 0
    %1777 = vmatpush1.bf16.msra.mxu0 %v1731
    %1778 = vmatprep.subr.bf16.mxu0 0
    %1779 = vmatpush1.bf16.msra.mxu0 %v1732
    %1780 = vmatprep.subr.bf16.mxu0 0
    %1781 = vmatpush1.bf16.msra.mxu0 %v1733
    %1782 = vmatprep.mubr.bf16.mxu0 %v1620
    %1783 = vmatmul.mubr.bf16.gmra.mrb[0].mxu0 %v1619
    %v1784 = vpop.f32.mrb[0].mxu0
    %v1785 = vadd.f32 %v1653, %v1784
    %v1786 = vpop.f32.mrb[0].mxu0
    %v1787 = vpop.f32.mrb[0].mxu0
    %v1788 = vpop.f32.mrb[0].mxu0
    %1789 = vdwg.mxu0
    %v1790 = vmul.f32 %v1370, 0.5
    %v1791 = vmul.f32 %v1371, 0.5
    %v1792 = vtanh.pop %v1790
    %v1793 = vtanh.pop %v1791
    %v1794 = vadd.f32 %v1792, 1.0
    %v1795 = vadd.f32 %v1793, 1.0
    %v1796 = vmul.f32 %v1794, 0.5
    %v1797 = vmul.f32 %v1795, 0.5
    %v1800 = vcombine.low %v1796, %v1797
    %v1802 = vunpack.c.l.s4 1966171168
    %v1803 = vunpack.c.0.s8 %v1802
    %v1804 = vlaneseq
    %v1805 = vshrl.u32 %v1804, 7
    %v1806 = vsub.s32 %v1803, %v1805
    %v1807 = vrot.slane %v1800, %v1806
    %v1809 = vunpack.c.l.s4 1966171168
    %v1810 = vunpack.c.0.s8 %v1809
    %v1811 = vlaneseq
    %v1812 = vshrl.u32 %v1811, 7
    %v1813 = vsub.s32 %v1810, %v1812
    %v1814 = vrot.slane %v1807, %v1813
    %v1816 = vlaneseq
    %vm1817 = vcmp.ge.s32.totalorder %v1816, 0
    %vm1818 = vcmp.lt.s32.totalorder %v1816, 256
    %vm1819 = vmand %vm1817, %vm1818
    %1820 = vst.msk [vmem:[%s11] sm:$0x3] %vm1819, %v1814
    %v1821 = vtanh.pop %v1370
    %v1822 = vtanh.pop %v1371
    %v1825 = vcombine.low %v1821, %v1822
    %v1827 = vunpack.c.l.s4 1966171168
    %v1828 = vunpack.c.0.s8 %v1827
    %v1829 = vlaneseq
    %v1830 = vshrl.u32 %v1829, 7
    %v1831 = vsub.s32 %v1828, %v1830
    %v1832 = vrot.slane %v1825, %v1831
    %v1834 = vunpack.c.l.s4 1966171168
    %v1835 = vunpack.c.0.s8 %v1834
    %v1836 = vlaneseq
    %v1837 = vshrl.u32 %v1836, 7
    %v1838 = vsub.s32 %v1835, %v1837
    %v1839 = vrot.slane %v1832, %v1838
    %1841 = vst.msk [vmem:[%s12] sm:$0x3] %vm1819, %v1839
    %v1842 = vmul.f32 %v1785, 0.5
    %v1843 = vtanh.pop %v1842
    %v1844 = vadd.f32 %v1843, 1.0
    %v1845 = vmul.f32 %v1844, 0.5
    %1846 = vst [vmem:[%s13] sm:$0x1] %v1845
    %v1847 = vld [vmem:[#allocation9] sm:$0xff]
    %v1848 = vld [vmem:[#allocation9 + $0x8] sm:$0xff]
    %v1849 = vld [vmem:[#allocation9 + $0x10] sm:$0xff]
    %v1850 = vld [vmem:[#allocation9 + $0x18] sm:$0xff]
    %v1851 = vld [vmem:[#allocation9 + $0x20] sm:$0xff]
    %v1852 = vld [vmem:[#allocation9 + $0x28] sm:$0xff]
    %v1853 = vld [vmem:[#allocation9 + $0x30] sm:$0xff]
    %v1854 = vld [vmem:[#allocation9 + $0x38] sm:$0xff]
    %v1855 = vld [vmem:[#allocation9 + $0x40] sm:$0xff]
    %v1856 = vld [vmem:[#allocation9 + $0x48] sm:$0xff]
    %v1857 = vld [vmem:[#allocation9 + $0x50] sm:$0xff]
    %v1858 = vld [vmem:[#allocation9 + $0x58] sm:$0xff]
    %v1859 = vld [vmem:[#allocation9 + $0x60] sm:$0xff]
    %v1860 = vld [vmem:[#allocation9 + $0x68] sm:$0xff]
    %v1861 = vld [vmem:[#allocation9 + $0x70] sm:$0xff]
    %v1862 = vld [vmem:[#allocation9 + $0x78] sm:$0xff]
    %v1863 = vld [vmem:[#allocation9 + $0x80] sm:$0xff]
    %v1864 = vld [vmem:[#allocation9 + $0x88] sm:$0xff]
    %v1865 = vld [vmem:[#allocation9 + $0x90] sm:$0xff]
    %v1866 = vld [vmem:[#allocation9 + $0x98] sm:$0xff]
    %v1867 = vld [vmem:[#allocation9 + $0xa0] sm:$0xff]
    %v1868 = vld [vmem:[#allocation9 + $0xa8] sm:$0xff]
    %v1869 = vld [vmem:[#allocation9 + $0xb0] sm:$0xff]
    %v1870 = vld [vmem:[#allocation9 + $0xb8] sm:$0xff]
    %v1871 = vld [vmem:[#allocation9 + $0xc0] sm:$0xff]
    %v1872 = vld [vmem:[#allocation9 + $0xc8] sm:$0xff]
    %v1873 = vld [vmem:[#allocation9 + $0xd0] sm:$0xff]
    %v1874 = vld [vmem:[#allocation9 + $0xd8] sm:$0xff]
    %v1875 = vld [vmem:[#allocation9 + $0xe0] sm:$0xff]
    %v1876 = vld [vmem:[#allocation9 + $0xe8] sm:$0xff]
    %v1877 = vld [vmem:[#allocation9 + $0xf0] sm:$0xff]
    %v1878 = vld [vmem:[#allocation9 + $0xf8] sm:$0xff]
    %v1879 = vld [vmem:[#allocation9 + $0x100] sm:$0xff]
    %v1880 = vld [vmem:[#allocation9 + $0x108] sm:$0xff]
    %v1881 = vld [vmem:[#allocation9 + $0x110] sm:$0xff]
    %v1882 = vld [vmem:[#allocation9 + $0x118] sm:$0xff]
    %v1883 = vld [vmem:[#allocation9 + $0x120] sm:$0xff]
    %v1884 = vld [vmem:[#allocation9 + $0x128] sm:$0xff]
    %v1885 = vld [vmem:[#allocation9 + $0x130] sm:$0xff]
    %v1886 = vld [vmem:[#allocation9 + $0x138] sm:$0xff]
    %v1887 = vld [vmem:[#allocation9 + $0x140] sm:$0xff]
    %v1888 = vld [vmem:[#allocation9 + $0x148] sm:$0xff]
    %v1889 = vld [vmem:[#allocation9 + $0x150] sm:$0xff]
    %v1890 = vld [vmem:[#allocation9 + $0x158] sm:$0xff]
    %v1891 = vld [vmem:[#allocation9 + $0x160] sm:$0xff]
    %v1892 = vld [vmem:[#allocation9 + $0x168] sm:$0xff]
    %v1893 = vld [vmem:[#allocation9 + $0x170] sm:$0xff]
    %v1894 = vld [vmem:[#allocation9 + $0x178] sm:$0xff]
    %v1895 = vld [vmem:[#allocation9 + $0x180] sm:$0xff]
    %v1896 = vld [vmem:[#allocation9 + $0x188] sm:$0xff]
    %v1897 = vld [vmem:[#allocation9 + $0x190] sm:$0xff]
    %v1898 = vld [vmem:[#allocation9 + $0x198] sm:$0xff]
    %v1899 = vld [vmem:[#allocation9 + $0x1a0] sm:$0xff]
    %v1900 = vld [vmem:[#allocation9 + $0x1a8] sm:$0xff]
    %v1901 = vld [vmem:[#allocation9 + $0x1b0] sm:$0xff]
    %v1902 = vld [vmem:[#allocation9 + $0x1b8] sm:$0xff]
    %v1903 = vld [vmem:[#allocation9 + $0x1c0] sm:$0xff]
    %v1904 = vld [vmem:[#allocation9 + $0x1c8] sm:$0xff]
    %v1905 = vld [vmem:[#allocation9 + $0x1d0] sm:$0xff]
    %v1906 = vld [vmem:[#allocation9 + $0x1d8] sm:$0xff]
    %v1907 = vld [vmem:[#allocation9 + $0x1e0] sm:$0xff]
    %v1908 = vld [vmem:[#allocation9 + $0x1e8] sm:$0xff]
    %v1909 = vld [vmem:[#allocation9 + $0x1f0] sm:$0xff]
    %v1910 = vld [vmem:[#allocation9 + $0x1f8] sm:$0xff]
    %v1911 = vld [vmem:[#allocation9 + $0x200] sm:$0xff]
    %v1912 = vld [vmem:[#allocation9 + $0x208] sm:$0xff]
    %v1913 = vld [vmem:[#allocation9 + $0x210] sm:$0xff]
    %v1914 = vld [vmem:[#allocation9 + $0x218] sm:$0xff]
    %v1915 = vld [vmem:[#allocation9 + $0x220] sm:$0xff]
    %v1916 = vld [vmem:[#allocation9 + $0x228] sm:$0xff]
    %v1917 = vld [vmem:[#allocation9 + $0x230] sm:$0xff]
    %v1918 = vld [vmem:[#allocation9 + $0x238] sm:$0xff]
    %v1919 = vld [vmem:[#allocation9 + $0x240] sm:$0xff]
    %v1920 = vld [vmem:[#allocation9 + $0x248] sm:$0xff]
    %v1921 = vld [vmem:[#allocation9 + $0x250] sm:$0xff]
    %v1922 = vld [vmem:[#allocation9 + $0x258] sm:$0xff]
    %v1923 = vld [vmem:[#allocation9 + $0x260] sm:$0xff]
    %v1924 = vld [vmem:[#allocation9 + $0x268] sm:$0xff]
    %v1925 = vld [vmem:[#allocation9 + $0x270] sm:$0xff]
    %v1926 = vld [vmem:[#allocation9 + $0x278] sm:$0xff]
    %v1927 = vld [vmem:[#allocation9 + $0x280] sm:$0xff]
    %v1928 = vld [vmem:[#allocation9 + $0x288] sm:$0xff]
    %v1929 = vld [vmem:[#allocation9 + $0x290] sm:$0xff]
    %v1930 = vld [vmem:[#allocation9 + $0x298] sm:$0xff]
    %v1931 = vld [vmem:[#allocation9 + $0x2a0] sm:$0xff]
    %v1932 = vld [vmem:[#allocation9 + $0x2a8] sm:$0xff]
    %v1933 = vld [vmem:[#allocation9 + $0x2b0] sm:$0xff]
    %v1934 = vld [vmem:[#allocation9 + $0x2b8] sm:$0xff]
    %v1935 = vld [vmem:[#allocation9 + $0x2c0] sm:$0xff]
    %v1936 = vld [vmem:[#allocation9 + $0x2c8] sm:$0xff]
    %v1937 = vld [vmem:[#allocation9 + $0x2d0] sm:$0xff]
    %v1938 = vld [vmem:[#allocation9 + $0x2d8] sm:$0xff]
    %v1939 = vld [vmem:[#allocation9 + $0x2e0] sm:$0xff]
    %v1940 = vld [vmem:[#allocation9 + $0x2e8] sm:$0xff]
    %v1941 = vld [vmem:[#allocation9 + $0x2f0] sm:$0xff]
    %v1942 = vld [vmem:[#allocation9 + $0x2f8] sm:$0xff]
    %v1943 = vld [vmem:[#allocation9 + $0x300] sm:$0xff]
    %v1944 = vld [vmem:[#allocation9 + $0x308] sm:$0xff]
    %v1945 = vld [vmem:[#allocation9 + $0x310] sm:$0xff]
    %v1946 = vld [vmem:[#allocation9 + $0x318] sm:$0xff]
    %v1947 = vld [vmem:[#allocation9 + $0x320] sm:$0xff]
    %v1948 = vld [vmem:[#allocation9 + $0x328] sm:$0xff]
    %v1949 = vld [vmem:[#allocation9 + $0x330] sm:$0xff]
    %v1950 = vld [vmem:[#allocation9 + $0x338] sm:$0xff]
    %v1951 = vld [vmem:[#allocation9 + $0x340] sm:$0xff]
    %v1952 = vld [vmem:[#allocation9 + $0x348] sm:$0xff]
    %v1953 = vld [vmem:[#allocation9 + $0x350] sm:$0xff]
    %v1954 = vld [vmem:[#allocation9 + $0x358] sm:$0xff]
    %v1955 = vld [vmem:[#allocation9 + $0x360] sm:$0xff]
    %v1956 = vld [vmem:[#allocation9 + $0x368] sm:$0xff]
    %v1957 = vld [vmem:[#allocation9 + $0x370] sm:$0xff]
    %v1958 = vld [vmem:[#allocation9 + $0x378] sm:$0xff]
    %v1959 = vld [vmem:[#allocation9 + $0x380] sm:$0xff]
    %v1960 = vld [vmem:[#allocation9 + $0x388] sm:$0xff]
    %v1961 = vld [vmem:[#allocation9 + $0x390] sm:$0xff]
    %v1962 = vld [vmem:[#allocation9 + $0x398] sm:$0xff]
    %v1963 = vld [vmem:[#allocation9 + $0x3a0] sm:$0xff]
    %v1964 = vld [vmem:[#allocation9 + $0x3a8] sm:$0xff]
    %v1965 = vld [vmem:[#allocation9 + $0x3b0] sm:$0xff]
    %v1966 = vld [vmem:[#allocation9 + $0x3b8] sm:$0xff]
    %v1967 = vld [vmem:[#allocation9 + $0x3c0] sm:$0xff]
    %v1968 = vld [vmem:[#allocation9 + $0x3c8] sm:$0xff]
    %v1969 = vld [vmem:[#allocation9 + $0x3d0] sm:$0xff]
    %v1970 = vld [vmem:[#allocation9 + $0x3d8] sm:$0xff]
    %v1971 = vld [vmem:[#allocation9 + $0x3e0] sm:$0xff]
    %v1972 = vld [vmem:[#allocation9 + $0x3e8] sm:$0xff]
    %v1973 = vld [vmem:[#allocation9 + $0x3f0] sm:$0xff]
    %v1974 = vld [vmem:[#allocation9 + $0x3f8] sm:$0xff]
    %v1975 = vld [vmem:[#allocation9 + $0x400] sm:$0xff]
    %v1976 = vld [vmem:[#allocation9 + $0x408] sm:$0xff]
    %v1977 = vld [vmem:[#allocation9 + $0x410] sm:$0xff]
    %v1978 = vld [vmem:[#allocation9 + $0x418] sm:$0xff]
    %v1979 = vld [vmem:[#allocation9 + $0x420] sm:$0xff]
    %v1980 = vld [vmem:[#allocation9 + $0x428] sm:$0xff]
    %v1981 = vld [vmem:[#allocation9 + $0x430] sm:$0xff]
    %v1982 = vld [vmem:[#allocation9 + $0x438] sm:$0xff]
    %v1983 = vld [vmem:[#allocation9 + $0x440] sm:$0xff]
    %v1984 = vld [vmem:[#allocation9 + $0x448] sm:$0xff]
    %v1985 = vld [vmem:[#allocation9 + $0x450] sm:$0xff]
    %v1986 = vld [vmem:[#allocation9 + $0x458] sm:$0xff]
    %v1987 = vld [vmem:[#allocation9 + $0x460] sm:$0xff]
    %v1988 = vld [vmem:[#allocation9 + $0x468] sm:$0xff]
    %v1989 = vld [vmem:[#allocation9 + $0x470] sm:$0xff]
    %v1990 = vld [vmem:[#allocation9 + $0x478] sm:$0xff]
    %v1991 = vld [vmem:[#allocation9 + $0x480] sm:$0xff]
    %v1992 = vld [vmem:[#allocation9 + $0x488] sm:$0xff]
    %v1993 = vld [vmem:[#allocation9 + $0x490] sm:$0xff]
    %v1994 = vld [vmem:[#allocation9 + $0x498] sm:$0xff]
    %v1995 = vld [vmem:[#allocation9 + $0x4a0] sm:$0xff]
    %v1996 = vld [vmem:[#allocation9 + $0x4a8] sm:$0xff]
    %v1997 = vld [vmem:[#allocation9 + $0x4b0] sm:$0xff]
    %v1998 = vld [vmem:[#allocation9 + $0x4b8] sm:$0xff]
    %v1999 = vld [vmem:[#allocation9 + $0x4c0] sm:$0xff]
    %v2000 = vld [vmem:[#allocation9 + $0x4c8] sm:$0xff]
    %v2001 = vld [vmem:[#allocation9 + $0x4d0] sm:$0xff]
    %v2002 = vld [vmem:[#allocation9 + $0x4d8] sm:$0xff]
    %v2003 = vld [vmem:[#allocation9 + $0x4e0] sm:$0xff]
    %v2004 = vld [vmem:[#allocation9 + $0x4e8] sm:$0xff]
    %v2005 = vld [vmem:[#allocation9 + $0x4f0] sm:$0xff]
    %v2006 = vld [vmem:[#allocation9 + $0x4f8] sm:$0xff]
    %v2007 = vld [vmem:[#allocation9 + $0x500] sm:$0xff]
    %v2008 = vld [vmem:[#allocation9 + $0x508] sm:$0xff]
    %v2009 = vld [vmem:[#allocation9 + $0x510] sm:$0xff]
    %v2010 = vld [vmem:[#allocation9 + $0x518] sm:$0xff]
    %v2011 = vld [vmem:[#allocation9 + $0x520] sm:$0xff]
    %v2012 = vld [vmem:[#allocation9 + $0x528] sm:$0xff]
    %v2013 = vld [vmem:[#allocation9 + $0x530] sm:$0xff]
    %v2014 = vld [vmem:[#allocation9 + $0x538] sm:$0xff]
    %v2015 = vld [vmem:[#allocation9 + $0x540] sm:$0xff]
    %v2016 = vld [vmem:[#allocation9 + $0x548] sm:$0xff]
    %v2017 = vld [vmem:[#allocation9 + $0x550] sm:$0xff]
    %v2018 = vld [vmem:[#allocation9 + $0x558] sm:$0xff]
    %v2019 = vld [vmem:[#allocation9 + $0x560] sm:$0xff]
    %v2020 = vld [vmem:[#allocation9 + $0x568] sm:$0xff]
    %v2021 = vld [vmem:[#allocation9 + $0x570] sm:$0xff]
    %v2022 = vld [vmem:[#allocation9 + $0x578] sm:$0xff]
    %v2023 = vld [vmem:[#allocation9 + $0x580] sm:$0xff]
    %v2024 = vld [vmem:[#allocation9 + $0x588] sm:$0xff]
    %v2025 = vld [vmem:[#allocation9 + $0x590] sm:$0xff]
    %v2026 = vld [vmem:[#allocation9 + $0x598] sm:$0xff]
    %v2027 = vld [vmem:[#allocation9 + $0x5a0] sm:$0xff]
    %v2028 = vld [vmem:[#allocation9 + $0x5a8] sm:$0xff]
    %v2029 = vld [vmem:[#allocation9 + $0x5b0] sm:$0xff]
    %v2030 = vld [vmem:[#allocation9 + $0x5b8] sm:$0xff]
    %v2031 = vld [vmem:[#allocation9 + $0x5c0] sm:$0xff]
    %v2032 = vld [vmem:[#allocation9 + $0x5c8] sm:$0xff]
    %v2033 = vld [vmem:[#allocation9 + $0x5d0] sm:$0xff]
    %v2034 = vld [vmem:[#allocation9 + $0x5d8] sm:$0xff]
    %v2035 = vld [vmem:[#allocation9 + $0x5e0] sm:$0xff]
    %v2036 = vld [vmem:[#allocation9 + $0x5e8] sm:$0xff]
    %v2037 = vld [vmem:[#allocation9 + $0x5f0] sm:$0xff]
    %v2038 = vld [vmem:[#allocation9 + $0x5f8] sm:$0xff]
    %v2039 = vunpack.c.l.s8.bf16 %v1847
    %v2040 = vunpack.c.l.s8.bf16 %v1848
    %v2041 = vunpack.c.l.s8.bf16 %v1849
    %v2042 = vunpack.c.l.s8.bf16 %v1850
    %v2043 = vunpack.c.l.s8.bf16 %v1851
    %v2044 = vunpack.c.l.s8.bf16 %v1852
    %v2045 = vunpack.c.l.s8.bf16 %v1853
    %v2046 = vunpack.c.l.s8.bf16 %v1854
    %v2047 = vunpack.c.l.s8.bf16 %v1855
    %v2048 = vunpack.c.l.s8.bf16 %v1856
    %v2049 = vunpack.c.l.s8.bf16 %v1857
    %v2050 = vunpack.c.l.s8.bf16 %v1858
    %v2051 = vunpack.c.l.s8.bf16 %v1859
    %v2052 = vunpack.c.l.s8.bf16 %v1860
    %v2053 = vunpack.c.l.s8.bf16 %v1861
    %v2054 = vunpack.c.l.s8.bf16 %v1862
    %v2055 = vunpack.c.l.s8.bf16 %v1863
    %v2056 = vunpack.c.l.s8.bf16 %v1864
    %v2057 = vunpack.c.l.s8.bf16 %v1865
    %v2058 = vunpack.c.l.s8.bf16 %v1866
    %v2059 = vunpack.c.l.s8.bf16 %v1867
    %v2060 = vunpack.c.l.s8.bf16 %v1868
    %v2061 = vunpack.c.l.s8.bf16 %v1869
    %v2062 = vunpack.c.l.s8.bf16 %v1870
    %v2063 = vunpack.c.h.s8.bf16 %v1847
    %v2064 = vunpack.c.h.s8.bf16 %v1848
    %v2065 = vunpack.c.h.s8.bf16 %v1849
    %v2066 = vunpack.c.h.s8.bf16 %v1850
    %v2067 = vunpack.c.h.s8.bf16 %v1851
    %v2068 = vunpack.c.h.s8.bf16 %v1852
    %v2069 = vunpack.c.h.s8.bf16 %v1853
    %v2070 = vunpack.c.h.s8.bf16 %v1854
    %v2071 = vunpack.c.h.s8.bf16 %v1855
    %v2072 = vunpack.c.h.s8.bf16 %v1856
    %v2073 = vunpack.c.h.s8.bf16 %v1857
    %v2074 = vunpack.c.h.s8.bf16 %v1858
    %v2075 = vunpack.c.h.s8.bf16 %v1859
    %v2076 = vunpack.c.h.s8.bf16 %v1860
    %v2077 = vunpack.c.h.s8.bf16 %v1861
    %v2078 = vunpack.c.h.s8.bf16 %v1862
    %v2079 = vunpack.c.h.s8.bf16 %v1863
    %v2080 = vunpack.c.h.s8.bf16 %v1864
    %v2081 = vunpack.c.h.s8.bf16 %v1865
    %v2082 = vunpack.c.h.s8.bf16 %v1866
    %v2083 = vunpack.c.h.s8.bf16 %v1867
    %v2084 = vunpack.c.h.s8.bf16 %v1868
    %v2085 = vunpack.c.h.s8.bf16 %v1869
    %v2086 = vunpack.c.h.s8.bf16 %v1870
    %v2087 = vunpack.c.l.s8.bf16 %v1871
    %v2088 = vunpack.c.l.s8.bf16 %v1872
    %v2089 = vunpack.c.l.s8.bf16 %v1873
    %v2090 = vunpack.c.l.s8.bf16 %v1874
    %v2091 = vunpack.c.l.s8.bf16 %v1875
    %v2092 = vunpack.c.l.s8.bf16 %v1876
    %v2093 = vunpack.c.l.s8.bf16 %v1877
    %v2094 = vunpack.c.l.s8.bf16 %v1878
    %v2095 = vunpack.c.l.s8.bf16 %v1879
    %v2096 = vunpack.c.l.s8.bf16 %v1880
    %v2097 = vunpack.c.l.s8.bf16 %v1881
    %v2098 = vunpack.c.l.s8.bf16 %v1882
    %v2099 = vunpack.c.l.s8.bf16 %v1883
    %v2100 = vunpack.c.l.s8.bf16 %v1884
    %v2101 = vunpack.c.l.s8.bf16 %v1885
    %v2102 = vunpack.c.l.s8.bf16 %v1886
    %v2103 = vunpack.c.l.s8.bf16 %v1887
    %v2104 = vunpack.c.l.s8.bf16 %v1888
    %v2105 = vunpack.c.l.s8.bf16 %v1889
    %v2106 = vunpack.c.l.s8.bf16 %v1890
    %v2107 = vunpack.c.l.s8.bf16 %v1891
    %v2108 = vunpack.c.l.s8.bf16 %v1892
    %v2109 = vunpack.c.l.s8.bf16 %v1893
    %v2110 = vunpack.c.l.s8.bf16 %v1894
    %v2111 = vunpack.c.h.s8.bf16 %v1871
    %v2112 = vunpack.c.h.s8.bf16 %v1872
    %v2113 = vunpack.c.h.s8.bf16 %v1873
    %v2114 = vunpack.c.h.s8.bf16 %v1874
    %v2115 = vunpack.c.h.s8.bf16 %v1875
    %v2116 = vunpack.c.h.s8.bf16 %v1876
    %v2117 = vunpack.c.h.s8.bf16 %v1877
    %v2118 = vunpack.c.h.s8.bf16 %v1878
    %v2119 = vunpack.c.h.s8.bf16 %v1879
    %v2120 = vunpack.c.h.s8.bf16 %v1880
    %v2121 = vunpack.c.h.s8.bf16 %v1881
    %v2122 = vunpack.c.h.s8.bf16 %v1882
    %v2123 = vunpack.c.h.s8.bf16 %v1883
    %v2124 = vunpack.c.h.s8.bf16 %v1884
    %v2125 = vunpack.c.h.s8.bf16 %v1885
    %v2126 = vunpack.c.h.s8.bf16 %v1886
    %v2127 = vunpack.c.h.s8.bf16 %v1887
    %v2128 = vunpack.c.h.s8.bf16 %v1888
    %v2129 = vunpack.c.h.s8.bf16 %v1889
    %v2130 = vunpack.c.h.s8.bf16 %v1890
    %v2131 = vunpack.c.h.s8.bf16 %v1891
    %v2132 = vunpack.c.h.s8.bf16 %v1892
    %v2133 = vunpack.c.h.s8.bf16 %v1893
    %v2134 = vunpack.c.h.s8.bf16 %v1894
    %v2135 = vunpack.c.l.s8.bf16 %v1895
    %v2136 = vunpack.c.l.s8.bf16 %v1896
    %v2137 = vunpack.c.l.s8.bf16 %v1897
    %v2138 = vunpack.c.l.s8.bf16 %v1898
    %v2139 = vunpack.c.l.s8.bf16 %v1899
    %v2140 = vunpack.c.l.s8.bf16 %v1900
    %v2141 = vunpack.c.l.s8.bf16 %v1901
    %v2142 = vunpack.c.l.s8.bf16 %v1902
    %v2143 = vunpack.c.l.s8.bf16 %v1903
    %v2144 = vunpack.c.l.s8.bf16 %v1904
    %v2145 = vunpack.c.l.s8.bf16 %v1905
    %v2146 = vunpack.c.l.s8.bf16 %v1906
    %v2147 = vunpack.c.l.s8.bf16 %v1907
    %v2148 = vunpack.c.l.s8.bf16 %v1908
    %v2149 = vunpack.c.l.s8.bf16 %v1909
    %v2150 = vunpack.c.l.s8.bf16 %v1910
    %v2151 = vunpack.c.l.s8.bf16 %v1911
    %v2152 = vunpack.c.l.s8.bf16 %v1912
    %v2153 = vunpack.c.l.s8.bf16 %v1913
    %v2154 = vunpack.c.l.s8.bf16 %v1914
    %v2155 = vunpack.c.l.s8.bf16 %v1915
    %v2156 = vunpack.c.l.s8.bf16 %v1916
    %v2157 = vunpack.c.l.s8.bf16 %v1917
    %v2158 = vunpack.c.l.s8.bf16 %v1918
    %v2159 = vunpack.c.h.s8.bf16 %v1895
    %v2160 = vunpack.c.h.s8.bf16 %v1896
    %v2161 = vunpack.c.h.s8.bf16 %v1897
    %v2162 = vunpack.c.h.s8.bf16 %v1898
    %v2163 = vunpack.c.h.s8.bf16 %v1899
    %v2164 = vunpack.c.h.s8.bf16 %v1900
    %v2165 = vunpack.c.h.s8.bf16 %v1901
    %v2166 = vunpack.c.h.s8.bf16 %v1902
    %v2167 = vunpack.c.h.s8.bf16 %v1903
    %v2168 = vunpack.c.h.s8.bf16 %v1904
    %v2169 = vunpack.c.h.s8.bf16 %v1905
    %v2170 = vunpack.c.h.s8.bf16 %v1906
    %v2171 = vunpack.c.h.s8.bf16 %v1907
    %v2172 = vunpack.c.h.s8.bf16 %v1908
    %v2173 = vunpack.c.h.s8.bf16 %v1909
    %v2174 = vunpack.c.h.s8.bf16 %v1910
    %v2175 = vunpack.c.h.s8.bf16 %v1911
    %v2176 = vunpack.c.h.s8.bf16 %v1912
    %v2177 = vunpack.c.h.s8.bf16 %v1913
    %v2178 = vunpack.c.h.s8.bf16 %v1914
    %v2179 = vunpack.c.h.s8.bf16 %v1915
    %v2180 = vunpack.c.h.s8.bf16 %v1916
    %v2181 = vunpack.c.h.s8.bf16 %v1917
    %v2182 = vunpack.c.h.s8.bf16 %v1918
    %v2183 = vunpack.c.l.s8.bf16 %v1919
    %v2184 = vunpack.c.l.s8.bf16 %v1920
    %v2185 = vunpack.c.l.s8.bf16 %v1921
    %v2186 = vunpack.c.l.s8.bf16 %v1922
    %v2187 = vunpack.c.l.s8.bf16 %v1923
    %v2188 = vunpack.c.l.s8.bf16 %v1924
    %v2189 = vunpack.c.l.s8.bf16 %v1925
    %v2190 = vunpack.c.l.s8.bf16 %v1926
    %v2191 = vunpack.c.l.s8.bf16 %v1927
    %v2192 = vunpack.c.l.s8.bf16 %v1928
    %v2193 = vunpack.c.l.s8.bf16 %v1929
    %v2194 = vunpack.c.l.s8.bf16 %v1930
    %v2195 = vunpack.c.l.s8.bf16 %v1931
    %v2196 = vunpack.c.l.s8.bf16 %v1932
    %v2197 = vunpack.c.l.s8.bf16 %v1933
    %v2198 = vunpack.c.l.s8.bf16 %v1934
    %v2199 = vunpack.c.l.s8.bf16 %v1935
    %v2200 = vunpack.c.l.s8.bf16 %v1936
    %v2201 = vunpack.c.l.s8.bf16 %v1937
    %v2202 = vunpack.c.l.s8.bf16 %v1938
    %v2203 = vunpack.c.l.s8.bf16 %v1939
    %v2204 = vunpack.c.l.s8.bf16 %v1940
    %v2205 = vunpack.c.l.s8.bf16 %v1941
    %v2206 = vunpack.c.l.s8.bf16 %v1942
    %v2207 = vunpack.c.h.s8.bf16 %v1919
    %v2208 = vunpack.c.h.s8.bf16 %v1920
    %v2209 = vunpack.c.h.s8.bf16 %v1921
    %v2210 = vunpack.c.h.s8.bf16 %v1922
    %v2211 = vunpack.c.h.s8.bf16 %v1923
    %v2212 = vunpack.c.h.s8.bf16 %v1924
    %v2213 = vunpack.c.h.s8.bf16 %v1925
    %v2214 = vunpack.c.h.s8.bf16 %v1926
    %v2215 = vunpack.c.h.s8.bf16 %v1927
    %v2216 = vunpack.c.h.s8.bf16 %v1928
    %v2217 = vunpack.c.h.s8.bf16 %v1929
    %v2218 = vunpack.c.h.s8.bf16 %v1930
    %v2219 = vunpack.c.h.s8.bf16 %v1931
    %v2220 = vunpack.c.h.s8.bf16 %v1932
    %v2221 = vunpack.c.h.s8.bf16 %v1933
    %v2222 = vunpack.c.h.s8.bf16 %v1934
    %v2223 = vunpack.c.h.s8.bf16 %v1935
    %v2224 = vunpack.c.h.s8.bf16 %v1936
    %v2225 = vunpack.c.h.s8.bf16 %v1937
    %v2226 = vunpack.c.h.s8.bf16 %v1938
    %v2227 = vunpack.c.h.s8.bf16 %v1939
    %v2228 = vunpack.c.h.s8.bf16 %v1940
    %v2229 = vunpack.c.h.s8.bf16 %v1941
    %v2230 = vunpack.c.h.s8.bf16 %v1942
    %v2231 = vunpack.c.l.s8.bf16 %v1943
    %v2232 = vunpack.c.l.s8.bf16 %v1944
    %v2233 = vunpack.c.l.s8.bf16 %v1945
    %v2234 = vunpack.c.l.s8.bf16 %v1946
    %v2235 = vunpack.c.l.s8.bf16 %v1947
    %v2236 = vunpack.c.l.s8.bf16 %v1948
    %v2237 = vunpack.c.l.s8.bf16 %v1949
    %v2238 = vunpack.c.l.s8.bf16 %v1950
    %v2239 = vunpack.c.l.s8.bf16 %v1951
    %v2240 = vunpack.c.l.s8.bf16 %v1952
    %v2241 = vunpack.c.l.s8.bf16 %v1953
    %v2242 = vunpack.c.l.s8.bf16 %v1954
    %v2243 = vunpack.c.l.s8.bf16 %v1955
    %v2244 = vunpack.c.l.s8.bf16 %v1956
    %v2245 = vunpack.c.l.s8.bf16 %v1957
    %v2246 = vunpack.c.l.s8.bf16 %v1958
    %v2247 = vunpack.c.l.s8.bf16 %v1959
    %v2248 = vunpack.c.l.s8.bf16 %v1960
    %v2249 = vunpack.c.l.s8.bf16 %v1961
    %v2250 = vunpack.c.l.s8.bf16 %v1962
    %v2251 = vunpack.c.l.s8.bf16 %v1963
    %v2252 = vunpack.c.l.s8.bf16 %v1964
    %v2253 = vunpack.c.l.s8.bf16 %v1965
    %v2254 = vunpack.c.l.s8.bf16 %v1966
    %v2255 = vunpack.c.h.s8.bf16 %v1943
    %v2256 = vunpack.c.h.s8.bf16 %v1944
    %v2257 = vunpack.c.h.s8.bf16 %v1945
    %v2258 = vunpack.c.h.s8.bf16 %v1946
    %v2259 = vunpack.c.h.s8.bf16 %v1947
    %v2260 = vunpack.c.h.s8.bf16 %v1948
    %v2261 = vunpack.c.h.s8.bf16 %v1949
    %v2262 = vunpack.c.h.s8.bf16 %v1950
    %v2263 = vunpack.c.h.s8.bf16 %v1951
    %v2264 = vunpack.c.h.s8.bf16 %v1952
    %v2265 = vunpack.c.h.s8.bf16 %v1953
    %v2266 = vunpack.c.h.s8.bf16 %v1954
    %v2267 = vunpack.c.h.s8.bf16 %v1955
    %v2268 = vunpack.c.h.s8.bf16 %v1956
    %v2269 = vunpack.c.h.s8.bf16 %v1957
    %v2270 = vunpack.c.h.s8.bf16 %v1958
    %v2271 = vunpack.c.h.s8.bf16 %v1959
    %v2272 = vunpack.c.h.s8.bf16 %v1960
    %v2273 = vunpack.c.h.s8.bf16 %v1961
    %v2274 = vunpack.c.h.s8.bf16 %v1962
    %v2275 = vunpack.c.h.s8.bf16 %v1963
    %v2276 = vunpack.c.h.s8.bf16 %v1964
    %v2277 = vunpack.c.h.s8.bf16 %v1965
    %v2278 = vunpack.c.h.s8.bf16 %v1966
    %v2279 = vunpack.c.l.s8.bf16 %v1967
    %v2280 = vunpack.c.l.s8.bf16 %v1968
    %v2281 = vunpack.c.l.s8.bf16 %v1969
    %v2282 = vunpack.c.l.s8.bf16 %v1970
    %v2283 = vunpack.c.l.s8.bf16 %v1971
    %v2284 = vunpack.c.l.s8.bf16 %v1972
    %v2285 = vunpack.c.l.s8.bf16 %v1973
    %v2286 = vunpack.c.l.s8.bf16 %v1974
    %v2287 = vunpack.c.l.s8.bf16 %v1975
    %v2288 = vunpack.c.l.s8.bf16 %v1976
    %v2289 = vunpack.c.l.s8.bf16 %v1977
    %v2290 = vunpack.c.l.s8.bf16 %v1978
    %v2291 = vunpack.c.l.s8.bf16 %v1979
    %v2292 = vunpack.c.l.s8.bf16 %v1980
    %v2293 = vunpack.c.l.s8.bf16 %v1981
    %v2294 = vunpack.c.l.s8.bf16 %v1982
    %v2295 = vunpack.c.l.s8.bf16 %v1983
    %v2296 = vunpack.c.l.s8.bf16 %v1984
    %v2297 = vunpack.c.l.s8.bf16 %v1985
    %v2298 = vunpack.c.l.s8.bf16 %v1986
    %v2299 = vunpack.c.l.s8.bf16 %v1987
    %v2300 = vunpack.c.l.s8.bf16 %v1988
    %v2301 = vunpack.c.l.s8.bf16 %v1989
    %v2302 = vunpack.c.l.s8.bf16 %v1990
    %v2303 = vunpack.c.h.s8.bf16 %v1967
    %v2304 = vunpack.c.h.s8.bf16 %v1968
    %v2305 = vunpack.c.h.s8.bf16 %v1969
    %v2306 = vunpack.c.h.s8.bf16 %v1970
    %v2307 = vunpack.c.h.s8.bf16 %v1971
    %v2308 = vunpack.c.h.s8.bf16 %v1972
    %v2309 = vunpack.c.h.s8.bf16 %v1973
    %v2310 = vunpack.c.h.s8.bf16 %v1974
    %v2311 = vunpack.c.h.s8.bf16 %v1975
    %v2312 = vunpack.c.h.s8.bf16 %v1976
    %v2313 = vunpack.c.h.s8.bf16 %v1977
    %v2314 = vunpack.c.h.s8.bf16 %v1978
    %v2315 = vunpack.c.h.s8.bf16 %v1979
    %v2316 = vunpack.c.h.s8.bf16 %v1980
    %v2317 = vunpack.c.h.s8.bf16 %v1981
    %v2318 = vunpack.c.h.s8.bf16 %v1982
    %v2319 = vunpack.c.h.s8.bf16 %v1983
    %v2320 = vunpack.c.h.s8.bf16 %v1984
    %v2321 = vunpack.c.h.s8.bf16 %v1985
    %v2322 = vunpack.c.h.s8.bf16 %v1986
    %v2323 = vunpack.c.h.s8.bf16 %v1987
    %v2324 = vunpack.c.h.s8.bf16 %v1988
    %v2325 = vunpack.c.h.s8.bf16 %v1989
    %v2326 = vunpack.c.h.s8.bf16 %v1990
    %v2327 = vunpack.c.l.s8.bf16 %v1991
    %v2328 = vunpack.c.l.s8.bf16 %v1992
    %v2329 = vunpack.c.l.s8.bf16 %v1993
    %v2330 = vunpack.c.l.s8.bf16 %v1994
    %v2331 = vunpack.c.l.s8.bf16 %v1995
    %v2332 = vunpack.c.l.s8.bf16 %v1996
    %v2333 = vunpack.c.l.s8.bf16 %v1997
    %v2334 = vunpack.c.l.s8.bf16 %v1998
    %v2335 = vunpack.c.l.s8.bf16 %v1999
    %v2336 = vunpack.c.l.s8.bf16 %v2000
    %v2337 = vunpack.c.l.s8.bf16 %v2001
    %v2338 = vunpack.c.l.s8.bf16 %v2002
    %v2339 = vunpack.c.l.s8.bf16 %v2003
    %v2340 = vunpack.c.l.s8.bf16 %v2004
    %v2341 = vunpack.c.l.s8.bf16 %v2005
    %v2342 = vunpack.c.l.s8.bf16 %v2006
    %v2343 = vunpack.c.l.s8.bf16 %v2007
    %v2344 = vunpack.c.l.s8.bf16 %v2008
    %v2345 = vunpack.c.l.s8.bf16 %v2009
    %v2346 = vunpack.c.l.s8.bf16 %v2010
    %v2347 = vunpack.c.l.s8.bf16 %v2011
    %v2348 = vunpack.c.l.s8.bf16 %v2012
    %v2349 = vunpack.c.l.s8.bf16 %v2013
    %v2350 = vunpack.c.l.s8.bf16 %v2014
    %v2351 = vunpack.c.h.s8.bf16 %v1991
    %v2352 = vunpack.c.h.s8.bf16 %v1992
    %v2353 = vunpack.c.h.s8.bf16 %v1993
    %v2354 = vunpack.c.h.s8.bf16 %v1994
    %v2355 = vunpack.c.h.s8.bf16 %v1995
    %v2356 = vunpack.c.h.s8.bf16 %v1996
    %v2357 = vunpack.c.h.s8.bf16 %v1997
    %v2358 = vunpack.c.h.s8.bf16 %v1998
    %v2359 = vunpack.c.h.s8.bf16 %v1999
    %v2360 = vunpack.c.h.s8.bf16 %v2000
    %v2361 = vunpack.c.h.s8.bf16 %v2001
    %v2362 = vunpack.c.h.s8.bf16 %v2002
    %v2363 = vunpack.c.h.s8.bf16 %v2003
    %v2364 = vunpack.c.h.s8.bf16 %v2004
    %v2365 = vunpack.c.h.s8.bf16 %v2005
    %v2366 = vunpack.c.h.s8.bf16 %v2006
    %v2367 = vunpack.c.h.s8.bf16 %v2007
    %v2368 = vunpack.c.h.s8.bf16 %v2008
    %v2369 = vunpack.c.h.s8.bf16 %v2009
    %v2370 = vunpack.c.h.s8.bf16 %v2010
    %v2371 = vunpack.c.h.s8.bf16 %v2011
    %v2372 = vunpack.c.h.s8.bf16 %v2012
    %v2373 = vunpack.c.h.s8.bf16 %v2013
    %v2374 = vunpack.c.h.s8.bf16 %v2014
    %v2375 = vunpack.c.l.s8.bf16 %v2015
    %v2376 = vunpack.c.l.s8.bf16 %v2016
    %v2377 = vunpack.c.l.s8.bf16 %v2017
    %v2378 = vunpack.c.l.s8.bf16 %v2018
    %v2379 = vunpack.c.l.s8.bf16 %v2019
    %v2380 = vunpack.c.l.s8.bf16 %v2020
    %v2381 = vunpack.c.l.s8.bf16 %v2021
    %v2382 = vunpack.c.l.s8.bf16 %v2022
    %v2383 = vunpack.c.l.s8.bf16 %v2023
    %v2384 = vunpack.c.l.s8.bf16 %v2024
    %v2385 = vunpack.c.l.s8.bf16 %v2025
    %v2386 = vunpack.c.l.s8.bf16 %v2026
    %v2387 = vunpack.c.l.s8.bf16 %v2027
    %v2388 = vunpack.c.l.s8.bf16 %v2028
    %v2389 = vunpack.c.l.s8.bf16 %v2029
    %v2390 = vunpack.c.l.s8.bf16 %v2030
    %v2391 = vunpack.c.l.s8.bf16 %v2031
    %v2392 = vunpack.c.l.s8.bf16 %v2032
    %v2393 = vunpack.c.l.s8.bf16 %v2033
    %v2394 = vunpack.c.l.s8.bf16 %v2034
    %v2395 = vunpack.c.l.s8.bf16 %v2035
    %v2396 = vunpack.c.l.s8.bf16 %v2036
    %v2397 = vunpack.c.l.s8.bf16 %v2037
    %v2398 = vunpack.c.l.s8.bf16 %v2038
    %v2399 = vunpack.c.h.s8.bf16 %v2015
    %v2400 = vunpack.c.h.s8.bf16 %v2016
    %v2401 = vunpack.c.h.s8.bf16 %v2017
    %v2402 = vunpack.c.h.s8.bf16 %v2018
    %v2403 = vunpack.c.h.s8.bf16 %v2019
    %v2404 = vunpack.c.h.s8.bf16 %v2020
    %v2405 = vunpack.c.h.s8.bf16 %v2021
    %v2406 = vunpack.c.h.s8.bf16 %v2022
    %v2407 = vunpack.c.h.s8.bf16 %v2023
    %v2408 = vunpack.c.h.s8.bf16 %v2024
    %v2409 = vunpack.c.h.s8.bf16 %v2025
    %v2410 = vunpack.c.h.s8.bf16 %v2026
    %v2411 = vunpack.c.h.s8.bf16 %v2027
    %v2412 = vunpack.c.h.s8.bf16 %v2028
    %v2413 = vunpack.c.h.s8.bf16 %v2029
    %v2414 = vunpack.c.h.s8.bf16 %v2030
    %v2415 = vunpack.c.h.s8.bf16 %v2031
    %v2416 = vunpack.c.h.s8.bf16 %v2032
    %v2417 = vunpack.c.h.s8.bf16 %v2033
    %v2418 = vunpack.c.h.s8.bf16 %v2034
    %v2419 = vunpack.c.h.s8.bf16 %v2035
    %v2420 = vunpack.c.h.s8.bf16 %v2036
    %v2421 = vunpack.c.h.s8.bf16 %v2037
    %v2422 = vunpack.c.h.s8.bf16 %v2038
    %2423 = vmatprep.subr.bf16.mxu0 %v2040
    %2424 = vmatpush1.bf16.msra.mxu0 %v2039
    %2425 = vmatprep.subr.bf16.mxu0 %v2064
    %2426 = vmatpush1.bf16.msra.mxu0 %v2063
    %2427 = vmatprep.subr.bf16.mxu0 %v2088
    %2428 = vmatpush1.bf16.msra.mxu0 %v2087
    %2429 = vmatprep.subr.bf16.mxu0 %v2112
    %2430 = vmatpush1.bf16.msra.mxu0 %v2111
    %2431 = vmatprep.subr.bf16.mxu0 %v2136
    %2432 = vmatpush1.bf16.msra.mxu0 %v2135
    %2433 = vmatprep.subr.bf16.mxu0 %v2160
    %2434 = vmatpush1.bf16.msra.mxu0 %v2159
    %2435 = vmatprep.subr.bf16.mxu0 %v2184
    %2436 = vmatpush1.bf16.msra.mxu0 %v2183
    %2437 = vmatprep.subr.bf16.mxu0 %v2208
    %2438 = vmatpush1.bf16.msra.mxu0 %v2207
    %2439 = vmatprep.subr.bf16.mxu0 %v2232
    %2440 = vmatpush1.bf16.msra.mxu0 %v2231
    %2441 = vmatprep.subr.bf16.mxu0 %v2256
    %2442 = vmatpush1.bf16.msra.mxu0 %v2255
    %2443 = vmatprep.subr.bf16.mxu0 %v2280
    %2444 = vmatpush1.bf16.msra.mxu0 %v2279
    %2445 = vmatprep.subr.bf16.mxu0 %v2304
    %2446 = vmatpush1.bf16.msra.mxu0 %v2303
    %2447 = vmatprep.subr.bf16.mxu0 %v2328
    %2448 = vmatpush1.bf16.msra.mxu0 %v2327
    %2449 = vmatprep.subr.bf16.mxu0 %v2352
    %2450 = vmatpush1.bf16.msra.mxu0 %v2351
    %2451 = vmatprep.subr.bf16.mxu0 %v2376
    %2452 = vmatpush1.bf16.msra.mxu0 %v2375
    %2453 = vmatprep.subr.bf16.mxu0 %v2400
    %2454 = vmatpush1.bf16.msra.mxu0 %v2399
    %2455 = vmatprep.mubr.bf16.mxu0 %v1373
    %2456 = vmatmul.mubr.bf16.gmra.mrb[0].mxu0 %v1372
    %v2457 = vpop.f32.mrb[0].mxu0
    %v2458 = vadd.f32 0.0, %v2457
    %v2459 = vpop.f32.mrb[0].mxu0
    %v2460 = vadd.f32 0.0, %v2459
    %v2461 = vpop.f32.mrb[0].mxu0
    %v2462 = vpop.f32.mrb[0].mxu0
    %2463 = vdwg.mxu0
    %2464 = vmatprep.subr.bf16.mxu0 %v2042
    %2465 = vmatpush1.bf16.msra.mxu0 %v2041
    %2466 = vmatprep.subr.bf16.mxu0 %v2066
    %2467 = vmatpush1.bf16.msra.mxu0 %v2065
    %2468 = vmatprep.subr.bf16.mxu0 %v2090
    %2469 = vmatpush1.bf16.msra.mxu0 %v2089
    %2470 = vmatprep.subr.bf16.mxu0 %v2114
    %2471 = vmatpush1.bf16.msra.mxu0 %v2113
    %2472 = vmatprep.subr.bf16.mxu0 %v2138
    %2473 = vmatpush1.bf16.msra.mxu0 %v2137
    %2474 = vmatprep.subr.bf16.mxu0 %v2162
    %2475 = vmatpush1.bf16.msra.mxu0 %v2161
    %2476 = vmatprep.subr.bf16.mxu0 %v2186
    %2477 = vmatpush1.bf16.msra.mxu0 %v2185
    %2478 = vmatprep.subr.bf16.mxu0 %v2210
    %2479 = vmatpush1.bf16.msra.mxu0 %v2209
    %2480 = vmatprep.subr.bf16.mxu0 %v2234
    %2481 = vmatpush1.bf16.msra.mxu0 %v2233
    %2482 = vmatprep.subr.bf16.mxu0 %v2258
    %2483 = vmatpush1.bf16.msra.mxu0 %v2257
    %2484 = vmatprep.subr.bf16.mxu0 %v2282
    %2485 = vmatpush1.bf16.msra.mxu0 %v2281
    %2486 = vmatprep.subr.bf16.mxu0 %v2306
    %2487 = vmatpush1.bf16.msra.mxu0 %v2305
    %2488 = vmatprep.subr.bf16.mxu0 %v2330
    %2489 = vmatpush1.bf16.msra.mxu0 %v2329
    %2490 = vmatprep.subr.bf16.mxu0 %v2354
    %2491 = vmatpush1.bf16.msra.mxu0 %v2353
    %2492 = vmatprep.subr.bf16.mxu0 %v2378
    %2493 = vmatpush1.bf16.msra.mxu0 %v2377
    %2494 = vmatprep.subr.bf16.mxu0 %v2402
    %2495 = vmatpush1.bf16.msra.mxu0 %v2401
    %2496 = vmatprep.mubr.bf16.mxu0 %v1373
    %2497 = vmatmul.mubr.bf16.gmra.mrb[0].mxu0 %v1372
    %v2498 = vpop.f32.mrb[0].mxu0
    %v2499 = vadd.f32 0.0, %v2498
    %v2500 = vpop.f32.mrb[0].mxu0
    %v2501 = vadd.f32 0.0, %v2500
    %v2502 = vpop.f32.mrb[0].mxu0
    %v2503 = vpop.f32.mrb[0].mxu0
    %2504 = vdwg.mxu0
    %2505 = vmatprep.subr.bf16.mxu0 %v2044
    %2506 = vmatpush1.bf16.msra.mxu0 %v2043
    %2507 = vmatprep.subr.bf16.mxu0 %v2068
    %2508 = vmatpush1.bf16.msra.mxu0 %v2067
    %2509 = vmatprep.subr.bf16.mxu0 %v2092
    %2510 = vmatpush1.bf16.msra.mxu0 %v2091
    %2511 = vmatprep.subr.bf16.mxu0 %v2116
    %2512 = vmatpush1.bf16.msra.mxu0 %v2115
    %2513 = vmatprep.subr.bf16.mxu0 %v2140
    %2514 = vmatpush1.bf16.msra.mxu0 %v2139
    %2515 = vmatprep.subr.bf16.mxu0 %v2164
    %2516 = vmatpush1.bf16.msra.mxu0 %v2163
    %2517 = vmatprep.subr.bf16.mxu0 %v2188
    %2518 = vmatpush1.bf16.msra.mxu0 %v2187
    %2519 = vmatprep.subr.bf16.mxu0 %v2212
    %2520 = vmatpush1.bf16.msra.mxu0 %v2211
    %2521 = vmatprep.subr.bf16.mxu0 %v2236
    %2522 = vmatpush1.bf16.msra.mxu0 %v2235
    %2523 = vmatprep.subr.bf16.mxu0 %v2260
    %2524 = vmatpush1.bf16.msra.mxu0 %v2259
    %2525 = vmatprep.subr.bf16.mxu0 %v2284
    %2526 = vmatpush1.bf16.msra.mxu0 %v2283
    %2527 = vmatprep.subr.bf16.mxu0 %v2308
    %2528 = vmatpush1.bf16.msra.mxu0 %v2307
    %2529 = vmatprep.subr.bf16.mxu0 %v2332
    %2530 = vmatpush1.bf16.msra.mxu0 %v2331
    %2531 = vmatprep.subr.bf16.mxu0 %v2356
    %2532 = vmatpush1.bf16.msra.mxu0 %v2355
    %2533 = vmatprep.subr.bf16.mxu0 %v2380
    %2534 = vmatpush1.bf16.msra.mxu0 %v2379
    %2535 = vmatprep.subr.bf16.mxu0 %v2404
    %2536 = vmatpush1.bf16.msra.mxu0 %v2403
    %2537 = vmatprep.mubr.bf16.mxu0 %v1373
    %2538 = vmatmul.mubr.bf16.gmra.mrb[0].mxu0 %v1372
    %v2539 = vpop.f32.mrb[0].mxu0
    %v2540 = vadd.f32 0.0, %v2539
    %v2541 = vpop.f32.mrb[0].mxu0
    %v2542 = vadd.f32 0.0, %v2541
    %v2543 = vpop.f32.mrb[0].mxu0
    %v2544 = vpop.f32.mrb[0].mxu0
    %2545 = vdwg.mxu0
    %2546 = vmatprep.subr.bf16.mxu0 %v2046
    %2547 = vmatpush1.bf16.msra.mxu0 %v2045
    %2548 = vmatprep.subr.bf16.mxu0 %v2070
    %2549 = vmatpush1.bf16.msra.mxu0 %v2069
    %2550 = vmatprep.subr.bf16.mxu0 %v2094
    %2551 = vmatpush1.bf16.msra.mxu0 %v2093
    %2552 = vmatprep.subr.bf16.mxu0 %v2118
    %2553 = vmatpush1.bf16.msra.mxu0 %v2117
    %2554 = vmatprep.subr.bf16.mxu0 %v2142
    %2555 = vmatpush1.bf16.msra.mxu0 %v2141
    %2556 = vmatprep.subr.bf16.mxu0 %v2166
    %2557 = vmatpush1.bf16.msra.mxu0 %v2165
    %2558 = vmatprep.subr.bf16.mxu0 %v2190
    %2559 = vmatpush1.bf16.msra.mxu0 %v2189
    %2560 = vmatprep.subr.bf16.mxu0 %v2214
    %2561 = vmatpush1.bf16.msra.mxu0 %v2213
    %2562 = vmatprep.subr.bf16.mxu0 %v2238
    %2563 = vmatpush1.bf16.msra.mxu0 %v2237
    %2564 = vmatprep.subr.bf16.mxu0 %v2262
    %2565 = vmatpush1.bf16.msra.mxu0 %v2261
    %2566 = vmatprep.subr.bf16.mxu0 %v2286
    %2567 = vmatpush1.bf16.msra.mxu0 %v2285
    %2568 = vmatprep.subr.bf16.mxu0 %v2310
    %2569 = vmatpush1.bf16.msra.mxu0 %v2309
    %2570 = vmatprep.subr.bf16.mxu0 %v2334
    %2571 = vmatpush1.bf16.msra.mxu0 %v2333
    %2572 = vmatprep.subr.bf16.mxu0 %v2358
    %2573 = vmatpush1.bf16.msra.mxu0 %v2357
    %2574 = vmatprep.subr.bf16.mxu0 %v2382
    %2575 = vmatpush1.bf16.msra.mxu0 %v2381
    %2576 = vmatprep.subr.bf16.mxu0 %v2406
    %2577 = vmatpush1.bf16.msra.mxu0 %v2405
    %2578 = vmatprep.mubr.bf16.mxu0 %v1373
    %2579 = vmatmul.mubr.bf16.gmra.mrb[0].mxu0 %v1372
    %v2580 = vpop.f32.mrb[0].mxu0
    %v2581 = vadd.f32 0.0, %v2580
    %v2582 = vpop.f32.mrb[0].mxu0
    %v2583 = vadd.f32 0.0, %v2582
    %v2584 = vpop.f32.mrb[0].mxu0
    %v2585 = vpop.f32.mrb[0].mxu0
    %2586 = vdwg.mxu0
    %2587 = vmatprep.subr.bf16.mxu0 %v2048
    %2588 = vmatpush1.bf16.msra.mxu0 %v2047
    %2589 = vmatprep.subr.bf16.mxu0 %v2072
    %2590 = vmatpush1.bf16.msra.mxu0 %v2071
    %2591 = vmatprep.subr.bf16.mxu0 %v2096
    %2592 = vmatpush1.bf16.msra.mxu0 %v2095
    %2593 = vmatprep.subr.bf16.mxu0 %v2120
    %2594 = vmatpush1.bf16.msra.mxu0 %v2119
    %2595 = vmatprep.subr.bf16.mxu0 %v2144
    %2596 = vmatpush1.bf16.msra.mxu0 %v2143
    %2597 = vmatprep.subr.bf16.mxu0 %v2168
    %2598 = vmatpush1.bf16.msra.mxu0 %v2167
    %2599 = vmatprep.subr.bf16.mxu0 %v2192
    %2600 = vmatpush1.bf16.msra.mxu0 %v2191
    %2601 = vmatprep.subr.bf16.mxu0 %v2216
    %2602 = vmatpush1.bf16.msra.mxu0 %v2215
    %2603 = vmatprep.subr.bf16.mxu0 %v2240
    %2604 = vmatpush1.bf16.msra.mxu0 %v2239
    %2605 = vmatprep.subr.bf16.mxu0 %v2264
    %2606 = vmatpush1.bf16.msra.mxu0 %v2263
    %2607 = vmatprep.subr.bf16.mxu0 %v2288
    %2608 = vmatpush1.bf16.msra.mxu0 %v2287
    %2609 = vmatprep.subr.bf16.mxu0 %v2312
    %2610 = vmatpush1.bf16.msra.mxu0 %v2311
    %2611 = vmatprep.subr.bf16.mxu0 %v2336
    %2612 = vmatpush1.bf16.msra.mxu0 %v2335
    %2613 = vmatprep.subr.bf16.mxu0 %v2360
    %2614 = vmatpush1.bf16.msra.mxu0 %v2359
    %2615 = vmatprep.subr.bf16.mxu0 %v2384
    %2616 = vmatpush1.bf16.msra.mxu0 %v2383
    %2617 = vmatprep.subr.bf16.mxu0 %v2408
    %2618 = vmatpush1.bf16.msra.mxu0 %v2407
    %2619 = vmatprep.mubr.bf16.mxu0 %v1373
    %2620 = vmatmul.mubr.bf16.gmra.mrb[0].mxu0 %v1372
    %v2621 = vpop.f32.mrb[0].mxu0
    %v2622 = vadd.f32 0.0, %v2621
    %v2623 = vpop.f32.mrb[0].mxu0
    %v2624 = vadd.f32 0.0, %v2623
    %v2625 = vpop.f32.mrb[0].mxu0
    %v2626 = vpop.f32.mrb[0].mxu0
    %2627 = vdwg.mxu0
    %2628 = vmatprep.subr.bf16.mxu0 %v2050
    %2629 = vmatpush1.bf16.msra.mxu0 %v2049
    %2630 = vmatprep.subr.bf16.mxu0 %v2074
    %2631 = vmatpush1.bf16.msra.mxu0 %v2073
    %2632 = vmatprep.subr.bf16.mxu0 %v2098
    %2633 = vmatpush1.bf16.msra.mxu0 %v2097
    %2634 = vmatprep.subr.bf16.mxu0 %v2122
    %2635 = vmatpush1.bf16.msra.mxu0 %v2121
    %2636 = vmatprep.subr.bf16.mxu0 %v2146
    %2637 = vmatpush1.bf16.msra.mxu0 %v2145
    %2638 = vmatprep.subr.bf16.mxu0 %v2170
    %2639 = vmatpush1.bf16.msra.mxu0 %v2169
    %2640 = vmatprep.subr.bf16.mxu0 %v2194
    %2641 = vmatpush1.bf16.msra.mxu0 %v2193
    %2642 = vmatprep.subr.bf16.mxu0 %v2218
    %2643 = vmatpush1.bf16.msra.mxu0 %v2217
    %2644 = vmatprep.subr.bf16.mxu0 %v2242
    %2645 = vmatpush1.bf16.msra.mxu0 %v2241
    %2646 = vmatprep.subr.bf16.mxu0 %v2266
    %2647 = vmatpush1.bf16.msra.mxu0 %v2265
    %2648 = vmatprep.subr.bf16.mxu0 %v2290
    %2649 = vmatpush1.bf16.msra.mxu0 %v2289
    %2650 = vmatprep.subr.bf16.mxu0 %v2314
    %2651 = vmatpush1.bf16.msra.mxu0 %v2313
    %2652 = vmatprep.subr.bf16.mxu0 %v2338
    %2653 = vmatpush1.bf16.msra.mxu0 %v2337
    %2654 = vmatprep.subr.bf16.mxu0 %v2362
    %2655 = vmatpush1.bf16.msra.mxu0 %v2361
    %2656 = vmatprep.subr.bf16.mxu0 %v2386
    %2657 = vmatpush1.bf16.msra.mxu0 %v2385
    %2658 = vmatprep.subr.bf16.mxu0 %v2410
    %2659 = vmatpush1.bf16.msra.mxu0 %v2409
    %2660 = vmatprep.mubr.bf16.mxu0 %v1373
    %2661 = vmatmul.mubr.bf16.gmra.mrb[0].mxu0 %v1372
    %v2662 = vpop.f32.mrb[0].mxu0
    %v2663 = vadd.f32 0.0, %v2662
    %v2664 = vpop.f32.mrb[0].mxu0
    %v2665 = vadd.f32 0.0, %v2664
    %v2666 = vpop.f32.mrb[0].mxu0
    %v2667 = vpop.f32.mrb[0].mxu0
    %2668 = vdwg.mxu0
    %2669 = vmatprep.subr.bf16.mxu0 %v2052
    %2670 = vmatpush1.bf16.msra.mxu0 %v2051
    %2671 = vmatprep.subr.bf16.mxu0 %v2076
    %2672 = vmatpush1.bf16.msra.mxu0 %v2075
    %2673 = vmatprep.subr.bf16.mxu0 %v2100
    %2674 = vmatpush1.bf16.msra.mxu0 %v2099
    %2675 = vmatprep.subr.bf16.mxu0 %v2124
    %2676 = vmatpush1.bf16.msra.mxu0 %v2123
    %2677 = vmatprep.subr.bf16.mxu0 %v2148
    %2678 = vmatpush1.bf16.msra.mxu0 %v2147
    %2679 = vmatprep.subr.bf16.mxu0 %v2172
    %2680 = vmatpush1.bf16.msra.mxu0 %v2171
    %2681 = vmatprep.subr.bf16.mxu0 %v2196
    %2682 = vmatpush1.bf16.msra.mxu0 %v2195
    %2683 = vmatprep.subr.bf16.mxu0 %v2220
    %2684 = vmatpush1.bf16.msra.mxu0 %v2219
    %2685 = vmatprep.subr.bf16.mxu0 %v2244
    %2686 = vmatpush1.bf16.msra.mxu0 %v2243
    %2687 = vmatprep.subr.bf16.mxu0 %v2268
    %2688 = vmatpush1.bf16.msra.mxu0 %v2267
    %2689 = vmatprep.subr.bf16.mxu0 %v2292
    %2690 = vmatpush1.bf16.msra.mxu0 %v2291
    %2691 = vmatprep.subr.bf16.mxu0 %v2316
    %2692 = vmatpush1.bf16.msra.mxu0 %v2315
    %2693 = vmatprep.subr.bf16.mxu0 %v2340
    %2694 = vmatpush1.bf16.msra.mxu0 %v2339
    %2695 = vmatprep.subr.bf16.mxu0 %v2364
    %2696 = vmatpush1.bf16.msra.mxu0 %v2363
    %2697 = vmatprep.subr.bf16.mxu0 %v2388
    %2698 = vmatpush1.bf16.msra.mxu0 %v2387
    %2699 = vmatprep.subr.bf16.mxu0 %v2412
    %2700 = vmatpush1.bf16.msra.mxu0 %v2411
    %2701 = vmatprep.mubr.bf16.mxu0 %v1373
    %2702 = vmatmul.mubr.bf16.gmra.mrb[0].mxu0 %v1372
    %v2703 = vpop.f32.mrb[0].mxu0
    %v2704 = vadd.f32 0.0, %v2703
    %v2705 = vpop.f32.mrb[0].mxu0
    %v2706 = vadd.f32 0.0, %v2705
    %v2707 = vpop.f32.mrb[0].mxu0
    %v2708 = vpop.f32.mrb[0].mxu0
    %2709 = vdwg.mxu0
    %2710 = vmatprep.subr.bf16.mxu0 %v2054
    %2711 = vmatpush1.bf16.msra.mxu0 %v2053
    %2712 = vmatprep.subr.bf16.mxu0 %v2078
    %2713 = vmatpush1.bf16.msra.mxu0 %v2077
    %2714 = vmatprep.subr.bf16.mxu0 %v2102
    %2715 = vmatpush1.bf16.msra.mxu0 %v2101
    %2716 = vmatprep.subr.bf16.mxu0 %v2126
    %2717 = vmatpush1.bf16.msra.mxu0 %v2125
    %2718 = vmatprep.subr.bf16.mxu0 %v2150
    %2719 = vmatpush1.bf16.msra.mxu0 %v2149
    %2720 = vmatprep.subr.bf16.mxu0 %v2174
    %2721 = vmatpush1.bf16.msra.mxu0 %v2173
    %2722 = vmatprep.subr.bf16.mxu0 %v2198
    %2723 = vmatpush1.bf16.msra.mxu0 %v2197
    %2724 = vmatprep.subr.bf16.mxu0 %v2222
    %2725 = vmatpush1.bf16.msra.mxu0 %v2221
    %2726 = vmatprep.subr.bf16.mxu0 %v2246
    %2727 = vmatpush1.bf16.msra.mxu0 %v2245
    %2728 = vmatprep.subr.bf16.mxu0 %v2270
    %2729 = vmatpush1.bf16.msra.mxu0 %v2269
    %2730 = vmatprep.subr.bf16.mxu0 %v2294
    %2731 = vmatpush1.bf16.msra.mxu0 %v2293
    %2732 = vmatprep.subr.bf16.mxu0 %v2318
    %2733 = vmatpush1.bf16.msra.mxu0 %v2317
    %2734 = vmatprep.subr.bf16.mxu0 %v2342
    %2735 = vmatpush1.bf16.msra.mxu0 %v2341
    %2736 = vmatprep.subr.bf16.mxu0 %v2366
    %2737 = vmatpush1.bf16.msra.mxu0 %v2365
    %2738 = vmatprep.subr.bf16.mxu0 %v2390
    %2739 = vmatpush1.bf16.msra.mxu0 %v2389
    %2740 = vmatprep.subr.bf16.mxu0 %v2414
    %2741 = vmatpush1.bf16.msra.mxu0 %v2413
    %2742 = vmatprep.mubr.bf16.mxu0 %v1373
    %2743 = vmatmul.mubr.bf16.gmra.mrb[0].mxu0 %v1372
    %v2744 = vpop.f32.mrb[0].mxu0
    %v2745 = vadd.f32 0.0, %v2744
    %v2746 = vpop.f32.mrb[0].mxu0
    %v2747 = vadd.f32 0.0, %v2746
    %v2748 = vpop.f32.mrb[0].mxu0
    %v2749 = vpop.f32.mrb[0].mxu0
    %2750 = vdwg.mxu0
    %2751 = vmatprep.subr.bf16.mxu0 %v2056
    %2752 = vmatpush1.bf16.msra.mxu0 %v2055
    %2753 = vmatprep.subr.bf16.mxu0 %v2080
    %2754 = vmatpush1.bf16.msra.mxu0 %v2079
    %2755 = vmatprep.subr.bf16.mxu0 %v2104
    %2756 = vmatpush1.bf16.msra.mxu0 %v2103
    %2757 = vmatprep.subr.bf16.mxu0 %v2128
    %2758 = vmatpush1.bf16.msra.mxu0 %v2127
    %2759 = vmatprep.subr.bf16.mxu0 %v2152
    %2760 = vmatpush1.bf16.msra.mxu0 %v2151
    %2761 = vmatprep.subr.bf16.mxu0 %v2176
    %2762 = vmatpush1.bf16.msra.mxu0 %v2175
    %2763 = vmatprep.subr.bf16.mxu0 %v2200
    %2764 = vmatpush1.bf16.msra.mxu0 %v2199
    %2765 = vmatprep.subr.bf16.mxu0 %v2224
    %2766 = vmatpush1.bf16.msra.mxu0 %v2223
    %2767 = vmatprep.subr.bf16.mxu0 %v2248
    %2768 = vmatpush1.bf16.msra.mxu0 %v2247
    %2769 = vmatprep.subr.bf16.mxu0 %v2272
    %2770 = vmatpush1.bf16.msra.mxu0 %v2271
    %2771 = vmatprep.subr.bf16.mxu0 %v2296
    %2772 = vmatpush1.bf16.msra.mxu0 %v2295
    %2773 = vmatprep.subr.bf16.mxu0 %v2320
    %2774 = vmatpush1.bf16.msra.mxu0 %v2319
    %2775 = vmatprep.subr.bf16.mxu0 %v2344
    %2776 = vmatpush1.bf16.msra.mxu0 %v2343
    %2777 = vmatprep.subr.bf16.mxu0 %v2368
    %2778 = vmatpush1.bf16.msra.mxu0 %v2367
    %2779 = vmatprep.subr.bf16.mxu0 %v2392
    %2780 = vmatpush1.bf16.msra.mxu0 %v2391
    %2781 = vmatprep.subr.bf16.mxu0 %v2416
    %2782 = vmatpush1.bf16.msra.mxu0 %v2415
    %2783 = vmatprep.mubr.bf16.mxu0 %v1373
    %2784 = vmatmul.mubr.bf16.gmra.mrb[0].mxu0 %v1372
    %v2785 = vpop.f32.mrb[0].mxu0
    %v2786 = vadd.f32 0.0, %v2785
    %v2787 = vpop.f32.mrb[0].mxu0
    %v2788 = vadd.f32 0.0, %v2787
    %v2789 = vpop.f32.mrb[0].mxu0
    %v2790 = vpop.f32.mrb[0].mxu0
    %2791 = vdwg.mxu0
    %2792 = vmatprep.subr.bf16.mxu0 %v2058
    %2793 = vmatpush1.bf16.msra.mxu0 %v2057
    %2794 = vmatprep.subr.bf16.mxu0 %v2082
    %2795 = vmatpush1.bf16.msra.mxu0 %v2081
    %2796 = vmatprep.subr.bf16.mxu0 %v2106
    %2797 = vmatpush1.bf16.msra.mxu0 %v2105
    %2798 = vmatprep.subr.bf16.mxu0 %v2130
    %2799 = vmatpush1.bf16.msra.mxu0 %v2129
    %2800 = vmatprep.subr.bf16.mxu0 %v2154
    %2801 = vmatpush1.bf16.msra.mxu0 %v2153
    %2802 = vmatprep.subr.bf16.mxu0 %v2178
    %2803 = vmatpush1.bf16.msra.mxu0 %v2177
    %2804 = vmatprep.subr.bf16.mxu0 %v2202
    %2805 = vmatpush1.bf16.msra.mxu0 %v2201
    %2806 = vmatprep.subr.bf16.mxu0 %v2226
    %2807 = vmatpush1.bf16.msra.mxu0 %v2225
    %2808 = vmatprep.subr.bf16.mxu0 %v2250
    %2809 = vmatpush1.bf16.msra.mxu0 %v2249
    %2810 = vmatprep.subr.bf16.mxu0 %v2274
    %2811 = vmatpush1.bf16.msra.mxu0 %v2273
    %2812 = vmatprep.subr.bf16.mxu0 %v2298
    %2813 = vmatpush1.bf16.msra.mxu0 %v2297
    %2814 = vmatprep.subr.bf16.mxu0 %v2322
    %2815 = vmatpush1.bf16.msra.mxu0 %v2321
    %2816 = vmatprep.subr.bf16.mxu0 %v2346
    %2817 = vmatpush1.bf16.msra.mxu0 %v2345
    %2818 = vmatprep.subr.bf16.mxu0 %v2370
    %2819 = vmatpush1.bf16.msra.mxu0 %v2369
    %2820 = vmatprep.subr.bf16.mxu0 %v2394
    %2821 = vmatpush1.bf16.msra.mxu0 %v2393
    %2822 = vmatprep.subr.bf16.mxu0 %v2418
    %2823 = vmatpush1.bf16.msra.mxu0 %v2417
    %2824 = vmatprep.mubr.bf16.mxu0 %v1373
    %2825 = vmatmul.mubr.bf16.gmra.mrb[0].mxu0 %v1372
    %v2826 = vpop.f32.mrb[0].mxu0
    %v2827 = vadd.f32 0.0, %v2826
    %v2828 = vpop.f32.mrb[0].mxu0
    %v2829 = vadd.f32 0.0, %v2828
    %v2830 = vpop.f32.mrb[0].mxu0
    %v2831 = vpop.f32.mrb[0].mxu0
    %2832 = vdwg.mxu0
    %2833 = vmatprep.subr.bf16.mxu0 %v2060
    %2834 = vmatpush1.bf16.msra.mxu0 %v2059
    %2835 = vmatprep.subr.bf16.mxu0 %v2084
    %2836 = vmatpush1.bf16.msra.mxu0 %v2083
    %2837 = vmatprep.subr.bf16.mxu0 %v2108
    %2838 = vmatpush1.bf16.msra.mxu0 %v2107
    %2839 = vmatprep.subr.bf16.mxu0 %v2132
    %2840 = vmatpush1.bf16.msra.mxu0 %v2131
    %2841 = vmatprep.subr.bf16.mxu0 %v2156
    %2842 = vmatpush1.bf16.msra.mxu0 %v2155
    %2843 = vmatprep.subr.bf16.mxu0 %v2180
    %2844 = vmatpush1.bf16.msra.mxu0 %v2179
    %2845 = vmatprep.subr.bf16.mxu0 %v2204
    %2846 = vmatpush1.bf16.msra.mxu0 %v2203
    %2847 = vmatprep.subr.bf16.mxu0 %v2228
    %2848 = vmatpush1.bf16.msra.mxu0 %v2227
    %2849 = vmatprep.subr.bf16.mxu0 %v2252
    %2850 = vmatpush1.bf16.msra.mxu0 %v2251
    %2851 = vmatprep.subr.bf16.mxu0 %v2276
    %2852 = vmatpush1.bf16.msra.mxu0 %v2275
    %2853 = vmatprep.subr.bf16.mxu0 %v2300
    %2854 = vmatpush1.bf16.msra.mxu0 %v2299
    %2855 = vmatprep.subr.bf16.mxu0 %v2324
    %2856 = vmatpush1.bf16.msra.mxu0 %v2323
    %2857 = vmatprep.subr.bf16.mxu0 %v2348
    %2858 = vmatpush1.bf16.msra.mxu0 %v2347
    %2859 = vmatprep.subr.bf16.mxu0 %v2372
    %2860 = vmatpush1.bf16.msra.mxu0 %v2371
    %2861 = vmatprep.subr.bf16.mxu0 %v2396
    %2862 = vmatpush1.bf16.msra.mxu0 %v2395
    %2863 = vmatprep.subr.bf16.mxu0 %v2420
    %2864 = vmatpush1.bf16.msra.mxu0 %v2419
    %2865 = vmatprep.mubr.bf16.mxu0 %v1373
    %2866 = vmatmul.mubr.bf16.gmra.mrb[0].mxu0 %v1372
    %v2867 = vpop.f32.mrb[0].mxu0
    %v2868 = vadd.f32 0.0, %v2867
    %v2869 = vpop.f32.mrb[0].mxu0
    %v2870 = vadd.f32 0.0, %v2869
    %v2871 = vpop.f32.mrb[0].mxu0
    %v2872 = vpop.f32.mrb[0].mxu0
    %2873 = vdwg.mxu0
    %2874 = vmatprep.subr.bf16.mxu0 %v2062
    %2875 = vmatpush1.bf16.msra.mxu0 %v2061
    %2876 = vmatprep.subr.bf16.mxu0 %v2086
    %2877 = vmatpush1.bf16.msra.mxu0 %v2085
    %2878 = vmatprep.subr.bf16.mxu0 %v2110
    %2879 = vmatpush1.bf16.msra.mxu0 %v2109
    %2880 = vmatprep.subr.bf16.mxu0 %v2134
    %2881 = vmatpush1.bf16.msra.mxu0 %v2133
    %2882 = vmatprep.subr.bf16.mxu0 %v2158
    %2883 = vmatpush1.bf16.msra.mxu0 %v2157
    %2884 = vmatprep.subr.bf16.mxu0 %v2182
    %2885 = vmatpush1.bf16.msra.mxu0 %v2181
    %2886 = vmatprep.subr.bf16.mxu0 %v2206
    %2887 = vmatpush1.bf16.msra.mxu0 %v2205
    %2888 = vmatprep.subr.bf16.mxu0 %v2230
    %2889 = vmatpush1.bf16.msra.mxu0 %v2229
    %2890 = vmatprep.subr.bf16.mxu0 %v2254
    %2891 = vmatpush1.bf16.msra.mxu0 %v2253
    %2892 = vmatprep.subr.bf16.mxu0 %v2278
    %2893 = vmatpush1.bf16.msra.mxu0 %v2277
    %2894 = vmatprep.subr.bf16.mxu0 %v2302
    %2895 = vmatpush1.bf16.msra.mxu0 %v2301
    %2896 = vmatprep.subr.bf16.mxu0 %v2326
    %2897 = vmatpush1.bf16.msra.mxu0 %v2325
    %2898 = vmatprep.subr.bf16.mxu0 %v2350
    %2899 = vmatpush1.bf16.msra.mxu0 %v2349
    %2900 = vmatprep.subr.bf16.mxu0 %v2374
    %2901 = vmatpush1.bf16.msra.mxu0 %v2373
    %2902 = vmatprep.subr.bf16.mxu0 %v2398
    %2903 = vmatpush1.bf16.msra.mxu0 %v2397
    %2904 = vmatprep.subr.bf16.mxu0 %v2422
    %2905 = vmatpush1.bf16.msra.mxu0 %v2421
    %2906 = vmatprep.mubr.bf16.mxu0 %v1373
    %2907 = vmatmul.mubr.bf16.gmra.mrb[0].mxu0 %v1372
    %v2908 = vpop.f32.mrb[0].mxu0
    %v2909 = vadd.f32 0.0, %v2908
    %v2910 = vpop.f32.mrb[0].mxu0
    %v2911 = vadd.f32 0.0, %v2910
    %v2912 = vpop.f32.mrb[0].mxu0
    %v2913 = vpop.f32.mrb[0].mxu0
    %2914 = vdwg.mxu0
    %v2915 = vstv %s112
    %v2916 = vmul.f32 %v2458, %v2915
    %v2917 = vmul.f32 %v2460, %v2915
    %v2918 = vmul.f32 %v2499, %v2915
    %v2919 = vmul.f32 %v2501, %v2915
    %v2920 = vmul.f32 %v2540, %v2915
    %v2921 = vmul.f32 %v2542, %v2915
    %v2922 = vmul.f32 %v2581, %v2915
    %v2923 = vmul.f32 %v2583, %v2915
    %v2924 = vmul.f32 %v2622, %v2915
    %v2925 = vmul.f32 %v2624, %v2915
    %v2926 = vmul.f32 %v2663, %v2915
    %v2927 = vmul.f32 %v2665, %v2915
    %v2928 = vmul.f32 %v2704, %v2915
    %v2929 = vmul.f32 %v2706, %v2915
    %v2930 = vmul.f32 %v2745, %v2915
    %v2931 = vmul.f32 %v2747, %v2915
    %v2932 = vmul.f32 %v2786, %v2915
    %v2933 = vmul.f32 %v2788, %v2915
    %v2934 = vmul.f32 %v2827, %v2915
    %v2935 = vmul.f32 %v2829, %v2915
    %v2936 = vmul.f32 %v2868, %v2915
    %v2937 = vmul.f32 %v2870, %v2915
    %v2938 = vmul.f32 %v2909, %v2915
    %v2939 = vmul.f32 %v2911, %v2915
    %v2940 = vld [vmem:[%s9] sm:$0xff]
    %v2941 = vld [vmem:[%s9 + $0x8] sm:$0xff]
    %v2942 = vld [vmem:[%s9 + $0x10] sm:$0xff]
    %v2946 = vlaneseq
    %v2947 = vshrl.u32 %v2946, 7
    %v2948 = vsub.s32 0, %v2947
    %v2949 = vrot.slane %v2940, %v2948
    %v2950 = vlaneseq
    %v2951 = vshrl.u32 %v2950, 7
    %v2952 = vsub.s32 1, %v2951
    %v2953 = vrot.slane %v2940, %v2952
    %v2954 = vlaneseq
    %v2955 = vshrl.u32 %v2954, 7
    %v2956 = vsub.s32 2, %v2955
    %v2957 = vrot.slane %v2940, %v2956
    %v2958 = vlaneseq
    %v2959 = vshrl.u32 %v2958, 7
    %v2960 = vsub.s32 3, %v2959
    %v2961 = vrot.slane %v2940, %v2960
    %v2962 = vlaneseq
    %v2963 = vshrl.u32 %v2962, 7
    %v2964 = vsub.s32 4, %v2963
    %v2965 = vrot.slane %v2940, %v2964
    %v2966 = vlaneseq
    %v2967 = vshrl.u32 %v2966, 7
    %v2968 = vsub.s32 5, %v2967
    %v2969 = vrot.slane %v2940, %v2968
    %v2970 = vlaneseq
    %v2971 = vshrl.u32 %v2970, 7
    %v2972 = vsub.s32 6, %v2971
    %v2973 = vrot.slane %v2940, %v2972
    %v2974 = vlaneseq
    %v2975 = vshrl.u32 %v2974, 7
    %v2976 = vsub.s32 7, %v2975
    %v2977 = vrot.slane %v2940, %v2976
    %v2978 = vlaneseq
    %v2979 = vshrl.u32 %v2978, 7
    %v2980 = vsub.s32 0, %v2979
    %v2981 = vrot.slane %v2941, %v2980
    %v2982 = vlaneseq
    %v2983 = vshrl.u32 %v2982, 7
    %v2984 = vsub.s32 1, %v2983
    %v2985 = vrot.slane %v2941, %v2984
    %v2986 = vlaneseq
    %v2987 = vshrl.u32 %v2986, 7
    %v2988 = vsub.s32 2, %v2987
    %v2989 = vrot.slane %v2941, %v2988
    %v2990 = vlaneseq
    %v2991 = vshrl.u32 %v2990, 7
    %v2992 = vsub.s32 3, %v2991
    %v2993 = vrot.slane %v2941, %v2992
    %v2994 = vlaneseq
    %v2995 = vshrl.u32 %v2994, 7
    %v2996 = vsub.s32 4, %v2995
    %v2997 = vrot.slane %v2941, %v2996
    %v2998 = vlaneseq
    %v2999 = vshrl.u32 %v2998, 7
    %v3000 = vsub.s32 5, %v2999
    %v3001 = vrot.slane %v2941, %v3000
    %v3002 = vlaneseq
    %v3003 = vshrl.u32 %v3002, 7
    %v3004 = vsub.s32 6, %v3003
    %v3005 = vrot.slane %v2941, %v3004
    %v3006 = vlaneseq
    %v3007 = vshrl.u32 %v3006, 7
    %v3008 = vsub.s32 7, %v3007
    %v3009 = vrot.slane %v2941, %v3008
    %v3010 = vlaneseq
    %v3011 = vshrl.u32 %v3010, 7
    %v3012 = vsub.s32 0, %v3011
    %v3013 = vrot.slane %v2942, %v3012
    %v3014 = vlaneseq
    %v3015 = vshrl.u32 %v3014, 7
    %v3016 = vsub.s32 1, %v3015
    %v3017 = vrot.slane %v2942, %v3016
    %v3018 = vlaneseq
    %v3019 = vshrl.u32 %v3018, 7
    %v3020 = vsub.s32 2, %v3019
    %v3021 = vrot.slane %v2942, %v3020
    %v3022 = vlaneseq
    %v3023 = vshrl.u32 %v3022, 7
    %v3024 = vsub.s32 3, %v3023
    %v3025 = vrot.slane %v2942, %v3024
    %v3026 = vlaneseq
    %v3027 = vshrl.u32 %v3026, 7
    %v3028 = vsub.s32 4, %v3027
    %v3029 = vrot.slane %v2942, %v3028
    %v3030 = vlaneseq
    %v3031 = vshrl.u32 %v3030, 7
    %v3032 = vsub.s32 5, %v3031
    %v3033 = vrot.slane %v2942, %v3032
    %v3034 = vlaneseq
    %v3035 = vshrl.u32 %v3034, 7
    %v3036 = vsub.s32 6, %v3035
    %v3037 = vrot.slane %v2942, %v3036
    %v3038 = vlaneseq
    %v3039 = vshrl.u32 %v3038, 7
    %v3040 = vsub.s32 7, %v3039
    %v3041 = vrot.slane %v2942, %v3040
    %v3066 = vadd.f32 %v2916, %v2949
    %v3067 = vadd.f32 %v2917, %v2953
    %v3068 = vadd.f32 %v2918, %v2957
    %v3069 = vadd.f32 %v2919, %v2961
    %v3070 = vadd.f32 %v2920, %v2965
    %v3071 = vadd.f32 %v2921, %v2969
    %v3072 = vadd.f32 %v2922, %v2973
    %v3073 = vadd.f32 %v2923, %v2977
    %v3074 = vadd.f32 %v2924, %v2981
    %v3075 = vadd.f32 %v2925, %v2985
    %v3076 = vadd.f32 %v2926, %v2989
    %v3077 = vadd.f32 %v2927, %v2993
    %v3078 = vadd.f32 %v2928, %v2997
    %v3079 = vadd.f32 %v2929, %v3001
    %v3080 = vadd.f32 %v2930, %v3005
    %v3081 = vadd.f32 %v2931, %v3009
    %v3082 = vadd.f32 %v2932, %v3013
    %v3083 = vadd.f32 %v2933, %v3017
    %v3084 = vadd.f32 %v2934, %v3021
    %v3085 = vadd.f32 %v2935, %v3025
    %v3086 = vadd.f32 %v2936, %v3029
    %v3087 = vadd.f32 %v2937, %v3033
    %v3088 = vadd.f32 %v2938, %v3037
    %v3089 = vadd.f32 %v2939, %v3041
    %v3090 = vmul.f32 %v3066, 0.5
    %v3091 = vmul.f32 %v3067, 0.5
    %v3092 = vmul.f32 %v3068, 0.5
    %v3093 = vmul.f32 %v3069, 0.5
    %v3094 = vmul.f32 %v3070, 0.5
    %v3095 = vmul.f32 %v3071, 0.5
    %v3096 = vmul.f32 %v3072, 0.5
    %v3097 = vmul.f32 %v3073, 0.5
    %v3098 = vmul.f32 %v3074, 0.5
    %v3099 = vmul.f32 %v3075, 0.5
    %v3100 = vmul.f32 %v3076, 0.5
    %v3101 = vmul.f32 %v3077, 0.5
    %v3102 = vmul.f32 %v3078, 0.5
    %v3103 = vmul.f32 %v3079, 0.5
    %v3104 = vmul.f32 %v3080, 0.5
    %v3105 = vmul.f32 %v3081, 0.5
    %v3106 = vmul.f32 %v3082, 0.5
    %v3107 = vmul.f32 %v3083, 0.5
    %v3108 = vmul.f32 %v3084, 0.5
    %v3109 = vmul.f32 %v3085, 0.5
    %v3110 = vmul.f32 %v3086, 0.5
    %v3111 = vmul.f32 %v3087, 0.5
    %v3112 = vmul.f32 %v3088, 0.5
    %v3113 = vmul.f32 %v3089, 0.5
    %v3114 = vtanh.pop %v3090
    %v3115 = vtanh.pop %v3091
    %v3116 = vtanh.pop %v3092
    %v3117 = vtanh.pop %v3093
    %v3118 = vtanh.pop %v3094
    %v3119 = vtanh.pop %v3095
    %v3120 = vtanh.pop %v3096
    %v3121 = vtanh.pop %v3097
    %v3122 = vtanh.pop %v3098
    %v3123 = vtanh.pop %v3099
    %v3124 = vtanh.pop %v3100
    %v3125 = vtanh.pop %v3101
    %v3126 = vtanh.pop %v3102
    %v3127 = vtanh.pop %v3103
    %v3128 = vtanh.pop %v3104
    %v3129 = vtanh.pop %v3105
    %v3130 = vtanh.pop %v3106
    %v3131 = vtanh.pop %v3107
    %v3132 = vtanh.pop %v3108
    %v3133 = vtanh.pop %v3109
    %v3134 = vtanh.pop %v3110
    %v3135 = vtanh.pop %v3111
    %v3136 = vtanh.pop %v3112
    %v3137 = vtanh.pop %v3113
    %v3138 = vadd.f32 %v3114, 1.0
    %v3139 = vadd.f32 %v3115, 1.0
    %v3140 = vadd.f32 %v3116, 1.0
    %v3141 = vadd.f32 %v3117, 1.0
    %v3142 = vadd.f32 %v3118, 1.0
    %v3143 = vadd.f32 %v3119, 1.0
    %v3144 = vadd.f32 %v3120, 1.0
    %v3145 = vadd.f32 %v3121, 1.0
    %v3146 = vadd.f32 %v3122, 1.0
    %v3147 = vadd.f32 %v3123, 1.0
    %v3148 = vadd.f32 %v3124, 1.0
    %v3149 = vadd.f32 %v3125, 1.0
    %v3150 = vadd.f32 %v3126, 1.0
    %v3151 = vadd.f32 %v3127, 1.0
    %v3152 = vadd.f32 %v3128, 1.0
    %v3153 = vadd.f32 %v3129, 1.0
    %v3154 = vadd.f32 %v3130, 1.0
    %v3155 = vadd.f32 %v3131, 1.0
    %v3156 = vadd.f32 %v3132, 1.0
    %v3157 = vadd.f32 %v3133, 1.0
    %v3158 = vadd.f32 %v3134, 1.0
    %v3159 = vadd.f32 %v3135, 1.0
    %v3160 = vadd.f32 %v3136, 1.0
    %v3161 = vadd.f32 %v3137, 1.0
    %v3162 = vmul.f32 %v3138, 0.5
    %v3163 = vmul.f32 %v3139, 0.5
    %v3164 = vmul.f32 %v3140, 0.5
    %v3165 = vmul.f32 %v3141, 0.5
    %v3166 = vmul.f32 %v3142, 0.5
    %v3167 = vmul.f32 %v3143, 0.5
    %v3168 = vmul.f32 %v3144, 0.5
    %v3169 = vmul.f32 %v3145, 0.5
    %v3170 = vmul.f32 %v3146, 0.5
    %v3171 = vmul.f32 %v3147, 0.5
    %v3172 = vmul.f32 %v3148, 0.5
    %v3173 = vmul.f32 %v3149, 0.5
    %v3174 = vmul.f32 %v3150, 0.5
    %v3175 = vmul.f32 %v3151, 0.5
    %v3176 = vmul.f32 %v3152, 0.5
    %v3177 = vmul.f32 %v3153, 0.5
    %v3178 = vmul.f32 %v3154, 0.5
    %v3179 = vmul.f32 %v3155, 0.5
    %v3180 = vmul.f32 %v3156, 0.5
    %v3181 = vmul.f32 %v3157, 0.5
    %v3182 = vmul.f32 %v3158, 0.5
    %v3183 = vmul.f32 %v3159, 0.5
    %v3184 = vmul.f32 %v3160, 0.5
    %v3185 = vmul.f32 %v3161, 0.5
    %v3210 = vcombine.low %v3162, %v3163
    %v3211 = vcombine.low %v3164, %v3165
    %v3212 = vcombine.low %v3166, %v3167
    %v3213 = vcombine.low %v3168, %v3169
    %v3215 = vunpack.c.l.s4 1966171168
    %v3216 = vunpack.c.0.s8 %v3215
    %v3217 = vlaneseq
    %v3218 = vshrl.u32 %v3217, 7
    %v3219 = vsub.s32 %v3216, %v3218
    %v3220 = vrot.slane %v3210, %v3219
    %v3222 = vunpack.c.l.s4 1966171168
    %v3223 = vunpack.c.0.s8 %v3222
    %v3224 = vlaneseq
    %v3225 = vshrl.u32 %v3224, 7
    %v3226 = vsub.s32 %v3223, %v3225
    %v3227 = vrot.slane %v3211, %v3226
    %v3229 = vunpack.c.l.s4 1966171168
    %v3230 = vunpack.c.0.s8 %v3229
    %v3231 = vlaneseq
    %v3232 = vshrl.u32 %v3231, 7
    %v3233 = vsub.s32 %v3230, %v3232
    %v3234 = vrot.slane %v3212, %v3233
    %v3236 = vunpack.c.l.s4 1966171168
    %v3237 = vunpack.c.0.s8 %v3236
    %v3238 = vlaneseq
    %v3239 = vshrl.u32 %v3238, 7
    %v3240 = vsub.s32 %v3237, %v3239
    %v3241 = vrot.slane %v3213, %v3240
    %v3242 = vcombine.low %v3220, %v3227
    %v3243 = vcombine.low %v3234, %v3241
    %v3245 = vunpack.c.l.s4 1966171168
    %v3246 = vunpack.c.0.s8 %v3245
    %v3247 = vlaneseq
    %v3248 = vshrl.u32 %v3247, 7
    %v3249 = vsub.s32 %v3246, %v3248
    %v3250 = vrot.slane %v3242, %v3249
    %v3252 = vunpack.c.l.s4 1966171168
    %v3253 = vunpack.c.0.s8 %v3252
    %v3254 = vlaneseq
    %v3255 = vshrl.u32 %v3254, 7
    %v3256 = vsub.s32 %v3253, %v3255
    %v3257 = vrot.slane %v3243, %v3256
    %v3258 = vcombine.low %v3250, %v3257
    %v3259 = vcombine.low %v3170, %v3171
    %v3260 = vcombine.low %v3172, %v3173
    %v3261 = vcombine.low %v3174, %v3175
    %v3262 = vcombine.low %v3176, %v3177
    %v3264 = vunpack.c.l.s4 1966171168
    %v3265 = vunpack.c.0.s8 %v3264
    %v3266 = vlaneseq
    %v3267 = vshrl.u32 %v3266, 7
    %v3268 = vsub.s32 %v3265, %v3267
    %v3269 = vrot.slane %v3259, %v3268
    %v3271 = vunpack.c.l.s4 1966171168
    %v3272 = vunpack.c.0.s8 %v3271
    %v3273 = vlaneseq
    %v3274 = vshrl.u32 %v3273, 7
    %v3275 = vsub.s32 %v3272, %v3274
    %v3276 = vrot.slane %v3260, %v3275
    %v3278 = vunpack.c.l.s4 1966171168
    %v3279 = vunpack.c.0.s8 %v3278
    %v3280 = vlaneseq
    %v3281 = vshrl.u32 %v3280, 7
    %v3282 = vsub.s32 %v3279, %v3281
    %v3283 = vrot.slane %v3261, %v3282
    %v3285 = vunpack.c.l.s4 1966171168
    %v3286 = vunpack.c.0.s8 %v3285
    %v3287 = vlaneseq
    %v3288 = vshrl.u32 %v3287, 7
    %v3289 = vsub.s32 %v3286, %v3288
    %v3290 = vrot.slane %v3262, %v3289
    %v3291 = vcombine.low %v3269, %v3276
    %v3292 = vcombine.low %v3283, %v3290
    %v3294 = vunpack.c.l.s4 1966171168
    %v3295 = vunpack.c.0.s8 %v3294
    %v3296 = vlaneseq
    %v3297 = vshrl.u32 %v3296, 7
    %v3298 = vsub.s32 %v3295, %v3297
    %v3299 = vrot.slane %v3291, %v3298
    %v3301 = vunpack.c.l.s4 1966171168
    %v3302 = vunpack.c.0.s8 %v3301
    %v3303 = vlaneseq
    %v3304 = vshrl.u32 %v3303, 7
    %v3305 = vsub.s32 %v3302, %v3304
    %v3306 = vrot.slane %v3292, %v3305
    %v3307 = vcombine.low %v3299, %v3306
    %v3308 = vcombine.low %v3178, %v3179
    %v3309 = vcombine.low %v3180, %v3181
    %v3310 = vcombine.low %v3182, %v3183
    %v3311 = vcombine.low %v3184, %v3185
    %v3313 = vunpack.c.l.s4 1966171168
    %v3314 = vunpack.c.0.s8 %v3313
    %v3315 = vlaneseq
    %v3316 = vshrl.u32 %v3315, 7
    %v3317 = vsub.s32 %v3314, %v3316
    %v3318 = vrot.slane %v3308, %v3317
    %v3320 = vunpack.c.l.s4 1966171168
    %v3321 = vunpack.c.0.s8 %v3320
    %v3322 = vlaneseq
    %v3323 = vshrl.u32 %v3322, 7
    %v3324 = vsub.s32 %v3321, %v3323
    %v3325 = vrot.slane %v3309, %v3324
    %v3327 = vunpack.c.l.s4 1966171168
    %v3328 = vunpack.c.0.s8 %v3327
    %v3329 = vlaneseq
    %v3330 = vshrl.u32 %v3329, 7
    %v3331 = vsub.s32 %v3328, %v3330
    %v3332 = vrot.slane %v3310, %v3331
    %v3334 = vunpack.c.l.s4 1966171168
    %v3335 = vunpack.c.0.s8 %v3334
    %v3336 = vlaneseq
    %v3337 = vshrl.u32 %v3336, 7
    %v3338 = vsub.s32 %v3335, %v3337
    %v3339 = vrot.slane %v3311, %v3338
    %v3340 = vcombine.low %v3318, %v3325
    %v3341 = vcombine.low %v3332, %v3339
    %v3343 = vunpack.c.l.s4 1966171168
    %v3344 = vunpack.c.0.s8 %v3343
    %v3345 = vlaneseq
    %v3346 = vshrl.u32 %v3345, 7
    %v3347 = vsub.s32 %v3344, %v3346
    %v3348 = vrot.slane %v3340, %v3347
    %v3350 = vunpack.c.l.s4 1966171168
    %v3351 = vunpack.c.0.s8 %v3350
    %v3352 = vlaneseq
    %v3353 = vshrl.u32 %v3352, 7
    %v3354 = vsub.s32 %v3351, %v3353
    %v3355 = vrot.slane %v3341, %v3354
    %v3356 = vcombine.low %v3348, %v3355
    %3360 = vst [vmem:[%s10] sm:$0xff] %v3258
    %3361 = vst [vmem:[%s10 + $0x8] sm:$0xff] %v3307
    %3362 = vst [vmem:[%s10 + $0x10] sm:$0xff] %v3356
    // Predicated region
    $region62: #{net_forward.1} parent=1 // pred_check
      _
    $region63: #{net_forward.1} parent=1 // pred_check_branch
      %3364 = sbr.rel (0) target = $region65
    $region64: #{net_forward.1} parent=1 // pred_region
      _
    $region65: #{net_forward.1} parent=1 // pred_fallthru
      _
    // Predicated region
    $region66: #{net_forward.1} parent=1 // pred_check
      _
    $region67: #{net_forward.1} parent=1 // pred_check_branch
      %3366 = sbr.rel (0) target = $region69
    $region68: #{net_forward.1} parent=1 // pred_region
      _
    $region69: #{net_forward.1} parent=1 // pred_fallthru
      _
    // Predicated region
    $region70: #{net_forward.1} parent=1 // pred_check
      _
    $region71: #{net_forward.1} parent=1 // pred_check_branch
      %3368 = sbr.rel (0) target = $region73
    $region72: #{net_forward.1} parent=1 // pred_region
      _
    $region73: #{net_forward.1} parent=1 // pred_fallthru
      _
    // Predicated region
    $region74: #{net_forward.1} parent=1 // pred_check
      _
    $region75: #{net_forward.1} parent=1 // pred_check_branch
      %3370 = sbr.rel (0) target = $region77
    $region76: #{net_forward.1} parent=1 // pred_region
      _
    $region77: #{net_forward.1} parent=1 // pred_fallthru
      _
    // Predicated region
    $region78: #{net_forward.1} parent=1 // pred_check
      _
    $region79: #{net_forward.1} parent=1 // pred_check_branch
      %3372 = sbr.rel (0) target = $region81
    $region80: #{net_forward.1} parent=1 // pred_region
      _
    $region81: #{net_forward.1} parent=1 // pred_fallthru
      _
    // Predicated region
    $region82: #{net_forward.1} parent=1 // pred_check
      _
    $region83: #{net_forward.1} parent=1 // pred_check_branch
      %3374 = sbr.rel (0) target = $region85
    $region84: #{net_forward.1} parent=1 // pred_region
      _
    $region85: #{net_forward.1} parent=1 // pred_fallthru
      _
    // Predicated region
    $region86: #{net_forward.1} parent=1 // pred_check
      _
    $region87: #{net_forward.1} parent=1 // pred_check_branch
      %3376 = sbr.rel (0) target = $region89
    $region88: #{net_forward.1} parent=1 // pred_region
      _
    $region89: #{net_forward.1} parent=1 // pred_fallthru
      _
    // Predicated region
    $region90: #{net_forward.1} parent=1 // pred_check
      _
    $region91: #{net_forward.1} parent=1 // pred_check_branch
      %3378 = sbr.rel (0) target = $region93
    $region92: #{net_forward.1} parent=1 // pred_region
      _
    $region93: #{net_forward.1} parent=1 // pred_fallthru
      _
    %3379 = vsyncpa [#allocation3], 1
    %3380 = vsyncpa [#allocation7], 1
    %3381 = vsyncpa [#allocation10], 1
    %3382 = vsyncpa [#allocation4], 1

</llo_original>
